<compile_context>
chip_gen: v5e
topology: v5e:2x2
jax: 0.10.0
libtpu: 0.0.40
codegen_flags: <defaults>
</compile_context>

<pallas_src>
import functools
import math

import jax
import jax.numpy as jnp
from jax import lax
from jax.experimental import pallas as pl
from jax.experimental.pallas import tpu as pltpu


def _se_aspp_kernel(x_ref, w1_ref, w234_ref, w5_ref, bbr_ref,
                    wse1_ref, bse1_ref, wse2_ref, bse2_ref,
                    wcat_ref, bcat2_ref, o_ref,
                    xp_scr, col_scr, cat_scr, pool_scr,
                    *, dilations, pad):
    _, H, W, Cin = x_ref.shape
    Cout = w1_ref.shape[1]
    HW = H * W
    Ho, Wo = H // 2, W // 2
    Hp, Wp = H + 2 * pad, W + 2 * pad

    x = x_ref[0]                                   # (H, W, Cin)
    x2d = x.reshape(HW, Cin)                       # layout-preserving merge (W % 8 == 0)

    # ---- shared zero-padded halo for the dilated branches --------------------
    # Only the border bands are zeroed; the interior is written directly from x.
    zrow = jnp.zeros((pad, Wp, Cin), jnp.float32)
    zcol = jnp.zeros((H, pad, Cin), jnp.float32)
    xp_scr[0:pad, :, :] = zrow
    xp_scr[pad + H:Hp, :, :] = zrow
    xp_scr[pad:pad + H, 0:pad, :] = zcol
    xp_scr[pad:pad + H, pad + W:Wp, :] = zcol
    xp_scr[pad:pad + H, pad:pad + W, :] = x

    means = [None] * 5                             # per-branch (1, Cout) SE-pool means

    # ---- branch1: 1x1 conv (BN folded) + ReLU --------------------------------
    y1 = jnp.dot(x2d, w1_ref[...], preferred_element_type=jnp.float32)
    y1 = jnp.maximum(y1 + bbr_ref[0], 0.0)
    cat_scr[0] = y1
    means[0] = jnp.mean(y1, axis=0, keepdims=True)

    # ---- branches 2-4: dilated 3x3 convs, one big (HW, 9*Cin) matmul each ----
    for bi, d in enumerate(dilations):
        # Build the im2col slab: 9 shifted windows stacked along the lane axis.
        for tap in range(9):
            dy, dx = tap // 3, tap % 3
            y0 = pad + (dy - 1) * d
            x0 = pad + (dx - 1) * d
            win = xp_scr[y0:y0 + H, x0:x0 + W, :]          # (H, W, Cin)
            col_scr[:, tap * Cin:(tap + 1) * Cin] = win.reshape(HW, Cin)
        yb = jnp.dot(col_scr[...], w234_ref[bi],
                     preferred_element_type=jnp.float32)    # K = 9*Cin
        yb = jnp.maximum(yb + bbr_ref[bi + 1], 0.0)
        cat_scr[bi + 1] = yb
        means[bi + 1] = jnp.mean(yb, axis=0, keepdims=True)

    # ---- branch5: global average -> 1x1 conv (BN folded) + ReLU --------------
    # (bilinear upsample of a 1x1 map with align_corners=True is an exact broadcast,
    #  so the branch is spatially constant; keep only the (1, Cout) row.)
    xm = jnp.mean(x2d, axis=0, keepdims=True)                       # (1, Cin)
    g = jnp.dot(xm, w5_ref[...], preferred_element_type=jnp.float32)
    g = jnp.maximum(g + bbr_ref[4], 0.0)                            # (1, Cout)
    means[4] = g

    # ---- SE squeeze/excite (decomposed per branch block, no concat) ----------
    hidden = bse1_ref[...]                                          # (1, Cse)
    for b in range(5):
        hidden = hidden + jnp.dot(means[b], wse1_ref[b],
                                  preferred_element_type=jnp.float32)
    hidden = jnp.maximum(hidden, 0.0)

    def se_scale(b):                                                # (1, Cout)
        return jax.nn.sigmoid(
            jnp.dot(hidden, wse2_ref[b], preferred_element_type=jnp.float32)
            + bse2_ref[b])

    # ---- conv_cat (BN folded) + ReLU, SE gating fused per block --------------
    r = None
    for b in range(4):
        gated = cat_scr[b] * se_scale(b)                            # (HW, Cout)
        part = jnp.dot(gated, wcat_ref[b], preferred_element_type=jnp.float32)
        r = part if r is None else r + part
    # branch5 is spatially constant: its gated contribution is a single row.
    row5 = jnp.dot(g * se_scale(4), wcat_ref[4],
                   preferred_element_type=jnp.float32)              # (1, Cout)
    r = jnp.maximum(r + row5 + bcat2_ref[...], 0.0)                 # (HW, Cout)

    # ---- 2x2 max-pool, stride 2 ----------------------------------------------
    # Row pooling: split the (major) H factor — layout preserving.
    r4 = r.reshape(Ho, 2, W, Cout)
    rh = jnp.maximum(r4[:, 0, :, :], r4[:, 1, :, :])                # (Ho, W, Cout)
    # Column pooling: even/odd strided reads from a VMEM scratch.
    pool_scr[...] = rh.reshape(Ho * W, Cout)
    even = pool_scr[pl.ds(0, Ho * Wo, 2), :]
    odd = pool_scr[pl.ds(1, Ho * Wo, 2), :]
    o_ref[0] = jnp.maximum(even, odd).reshape(Ho, Wo, Cout)


def se_aspp_pallas(x_nhwc, kp, *, dilations, pad):
    """x_nhwc: (N, H, W, Cin) -> (N, H//2, W//2, Cout). Fully fused SE_ASPP forward."""
    N, H, W, Cin = x_nhwc.shape
    Cout = kp["w1"].shape[1]
    Cse = kp["wse1"].shape[2]
    Ho, Wo = H // 2, W // 2
    assert H % 2 == 0 and W % 2 == 0 and W % 8 == 0

    kernel = functools.partial(_se_aspp_kernel, dilations=dilations, pad=pad)
    b2 = lambda n: (0, 0)
    b3 = lambda n: (0, 0, 0)

    return pl.pallas_call(
        kernel,
        out_shape=jax.ShapeDtypeStruct((N, Ho, Wo, Cout), jnp.float32),
        grid_spec=pltpu.PrefetchScalarGridSpec(
            num_scalar_prefetch=0,
            grid=(N,),
            in_specs=[
                pl.BlockSpec((1, H, W, Cin), lambda n: (n, 0, 0, 0)),
                pl.BlockSpec((Cin, Cout), b2),            # w1   (branch1, BN folded)
                pl.BlockSpec((3, 9 * Cin, Cout), b3),     # w2/3/4 im2col (BN folded)
                pl.BlockSpec((Cin, Cout), b2),            # w5   (branch5, BN folded)
                pl.BlockSpec((5, 1, Cout), b3),           # folded branch biases
                pl.BlockSpec((5, Cout, Cse), b3),         # SE conv1 weight (per block)
                pl.BlockSpec((1, Cse), b2),               # SE conv1 bias
                pl.BlockSpec((5, Cse, Cout), b3),         # SE conv2 weight (per block)
                pl.BlockSpec((5, 1, Cout), b3),           # SE conv2 bias (per block)
                pl.BlockSpec((5, Cout, Cout), b3),        # conv_cat weight (per block)
                pl.BlockSpec((1, Cout), b2),              # conv_cat bias (BN folded)
            ],
            out_specs=pl.BlockSpec((1, Ho, Wo, Cout), lambda n: (n, 0, 0, 0)),
            scratch_shapes=[
                pltpu.VMEM((H + 2 * pad, W + 2 * pad, Cin), jnp.float32),  # padded halo
                pltpu.VMEM((H * W, 9 * Cin), jnp.float32),                 # im2col slab
                pltpu.VMEM((4, H * W, Cout), jnp.float32),                 # branch maps
                pltpu.VMEM((H // 2 * W, Cout), jnp.float32),               # pooling tmp
            ]),
        compiler_params=pltpu.CompilerParams(
            dimension_semantics=("parallel",)),
    )(x_nhwc, kp["w1"], kp["w234"], kp["w5"], kp["bbr"],
      kp["wse1"], kp["bse1"], kp["wse2"], kp["bse2"],
      kp["wcat"], kp["bcat2"])


class SE_ASPP:
    """JAX/Pallas port of SE_ASPP (inference semantics: BatchNorms folded)."""

    def __init__(self, dim_in, dim_out, rate=1, key=jax.random.PRNGKey(0)):
        self.dim_in = dim_in
        self.dim_out = dim_out
        self.rate = rate
        self.dilations = (6 * rate, 12 * rate, 18 * rate)
        self.pad = 18 * rate
        c5 = 5 * dim_out
        cse = c5 // 16
        assert cse >= 1, "dim_out*5 must be >= 16 for the SE bottleneck"
        keys = jax.random.split(key, 16)

        def conv_init(k, cout, cin, ksz):
            bound = 1.0 / math.sqrt(cin * ksz * ksz)
            kw, kb = jax.random.split(k)
            w = jax.random.uniform(kw, (cout, cin, ksz, ksz), jnp.float32, -bound, bound)
            b = jax.random.uniform(kb, (cout,), jnp.float32, -bound, bound)
            return w, b

        def bn_init(k, c):
            k1, k2, k3, k4 = jax.random.split(k, 4)
            gamma = jax.random.uniform(k1, (c,), jnp.float32, 0.8, 1.2)
            beta = jax.random.uniform(k2, (c,), jnp.float32, -0.1, 0.1)
            mean = 0.1 * jax.random.normal(k3, (c,), jnp.float32)
            var = jax.random.uniform(k4, (c,), jnp.float32, 0.8, 1.2)
            return gamma, beta, mean, var

        # raw (PyTorch-layout) params, kept for the pure-JAX reference check
        self.raw = {
            "branch1": conv_init(keys[0], dim_out, dim_in, 1) + bn_init(keys[1], dim_out),
            "branch2": conv_init(keys[2], dim_out, dim_in, 3) + bn_init(keys[3], dim_out),
            "branch3": conv_init(keys[4], dim_out, dim_in, 3) + bn_init(keys[5], dim_out),
            "branch4": conv_init(keys[6], dim_out, dim_in, 3) + bn_init(keys[7], dim_out),
            "branch5": conv_init(keys[8], dim_out, dim_in, 1) + bn_init(keys[9], dim_out),
            "conv_cat": conv_init(keys[10], dim_out, c5, 1) + bn_init(keys[11], dim_out),
            "se1": conv_init(keys[12], cse, c5, 1),
            "se2": conv_init(keys[13], c5, cse, 1),
        }

        def fold(p, eps=1e-5):
            w, b, gamma, beta, mean, var = p
            scale = gamma / jnp.sqrt(var + eps)
            return w * scale[:, None, None, None], (b - mean) * scale + beta

        w1, b1 = fold(self.raw["branch1"])
        w2, b2 = fold(self.raw["branch2"])
        w3, b3 = fold(self.raw["branch3"])
        w4, b4 = fold(self.raw["branch4"])
        w5, b5 = fold(self.raw["branch5"])
        wc, bc = fold(self.raw["conv_cat"])

        def to_1x1(w):            # (Cout, Cin, 1, 1) -> (Cin, Cout)
            return jnp.transpose(w[:, :, 0, 0], (1, 0))

        def to_im2col(w):         # (Cout, Cin, 3, 3) -> (9*Cin, Cout), tap-major rows
            return jnp.transpose(w, (2, 3, 1, 0)).reshape(9 * w.shape[1], w.shape[0])

        wse1 = to_1x1(self.raw["se1"][0]).reshape(5, dim_out, cse)          # (5,Cout,Cse)
        wse2 = jnp.transpose(
            to_1x1(self.raw["se2"][0]).reshape(cse, 5, dim_out), (1, 0, 2))  # (5,Cse,Cout)
        wcat = to_1x1(wc).reshape(5, dim_out, dim_out)                       # (5,Cout,Cout)

        self.kp = {
            "w1": to_1x1(w1),
            "w234": jnp.stack([to_im2col(w2), to_im2col(w3), to_im2col(w4)], axis=0),
            "w5": to_1x1(w5),
            "bbr": jnp.stack([b1, b2, b3, b4, b5], axis=0).reshape(5, 1, dim_out),
            "wse1": wse1,
            "bse1": self.raw["se1"][1].reshape(1, cse),
            "wse2": wse2,
            "bse2": self.raw["se2"][1].reshape(5, 1, dim_out),
            "wcat": wcat,
            "bcat2": bc.reshape(1, dim_out),
        }

    def __call__(self, x):
        # x: (N, C, H, W), PyTorch NCHW-facing API
        assert x.shape[1] == self.dim_in
        x_nhwc = jnp.transpose(x, (0, 2, 3, 1))
        y_nhwc = se_aspp_pallas(x_nhwc, self.kp,
                                dilations=self.dilations, pad=self.pad)
        return jnp.transpose(y_nhwc, (0, 3, 1, 2))


def _reference_forward(mod: SE_ASPP, x):
    """Pure-JAX (lax conv) reference mirroring the PyTorch forward (eval-mode BN)."""
    eps = 1e-5

    def conv(v, w, b, dilation=1, padding=0):
        y = lax.conv_general_dilated(
            v, w, window_strides=(1, 1),
            padding=((padding, padding), (padding, padding)),
            rhs_dilation=(dilation, dilation),
            dimension_numbers=("NCHW", "OIHW", "NCHW"),
            precision=lax.Precision.HIGHEST)
        return y + b[None, :, None, None]

    def bn(v, gamma, beta, mean, var):
        inv = gamma / jnp.sqrt(var + eps)
        return (v - mean[None, :, None, None]) * inv[None, :, None, None] \
            + beta[None, :, None, None]

    relu = lambda v: jnp.maximum(v, 0.0)
    N, _, H, W = x.shape
    p = mod.raw

    def branch(name, dilation=1, padding=0):
        w, b, gamma, beta, mean, var = p[name]
        return relu(bn(conv(x, w, b, dilation, padding), gamma, beta, mean, var))

    d1, d2, d3 = mod.dilations
    b1 = branch("branch1")
    b2 = branch("branch2", d1, d1)
    b3 = branch("branch3", d2, d2)
    b4 = branch("branch4", d3, d3)

    gf = jnp.mean(x, axis=(2, 3), keepdims=True)
    w5, bb5, g5, be5, m5, v5 = p["branch5"]
    gf = relu(bn(conv(gf, w5, bb5), g5, be5, m5, v5))
    gf = jnp.broadcast_to(gf, (N, mod.dim_out, H, W))   # bilinear from 1x1 == broadcast

    cat = jnp.concatenate([b1, b2, b3, b4, gf], axis=1)

    se = jnp.mean(cat, axis=(2, 3), keepdims=True)
    se = relu(conv(se, *p["se1"]))
    se = jax.nn.sigmoid(conv(se, *p["se2"]))
    gated = cat * se

    wc, bc, gc, bec, mc, vc = p["conv_cat"]
    r = relu(bn(conv(gated, wc, bc), gc, bec, mc, vc))
    r = lax.reduce_window(r, -jnp.inf, lax.max,
                          window_dimensions=(1, 1, 2, 2),
                          window_strides=(1, 1, 2, 2),
                          padding="VALID")
    return r


if __name__ == "__main__":
    key = jax.random.PRNGKey(0)
    xk, pk = jax.random.split(key)
    N, Cin, H, W = 2, 32, 16, 16
    dim_out = 16
    x = jax.random.normal(xk, (N, Cin, H, W), jnp.float32)

    mod = SE_ASPP(dim_in=Cin, dim_out=dim_out, rate=1, key=pk)

    out = jax.jit(mod.__call__)(x)
    out = jax.block_until_ready(out)

    ref = _reference_forward(mod, x)
    assert out.shape == (N, dim_out, H // 2, W // 2), out.shape
    max_err = float(jnp.max(jnp.abs(out - ref)))
    assert jnp.allclose(out, ref, atol=1e-3, rtol=1e-3), f"mismatch vs reference: {max_err}"

    print("KERNEL_OK")
</pallas_src>

<mosaic_0001>
module attributes {stable_mosaic.version = 11 : i64} {
  func.func @_se_aspp_kernel(%arg0: i32, %arg1: memref<1x16x16x32xf32, #tpu.memory_space<vmem>>, %arg2: memref<32x16xf32, #tpu.memory_space<vmem>>, %arg3: memref<3x288x16xf32, #tpu.memory_space<vmem>>, %arg4: memref<32x16xf32, #tpu.memory_space<vmem>>, %arg5: memref<5x1x16xf32, #tpu.memory_space<vmem>>, %arg6: memref<5x16x5xf32, #tpu.memory_space<vmem>>, %arg7: memref<1x5xf32, #tpu.memory_space<vmem>>, %arg8: memref<5x5x16xf32, #tpu.memory_space<vmem>>, %arg9: memref<5x1x16xf32, #tpu.memory_space<vmem>>, %arg10: memref<5x16x16xf32, #tpu.memory_space<vmem>>, %arg11: memref<1x16xf32, #tpu.memory_space<vmem>>, %arg12: memref<1x8x8x16xf32, #tpu.memory_space<vmem>>, %arg13: memref<52x52x32xf32, #tpu.memory_space<vmem>>, %arg14: memref<256x288xf32, #tpu.memory_space<vmem>>, %arg15: memref<4x256x16xf32, #tpu.memory_space<vmem>>, %arg16: memref<128x16xf32, #tpu.memory_space<vmem>>) attributes {dimension_semantics = [#tpu.dimension_semantics<parallel>], iteration_bounds = array<i64: 2>, scalar_prefetch = 0 : i64, scratch_operands = 4 : i64, tpu.core_type = #tpu.core_type<tc>, window_params = [{transform_indices = @transform_0, window_bounds = array<i64: 1, 16, 16, 32>}, {pipeline_mode = #tpu.pipeline_mode<synchronous>, transform_indices = @transform_1, window_bounds = array<i64: 32, 16>}, {pipeline_mode = #tpu.pipeline_mode<synchronous>, transform_indices = @transform_2, window_bounds = array<i64: 3, 288, 16>}, {pipeline_mode = #tpu.pipeline_mode<synchronous>, transform_indices = @transform_3, window_bounds = array<i64: 32, 16>}, {pipeline_mode = #tpu.pipeline_mode<synchronous>, transform_indices = @transform_4, window_bounds = array<i64: 5, 1, 16>}, {pipeline_mode = #tpu.pipeline_mode<synchronous>, transform_indices = @transform_5, window_bounds = array<i64: 5, 16, 5>}, {pipeline_mode = #tpu.pipeline_mode<synchronous>, transform_indices = @transform_6, window_bounds = array<i64: 1, 5>}, {pipeline_mode = #tpu.pipeline_mode<synchronous>, transform_indices = @transform_7, window_bounds = array<i64: 5, 5, 16>}, {pipeline_mode = #tpu.pipeline_mode<synchronous>, transform_indices = @transform_8, window_bounds = array<i64: 5, 1, 16>}, {pipeline_mode = #tpu.pipeline_mode<synchronous>, transform_indices = @transform_9, window_bounds = array<i64: 5, 16, 16>}, {pipeline_mode = #tpu.pipeline_mode<synchronous>, transform_indices = @transform_10, window_bounds = array<i64: 1, 16>}, {transform_indices = @transform_11, window_bounds = array<i64: 1, 8, 8, 16>}]} {
    %c0 = arith.constant 0 : index
    %c0_0 = arith.constant 0 : index
    %c0_1 = arith.constant 0 : index
    %c0_2 = arith.constant 0 : index
    %0 = vector.load %arg1[%c0, %c0_0, %c0_1, %c0_2] : memref<1x16x16x32xf32, #tpu.memory_space<vmem>>, vector<1x16x16x32xf32>
    %1 = vector.shape_cast %0 : vector<1x16x16x32xf32> to vector<16x16x32xf32>
    %2 = vector.shape_cast %1 : vector<16x16x32xf32> to vector<256x32xf32>
    %cst = arith.constant 0.000000e+00 : f32
    %3 = vector.broadcast %cst : f32 to vector<18x52x32xf32>
    %cst_3 = arith.constant 0.000000e+00 : f32
    %4 = vector.broadcast %cst_3 : f32 to vector<16x18x32xf32>
    %c0_4 = arith.constant 0 : index
    %c0_5 = arith.constant 0 : index
    %c0_6 = arith.constant 0 : index
    %5 = vector.load %arg13[%c0_4, %c0_5, %c0_6] : memref<52x52x32xf32, #tpu.memory_space<vmem>>, vector<18x52x32xf32>
    tpu.vector_store %arg13[%c0_4, %c0_5, %c0_6], %3 {strides = array<i32>} : memref<52x52x32xf32, #tpu.memory_space<vmem>>, vector<18x52x32xf32>,
    %c34 = arith.constant 34 : index
    %c0_7 = arith.constant 0 : index
    %c0_8 = arith.constant 0 : index
    %6 = vector.load %arg13[%c34, %c0_7, %c0_8] : memref<52x52x32xf32, #tpu.memory_space<vmem>>, vector<18x52x32xf32>
    tpu.vector_store %arg13[%c34, %c0_7, %c0_8], %3 {strides = array<i32>} : memref<52x52x32xf32, #tpu.memory_space<vmem>>, vector<18x52x32xf32>,
    %c18 = arith.constant 18 : index
    %c0_9 = arith.constant 0 : index
    %c0_10 = arith.constant 0 : index
    %7 = vector.load %arg13[%c18, %c0_9, %c0_10] : memref<52x52x32xf32, #tpu.memory_space<vmem>>, vector<16x18x32xf32>
    tpu.vector_store %arg13[%c18, %c0_9, %c0_10], %4 {strides = array<i32>} : memref<52x52x32xf32, #tpu.memory_space<vmem>>, vector<16x18x32xf32>,
    %c18_11 = arith.constant 18 : index
    %c34_12 = arith.constant 34 : index
    %c0_13 = arith.constant 0 : index
    %8 = vector.load %arg13[%c18_11, %c34_12, %c0_13] : memref<52x52x32xf32, #tpu.memory_space<vmem>>, vector<16x18x32xf32>
    tpu.vector_store %arg13[%c18_11, %c34_12, %c0_13], %4 {strides = array<i32>} : memref<52x52x32xf32, #tpu.memory_space<vmem>>, vector<16x18x32xf32>,
    %c18_14 = arith.constant 18 : index
    %c18_15 = arith.constant 18 : index
    %c0_16 = arith.constant 0 : index
    %9 = vector.load %arg13[%c18_14, %c18_15, %c0_16] : memref<52x52x32xf32, #tpu.memory_space<vmem>>, vector<16x16x32xf32>
    tpu.vector_store %arg13[%c18_14, %c18_15, %c0_16], %1 {strides = array<i32>} : memref<52x52x32xf32, #tpu.memory_space<vmem>>, vector<16x16x32xf32>,
    %c0_17 = arith.constant 0 : index
    %c0_18 = arith.constant 0 : index
    %10 = vector.load %arg2[%c0_17, %c0_18] : memref<32x16xf32, #tpu.memory_space<vmem>>, vector<32x16xf32>
    %cst_19 = arith.constant dense<0.000000e+00> : vector<256x16xf32>
    %11 = tpu.matmul %2, %10, %cst_19 {dimension_numbers = #tpu.dot_dimension_numbers<[1], [0], [0], [1], [0, 0, 1, 1], [], []>} : vector<256x32xf32>, vector<32x16xf32>, vector<256x16xf32> -> vector<256x16xf32>
    %c0_20 = arith.constant 0 : index
    %c0_21 = arith.constant 0 : index
    %c0_22 = arith.constant 0 : index
    %12 = vector.load %arg5[%c0_20, %c0_21, %c0_22] : memref<5x1x16xf32, #tpu.memory_space<vmem>>, vector<1x1x16xf32>
    %13 = vector.shape_cast %12 : vector<1x1x16xf32> to vector<1x16xf32>
    %14 = vector.broadcast %13 : vector<1x16xf32> to vector<256x16xf32>
    %15 = arith.addf %11, %14 : vector<256x16xf32>
    %cst_23 = arith.constant 0.000000e+00 : f32
    %16 = vector.broadcast %cst_23 : f32 to vector<256x16xf32>
    %17 = arith.maximumf %15, %16 : vector<256x16xf32>
    %c0_24 = arith.constant 0 : index
    %c0_25 = arith.constant 0 : index
    %c0_26 = arith.constant 0 : index
    %18 = vector.load %arg15[%c0_24, %c0_25, %c0_26] : memref<4x256x16xf32, #tpu.memory_space<vmem>>, vector<1x256x16xf32>
    %19 = vector.shape_cast %18 : vector<1x256x16xf32> to vector<256x16xf32>
    %20 = vector.shape_cast %17 : vector<256x16xf32> to vector<1x256x16xf32>
    tpu.vector_store %arg15[%c0_24, %c0_25, %c0_26], %20 {strides = array<i32>} : memref<4x256x16xf32, #tpu.memory_space<vmem>>, vector<1x256x16xf32>,
    %cst_27 = arith.constant dense<0.000000e+00> : vector<16xf32>
    %21 = vector.multi_reduction <add>, %17, %cst_27 [0] : vector<256x16xf32> to vector<16xf32>
    %22 = vector.shape_cast %21 : vector<16xf32> to vector<1x16xf32>
    %cst_28 = arith.constant 2.560000e+02 : f32
    %23 = vector.broadcast %cst_28 : f32 to vector<1x16xf32>
    %24 = arith.divf %22, %23 : vector<1x16xf32>
    %c12 = arith.constant 12 : index
    %c12_29 = arith.constant 12 : index
    %c0_30 = arith.constant 0 : index
    %25 = vector.load %arg13[%c12, %c12_29, %c0_30] : memref<52x52x32xf32, #tpu.memory_space<vmem>>, vector<16x16x32xf32>
    %26 = vector.shape_cast %25 : vector<16x16x32xf32> to vector<256x32xf32>
    %c0_31 = arith.constant 0 : index
    %c0_32 = arith.constant 0 : index
    %27 = vector.load %arg14[%c0_31, %c0_32] : memref<256x288xf32, #tpu.memory_space<vmem>>, vector<256x32xf32>
    tpu.vector_store %arg14[%c0_31, %c0_32], %26 {strides = array<i32>} : memref<256x288xf32, #tpu.memory_space<vmem>>, vector<256x32xf32>,
    %c12_33 = arith.constant 12 : index
    %c18_34 = arith.constant 18 : index
    %c0_35 = arith.constant 0 : index
    %28 = vector.load %arg13[%c12_33, %c18_34, %c0_35] : memref<52x52x32xf32, #tpu.memory_space<vmem>>, vector<16x16x32xf32>
    %29 = vector.shape_cast %28 : vector<16x16x32xf32> to vector<256x32xf32>
    %c0_36 = arith.constant 0 : index
    %c32 = arith.constant 32 : index
    %30 = vector.load %arg14[%c0_36, %c32] : memref<256x288xf32, #tpu.memory_space<vmem>>, vector<256x32xf32>
    tpu.vector_store %arg14[%c0_36, %c32], %29 {strides = array<i32>} : memref<256x288xf32, #tpu.memory_space<vmem>>, vector<256x32xf32>,
    %c12_37 = arith.constant 12 : index
    %c24 = arith.constant 24 : index
    %c0_38 = arith.constant 0 : index
    %31 = vector.load %arg13[%c12_37, %c24, %c0_38] : memref<52x52x32xf32, #tpu.memory_space<vmem>>, vector<16x16x32xf32>
    %32 = vector.shape_cast %31 : vector<16x16x32xf32> to vector<256x32xf32>
    %c0_39 = arith.constant 0 : index
    %c64 = arith.constant 64 : index
    %33 = vector.load %arg14[%c0_39, %c64] : memref<256x288xf32, #tpu.memory_space<vmem>>, vector<256x32xf32>
    tpu.vector_store %arg14[%c0_39, %c64], %32 {strides = array<i32>} : memref<256x288xf32, #tpu.memory_space<vmem>>, vector<256x32xf32>,
    %c18_40 = arith.constant 18 : index
    %c12_41 = arith.constant 12 : index
    %c0_42 = arith.constant 0 : index
    %34 = vector.load %arg13[%c18_40, %c12_41, %c0_42] : memref<52x52x32xf32, #tpu.memory_space<vmem>>, vector<16x16x32xf32>
    %35 = vector.shape_cast %34 : vector<16x16x32xf32> to vector<256x32xf32>
    %c0_43 = arith.constant 0 : index
    %c96 = arith.constant 96 : index
    %36 = vector.load %arg14[%c0_43, %c96] : memref<256x288xf32, #tpu.memory_space<vmem>>, vector<256x32xf32>
    tpu.vector_store %arg14[%c0_43, %c96], %35 {strides = array<i32>} : memref<256x288xf32, #tpu.memory_space<vmem>>, vector<256x32xf32>,
    %c18_44 = arith.constant 18 : index
    %c18_45 = arith.constant 18 : index
    %c0_46 = arith.constant 0 : index
    %37 = vector.load %arg13[%c18_44, %c18_45, %c0_46] : memref<52x52x32xf32, #tpu.memory_space<vmem>>, vector<16x16x32xf32>
    %38 = vector.shape_cast %37 : vector<16x16x32xf32> to vector<256x32xf32>
    %c0_47 = arith.constant 0 : index
    %c128 = arith.constant 128 : index
    %39 = vector.load %arg14[%c0_47, %c128] : memref<256x288xf32, #tpu.memory_space<vmem>>, vector<256x32xf32>
    tpu.vector_store %arg14[%c0_47, %c128], %38 {strides = array<i32>} : memref<256x288xf32, #tpu.memory_space<vmem>>, vector<256x32xf32>,
    %c18_48 = arith.constant 18 : index
    %c24_49 = arith.constant 24 : index
    %c0_50 = arith.constant 0 : index
    %40 = vector.load %arg13[%c18_48, %c24_49, %c0_50] : memref<52x52x32xf32, #tpu.memory_space<vmem>>, vector<16x16x32xf32>
    %41 = vector.shape_cast %40 : vector<16x16x32xf32> to vector<256x32xf32>
    %c0_51 = arith.constant 0 : index
    %c160 = arith.constant 160 : index
    %42 = vector.load %arg14[%c0_51, %c160] : memref<256x288xf32, #tpu.memory_space<vmem>>, vector<256x32xf32>
    tpu.vector_store %arg14[%c0_51, %c160], %41 {strides = array<i32>} : memref<256x288xf32, #tpu.memory_space<vmem>>, vector<256x32xf32>,
    %c24_52 = arith.constant 24 : index
    %c12_53 = arith.constant 12 : index
    %c0_54 = arith.constant 0 : index
    %43 = vector.load %arg13[%c24_52, %c12_53, %c0_54] : memref<52x52x32xf32, #tpu.memory_space<vmem>>, vector<16x16x32xf32>
    %44 = vector.shape_cast %43 : vector<16x16x32xf32> to vector<256x32xf32>
    %c0_55 = arith.constant 0 : index
    %c192 = arith.constant 192 : index
    %45 = vector.load %arg14[%c0_55, %c192] : memref<256x288xf32, #tpu.memory_space<vmem>>, vector<256x32xf32>
    tpu.vector_store %arg14[%c0_55, %c192], %44 {strides = array<i32>} : memref<256x288xf32, #tpu.memory_space<vmem>>, vector<256x32xf32>,
    %c24_56 = arith.constant 24 : index
    %c18_57 = arith.constant 18 : index
    %c0_58 = arith.constant 0 : index
    %46 = vector.load %arg13[%c24_56, %c18_57, %c0_58] : memref<52x52x32xf32, #tpu.memory_space<vmem>>, vector<16x16x32xf32>
    %47 = vector.shape_cast %46 : vector<16x16x32xf32> to vector<256x32xf32>
    %c0_59 = arith.constant 0 : index
    %c224 = arith.constant 224 : index
    %48 = vector.load %arg14[%c0_59, %c224] : memref<256x288xf32, #tpu.memory_space<vmem>>, vector<256x32xf32>
    tpu.vector_store %arg14[%c0_59, %c224], %47 {strides = array<i32>} : memref<256x288xf32, #tpu.memory_space<vmem>>, vector<256x32xf32>,
    %c24_60 = arith.constant 24 : index
    %c24_61 = arith.constant 24 : index
    %c0_62 = arith.constant 0 : index
    %49 = vector.load %arg13[%c24_60, %c24_61, %c0_62] : memref<52x52x32xf32, #tpu.memory_space<vmem>>, vector<16x16x32xf32>
    %50 = vector.shape_cast %49 : vector<16x16x32xf32> to vector<256x32xf32>
    %c0_63 = arith.constant 0 : index
    %c256 = arith.constant 256 : index
    %51 = vector.load %arg14[%c0_63, %c256] : memref<256x288xf32, #tpu.memory_space<vmem>>, vector<256x32xf32>
    tpu.vector_store %arg14[%c0_63, %c256], %50 {strides = array<i32>} : memref<256x288xf32, #tpu.memory_space<vmem>>, vector<256x32xf32>,
    %c0_64 = arith.constant 0 : index
    %c0_65 = arith.constant 0 : index
    %52 = vector.load %arg14[%c0_64, %c0_65] : memref<256x288xf32, #tpu.memory_space<vmem>>, vector<256x288xf32>
    %c0_66 = arith.constant 0 : index
    %c0_67 = arith.constant 0 : index
    %c0_68 = arith.constant 0 : index
    %53 = vector.load %arg3[%c0_66, %c0_67, %c0_68] : memref<3x288x16xf32, #tpu.memory_space<vmem>>, vector<1x288x16xf32>
    %54 = vector.shape_cast %53 : vector<1x288x16xf32> to vector<288x16xf32>
    %cst_69 = arith.constant dense<0.000000e+00> : vector<256x16xf32>
    %55 = tpu.matmul %52, %54, %cst_69 {dimension_numbers = #tpu.dot_dimension_numbers<[1], [0], [0], [1], [0, 0, 1, 1], [], []>} : vector<256x288xf32>, vector<288x16xf32>, vector<256x16xf32> -> vector<256x16xf32>
    %c1 = arith.constant 1 : index
    %c0_70 = arith.constant 0 : index
    %c0_71 = arith.constant 0 : index
    %56 = vector.load %arg5[%c1, %c0_70, %c0_71] : memref<5x1x16xf32, #tpu.memory_space<vmem>>, vector<1x1x16xf32>
    %57 = vector.shape_cast %56 : vector<1x1x16xf32> to vector<1x16xf32>
    %58 = vector.broadcast %57 : vector<1x16xf32> to vector<256x16xf32>
    %59 = arith.addf %55, %58 : vector<256x16xf32>
    %cst_72 = arith.constant 0.000000e+00 : f32
    %60 = vector.broadcast %cst_72 : f32 to vector<256x16xf32>
    %61 = arith.maximumf %59, %60 : vector<256x16xf32>
    %c1_73 = arith.constant 1 : index
    %c0_74 = arith.constant 0 : index
    %c0_75 = arith.constant 0 : index
    %62 = vector.load %arg15[%c1_73, %c0_74, %c0_75] : memref<4x256x16xf32, #tpu.memory_space<vmem>>, vector<1x256x16xf32>
    %63 = vector.shape_cast %62 : vector<1x256x16xf32> to vector<256x16xf32>
    %64 = vector.shape_cast %61 : vector<256x16xf32> to vector<1x256x16xf32>
    tpu.vector_store %arg15[%c1_73, %c0_74, %c0_75], %64 {strides = array<i32>} : memref<4x256x16xf32, #tpu.memory_space<vmem>>, vector<1x256x16xf32>,
    %cst_76 = arith.constant dense<0.000000e+00> : vector<16xf32>
    %65 = vector.multi_reduction <add>, %61, %cst_76 [0] : vector<256x16xf32> to vector<16xf32>
    %66 = vector.shape_cast %65 : vector<16xf32> to vector<1x16xf32>
    %cst_77 = arith.constant 2.560000e+02 : f32
    %67 = vector.broadcast %cst_77 : f32 to vector<1x16xf32>
    %68 = arith.divf %66, %67 : vector<1x16xf32>
    %c6 = arith.constant 6 : index
    %c6_78 = arith.constant 6 : index
    %c0_79 = arith.constant 0 : index
    %69 = vector.load %arg13[%c6, %c6_78, %c0_79] : memref<52x52x32xf32, #tpu.memory_space<vmem>>, vector<16x16x32xf32>
    %70 = vector.shape_cast %69 : vector<16x16x32xf32> to vector<256x32xf32>
    %c0_80 = arith.constant 0 : index
    %c0_81 = arith.constant 0 : index
    %71 = vector.load %arg14[%c0_80, %c0_81] : memref<256x288xf32, #tpu.memory_space<vmem>>, vector<256x32xf32>
    tpu.vector_store %arg14[%c0_80, %c0_81], %70 {strides = array<i32>} : memref<256x288xf32, #tpu.memory_space<vmem>>, vector<256x32xf32>,
    %c6_82 = arith.constant 6 : index
    %c18_83 = arith.constant 18 : index
    %c0_84 = arith.constant 0 : index
    %72 = vector.load %arg13[%c6_82, %c18_83, %c0_84] : memref<52x52x32xf32, #tpu.memory_space<vmem>>, vector<16x16x32xf32>
    %73 = vector.shape_cast %72 : vector<16x16x32xf32> to vector<256x32xf32>
    %c0_85 = arith.constant 0 : index
    %c32_86 = arith.constant 32 : index
    %74 = vector.load %arg14[%c0_85, %c32_86] : memref<256x288xf32, #tpu.memory_space<vmem>>, vector<256x32xf32>
    tpu.vector_store %arg14[%c0_85, %c32_86], %73 {strides = array<i32>} : memref<256x288xf32, #tpu.memory_space<vmem>>, vector<256x32xf32>,
    %c6_87 = arith.constant 6 : index
    %c30 = arith.constant 30 : index
    %c0_88 = arith.constant 0 : index
    %75 = vector.load %arg13[%c6_87, %c30, %c0_88] : memref<52x52x32xf32, #tpu.memory_space<vmem>>, vector<16x16x32xf32>
    %76 = vector.shape_cast %75 : vector<16x16x32xf32> to vector<256x32xf32>
    %c0_89 = arith.constant 0 : index
    %c64_90 = arith.constant 64 : index
    %77 = vector.load %arg14[%c0_89, %c64_90] : memref<256x288xf32, #tpu.memory_space<vmem>>, vector<256x32xf32>
    tpu.vector_store %arg14[%c0_89, %c64_90], %76 {strides = array<i32>} : memref<256x288xf32, #tpu.memory_space<vmem>>, vector<256x32xf32>,
    %c18_91 = arith.constant 18 : index
    %c6_92 = arith.constant 6 : index
    %c0_93 = arith.constant 0 : index
    %78 = vector.load %arg13[%c18_91, %c6_92, %c0_93] : memref<52x52x32xf32, #tpu.memory_space<vmem>>, vector<16x16x32xf32>
    %79 = vector.shape_cast %78 : vector<16x16x32xf32> to vector<256x32xf32>
    %c0_94 = arith.constant 0 : index
    %c96_95 = arith.constant 96 : index
    %80 = vector.load %arg14[%c0_94, %c96_95] : memref<256x288xf32, #tpu.memory_space<vmem>>, vector<256x32xf32>
    tpu.vector_store %arg14[%c0_94, %c96_95], %79 {strides = array<i32>} : memref<256x288xf32, #tpu.memory_space<vmem>>, vector<256x32xf32>,
    %c18_96 = arith.constant 18 : index
    %c18_97 = arith.constant 18 : index
    %c0_98 = arith.constant 0 : index
    %81 = vector.load %arg13[%c18_96, %c18_97, %c0_98] : memref<52x52x32xf32, #tpu.memory_space<vmem>>, vector<16x16x32xf32>
    %82 = vector.shape_cast %81 : vector<16x16x32xf32> to vector<256x32xf32>
    %c0_99 = arith.constant 0 : index
    %c128_100 = arith.constant 128 : index
    %83 = vector.load %arg14[%c0_99, %c128_100] : memref<256x288xf32, #tpu.memory_space<vmem>>, vector<256x32xf32>
    tpu.vector_store %arg14[%c0_99, %c128_100], %82 {strides = array<i32>} : memref<256x288xf32, #tpu.memory_space<vmem>>, vector<256x32xf32>,
    %c18_101 = arith.constant 18 : index
    %c30_102 = arith.constant 30 : index
    %c0_103 = arith.constant 0 : index
    %84 = vector.load %arg13[%c18_101, %c30_102, %c0_103] : memref<52x52x32xf32, #tpu.memory_space<vmem>>, vector<16x16x32xf32>
    %85 = vector.shape_cast %84 : vector<16x16x32xf32> to vector<256x32xf32>
    %c0_104 = arith.constant 0 : index
    %c160_105 = arith.constant 160 : index
    %86 = vector.load %arg14[%c0_104, %c160_105] : memref<256x288xf32, #tpu.memory_space<vmem>>, vector<256x32xf32>
    tpu.vector_store %arg14[%c0_104, %c160_105], %85 {strides = array<i32>} : memref<256x288xf32, #tpu.memory_space<vmem>>, vector<256x32xf32>,
    %c30_106 = arith.constant 30 : index
    %c6_107 = arith.constant 6 : index
    %c0_108 = arith.constant 0 : index
    %87 = vector.load %arg13[%c30_106, %c6_107, %c0_108] : memref<52x52x32xf32, #tpu.memory_space<vmem>>, vector<16x16x32xf32>
    %88 = vector.shape_cast %87 : vector<16x16x32xf32> to vector<256x32xf32>
    %c0_109 = arith.constant 0 : index
    %c192_110 = arith.constant 192 : index
    %89 = vector.load %arg14[%c0_109, %c192_110] : memref<256x288xf32, #tpu.memory_space<vmem>>, vector<256x32xf32>
    tpu.vector_store %arg14[%c0_109, %c192_110], %88 {strides = array<i32>} : memref<256x288xf32, #tpu.memory_space<vmem>>, vector<256x32xf32>,
    %c30_111 = arith.constant 30 : index
    %c18_112 = arith.constant 18 : index
    %c0_113 = arith.constant 0 : index
    %90 = vector.load %arg13[%c30_111, %c18_112, %c0_113] : memref<52x52x32xf32, #tpu.memory_space<vmem>>, vector<16x16x32xf32>
    %91 = vector.shape_cast %90 : vector<16x16x32xf32> to vector<256x32xf32>
    %c0_114 = arith.constant 0 : index
    %c224_115 = arith.constant 224 : index
    %92 = vector.load %arg14[%c0_114, %c224_115] : memref<256x288xf32, #tpu.memory_space<vmem>>, vector<256x32xf32>
    tpu.vector_store %arg14[%c0_114, %c224_115], %91 {strides = array<i32>} : memref<256x288xf32, #tpu.memory_space<vmem>>, vector<256x32xf32>,
    %c30_116 = arith.constant 30 : index
    %c30_117 = arith.constant 30 : index
    %c0_118 = arith.constant 0 : index
    %93 = vector.load %arg13[%c30_116, %c30_117, %c0_118] : memref<52x52x32xf32, #tpu.memory_space<vmem>>, vector<16x16x32xf32>
    %94 = vector.shape_cast %93 : vector<16x16x32xf32> to vector<256x32xf32>
    %c0_119 = arith.constant 0 : index
    %c256_120 = arith.constant 256 : index
    %95 = vector.load %arg14[%c0_119, %c256_120] : memref<256x288xf32, #tpu.memory_space<vmem>>, vector<256x32xf32>
    tpu.vector_store %arg14[%c0_119, %c256_120], %94 {strides = array<i32>} : memref<256x288xf32, #tpu.memory_space<vmem>>, vector<256x32xf32>,
    %c0_121 = arith.constant 0 : index
    %c0_122 = arith.constant 0 : index
    %96 = vector.load %arg14[%c0_121, %c0_122] : memref<256x288xf32, #tpu.memory_space<vmem>>, vector<256x288xf32>
    %c1_123 = arith.constant 1 : index
    %c0_124 = arith.constant 0 : index
    %c0_125 = arith.constant 0 : index
    %97 = vector.load %arg3[%c1_123, %c0_124, %c0_125] : memref<3x288x16xf32, #tpu.memory_space<vmem>>, vector<1x288x16xf32>
    %98 = vector.shape_cast %97 : vector<1x288x16xf32> to vector<288x16xf32>
    %cst_126 = arith.constant dense<0.000000e+00> : vector<256x16xf32>
    %99 = tpu.matmul %96, %98, %cst_126 {dimension_numbers = #tpu.dot_dimension_numbers<[1], [0], [0], [1], [0, 0, 1, 1], [], []>} : vector<256x288xf32>, vector<288x16xf32>, vector<256x16xf32> -> vector<256x16xf32>
    %c2 = arith.constant 2 : index
    %c0_127 = arith.constant 0 : index
    %c0_128 = arith.constant 0 : index
    %100 = vector.load %arg5[%c2, %c0_127, %c0_128] : memref<5x1x16xf32, #tpu.memory_space<vmem>>, vector<1x1x16xf32>
    %101 = vector.shape_cast %100 : vector<1x1x16xf32> to vector<1x16xf32>
    %102 = vector.broadcast %101 : vector<1x16xf32> to vector<256x16xf32>
    %103 = arith.addf %99, %102 : vector<256x16xf32>
    %cst_129 = arith.constant 0.000000e+00 : f32
    %104 = vector.broadcast %cst_129 : f32 to vector<256x16xf32>
    %105 = arith.maximumf %103, %104 : vector<256x16xf32>
    %c2_130 = arith.constant 2 : index
    %c0_131 = arith.constant 0 : index
    %c0_132 = arith.constant 0 : index
    %106 = vector.load %arg15[%c2_130, %c0_131, %c0_132] : memref<4x256x16xf32, #tpu.memory_space<vmem>>, vector<1x256x16xf32>
    %107 = vector.shape_cast %106 : vector<1x256x16xf32> to vector<256x16xf32>
    %108 = vector.shape_cast %105 : vector<256x16xf32> to vector<1x256x16xf32>
    tpu.vector_store %arg15[%c2_130, %c0_131, %c0_132], %108 {strides = array<i32>} : memref<4x256x16xf32, #tpu.memory_space<vmem>>, vector<1x256x16xf32>,
    %cst_133 = arith.constant dense<0.000000e+00> : vector<16xf32>
    %109 = vector.multi_reduction <add>, %105, %cst_133 [0] : vector<256x16xf32> to vector<16xf32>
    %110 = vector.shape_cast %109 : vector<16xf32> to vector<1x16xf32>
    %cst_134 = arith.constant 2.560000e+02 : f32
    %111 = vector.broadcast %cst_134 : f32 to vector<1x16xf32>
    %112 = arith.divf %110, %111 : vector<1x16xf32>
    %c0_135 = arith.constant 0 : index
    %c0_136 = arith.constant 0 : index
    %c0_137 = arith.constant 0 : index
    %113 = vector.load %arg13[%c0_135, %c0_136, %c0_137] : memref<52x52x32xf32, #tpu.memory_space<vmem>>, vector<16x16x32xf32>
    %114 = vector.shape_cast %113 : vector<16x16x32xf32> to vector<256x32xf32>
    %c0_138 = arith.constant 0 : index
    %c0_139 = arith.constant 0 : index
    %115 = vector.load %arg14[%c0_138, %c0_139] : memref<256x288xf32, #tpu.memory_space<vmem>>, vector<256x32xf32>
    tpu.vector_store %arg14[%c0_138, %c0_139], %114 {strides = array<i32>} : memref<256x288xf32, #tpu.memory_space<vmem>>, vector<256x32xf32>,
    %c0_140 = arith.constant 0 : index
    %c18_141 = arith.constant 18 : index
    %c0_142 = arith.constant 0 : index
    %116 = vector.load %arg13[%c0_140, %c18_141, %c0_142] : memref<52x52x32xf32, #tpu.memory_space<vmem>>, vector<16x16x32xf32>
    %117 = vector.shape_cast %116 : vector<16x16x32xf32> to vector<256x32xf32>
    %c0_143 = arith.constant 0 : index
    %c32_144 = arith.constant 32 : index
    %118 = vector.load %arg14[%c0_143, %c32_144] : memref<256x288xf32, #tpu.memory_space<vmem>>, vector<256x32xf32>
    tpu.vector_store %arg14[%c0_143, %c32_144], %117 {strides = array<i32>} : memref<256x288xf32, #tpu.memory_space<vmem>>, vector<256x32xf32>,
    %c0_145 = arith.constant 0 : index
    %c36 = arith.constant 36 : index
    %c0_146 = arith.constant 0 : index
    %119 = vector.load %arg13[%c0_145, %c36, %c0_146] : memref<52x52x32xf32, #tpu.memory_space<vmem>>, vector<16x16x32xf32>
    %120 = vector.shape_cast %119 : vector<16x16x32xf32> to vector<256x32xf32>
    %c0_147 = arith.constant 0 : index
    %c64_148 = arith.constant 64 : index
    %121 = vector.load %arg14[%c0_147, %c64_148] : memref<256x288xf32, #tpu.memory_space<vmem>>, vector<256x32xf32>
    tpu.vector_store %arg14[%c0_147, %c64_148], %120 {strides = array<i32>} : memref<256x288xf32, #tpu.memory_space<vmem>>, vector<256x32xf32>,
    %c18_149 = arith.constant 18 : index
    %c0_150 = arith.constant 0 : index
    %c0_151 = arith.constant 0 : index
    %122 = vector.load %arg13[%c18_149, %c0_150, %c0_151] : memref<52x52x32xf32, #tpu.memory_space<vmem>>, vector<16x16x32xf32>
    %123 = vector.shape_cast %122 : vector<16x16x32xf32> to vector<256x32xf32>
    %c0_152 = arith.constant 0 : index
    %c96_153 = arith.constant 96 : index
    %124 = vector.load %arg14[%c0_152, %c96_153] : memref<256x288xf32, #tpu.memory_space<vmem>>, vector<256x32xf32>
    tpu.vector_store %arg14[%c0_152, %c96_153], %123 {strides = array<i32>} : memref<256x288xf32, #tpu.memory_space<vmem>>, vector<256x32xf32>,
    %c18_154 = arith.constant 18 : index
    %c18_155 = arith.constant 18 : index
    %c0_156 = arith.constant 0 : index
    %125 = vector.load %arg13[%c18_154, %c18_155, %c0_156] : memref<52x52x32xf32, #tpu.memory_space<vmem>>, vector<16x16x32xf32>
    %126 = vector.shape_cast %125 : vector<16x16x32xf32> to vector<256x32xf32>
    %c0_157 = arith.constant 0 : index
    %c128_158 = arith.constant 128 : index
    %127 = vector.load %arg14[%c0_157, %c128_158] : memref<256x288xf32, #tpu.memory_space<vmem>>, vector<256x32xf32>
    tpu.vector_store %arg14[%c0_157, %c128_158], %126 {strides = array<i32>} : memref<256x288xf32, #tpu.memory_space<vmem>>, vector<256x32xf32>,
    %c18_159 = arith.constant 18 : index
    %c36_160 = arith.constant 36 : index
    %c0_161 = arith.constant 0 : index
    %128 = vector.load %arg13[%c18_159, %c36_160, %c0_161] : memref<52x52x32xf32, #tpu.memory_space<vmem>>, vector<16x16x32xf32>
    %129 = vector.shape_cast %128 : vector<16x16x32xf32> to vector<256x32xf32>
    %c0_162 = arith.constant 0 : index
    %c160_163 = arith.constant 160 : index
    %130 = vector.load %arg14[%c0_162, %c160_163] : memref<256x288xf32, #tpu.memory_space<vmem>>, vector<256x32xf32>
    tpu.vector_store %arg14[%c0_162, %c160_163], %129 {strides = array<i32>} : memref<256x288xf32, #tpu.memory_space<vmem>>, vector<256x32xf32>,
    %c36_164 = arith.constant 36 : index
    %c0_165 = arith.constant 0 : index
    %c0_166 = arith.constant 0 : index
    %131 = vector.load %arg13[%c36_164, %c0_165, %c0_166] : memref<52x52x32xf32, #tpu.memory_space<vmem>>, vector<16x16x32xf32>
    %132 = vector.shape_cast %131 : vector<16x16x32xf32> to vector<256x32xf32>
    %c0_167 = arith.constant 0 : index
    %c192_168 = arith.constant 192 : index
    %133 = vector.load %arg14[%c0_167, %c192_168] : memref<256x288xf32, #tpu.memory_space<vmem>>, vector<256x32xf32>
    tpu.vector_store %arg14[%c0_167, %c192_168], %132 {strides = array<i32>} : memref<256x288xf32, #tpu.memory_space<vmem>>, vector<256x32xf32>,
    %c36_169 = arith.constant 36 : index
    %c18_170 = arith.constant 18 : index
    %c0_171 = arith.constant 0 : index
    %134 = vector.load %arg13[%c36_169, %c18_170, %c0_171] : memref<52x52x32xf32, #tpu.memory_space<vmem>>, vector<16x16x32xf32>
    %135 = vector.shape_cast %134 : vector<16x16x32xf32> to vector<256x32xf32>
    %c0_172 = arith.constant 0 : index
    %c224_173 = arith.constant 224 : index
    %136 = vector.load %arg14[%c0_172, %c224_173] : memref<256x288xf32, #tpu.memory_space<vmem>>, vector<256x32xf32>
    tpu.vector_store %arg14[%c0_172, %c224_173], %135 {strides = array<i32>} : memref<256x288xf32, #tpu.memory_space<vmem>>, vector<256x32xf32>,
    %c36_174 = arith.constant 36 : index
    %c36_175 = arith.constant 36 : index
    %c0_176 = arith.constant 0 : index
    %137 = vector.load %arg13[%c36_174, %c36_175, %c0_176] : memref<52x52x32xf32, #tpu.memory_space<vmem>>, vector<16x16x32xf32>
    %138 = vector.shape_cast %137 : vector<16x16x32xf32> to vector<256x32xf32>
    %c0_177 = arith.constant 0 : index
    %c256_178 = arith.constant 256 : index
    %139 = vector.load %arg14[%c0_177, %c256_178] : memref<256x288xf32, #tpu.memory_space<vmem>>, vector<256x32xf32>
    tpu.vector_store %arg14[%c0_177, %c256_178], %138 {strides = array<i32>} : memref<256x288xf32, #tpu.memory_space<vmem>>, vector<256x32xf32>,
    %c0_179 = arith.constant 0 : index
    %c0_180 = arith.constant 0 : index
    %140 = vector.load %arg14[%c0_179, %c0_180] : memref<256x288xf32, #tpu.memory_space<vmem>>, vector<256x288xf32>
    %c2_181 = arith.constant 2 : index
    %c0_182 = arith.constant 0 : index
    %c0_183 = arith.constant 0 : index
    %141 = vector.load %arg3[%c2_181, %c0_182, %c0_183] : memref<3x288x16xf32, #tpu.memory_space<vmem>>, vector<1x288x16xf32>
    %142 = vector.shape_cast %141 : vector<1x288x16xf32> to vector<288x16xf32>
    %cst_184 = arith.constant dense<0.000000e+00> : vector<256x16xf32>
    %143 = tpu.matmul %140, %142, %cst_184 {dimension_numbers = #tpu.dot_dimension_numbers<[1], [0], [0], [1], [0, 0, 1, 1], [], []>} : vector<256x288xf32>, vector<288x16xf32>, vector<256x16xf32> -> vector<256x16xf32>
    %c3 = arith.constant 3 : index
    %c0_185 = arith.constant 0 : index
    %c0_186 = arith.constant 0 : index
    %144 = vector.load %arg5[%c3, %c0_185, %c0_186] : memref<5x1x16xf32, #tpu.memory_space<vmem>>, vector<1x1x16xf32>
    %145 = vector.shape_cast %144 : vector<1x1x16xf32> to vector<1x16xf32>
    %146 = vector.broadcast %145 : vector<1x16xf32> to vector<256x16xf32>
    %147 = arith.addf %143, %146 : vector<256x16xf32>
    %cst_187 = arith.constant 0.000000e+00 : f32
    %148 = vector.broadcast %cst_187 : f32 to vector<256x16xf32>
    %149 = arith.maximumf %147, %148 : vector<256x16xf32>
    %c3_188 = arith.constant 3 : index
    %c0_189 = arith.constant 0 : index
    %c0_190 = arith.constant 0 : index
    %150 = vector.load %arg15[%c3_188, %c0_189, %c0_190] : memref<4x256x16xf32, #tpu.memory_space<vmem>>, vector<1x256x16xf32>
    %151 = vector.shape_cast %150 : vector<1x256x16xf32> to vector<256x16xf32>
    %152 = vector.shape_cast %149 : vector<256x16xf32> to vector<1x256x16xf32>
    tpu.vector_store %arg15[%c3_188, %c0_189, %c0_190], %152 {strides = array<i32>} : memref<4x256x16xf32, #tpu.memory_space<vmem>>, vector<1x256x16xf32>,
    %cst_191 = arith.constant dense<0.000000e+00> : vector<16xf32>
    %153 = vector.multi_reduction <add>, %149, %cst_191 [0] : vector<256x16xf32> to vector<16xf32>
    %154 = vector.shape_cast %153 : vector<16xf32> to vector<1x16xf32>
    %cst_192 = arith.constant 2.560000e+02 : f32
    %155 = vector.broadcast %cst_192 : f32 to vector<1x16xf32>
    %156 = arith.divf %154, %155 : vector<1x16xf32>
    %cst_193 = arith.constant dense<0.000000e+00> : vector<32xf32>
    %157 = vector.multi_reduction <add>, %2, %cst_193 [0] : vector<256x32xf32> to vector<32xf32>
    %158 = vector.shape_cast %157 : vector<32xf32> to vector<1x32xf32>
    %cst_194 = arith.constant 2.560000e+02 : f32
    %159 = vector.broadcast %cst_194 : f32 to vector<1x32xf32>
    %160 = arith.divf %158, %159 : vector<1x32xf32>
    %c0_195 = arith.constant 0 : index
    %c0_196 = arith.constant 0 : index
    %161 = vector.load %arg4[%c0_195, %c0_196] : memref<32x16xf32, #tpu.memory_space<vmem>>, vector<32x16xf32>
    %cst_197 = arith.constant dense<0.000000e+00> : vector<1x16xf32>
    %162 = tpu.matmul %160, %161, %cst_197 {dimension_numbers = #tpu.dot_dimension_numbers<[1], [0], [0], [1], [0, 0, 1, 1], [], []>} : vector<1x32xf32>, vector<32x16xf32>, vector<1x16xf32> -> vector<1x16xf32>
    %c4 = arith.constant 4 : index
    %c0_198 = arith.constant 0 : index
    %c0_199 = arith.constant 0 : index
    %163 = vector.load %arg5[%c4, %c0_198, %c0_199] : memref<5x1x16xf32, #tpu.memory_space<vmem>>, vector<1x1x16xf32>
    %164 = vector.shape_cast %163 : vector<1x1x16xf32> to vector<1x16xf32>
    %165 = arith.addf %162, %164 : vector<1x16xf32>
    %cst_200 = arith.constant 0.000000e+00 : f32
    %166 = vector.broadcast %cst_200 : f32 to vector<1x16xf32>
    %167 = arith.maximumf %165, %166 : vector<1x16xf32>
    %c0_201 = arith.constant 0 : index
    %c0_202 = arith.constant 0 : index
    %168 = vector.load %arg7[%c0_201, %c0_202] : memref<1x5xf32, #tpu.memory_space<vmem>>, vector<1x5xf32>
    %c0_203 = arith.constant 0 : index
    %c0_204 = arith.constant 0 : index
    %c0_205 = arith.constant 0 : index
    %169 = vector.load %arg6[%c0_203, %c0_204, %c0_205] : memref<5x16x5xf32, #tpu.memory_space<vmem>>, vector<1x16x5xf32>
    %170 = vector.shape_cast %169 : vector<1x16x5xf32> to vector<16x5xf32>
    %cst_206 = arith.constant dense<0.000000e+00> : vector<1x5xf32>
    %171 = tpu.matmul %24, %170, %cst_206 {dimension_numbers = #tpu.dot_dimension_numbers<[1], [0], [0], [1], [0, 0, 1, 1], [], []>} : vector<1x16xf32>, vector<16x5xf32>, vector<1x5xf32> -> vector<1x5xf32>
    %172 = arith.addf %168, %171 : vector<1x5xf32>
    %c1_207 = arith.constant 1 : index
    %c0_208 = arith.constant 0 : index
    %c0_209 = arith.constant 0 : index
    %173 = vector.load %arg6[%c1_207, %c0_208, %c0_209] : memref<5x16x5xf32, #tpu.memory_space<vmem>>, vector<1x16x5xf32>
    %174 = vector.shape_cast %173 : vector<1x16x5xf32> to vector<16x5xf32>
    %cst_210 = arith.constant dense<0.000000e+00> : vector<1x5xf32>
    %175 = tpu.matmul %68, %174, %cst_210 {dimension_numbers = #tpu.dot_dimension_numbers<[1], [0], [0], [1], [0, 0, 1, 1], [], []>} : vector<1x16xf32>, vector<16x5xf32>, vector<1x5xf32> -> vector<1x5xf32>
    %176 = arith.addf %172, %175 : vector<1x5xf32>
    %c2_211 = arith.constant 2 : index
    %c0_212 = arith.constant 0 : index
    %c0_213 = arith.constant 0 : index
    %177 = vector.load %arg6[%c2_211, %c0_212, %c0_213] : memref<5x16x5xf32, #tpu.memory_space<vmem>>, vector<1x16x5xf32>
    %178 = vector.shape_cast %177 : vector<1x16x5xf32> to vector<16x5xf32>
    %cst_214 = arith.constant dense<0.000000e+00> : vector<1x5xf32>
    %179 = tpu.matmul %112, %178, %cst_214 {dimension_numbers = #tpu.dot_dimension_numbers<[1], [0], [0], [1], [0, 0, 1, 1], [], []>} : vector<1x16xf32>, vector<16x5xf32>, vector<1x5xf32> -> vector<1x5xf32>
    %180 = arith.addf %176, %179 : vector<1x5xf32>
    %c3_215 = arith.constant 3 : index
    %c0_216 = arith.constant 0 : index
    %c0_217 = arith.constant 0 : index
    %181 = vector.load %arg6[%c3_215, %c0_216, %c0_217] : memref<5x16x5xf32, #tpu.memory_space<vmem>>, vector<1x16x5xf32>
    %182 = vector.shape_cast %181 : vector<1x16x5xf32> to vector<16x5xf32>
    %cst_218 = arith.constant dense<0.000000e+00> : vector<1x5xf32>
    %183 = tpu.matmul %156, %182, %cst_218 {dimension_numbers = #tpu.dot_dimension_numbers<[1], [0], [0], [1], [0, 0, 1, 1], [], []>} : vector<1x16xf32>, vector<16x5xf32>, vector<1x5xf32> -> vector<1x5xf32>
    %184 = arith.addf %180, %183 : vector<1x5xf32>
    %c4_219 = arith.constant 4 : index
    %c0_220 = arith.constant 0 : index
    %c0_221 = arith.constant 0 : index
    %185 = vector.load %arg6[%c4_219, %c0_220, %c0_221] : memref<5x16x5xf32, #tpu.memory_space<vmem>>, vector<1x16x5xf32>
    %186 = vector.shape_cast %185 : vector<1x16x5xf32> to vector<16x5xf32>
    %cst_222 = arith.constant dense<0.000000e+00> : vector<1x5xf32>
    %187 = tpu.matmul %167, %186, %cst_222 {dimension_numbers = #tpu.dot_dimension_numbers<[1], [0], [0], [1], [0, 0, 1, 1], [], []>} : vector<1x16xf32>, vector<16x5xf32>, vector<1x5xf32> -> vector<1x5xf32>
    %188 = arith.addf %184, %187 : vector<1x5xf32>
    %cst_223 = arith.constant 0.000000e+00 : f32
    %189 = vector.broadcast %cst_223 : f32 to vector<1x5xf32>
    %190 = arith.maximumf %188, %189 : vector<1x5xf32>
    %c0_224 = arith.constant 0 : index
    %c0_225 = arith.constant 0 : index
    %c0_226 = arith.constant 0 : index
    %191 = vector.load %arg15[%c0_224, %c0_225, %c0_226] : memref<4x256x16xf32, #tpu.memory_space<vmem>>, vector<1x256x16xf32>
    %192 = vector.shape_cast %191 : vector<1x256x16xf32> to vector<256x16xf32>
    %c0_227 = arith.constant 0 : index
    %c0_228 = arith.constant 0 : index
    %c0_229 = arith.constant 0 : index
    %193 = vector.load %arg8[%c0_227, %c0_228, %c0_229] : memref<5x5x16xf32, #tpu.memory_space<vmem>>, vector<1x5x16xf32>
    %194 = vector.shape_cast %193 : vector<1x5x16xf32> to vector<5x16xf32>
    %cst_230 = arith.constant dense<0.000000e+00> : vector<1x16xf32>
    %195 = tpu.matmul %190, %194, %cst_230 {dimension_numbers = #tpu.dot_dimension_numbers<[1], [0], [0], [1], [0, 0, 1, 1], [], []>} : vector<1x5xf32>, vector<5x16xf32>, vector<1x16xf32> -> vector<1x16xf32>
    %c0_231 = arith.constant 0 : index
    %c0_232 = arith.constant 0 : index
    %c0_233 = arith.constant 0 : index
    %196 = vector.load %arg9[%c0_231, %c0_232, %c0_233] : memref<5x1x16xf32, #tpu.memory_space<vmem>>, vector<1x1x16xf32>
    %197 = vector.shape_cast %196 : vector<1x1x16xf32> to vector<1x16xf32>
    %198 = arith.addf %195, %197 : vector<1x16xf32>
    %199 = arith.negf %198 : vector<1x16xf32>
    %200 = math.exp %199 : vector<1x16xf32>
    %cst_234 = arith.constant 1.000000e+00 : f32
    %201 = vector.broadcast %cst_234 : f32 to vector<1x16xf32>
    %202 = arith.addf %201, %200 : vector<1x16xf32>
    %203 = arith.divf %201, %202 : vector<1x16xf32>
    %204 = vector.broadcast %203 : vector<1x16xf32> to vector<256x16xf32>
    %205 = arith.mulf %192, %204 : vector<256x16xf32>
    %c0_235 = arith.constant 0 : index
    %c0_236 = arith.constant 0 : index
    %c0_237 = arith.constant 0 : index
    %206 = vector.load %arg10[%c0_235, %c0_236, %c0_237] : memref<5x16x16xf32, #tpu.memory_space<vmem>>, vector<1x16x16xf32>
    %207 = vector.shape_cast %206 : vector<1x16x16xf32> to vector<16x16xf32>
    %cst_238 = arith.constant dense<0.000000e+00> : vector<256x16xf32>
    %208 = tpu.matmul %205, %207, %cst_238 {dimension_numbers = #tpu.dot_dimension_numbers<[1], [0], [0], [1], [0, 0, 1, 1], [], []>} : vector<256x16xf32>, vector<16x16xf32>, vector<256x16xf32> -> vector<256x16xf32>
    %c1_239 = arith.constant 1 : index
    %c0_240 = arith.constant 0 : index
    %c0_241 = arith.constant 0 : index
    %209 = vector.load %arg15[%c1_239, %c0_240, %c0_241] : memref<4x256x16xf32, #tpu.memory_space<vmem>>, vector<1x256x16xf32>
    %210 = vector.shape_cast %209 : vector<1x256x16xf32> to vector<256x16xf32>
    %c1_242 = arith.constant 1 : index
    %c0_243 = arith.constant 0 : index
    %c0_244 = arith.constant 0 : index
    %211 = vector.load %arg8[%c1_242, %c0_243, %c0_244] : memref<5x5x16xf32, #tpu.memory_space<vmem>>, vector<1x5x16xf32>
    %212 = vector.shape_cast %211 : vector<1x5x16xf32> to vector<5x16xf32>
    %cst_245 = arith.constant dense<0.000000e+00> : vector<1x16xf32>
    %213 = tpu.matmul %190, %212, %cst_245 {dimension_numbers = #tpu.dot_dimension_numbers<[1], [0], [0], [1], [0, 0, 1, 1], [], []>} : vector<1x5xf32>, vector<5x16xf32>, vector<1x16xf32> -> vector<1x16xf32>
    %c1_246 = arith.constant 1 : index
    %c0_247 = arith.constant 0 : index
    %c0_248 = arith.constant 0 : index
    %214 = vector.load %arg9[%c1_246, %c0_247, %c0_248] : memref<5x1x16xf32, #tpu.memory_space<vmem>>, vector<1x1x16xf32>
    %215 = vector.shape_cast %214 : vector<1x1x16xf32> to vector<1x16xf32>
    %216 = arith.addf %213, %215 : vector<1x16xf32>
    %217 = arith.negf %216 : vector<1x16xf32>
    %218 = math.exp %217 : vector<1x16xf32>
    %cst_249 = arith.constant 1.000000e+00 : f32
    %219 = vector.broadcast %cst_249 : f32 to vector<1x16xf32>
    %220 = arith.addf %219, %218 : vector<1x16xf32>
    %221 = arith.divf %219, %220 : vector<1x16xf32>
    %222 = vector.broadcast %221 : vector<1x16xf32> to vector<256x16xf32>
    %223 = arith.mulf %210, %222 : vector<256x16xf32>
    %c1_250 = arith.constant 1 : index
    %c0_251 = arith.constant 0 : index
    %c0_252 = arith.constant 0 : index
    %224 = vector.load %arg10[%c1_250, %c0_251, %c0_252] : memref<5x16x16xf32, #tpu.memory_space<vmem>>, vector<1x16x16xf32>
    %225 = vector.shape_cast %224 : vector<1x16x16xf32> to vector<16x16xf32>
    %cst_253 = arith.constant dense<0.000000e+00> : vector<256x16xf32>
    %226 = tpu.matmul %223, %225, %cst_253 {dimension_numbers = #tpu.dot_dimension_numbers<[1], [0], [0], [1], [0, 0, 1, 1], [], []>} : vector<256x16xf32>, vector<16x16xf32>, vector<256x16xf32> -> vector<256x16xf32>
    %227 = arith.addf %208, %226 : vector<256x16xf32>
    %c2_254 = arith.constant 2 : index
    %c0_255 = arith.constant 0 : index
    %c0_256 = arith.constant 0 : index
    %228 = vector.load %arg15[%c2_254, %c0_255, %c0_256] : memref<4x256x16xf32, #tpu.memory_space<vmem>>, vector<1x256x16xf32>
    %229 = vector.shape_cast %228 : vector<1x256x16xf32> to vector<256x16xf32>
    %c2_257 = arith.constant 2 : index
    %c0_258 = arith.constant 0 : index
    %c0_259 = arith.constant 0 : index
    %230 = vector.load %arg8[%c2_257, %c0_258, %c0_259] : memref<5x5x16xf32, #tpu.memory_space<vmem>>, vector<1x5x16xf32>
    %231 = vector.shape_cast %230 : vector<1x5x16xf32> to vector<5x16xf32>
    %cst_260 = arith.constant dense<0.000000e+00> : vector<1x16xf32>
    %232 = tpu.matmul %190, %231, %cst_260 {dimension_numbers = #tpu.dot_dimension_numbers<[1], [0], [0], [1], [0, 0, 1, 1], [], []>} : vector<1x5xf32>, vector<5x16xf32>, vector<1x16xf32> -> vector<1x16xf32>
    %c2_261 = arith.constant 2 : index
    %c0_262 = arith.constant 0 : index
    %c0_263 = arith.constant 0 : index
    %233 = vector.load %arg9[%c2_261, %c0_262, %c0_263] : memref<5x1x16xf32, #tpu.memory_space<vmem>>, vector<1x1x16xf32>
    %234 = vector.shape_cast %233 : vector<1x1x16xf32> to vector<1x16xf32>
    %235 = arith.addf %232, %234 : vector<1x16xf32>
    %236 = arith.negf %235 : vector<1x16xf32>
    %237 = math.exp %236 : vector<1x16xf32>
    %cst_264 = arith.constant 1.000000e+00 : f32
    %238 = vector.broadcast %cst_264 : f32 to vector<1x16xf32>
    %239 = arith.addf %238, %237 : vector<1x16xf32>
    %240 = arith.divf %238, %239 : vector<1x16xf32>
    %241 = vector.broadcast %240 : vector<1x16xf32> to vector<256x16xf32>
    %242 = arith.mulf %229, %241 : vector<256x16xf32>
    %c2_265 = arith.constant 2 : index
    %c0_266 = arith.constant 0 : index
    %c0_267 = arith.constant 0 : index
    %243 = vector.load %arg10[%c2_265, %c0_266, %c0_267] : memref<5x16x16xf32, #tpu.memory_space<vmem>>, vector<1x16x16xf32>
    %244 = vector.shape_cast %243 : vector<1x16x16xf32> to vector<16x16xf32>
    %cst_268 = arith.constant dense<0.000000e+00> : vector<256x16xf32>
    %245 = tpu.matmul %242, %244, %cst_268 {dimension_numbers = #tpu.dot_dimension_numbers<[1], [0], [0], [1], [0, 0, 1, 1], [], []>} : vector<256x16xf32>, vector<16x16xf32>, vector<256x16xf32> -> vector<256x16xf32>
    %246 = arith.addf %227, %245 : vector<256x16xf32>
    %c3_269 = arith.constant 3 : index
    %c0_270 = arith.constant 0 : index
    %c0_271 = arith.constant 0 : index
    %247 = vector.load %arg15[%c3_269, %c0_270, %c0_271] : memref<4x256x16xf32, #tpu.memory_space<vmem>>, vector<1x256x16xf32>
    %248 = vector.shape_cast %247 : vector<1x256x16xf32> to vector<256x16xf32>
    %c3_272 = arith.constant 3 : index
    %c0_273 = arith.constant 0 : index
    %c0_274 = arith.constant 0 : index
    %249 = vector.load %arg8[%c3_272, %c0_273, %c0_274] : memref<5x5x16xf32, #tpu.memory_space<vmem>>, vector<1x5x16xf32>
    %250 = vector.shape_cast %249 : vector<1x5x16xf32> to vector<5x16xf32>
    %cst_275 = arith.constant dense<0.000000e+00> : vector<1x16xf32>
    %251 = tpu.matmul %190, %250, %cst_275 {dimension_numbers = #tpu.dot_dimension_numbers<[1], [0], [0], [1], [0, 0, 1, 1], [], []>} : vector<1x5xf32>, vector<5x16xf32>, vector<1x16xf32> -> vector<1x16xf32>
    %c3_276 = arith.constant 3 : index
    %c0_277 = arith.constant 0 : index
    %c0_278 = arith.constant 0 : index
    %252 = vector.load %arg9[%c3_276, %c0_277, %c0_278] : memref<5x1x16xf32, #tpu.memory_space<vmem>>, vector<1x1x16xf32>
    %253 = vector.shape_cast %252 : vector<1x1x16xf32> to vector<1x16xf32>
    %254 = arith.addf %251, %253 : vector<1x16xf32>
    %255 = arith.negf %254 : vector<1x16xf32>
    %256 = math.exp %255 : vector<1x16xf32>
    %cst_279 = arith.constant 1.000000e+00 : f32
    %257 = vector.broadcast %cst_279 : f32 to vector<1x16xf32>
    %258 = arith.addf %257, %256 : vector<1x16xf32>
    %259 = arith.divf %257, %258 : vector<1x16xf32>
    %260 = vector.broadcast %259 : vector<1x16xf32> to vector<256x16xf32>
    %261 = arith.mulf %248, %260 : vector<256x16xf32>
    %c3_280 = arith.constant 3 : index
    %c0_281 = arith.constant 0 : index
    %c0_282 = arith.constant 0 : index
    %262 = vector.load %arg10[%c3_280, %c0_281, %c0_282] : memref<5x16x16xf32, #tpu.memory_space<vmem>>, vector<1x16x16xf32>
    %263 = vector.shape_cast %262 : vector<1x16x16xf32> to vector<16x16xf32>
    %cst_283 = arith.constant dense<0.000000e+00> : vector<256x16xf32>
    %264 = tpu.matmul %261, %263, %cst_283 {dimension_numbers = #tpu.dot_dimension_numbers<[1], [0], [0], [1], [0, 0, 1, 1], [], []>} : vector<256x16xf32>, vector<16x16xf32>, vector<256x16xf32> -> vector<256x16xf32>
    %265 = arith.addf %246, %264 : vector<256x16xf32>
    %c4_284 = arith.constant 4 : index
    %c0_285 = arith.constant 0 : index
    %c0_286 = arith.constant 0 : index
    %266 = vector.load %arg8[%c4_284, %c0_285, %c0_286] : memref<5x5x16xf32, #tpu.memory_space<vmem>>, vector<1x5x16xf32>
    %267 = vector.shape_cast %266 : vector<1x5x16xf32> to vector<5x16xf32>
    %cst_287 = arith.constant dense<0.000000e+00> : vector<1x16xf32>
    %268 = tpu.matmul %190, %267, %cst_287 {dimension_numbers = #tpu.dot_dimension_numbers<[1], [0], [0], [1], [0, 0, 1, 1], [], []>} : vector<1x5xf32>, vector<5x16xf32>, vector<1x16xf32> -> vector<1x16xf32>
    %c4_288 = arith.constant 4 : index
    %c0_289 = arith.constant 0 : index
    %c0_290 = arith.constant 0 : index
    %269 = vector.load %arg9[%c4_288, %c0_289, %c0_290] : memref<5x1x16xf32, #tpu.memory_space<vmem>>, vector<1x1x16xf32>
    %270 = vector.shape_cast %269 : vector<1x1x16xf32> to vector<1x16xf32>
    %271 = arith.addf %268, %270 : vector<1x16xf32>
    %272 = arith.negf %271 : vector<1x16xf32>
    %273 = math.exp %272 : vector<1x16xf32>
    %cst_291 = arith.constant 1.000000e+00 : f32
    %274 = vector.broadcast %cst_291 : f32 to vector<1x16xf32>
    %275 = arith.addf %274, %273 : vector<1x16xf32>
    %276 = arith.divf %274, %275 : vector<1x16xf32>
    %277 = arith.mulf %167, %276 : vector<1x16xf32>
    %c4_292 = arith.constant 4 : index
    %c0_293 = arith.constant 0 : index
    %c0_294 = arith.constant 0 : index
    %278 = vector.load %arg10[%c4_292, %c0_293, %c0_294] : memref<5x16x16xf32, #tpu.memory_space<vmem>>, vector<1x16x16xf32>
    %279 = vector.shape_cast %278 : vector<1x16x16xf32> to vector<16x16xf32>
    %cst_295 = arith.constant dense<0.000000e+00> : vector<1x16xf32>
    %280 = tpu.matmul %277, %279, %cst_295 {dimension_numbers = #tpu.dot_dimension_numbers<[1], [0], [0], [1], [0, 0, 1, 1], [], []>} : vector<1x16xf32>, vector<16x16xf32>, vector<1x16xf32> -> vector<1x16xf32>
    %281 = vector.broadcast %280 : vector<1x16xf32> to vector<256x16xf32>
    %282 = arith.addf %265, %281 : vector<256x16xf32>
    %c0_296 = arith.constant 0 : index
    %c0_297 = arith.constant 0 : index
    %283 = vector.load %arg11[%c0_296, %c0_297] : memref<1x16xf32, #tpu.memory_space<vmem>>, vector<1x16xf32>
    %284 = vector.broadcast %283 : vector<1x16xf32> to vector<256x16xf32>
    %285 = arith.addf %282, %284 : vector<256x16xf32>
    %cst_298 = arith.constant 0.000000e+00 : f32
    %286 = vector.broadcast %cst_298 : f32 to vector<256x16xf32>
    %287 = arith.maximumf %285, %286 : vector<256x16xf32>
    %288 = vector.shape_cast %287 : vector<256x16xf32> to vector<8x2x16x16xf32>
    %289 = vector.extract_strided_slice %288 {offsets = [0, 0, 0, 0], sizes = [8, 1, 16, 16], strides = [1, 1, 1, 1]} : vector<8x2x16x16xf32> to vector<8x1x16x16xf32>
    %290 = vector.shape_cast %289 : vector<8x1x16x16xf32> to vector<8x16x16xf32>
    %291 = vector.extract_strided_slice %288 {offsets = [0, 1, 0, 0], sizes = [8, 1, 16, 16], strides = [1, 1, 1, 1]} : vector<8x2x16x16xf32> to vector<8x1x16x16xf32>
    %292 = vector.shape_cast %291 : vector<8x1x16x16xf32> to vector<8x16x16xf32>
    %293 = arith.maximumf %290, %292 : vector<8x16x16xf32>
    %294 = vector.shape_cast %293 : vector<8x16x16xf32> to vector<128x16xf32>
    %c0_299 = arith.constant 0 : index
    %c0_300 = arith.constant 0 : index
    %295 = vector.load %arg16[%c0_299, %c0_300] : memref<128x16xf32, #tpu.memory_space<vmem>>, vector<128x16xf32>
    tpu.vector_store %arg16[%c0_299, %c0_300], %294 {strides = array<i32>} : memref<128x16xf32, #tpu.memory_space<vmem>>, vector<128x16xf32>,
    %c0_301 = arith.constant 0 : index
    %c0_302 = arith.constant 0 : index
    %296 = tpu.strided_load %arg16[%c0_301, %c0_302] {strides = array<i32: 2, 1>} : memref<128x16xf32, #tpu.memory_space<vmem>>, vector<64x16xf32>
    %c1_303 = arith.constant 1 : index
    %c0_304 = arith.constant 0 : index
    %297 = tpu.strided_load %arg16[%c1_303, %c0_304] {strides = array<i32: 2, 1>} : memref<128x16xf32, #tpu.memory_space<vmem>>, vector<64x16xf32>
    %298 = arith.maximumf %296, %297 : vector<64x16xf32>
    %299 = vector.shape_cast %298 : vector<64x16xf32> to vector<8x8x16xf32>
    %c0_305 = arith.constant 0 : index
    %c0_306 = arith.constant 0 : index
    %c0_307 = arith.constant 0 : index
    %c0_308 = arith.constant 0 : index
    %300 = vector.load %arg12[%c0_305, %c0_306, %c0_307, %c0_308] : memref<1x8x8x16xf32, #tpu.memory_space<vmem>>, vector<1x8x8x16xf32>
    %301 = vector.shape_cast %300 : vector<1x8x8x16xf32> to vector<8x8x16xf32>
    %302 = vector.shape_cast %299 : vector<8x8x16xf32> to vector<1x8x8x16xf32>
    tpu.vector_store %arg12[%c0_305, %c0_306, %c0_307, %c0_308], %302 {strides = array<i32>} : memref<1x8x8x16xf32, #tpu.memory_space<vmem>>, vector<1x8x8x16xf32>,
    return
  }
  func.func @transform_0(%arg0: i32) -> (i32, i32, i32, i32) {
    %c0_i32 = arith.constant 0 : i32
    %c0_i32_0 = arith.constant 0 : i32
    %c0_i32_1 = arith.constant 0 : i32
    %c0_i32_2 = arith.constant 0 : i32
    return %arg0, %c0_i32, %c0_i32_0, %c0_i32_1 : i32, i32, i32, i32
  }
  func.func @transform_1(%arg0: i32) -> (i32, i32) {
    %c0_i32 = arith.constant 0 : i32
    %c0_i32_0 = arith.constant 0 : i32
    %c0_i32_1 = arith.constant 0 : i32
    return %c0_i32, %c0_i32_0 : i32, i32
  }
  func.func @transform_2(%arg0: i32) -> (i32, i32, i32) {
    %c0_i32 = arith.constant 0 : i32
    %c0_i32_0 = arith.constant 0 : i32
    %c0_i32_1 = arith.constant 0 : i32
    %c0_i32_2 = arith.constant 0 : i32
    return %c0_i32, %c0_i32_0, %c0_i32_1 : i32, i32, i32
  }
  func.func @transform_3(%arg0: i32) -> (i32, i32) {
    %c0_i32 = arith.constant 0 : i32
    %c0_i32_0 = arith.constant 0 : i32
    %c0_i32_1 = arith.constant 0 : i32
    return %c0_i32, %c0_i32_0 : i32, i32
  }
  func.func @transform_4(%arg0: i32) -> (i32, i32, i32) {
    %c0_i32 = arith.constant 0 : i32
    %c0_i32_0 = arith.constant 0 : i32
    %c0_i32_1 = arith.constant 0 : i32
    %c0_i32_2 = arith.constant 0 : i32
    return %c0_i32, %c0_i32_0, %c0_i32_1 : i32, i32, i32
  }
  func.func @transform_5(%arg0: i32) -> (i32, i32, i32) {
    %c0_i32 = arith.constant 0 : i32
    %c0_i32_0 = arith.constant 0 : i32
    %c0_i32_1 = arith.constant 0 : i32
    %c0_i32_2 = arith.constant 0 : i32
    return %c0_i32, %c0_i32_0, %c0_i32_1 : i32, i32, i32
  }
  func.func @transform_6(%arg0: i32) -> (i32, i32) {
    %c0_i32 = arith.constant 0 : i32
    %c0_i32_0 = arith.constant 0 : i32
    %c0_i32_1 = arith.constant 0 : i32
    return %c0_i32, %c0_i32_0 : i32, i32
  }
  func.func @transform_7(%arg0: i32) -> (i32, i32, i32) {
    %c0_i32 = arith.constant 0 : i32
    %c0_i32_0 = arith.constant 0 : i32
    %c0_i32_1 = arith.constant 0 : i32
    %c0_i32_2 = arith.constant 0 : i32
    return %c0_i32, %c0_i32_0, %c0_i32_1 : i32, i32, i32
  }
  func.func @transform_8(%arg0: i32) -> (i32, i32, i32) {
    %c0_i32 = arith.constant 0 : i32
    %c0_i32_0 = arith.constant 0 : i32
    %c0_i32_1 = arith.constant 0 : i32
    %c0_i32_2 = arith.constant 0 : i32
    return %c0_i32, %c0_i32_0, %c0_i32_1 : i32, i32, i32
  }
  func.func @transform_9(%arg0: i32) -> (i32, i32, i32) {
    %c0_i32 = arith.constant 0 : i32
    %c0_i32_0 = arith.constant 0 : i32
    %c0_i32_1 = arith.constant 0 : i32
    %c0_i32_2 = arith.constant 0 : i32
    return %c0_i32, %c0_i32_0, %c0_i32_1 : i32, i32, i32
  }
  func.func @transform_10(%arg0: i32) -> (i32, i32) {
    %c0_i32 = arith.constant 0 : i32
    %c0_i32_0 = arith.constant 0 : i32
    %c0_i32_1 = arith.constant 0 : i32
    return %c0_i32, %c0_i32_0 : i32, i32
  }
  func.func @transform_11(%arg0: i32) -> (i32, i32, i32, i32) {
    %c0_i32 = arith.constant 0 : i32
    %c0_i32_0 = arith.constant 0 : i32
    %c0_i32_1 = arith.constant 0 : i32
    %c0_i32_2 = arith.constant 0 : i32
    return %arg0, %c0_i32, %c0_i32_0, %c0_i32_1 : i32, i32, i32, i32
  }
}

</mosaic_0001>

<llo_original>
// kernel: a_call__.1
$region0: #{a_call__.1}
  #allocation0 [shape = 'u32[]', space=smem, size = 0x4, offset = 0x4, fixed_abs, tag = 'smem constant byte address 0x4 - core index']
  #allocation1 [shape = 'u32[72,128]{1,0:T(1,128)}', space=vmem, size = 0x9000, scoped, tag = 'internal scratch']
  #allocation2 [shape = 'f32[52,52,32]{2,1,0:T(8,128)}', space=vmem, size = 0x16c000, scoped, tag = 'scratch operand']
  #allocation3 [shape = 'f32[256,288]{1,0:T(8,128)}', space=vmem, size = 0x60000, scoped, tag = 'scratch operand']
  #allocation4 [shape = 'f32[4,256,16]{2,1,0:T(8,128)}', space=vmem, size = 0x80000, scoped, tag = 'scratch operand']
  #allocation5 [shape = 'f32[128,16]{1,0:T(8,128)}', space=vmem, size = 0x10000, scoped, tag = 'scratch operand']
  %s0 = inlined_call_operand.hbm [shape: f32[2,16,16,32], index: 0, kind: input, shape index: {}]
  %s1 = inlined_call_operand.hbm [shape: f32[32,16], index: 1, kind: input, shape index: {}]
  %s2 = inlined_call_operand.hbm [shape: f32[3,288,16], index: 2, kind: input, shape index: {}]
  %s3 = inlined_call_operand.hbm [shape: f32[32,16], index: 3, kind: input, shape index: {}]
  %s4 = inlined_call_operand.hbm [shape: f32[5,1,16], index: 4, kind: input, shape index: {}]
  %s5 = inlined_call_operand.hbm [shape: f32[5,16,5], index: 5, kind: input, shape index: {}]
  %s6 = inlined_call_operand.vmem [shape: f32[1,5], index: 6, kind: input, shape index: {}]
  %s7 = inlined_call_operand.hbm [shape: f32[5,5,16], index: 7, kind: input, shape index: {}]
  %s8 = inlined_call_operand.vmem [shape: f32[5,1,16], index: 8, kind: input, shape index: {}]
  %s9 = inlined_call_operand.hbm [shape: f32[5,16,16], index: 9, kind: input, shape index: {}]
  %s10 = inlined_call_operand.vmem [shape: f32[1,16], index: 10, kind: input, shape index: {}]
  %s11 = inlined_call_operand.hbm [shape: f32[2,8,8,16], index: 11, kind: output, shape index: {}]
  %s12 = sld [smem:[#allocation0]]
  $region109: #{a_call__.1} parent=0
    _
  %s14 = ssub.s32 1, %s12
  %s15 = scalar_select 0, %s14, %s12
  $region1: #{a_call__.1} parent=0
    #allocation6 [shape = 'u8[262144]{0}', space=vmem, size = 0x40000, scoped, tag = 'input window, operand 0']
    #allocation7 [shape = 's32[2]{0}', space=sflag, size = 0x8, scoped, tag = 'scoped memory for a_call__.1']
    #allocation8 [shape = 's32[2]{0}', space=sflag, size = 0x8, scoped, tag = 'scoped memory for a_call__.1']
    #allocation9 [shape = 'u8[16384]{0}', space=vmem, size = 0x4000, scoped, tag = 'input window, operand 1, single buffered']
    #allocation10 [shape = 's32[1]{0}', space=sflag, size = 0x4, scoped, tag = 'scoped memory for a_call__.1']
    #allocation11 [shape = 'u8[442368]{0}', space=vmem, size = 0x6c000, scoped, tag = 'input window, operand 2, single buffered']
    #allocation12 [shape = 'u8[16384]{0}', space=vmem, size = 0x4000, scoped, tag = 'input window, operand 3, single buffered']
    #allocation13 [shape = 's32[1]{0}', space=sflag, size = 0x4, scoped, tag = 'scoped memory for a_call__.1']
    #allocation14 [shape = 'u8[2560]{0}', space=vmem, size = 0xc00, scoped, tag = 'input window, operand 4, single buffered']
    #allocation15 [shape = 'u8[40960]{0}', space=vmem, size = 0xa000, scoped, tag = 'input window, operand 5, single buffered']
    #allocation16 [shape = 's32[1]{0}', space=sflag, size = 0x4, scoped, tag = 'scoped memory for a_call__.1']
    #allocation17 [shape = 'u8[20480]{0}', space=vmem, size = 0x5000, scoped, tag = 'input window, operand 7, single buffered']
    #allocation18 [shape = 'u8[40960]{0}', space=vmem, size = 0xa000, scoped, tag = 'input window, operand 9, single buffered']
    #allocation19 [shape = 's32[1]{0}', space=sflag, size = 0x4, scoped, tag = 'scoped memory for a_call__.1']
    #allocation20 [shape = 'u8[65536]{0}', space=vmem, size = 0x10000, scoped, tag = 'output window, operand 0']
    %16 = vsyncpa [#allocation7], 0
    %s17 = scalar_lea.sflag [#allocation7], 1
    %18 = vsyncpa %s17, 0
    %19 = vsyncpa [#allocation10], 0
    %20 = vsyncpa [#allocation13], 0
    %21 = vsyncpa [#allocation16], 0
    %22 = vsyncpa [#allocation19], 0
    %23 = vsyncpa [#allocation8], 0
    %s24 = scalar_lea.sflag [#allocation8], 1
    %25 = vsyncpa %s24, 0
    loop: start=0, step=1, limit=4
    $region2: #{a_call__.1} parent=1 // loop_pre_header
      _
    $region3: #{a_call__.1} parent=1 // loop_header
      %s27 = sphi 0, %s31
      %p28 = scmp.ge.s32.totalorder %s27, 4
      %s37 = sphi 0, %s39
      %s40 = sphi 0, %s37
      %s41 = sphi 0, %s40
      %s57 = sphi 0, %s41
      %s61 = sphi 0, %s61
      %s63 = sphi 0, %s61
      %s64 = sphi 0, %s63
      %s78 = sphi 0, %s64
      %s82 = sphi 0, %s82
      %s84 = sphi 0, %s82
      %s85 = sphi 0, %s84
      %s99 = sphi 0, %s85
      %s103 = sphi 0, %s103
      %s105 = sphi 0, %s103
      %s106 = sphi 0, %s105
      %s120 = sphi 0, %s106
      %s124 = sphi 0, %s124
      %s126 = sphi 0, %s124
      %s127 = sphi 0, %s126
      %s141 = sphi 0, %s127
      %s145 = sphi 0, %s145
      %s147 = sphi 0, %s145
      %s148 = sphi 0, %s147
      %s162 = sphi 0, %s148
      %s166 = sphi 0, %s166
      %s168 = sphi 0, %s166
      %s169 = sphi 0, %s168
      %s183 = sphi 0, %s169
      %s187 = sphi 0, %s187
      %s189 = sphi 0, %s187
      %s190 = sphi 0, %s189
      %s204 = sphi 0, %s190
      %s208 = sphi 0, %s208
      %s210 = sphi 0, %s208
      %s211 = sphi 0, %s210
      %s225 = sphi 0, %s211
      %s229 = sphi 0, %s229
      %s231 = sphi 0, %s229
      %s232 = sphi 0, %s231
      %s246 = sphi 0, %s232
      %s250 = sphi 0, %s250
      %s252 = sphi 0, %s250
      %s253 = sphi 0, %s252
      %s267 = sphi 0, %s253
      %s273 = sphi 0, %s275
      %s276 = sphi 0, %s273
      %s277 = sphi 0, %s276
      %s293 = sphi 0, %s277
    $region4: #{a_call__.1} parent=1 // loop_header_branch
      %30 = sbr.rel (%p28) target = $region8
    $region5: #{a_call__.1} parent=1 // loop_body
      %s32 = ssub.s32 %s27, 1
      %s33 = ssub.s32 %s27, 2
      %s34 = sadd.s32 %s27, 1
      %s35 = ssub.s32 %s27, %s34
      %p36 = scmp.eq.s32.totalorder %s35, 0
      %s38 = sadd.s32 %s37, 1
      %s39 = scalar_select %p36, %s37, %s38
      %p42 = pneg %p36
      %p43 = scmp.eq.s32.totalorder %s27, 1
      %p44 = por %p42, %p43
      %p45 = scmp.ne.s32.totalorder %s37, %s40
      %p46 = scmp.eq.s32.totalorder %s27, 0
      %p47 = por %p45, %p46
      %p48 = scmp.ne.s32.totalorder %s37, %s40
      %p49 = scmp.eq.s32.totalorder %s32, 1
      %p50 = por %p48, %p49
      %p51 = scmp.ne.s32.totalorder %s40, %s41
      %p52 = scmp.eq.s32.totalorder %s32, 0
      %p53 = por %p51, %p52
      %p54 = scmp.ne.s32.totalorder %s40, %s41
      %p55 = scmp.eq.s32.totalorder %s33, 1
      %p56 = por %p54, %p55
      %p58 = scmp.ne.s32.totalorder %s41, %s57
      %p59 = scmp.eq.s32.totalorder %s33, 0
      %p60 = por %p58, %p59
      %s62 = sadd.s32 %s61, 1
      %p65 = scmp.eq.s32.totalorder %s27, 1
      %p66 = scmp.ne.s32.totalorder %s61, %s63
      %p67 = scmp.eq.s32.totalorder %s27, 0
      %p68 = por %p66, %p67
      %p69 = scmp.ne.s32.totalorder %s61, %s63
      %p70 = scmp.eq.s32.totalorder %s32, 1
      %p71 = por %p69, %p70
      %p72 = scmp.ne.s32.totalorder %s63, %s64
      %p73 = scmp.eq.s32.totalorder %s32, 0
      %p74 = por %p72, %p73
      %p75 = scmp.ne.s32.totalorder %s63, %s64
      %p76 = scmp.eq.s32.totalorder %s33, 1
      %p77 = por %p75, %p76
      %p79 = scmp.ne.s32.totalorder %s64, %s78
      %p80 = scmp.eq.s32.totalorder %s33, 0
      %p81 = por %p79, %p80
      %s83 = sadd.s32 %s82, 1
      %p86 = scmp.eq.s32.totalorder %s27, 1
      %p87 = scmp.ne.s32.totalorder %s82, %s84
      %p88 = scmp.eq.s32.totalorder %s27, 0
      %p89 = por %p87, %p88
      %p90 = scmp.ne.s32.totalorder %s82, %s84
      %p91 = scmp.eq.s32.totalorder %s32, 1
      %p92 = por %p90, %p91
      %p93 = scmp.ne.s32.totalorder %s84, %s85
      %p94 = scmp.eq.s32.totalorder %s32, 0
      %p95 = por %p93, %p94
      %p96 = scmp.ne.s32.totalorder %s84, %s85
      %p97 = scmp.eq.s32.totalorder %s33, 1
      %p98 = por %p96, %p97
      %p100 = scmp.ne.s32.totalorder %s85, %s99
      %p101 = scmp.eq.s32.totalorder %s33, 0
      %p102 = por %p100, %p101
      %s104 = sadd.s32 %s103, 1
      %p107 = scmp.eq.s32.totalorder %s27, 1
      %p108 = scmp.ne.s32.totalorder %s103, %s105
      %p109 = scmp.eq.s32.totalorder %s27, 0
      %p110 = por %p108, %p109
      %p111 = scmp.ne.s32.totalorder %s103, %s105
      %p112 = scmp.eq.s32.totalorder %s32, 1
      %p113 = por %p111, %p112
      %p114 = scmp.ne.s32.totalorder %s105, %s106
      %p115 = scmp.eq.s32.totalorder %s32, 0
      %p116 = por %p114, %p115
      %p117 = scmp.ne.s32.totalorder %s105, %s106
      %p118 = scmp.eq.s32.totalorder %s33, 1
      %p119 = por %p117, %p118
      %p121 = scmp.ne.s32.totalorder %s106, %s120
      %p122 = scmp.eq.s32.totalorder %s33, 0
      %p123 = por %p121, %p122
      %s125 = sadd.s32 %s124, 1
      %p128 = scmp.eq.s32.totalorder %s27, 1
      %p129 = scmp.ne.s32.totalorder %s124, %s126
      %p130 = scmp.eq.s32.totalorder %s27, 0
      %p131 = por %p129, %p130
      %p132 = scmp.ne.s32.totalorder %s124, %s126
      %p133 = scmp.eq.s32.totalorder %s32, 1
      %p134 = por %p132, %p133
      %p135 = scmp.ne.s32.totalorder %s126, %s127
      %p136 = scmp.eq.s32.totalorder %s32, 0
      %p137 = por %p135, %p136
      %p138 = scmp.ne.s32.totalorder %s126, %s127
      %p139 = scmp.eq.s32.totalorder %s33, 1
      %p140 = por %p138, %p139
      %p142 = scmp.ne.s32.totalorder %s127, %s141
      %p143 = scmp.eq.s32.totalorder %s33, 0
      %p144 = por %p142, %p143
      %s146 = sadd.s32 %s145, 1
      %p149 = scmp.eq.s32.totalorder %s27, 1
      %p150 = scmp.ne.s32.totalorder %s145, %s147
      %p151 = scmp.eq.s32.totalorder %s27, 0
      %p152 = por %p150, %p151
      %p153 = scmp.ne.s32.totalorder %s145, %s147
      %p154 = scmp.eq.s32.totalorder %s32, 1
      %p155 = por %p153, %p154
      %p156 = scmp.ne.s32.totalorder %s147, %s148
      %p157 = scmp.eq.s32.totalorder %s32, 0
      %p158 = por %p156, %p157
      %p159 = scmp.ne.s32.totalorder %s147, %s148
      %p160 = scmp.eq.s32.totalorder %s33, 1
      %p161 = por %p159, %p160
      %p163 = scmp.ne.s32.totalorder %s148, %s162
      %p164 = scmp.eq.s32.totalorder %s33, 0
      %p165 = por %p163, %p164
      %s167 = sadd.s32 %s166, 1
      %p170 = scmp.eq.s32.totalorder %s27, 1
      %p171 = scmp.ne.s32.totalorder %s166, %s168
      %p172 = scmp.eq.s32.totalorder %s27, 0
      %p173 = por %p171, %p172
      %p174 = scmp.ne.s32.totalorder %s166, %s168
      %p175 = scmp.eq.s32.totalorder %s32, 1
      %p176 = por %p174, %p175
      %p177 = scmp.ne.s32.totalorder %s168, %s169
      %p178 = scmp.eq.s32.totalorder %s32, 0
      %p179 = por %p177, %p178
      %p180 = scmp.ne.s32.totalorder %s168, %s169
      %p181 = scmp.eq.s32.totalorder %s33, 1
      %p182 = por %p180, %p181
      %p184 = scmp.ne.s32.totalorder %s169, %s183
      %p185 = scmp.eq.s32.totalorder %s33, 0
      %p186 = por %p184, %p185
      %s188 = sadd.s32 %s187, 1
      %p191 = scmp.eq.s32.totalorder %s27, 1
      %p192 = scmp.ne.s32.totalorder %s187, %s189
      %p193 = scmp.eq.s32.totalorder %s27, 0
      %p194 = por %p192, %p193
      %p195 = scmp.ne.s32.totalorder %s187, %s189
      %p196 = scmp.eq.s32.totalorder %s32, 1
      %p197 = por %p195, %p196
      %p198 = scmp.ne.s32.totalorder %s189, %s190
      %p199 = scmp.eq.s32.totalorder %s32, 0
      %p200 = por %p198, %p199
      %p201 = scmp.ne.s32.totalorder %s189, %s190
      %p202 = scmp.eq.s32.totalorder %s33, 1
      %p203 = por %p201, %p202
      %p205 = scmp.ne.s32.totalorder %s190, %s204
      %p206 = scmp.eq.s32.totalorder %s33, 0
      %p207 = por %p205, %p206
      %s209 = sadd.s32 %s208, 1
      %p212 = scmp.eq.s32.totalorder %s27, 1
      %p213 = scmp.ne.s32.totalorder %s208, %s210
      %p214 = scmp.eq.s32.totalorder %s27, 0
      %p215 = por %p213, %p214
      %p216 = scmp.ne.s32.totalorder %s208, %s210
      %p217 = scmp.eq.s32.totalorder %s32, 1
      %p218 = por %p216, %p217
      %p219 = scmp.ne.s32.totalorder %s210, %s211
      %p220 = scmp.eq.s32.totalorder %s32, 0
      %p221 = por %p219, %p220
      %p222 = scmp.ne.s32.totalorder %s210, %s211
      %p223 = scmp.eq.s32.totalorder %s33, 1
      %p224 = por %p222, %p223
      %p226 = scmp.ne.s32.totalorder %s211, %s225
      %p227 = scmp.eq.s32.totalorder %s33, 0
      %p228 = por %p226, %p227
      %s230 = sadd.s32 %s229, 1
      %p233 = scmp.eq.s32.totalorder %s27, 1
      %p234 = scmp.ne.s32.totalorder %s229, %s231
      %p235 = scmp.eq.s32.totalorder %s27, 0
      %p236 = por %p234, %p235
      %p237 = scmp.ne.s32.totalorder %s229, %s231
      %p238 = scmp.eq.s32.totalorder %s32, 1
      %p239 = por %p237, %p238
      %p240 = scmp.ne.s32.totalorder %s231, %s232
      %p241 = scmp.eq.s32.totalorder %s32, 0
      %p242 = por %p240, %p241
      %p243 = scmp.ne.s32.totalorder %s231, %s232
      %p244 = scmp.eq.s32.totalorder %s33, 1
      %p245 = por %p243, %p244
      %p247 = scmp.ne.s32.totalorder %s232, %s246
      %p248 = scmp.eq.s32.totalorder %s33, 0
      %p249 = por %p247, %p248
      %s251 = sadd.s32 %s250, 1
      %p254 = scmp.eq.s32.totalorder %s27, 1
      %p255 = scmp.ne.s32.totalorder %s250, %s252
      %p256 = scmp.eq.s32.totalorder %s27, 0
      %p257 = por %p255, %p256
      %p258 = scmp.ne.s32.totalorder %s250, %s252
      %p259 = scmp.eq.s32.totalorder %s32, 1
      %p260 = por %p258, %p259
      %p261 = scmp.ne.s32.totalorder %s252, %s253
      %p262 = scmp.eq.s32.totalorder %s32, 0
      %p263 = por %p261, %p262
      %p264 = scmp.ne.s32.totalorder %s252, %s253
      %p265 = scmp.eq.s32.totalorder %s33, 1
      %p266 = por %p264, %p265
      %p268 = scmp.ne.s32.totalorder %s253, %s267
      %p269 = scmp.eq.s32.totalorder %s33, 0
      %p270 = por %p268, %p269
      %s271 = ssub.s32 %s27, %s34
      %p272 = scmp.eq.s32.totalorder %s271, 0
      %s274 = sadd.s32 %s273, 1
      %s275 = scalar_select %p272, %s273, %s274
      %p278 = pneg %p272
      %p279 = scmp.eq.s32.totalorder %s27, 1
      %p280 = por %p278, %p279
      %p281 = scmp.ne.s32.totalorder %s273, %s276
      %p282 = scmp.eq.s32.totalorder %s27, 0
      %p283 = por %p281, %p282
      %p284 = scmp.ne.s32.totalorder %s273, %s276
      %p285 = scmp.eq.s32.totalorder %s32, 1
      %p286 = por %p284, %p285
      %p287 = scmp.ne.s32.totalorder %s276, %s277
      %p288 = scmp.eq.s32.totalorder %s32, 0
      %p289 = por %p287, %p288
      %p290 = scmp.ne.s32.totalorder %s276, %s277
      %p291 = scmp.eq.s32.totalorder %s33, 1
      %p292 = por %p290, %p291
      %p294 = scmp.ne.s32.totalorder %s277, %s293
      %p295 = scmp.eq.s32.totalorder %s33, 0
      %p296 = por %p294, %p295
      %p297 = scmp.le.s32.totalorder 1, %s27
      %p298 = scmp.lt.s32.totalorder %s27, 3
      %p299 = pnand %p297, %p298
      %p300 = pneg %p299
      // Predicated region
      $region9: #{a_call__.1} parent=5 // pred_check
        _
      $region10: #{a_call__.1} parent=5 // pred_check_branch
        %302 = sbr.rel (%p299) target = $region12
      $region11: #{a_call__.1} parent=5 // pred_region
        %s303 = ssub.s32 %s27, 1
        // Predicated region
        $region13: #{a_call__.1} parent=11 // pred_check
          %p304 = pneg %p74
        $region14: #{a_call__.1} parent=11 // pred_check_branch
          %306 = sbr.rel (%p304) target = $region16
        $region15: #{a_call__.1} parent=11 // pred_region
          %308 = vsyncadd [#allocation10], 0
          %s309 = sshll.u32 %s1, 4
          %s310 = int_to_ptr.hbm [resolvable:$true] %s309
          %s311 = sshll.u32 [#allocation9], 4
          %s312 = int_to_ptr.vmem [resolvable:$true] %s311
          %317 = dma.hbm_to_vmem [thread:$0]  %s310, 512, %s312, [#allocation10], 128, 128, 8
        $region16: #{a_call__.1} parent=11 // pred_fallthru
          _
        // Predicated region
        $region17: #{a_call__.1} parent=11 // pred_check
          %p318 = pneg %p95
        $region18: #{a_call__.1} parent=11 // pred_check_branch
          %320 = sbr.rel (%p318) target = $region20
        $region19: #{a_call__.1} parent=11 // pred_region
          %322 = vsyncadd [#allocation10], 0
          %s323 = sshll.u32 %s2, 4
          %s324 = int_to_ptr.hbm [resolvable:$true] %s323
          %s325 = sshll.u32 [#allocation11], 4
          %s326 = int_to_ptr.vmem [resolvable:$true] %s325
          %331 = dma.hbm_to_vmem [thread:$0]  %s324, 13824, %s326, [#allocation10], 128, 128, 8
        $region20: #{a_call__.1} parent=11 // pred_fallthru
          _
        // Predicated region
        $region21: #{a_call__.1} parent=11 // pred_check
          %p332 = pneg %p116
        $region22: #{a_call__.1} parent=11 // pred_check_branch
          %334 = sbr.rel (%p332) target = $region24
        $region23: #{a_call__.1} parent=11 // pred_region
          %336 = vsyncadd [#allocation13], 0
          %s337 = sshll.u32 %s3, 4
          %s338 = int_to_ptr.hbm [resolvable:$true] %s337
          %s339 = sshll.u32 [#allocation12], 4
          %s340 = int_to_ptr.vmem [resolvable:$true] %s339
          %345 = dma.hbm_to_vmem [thread:$0]  %s338, 512, %s340, [#allocation13], 128, 128, 8
        $region24: #{a_call__.1} parent=11 // pred_fallthru
          _
        // Predicated region
        $region25: #{a_call__.1} parent=11 // pred_check
          %p346 = pneg %p137
        $region26: #{a_call__.1} parent=11 // pred_check_branch
          %348 = sbr.rel (%p346) target = $region28
        $region27: #{a_call__.1} parent=11 // pred_region
          %350 = vsyncadd [#allocation13], 0
          %s351 = sshll.u32 %s4, 4
          %s352 = int_to_ptr.hbm [resolvable:$true] %s351
          %s353 = sshll.u32 [#allocation14], 4
          %s354 = int_to_ptr.vmem [resolvable:$true] %s353
          %359 = dma.hbm_to_vmem [thread:$0]  %s352, 80, %s354, [#allocation13], 16, 16, 1
        $region28: #{a_call__.1} parent=11 // pred_fallthru
          _
        // Predicated region
        $region29: #{a_call__.1} parent=11 // pred_check
          %p360 = pneg %p158
        $region30: #{a_call__.1} parent=11 // pred_check_branch
          %362 = sbr.rel (%p360) target = $region32
        $region31: #{a_call__.1} parent=11 // pred_region
          %364 = vsyncadd [#allocation16], 0
          %s365 = sshll.u32 %s5, 4
          %s366 = int_to_ptr.hbm [resolvable:$true] %s365
          %s367 = sshll.u32 [#allocation15], 4
          %s368 = int_to_ptr.vmem [resolvable:$true] %s367
          %373 = dma.hbm_to_vmem [thread:$0]  %s366, 1280, %s368, [#allocation16], 128, 128, 8
        $region32: #{a_call__.1} parent=11 // pred_fallthru
          _
        // Predicated region
        $region33: #{a_call__.1} parent=11 // pred_check
          %p374 = pneg %p179
        $region34: #{a_call__.1} parent=11 // pred_check_branch
          %376 = sbr.rel (%p374) target = $region36
        $region35: #{a_call__.1} parent=11 // pred_region
          _
        $region36: #{a_call__.1} parent=11 // pred_fallthru
          _
        // Predicated region
        $region37: #{a_call__.1} parent=11 // pred_check
          %p377 = pneg %p200
        $region38: #{a_call__.1} parent=11 // pred_check_branch
          %379 = sbr.rel (%p377) target = $region40
        $region39: #{a_call__.1} parent=11 // pred_region
          %381 = vsyncadd [#allocation16], 0
          %s382 = sshll.u32 %s7, 4
          %s383 = int_to_ptr.hbm [resolvable:$true] %s382
          %s384 = sshll.u32 [#allocation17], 4
          %s385 = int_to_ptr.vmem [resolvable:$true] %s384
          %390 = dma.hbm_to_vmem [thread:$0]  %s383, 640, %s385, [#allocation16], 128, 128, 8
        $region40: #{a_call__.1} parent=11 // pred_fallthru
          _
        // Predicated region
        $region41: #{a_call__.1} parent=11 // pred_check
          %p391 = pneg %p221
        $region42: #{a_call__.1} parent=11 // pred_check_branch
          %393 = sbr.rel (%p391) target = $region44
        $region43: #{a_call__.1} parent=11 // pred_region
          _
        $region44: #{a_call__.1} parent=11 // pred_fallthru
          _
        // Predicated region
        $region45: #{a_call__.1} parent=11 // pred_check
          %p394 = pneg %p242
        $region46: #{a_call__.1} parent=11 // pred_check_branch
          %396 = sbr.rel (%p394) target = $region48
        $region47: #{a_call__.1} parent=11 // pred_region
          %398 = vsyncadd [#allocation19], 0
          %s399 = sshll.u32 %s9, 4
          %s400 = int_to_ptr.hbm [resolvable:$true] %s399
          %s401 = sshll.u32 [#allocation18], 4
          %s402 = int_to_ptr.vmem [resolvable:$true] %s401
          %407 = dma.hbm_to_vmem [thread:$0]  %s400, 1280, %s402, [#allocation19], 128, 128, 8
        $region48: #{a_call__.1} parent=11 // pred_fallthru
          _
        // Predicated region
        $region49: #{a_call__.1} parent=11 // pred_check
          %p408 = pneg %p263
        $region50: #{a_call__.1} parent=11 // pred_check_branch
          %410 = sbr.rel (%p408) target = $region52
        $region51: #{a_call__.1} parent=11 // pred_region
          _
        $region52: #{a_call__.1} parent=11 // pred_fallthru
          _
      $region12: #{a_call__.1} parent=5 // pred_fallthru
        _
      %p411 = scmp.lt.s32.totalorder %s27, 2
      // Predicated region
      $region53: #{a_call__.1} parent=5 // pred_check
        %p412 = pneg %p411
      $region54: #{a_call__.1} parent=5 // pred_check_branch
        %414 = sbr.rel (%p412) target = $region56
      $region55: #{a_call__.1} parent=5 // pred_region
        // Predicated region
        $region57: #{a_call__.1} parent=55 // pred_check
          %p415 = pneg %p47
        $region58: #{a_call__.1} parent=55 // pred_check_branch
          %417 = sbr.rel (%p415) target = $region60
        $region59: #{a_call__.1} parent=55 // pred_region
          %s418 = sand.u32 %s37, 1
          %s419 = scalar_lea.sflag [#allocation7], %s418
          %s420 = sand.u32 %s37, 1
          %s421 = smul.addr %s420, 256
          %s422 = scalar_lea.vmem [#allocation6], %s421
          %424 = vsyncadd %s419, 0
          %s425 = smul.addr %s27, 32
          %s426 = smul.addr %s425, 8
          %s427 = scalar_lea.hbm %s0, %s426
          %s428 = sshll.u32 %s427, 4
          %s429 = int_to_ptr.hbm [resolvable:$true] %s428
          %s430 = sshll.u32 %s422, 4
          %s431 = int_to_ptr.vmem [resolvable:$true] %s430
          %436 = dma.hbm_to_vmem [thread:$0]  %s429, 4096, %s431, %s419, 128, 128, 8
        $region60: #{a_call__.1} parent=55 // pred_fallthru
          _
      $region56: #{a_call__.1} parent=5 // pred_fallthru
        _
      %p437 = scmp.le.s32.totalorder 1, %s27
      %p438 = scmp.lt.s32.totalorder %s27, 3
      %p439 = pnand %p437, %p438
      %p440 = pneg %p439
      // Predicated region
      $region61: #{a_call__.1} parent=5 // pred_check
        _
      $region62: #{a_call__.1} parent=5 // pred_check_branch
        %442 = sbr.rel (%p439) target = $region64
      $region63: #{a_call__.1} parent=5 // pred_region
        %s443 = ssub.s32 %s27, 1
        %s444 = sand.u32 %s40, 1
        %s445 = scalar_lea.sflag [#allocation7], %s444
        %s446 = sand.u32 %s40, 1
        %s447 = smul.addr %s446, 256
        %s448 = scalar_lea.vmem [#allocation6], %s447
        // Predicated region
        $region65: #{a_call__.1} parent=63 // pred_check
          %p449 = pneg %p53
        $region66: #{a_call__.1} parent=63 // pred_check_branch
          %451 = sbr.rel (%p449) target = $region68
        $region67: #{a_call__.1} parent=63 // pred_region
          %453 = dma.done %s445, 4096
        $region68: #{a_call__.1} parent=63 // pred_fallthru
          _
        // Predicated region
        $region69: #{a_call__.1} parent=63 // pred_check
          %p454 = pneg %p74
        $region70: #{a_call__.1} parent=63 // pred_check_branch
          %456 = sbr.rel (%p454) target = $region72
        $region71: #{a_call__.1} parent=63 // pred_region
          %458 = dma.done [#allocation10], 512
        $region72: #{a_call__.1} parent=63 // pred_fallthru
          _
        // Predicated region
        $region73: #{a_call__.1} parent=63 // pred_check
          %p459 = pneg %p95
        $region74: #{a_call__.1} parent=63 // pred_check_branch
          %461 = sbr.rel (%p459) target = $region76
        $region75: #{a_call__.1} parent=63 // pred_region
          %463 = dma.done [#allocation10], 13824
        $region76: #{a_call__.1} parent=63 // pred_fallthru
          _
        // Predicated region
        $region77: #{a_call__.1} parent=63 // pred_check
          %p464 = pneg %p116
        $region78: #{a_call__.1} parent=63 // pred_check_branch
          %466 = sbr.rel (%p464) target = $region80
        $region79: #{a_call__.1} parent=63 // pred_region
          %468 = dma.done [#allocation13], 512
        $region80: #{a_call__.1} parent=63 // pred_fallthru
          _
        // Predicated region
        $region81: #{a_call__.1} parent=63 // pred_check
          %p469 = pneg %p137
        $region82: #{a_call__.1} parent=63 // pred_check_branch
          %471 = sbr.rel (%p469) target = $region84
        $region83: #{a_call__.1} parent=63 // pred_region
          %473 = dma.done [#allocation13], 80
        $region84: #{a_call__.1} parent=63 // pred_fallthru
          _
        // Predicated region
        $region85: #{a_call__.1} parent=63 // pred_check
          %p474 = pneg %p158
        $region86: #{a_call__.1} parent=63 // pred_check_branch
          %476 = sbr.rel (%p474) target = $region88
        $region87: #{a_call__.1} parent=63 // pred_region
          %478 = dma.done [#allocation16], 1280
        $region88: #{a_call__.1} parent=63 // pred_fallthru
          _
        // Predicated region
        $region89: #{a_call__.1} parent=63 // pred_check
          %p479 = pneg %p200
        $region90: #{a_call__.1} parent=63 // pred_check_branch
          %481 = sbr.rel (%p479) target = $region92
        $region91: #{a_call__.1} parent=63 // pred_region
          %483 = dma.done [#allocation16], 640
        $region92: #{a_call__.1} parent=63 // pred_fallthru
          _
        // Predicated region
        $region93: #{a_call__.1} parent=63 // pred_check
          %p484 = pneg %p242
        $region94: #{a_call__.1} parent=63 // pred_check_branch
          %486 = sbr.rel (%p484) target = $region96
        $region95: #{a_call__.1} parent=63 // pred_region
          %488 = dma.done [#allocation19], 1280
        $region96: #{a_call__.1} parent=63 // pred_fallthru
          _
        %s489 = sand.u32 %s40, 1
        %s490 = scalar_lea.sflag [#allocation7], %s489
        %s491 = sand.u32 %s40, 1
        %s492 = smul.addr %s491, 256
        %s493 = scalar_lea.vmem [#allocation6], %s492
        %p494 = pneg %p53
        %p495 = pneg %p50
        %p496 = pneg %p74
        %p497 = pneg %p71
        %p498 = pneg %p95
        %p499 = pneg %p92
        %p500 = pneg %p116
        %p501 = pneg %p113
        %p502 = pneg %p137
        %p503 = pneg %p134
        %p504 = pneg %p158
        %p505 = pneg %p155
        %p506 = pneg %p179
        %p507 = pneg %p176
        %p508 = pneg %p200
        %p509 = pneg %p197
        %p510 = pneg %p221
        %p511 = pneg %p218
        %p512 = pneg %p242
        %p513 = pneg %p239
        %p514 = pneg %p263
        %p515 = pneg %p260
        %p516 = pneg %p289
        %p517 = pneg %p286
        %s518 = sand.u32 %s276, 1
        %s519 = scalar_lea.sflag [#allocation8], %s518
        %s520 = sand.u32 %s276, 1
        %s521 = smul.addr %s520, 64
        %s522 = scalar_lea.vmem [#allocation20], %s521
        %v523 = vld [vmem:[%s448] sm:$0xff]
        %v524 = vld [vmem:[%s448 + $0x8] sm:$0xff]
        %v525 = vld [vmem:[%s448 + $0x10] sm:$0xff]
        %v526 = vld [vmem:[%s448 + $0x18] sm:$0xff]
        %v527 = vld [vmem:[%s448 + $0x20] sm:$0xff]
        %v528 = vld [vmem:[%s448 + $0x28] sm:$0xff]
        %v529 = vld [vmem:[%s448 + $0x30] sm:$0xff]
        %v530 = vld [vmem:[%s448 + $0x38] sm:$0xff]
        %v531 = vld [vmem:[%s448 + $0x40] sm:$0xff]
        %v532 = vld [vmem:[%s448 + $0x48] sm:$0xff]
        %v533 = vld [vmem:[%s448 + $0x50] sm:$0xff]
        %v534 = vld [vmem:[%s448 + $0x58] sm:$0xff]
        %v535 = vld [vmem:[%s448 + $0x60] sm:$0xff]
        %v536 = vld [vmem:[%s448 + $0x68] sm:$0xff]
        %v537 = vld [vmem:[%s448 + $0x70] sm:$0xff]
        %v538 = vld [vmem:[%s448 + $0x78] sm:$0xff]
        %v539 = vld [vmem:[%s448 + $0x80] sm:$0xff]
        %v540 = vld [vmem:[%s448 + $0x88] sm:$0xff]
        %v541 = vld [vmem:[%s448 + $0x90] sm:$0xff]
        %v542 = vld [vmem:[%s448 + $0x98] sm:$0xff]
        %v543 = vld [vmem:[%s448 + $0xa0] sm:$0xff]
        %v544 = vld [vmem:[%s448 + $0xa8] sm:$0xff]
        %v545 = vld [vmem:[%s448 + $0xb0] sm:$0xff]
        %v546 = vld [vmem:[%s448 + $0xb8] sm:$0xff]
        %v547 = vld [vmem:[%s448 + $0xc0] sm:$0xff]
        %v548 = vld [vmem:[%s448 + $0xc8] sm:$0xff]
        %v549 = vld [vmem:[%s448 + $0xd0] sm:$0xff]
        %v550 = vld [vmem:[%s448 + $0xd8] sm:$0xff]
        %v551 = vld [vmem:[%s448 + $0xe0] sm:$0xff]
        %v552 = vld [vmem:[%s448 + $0xe8] sm:$0xff]
        %v553 = vld [vmem:[%s448 + $0xf0] sm:$0xff]
        %v554 = vld [vmem:[%s448 + $0xf8] sm:$0xff]
        %vm555 = vcmask 261120
        %556 = vst.msk [vmem:[#allocation2] sm:$0xff] %vm555, 0.0
        %557 = vst.msk [vmem:[#allocation2 + $0x8] sm:$0xff] %vm555, 0.0
        %558 = vst.msk [vmem:[#allocation2 + $0x10] sm:$0xff] %vm555, 0.0
        %559 = vst.msk [vmem:[#allocation2 + $0x18] sm:$0xff] %vm555, 0.0
        %560 = vst.msk [vmem:[#allocation2 + $0x20] sm:$0xff] %vm555, 0.0
        %561 = vst.msk [vmem:[#allocation2 + $0x28] sm:$0xff] %vm555, 0.0
        %vm562 = vcmask 257024
        %563 = vst.msk [vmem:[#allocation2 + $0x30] sm:$0xf] %vm562, 0.0
        %564 = vst.msk [vmem:[#allocation2 + $0x38] sm:$0xff] %vm555, 0.0
        %565 = vst.msk [vmem:[#allocation2 + $0x40] sm:$0xff] %vm555, 0.0
        %566 = vst.msk [vmem:[#allocation2 + $0x48] sm:$0xff] %vm555, 0.0
        %567 = vst.msk [vmem:[#allocation2 + $0x50] sm:$0xff] %vm555, 0.0
        %568 = vst.msk [vmem:[#allocation2 + $0x58] sm:$0xff] %vm555, 0.0
        %569 = vst.msk [vmem:[#allocation2 + $0x60] sm:$0xff] %vm555, 0.0
        %570 = vst.msk [vmem:[#allocation2 + $0x68] sm:$0xf] %vm562, 0.0
        %571 = vst.msk [vmem:[#allocation2 + $0x70] sm:$0xff] %vm555, 0.0
        %572 = vst.msk [vmem:[#allocation2 + $0x78] sm:$0xff] %vm555, 0.0
        %573 = vst.msk [vmem:[#allocation2 + $0x80] sm:$0xff] %vm555, 0.0
        %574 = vst.msk [vmem:[#allocation2 + $0x88] sm:$0xff] %vm555, 0.0
        %575 = vst.msk [vmem:[#allocation2 + $0x90] sm:$0xff] %vm555, 0.0
        %576 = vst.msk [vmem:[#allocation2 + $0x98] sm:$0xff] %vm555, 0.0
        %577 = vst.msk [vmem:[#allocation2 + $0xa0] sm:$0xf] %vm562, 0.0
        %578 = vst.msk [vmem:[#allocation2 + $0xa8] sm:$0xff] %vm555, 0.0
        %579 = vst.msk [vmem:[#allocation2 + $0xb0] sm:$0xff] %vm555, 0.0
        %580 = vst.msk [vmem:[#allocation2 + $0xb8] sm:$0xff] %vm555, 0.0
        %581 = vst.msk [vmem:[#allocation2 + $0xc0] sm:$0xff] %vm555, 0.0
        %582 = vst.msk [vmem:[#allocation2 + $0xc8] sm:$0xff] %vm555, 0.0
        %583 = vst.msk [vmem:[#allocation2 + $0xd0] sm:$0xff] %vm555, 0.0
        %584 = vst.msk [vmem:[#allocation2 + $0xd8] sm:$0xf] %vm562, 0.0
        %585 = vst.msk [vmem:[#allocation2 + $0xe0] sm:$0xff] %vm555, 0.0
        %586 = vst.msk [vmem:[#allocation2 + $0xe8] sm:$0xff] %vm555, 0.0
        %587 = vst.msk [vmem:[#allocation2 + $0xf0] sm:$0xff] %vm555, 0.0
        %588 = vst.msk [vmem:[#allocation2 + $0xf8] sm:$0xff] %vm555, 0.0
        %589 = vst.msk [vmem:[#allocation2 + $0x100] sm:$0xff] %vm555, 0.0
        %590 = vst.msk [vmem:[#allocation2 + $0x108] sm:$0xff] %vm555, 0.0
        %591 = vst.msk [vmem:[#allocation2 + $0x110] sm:$0xf] %vm562, 0.0
        %592 = vst.msk [vmem:[#allocation2 + $0x118] sm:$0xff] %vm555, 0.0
        %593 = vst.msk [vmem:[#allocation2 + $0x120] sm:$0xff] %vm555, 0.0
        %594 = vst.msk [vmem:[#allocation2 + $0x128] sm:$0xff] %vm555, 0.0
        %595 = vst.msk [vmem:[#allocation2 + $0x130] sm:$0xff] %vm555, 0.0
        %596 = vst.msk [vmem:[#allocation2 + $0x138] sm:$0xff] %vm555, 0.0
        %597 = vst.msk [vmem:[#allocation2 + $0x140] sm:$0xff] %vm555, 0.0
        %598 = vst.msk [vmem:[#allocation2 + $0x148] sm:$0xf] %vm562, 0.0
        %599 = vst.msk [vmem:[#allocation2 + $0x150] sm:$0xff] %vm555, 0.0
        %600 = vst.msk [vmem:[#allocation2 + $0x158] sm:$0xff] %vm555, 0.0
        %601 = vst.msk [vmem:[#allocation2 + $0x160] sm:$0xff] %vm555, 0.0
        %602 = vst.msk [vmem:[#allocation2 + $0x168] sm:$0xff] %vm555, 0.0
        %603 = vst.msk [vmem:[#allocation2 + $0x170] sm:$0xff] %vm555, 0.0
        %604 = vst.msk [vmem:[#allocation2 + $0x178] sm:$0xff] %vm555, 0.0
        %605 = vst.msk [vmem:[#allocation2 + $0x180] sm:$0xf] %vm562, 0.0
        %606 = vst.msk [vmem:[#allocation2 + $0x188] sm:$0xff] %vm555, 0.0
        %607 = vst.msk [vmem:[#allocation2 + $0x190] sm:$0xff] %vm555, 0.0
        %608 = vst.msk [vmem:[#allocation2 + $0x198] sm:$0xff] %vm555, 0.0
        %609 = vst.msk [vmem:[#allocation2 + $0x1a0] sm:$0xff] %vm555, 0.0
        %610 = vst.msk [vmem:[#allocation2 + $0x1a8] sm:$0xff] %vm555, 0.0
        %611 = vst.msk [vmem:[#allocation2 + $0x1b0] sm:$0xff] %vm555, 0.0
        %612 = vst.msk [vmem:[#allocation2 + $0x1b8] sm:$0xf] %vm562, 0.0
        %613 = vst.msk [vmem:[#allocation2 + $0x1c0] sm:$0xff] %vm555, 0.0
        %614 = vst.msk [vmem:[#allocation2 + $0x1c8] sm:$0xff] %vm555, 0.0
        %615 = vst.msk [vmem:[#allocation2 + $0x1d0] sm:$0xff] %vm555, 0.0
        %616 = vst.msk [vmem:[#allocation2 + $0x1d8] sm:$0xff] %vm555, 0.0
        %617 = vst.msk [vmem:[#allocation2 + $0x1e0] sm:$0xff] %vm555, 0.0
        %618 = vst.msk [vmem:[#allocation2 + $0x1e8] sm:$0xff] %vm555, 0.0
        %619 = vst.msk [vmem:[#allocation2 + $0x1f0] sm:$0xf] %vm562, 0.0
        %620 = vst.msk [vmem:[#allocation2 + $0x1f8] sm:$0xff] %vm555, 0.0
        %621 = vst.msk [vmem:[#allocation2 + $0x200] sm:$0xff] %vm555, 0.0
        %622 = vst.msk [vmem:[#allocation2 + $0x208] sm:$0xff] %vm555, 0.0
        %623 = vst.msk [vmem:[#allocation2 + $0x210] sm:$0xff] %vm555, 0.0
        %624 = vst.msk [vmem:[#allocation2 + $0x218] sm:$0xff] %vm555, 0.0
        %625 = vst.msk [vmem:[#allocation2 + $0x220] sm:$0xff] %vm555, 0.0
        %626 = vst.msk [vmem:[#allocation2 + $0x228] sm:$0xf] %vm562, 0.0
        %627 = vst.msk [vmem:[#allocation2 + $0x230] sm:$0xff] %vm555, 0.0
        %628 = vst.msk [vmem:[#allocation2 + $0x238] sm:$0xff] %vm555, 0.0
        %629 = vst.msk [vmem:[#allocation2 + $0x240] sm:$0xff] %vm555, 0.0
        %630 = vst.msk [vmem:[#allocation2 + $0x248] sm:$0xff] %vm555, 0.0
        %631 = vst.msk [vmem:[#allocation2 + $0x250] sm:$0xff] %vm555, 0.0
        %632 = vst.msk [vmem:[#allocation2 + $0x258] sm:$0xff] %vm555, 0.0
        %633 = vst.msk [vmem:[#allocation2 + $0x260] sm:$0xf] %vm562, 0.0
        %634 = vst.msk [vmem:[#allocation2 + $0x268] sm:$0xff] %vm555, 0.0
        %635 = vst.msk [vmem:[#allocation2 + $0x270] sm:$0xff] %vm555, 0.0
        %636 = vst.msk [vmem:[#allocation2 + $0x278] sm:$0xff] %vm555, 0.0
        %637 = vst.msk [vmem:[#allocation2 + $0x280] sm:$0xff] %vm555, 0.0
        %638 = vst.msk [vmem:[#allocation2 + $0x288] sm:$0xff] %vm555, 0.0
        %639 = vst.msk [vmem:[#allocation2 + $0x290] sm:$0xff] %vm555, 0.0
        %640 = vst.msk [vmem:[#allocation2 + $0x298] sm:$0xf] %vm562, 0.0
        %641 = vst.msk [vmem:[#allocation2 + $0x2a0] sm:$0xff] %vm555, 0.0
        %642 = vst.msk [vmem:[#allocation2 + $0x2a8] sm:$0xff] %vm555, 0.0
        %643 = vst.msk [vmem:[#allocation2 + $0x2b0] sm:$0xff] %vm555, 0.0
        %644 = vst.msk [vmem:[#allocation2 + $0x2b8] sm:$0xff] %vm555, 0.0
        %645 = vst.msk [vmem:[#allocation2 + $0x2c0] sm:$0xff] %vm555, 0.0
        %646 = vst.msk [vmem:[#allocation2 + $0x2c8] sm:$0xff] %vm555, 0.0
        %647 = vst.msk [vmem:[#allocation2 + $0x2d0] sm:$0xf] %vm562, 0.0
        %648 = vst.msk [vmem:[#allocation2 + $0x2d8] sm:$0xff] %vm555, 0.0
        %649 = vst.msk [vmem:[#allocation2 + $0x2e0] sm:$0xff] %vm555, 0.0
        %650 = vst.msk [vmem:[#allocation2 + $0x2e8] sm:$0xff] %vm555, 0.0
        %651 = vst.msk [vmem:[#allocation2 + $0x2f0] sm:$0xff] %vm555, 0.0
        %652 = vst.msk [vmem:[#allocation2 + $0x2f8] sm:$0xff] %vm555, 0.0
        %653 = vst.msk [vmem:[#allocation2 + $0x300] sm:$0xff] %vm555, 0.0
        %654 = vst.msk [vmem:[#allocation2 + $0x308] sm:$0xf] %vm562, 0.0
        %655 = vst.msk [vmem:[#allocation2 + $0x310] sm:$0xff] %vm555, 0.0
        %656 = vst.msk [vmem:[#allocation2 + $0x318] sm:$0xff] %vm555, 0.0
        %657 = vst.msk [vmem:[#allocation2 + $0x320] sm:$0xff] %vm555, 0.0
        %658 = vst.msk [vmem:[#allocation2 + $0x328] sm:$0xff] %vm555, 0.0
        %659 = vst.msk [vmem:[#allocation2 + $0x330] sm:$0xff] %vm555, 0.0
        %660 = vst.msk [vmem:[#allocation2 + $0x338] sm:$0xff] %vm555, 0.0
        %661 = vst.msk [vmem:[#allocation2 + $0x340] sm:$0xf] %vm562, 0.0
        %662 = vst.msk [vmem:[#allocation2 + $0x348] sm:$0xff] %vm555, 0.0
        %663 = vst.msk [vmem:[#allocation2 + $0x350] sm:$0xff] %vm555, 0.0
        %664 = vst.msk [vmem:[#allocation2 + $0x358] sm:$0xff] %vm555, 0.0
        %665 = vst.msk [vmem:[#allocation2 + $0x360] sm:$0xff] %vm555, 0.0
        %666 = vst.msk [vmem:[#allocation2 + $0x368] sm:$0xff] %vm555, 0.0
        %667 = vst.msk [vmem:[#allocation2 + $0x370] sm:$0xff] %vm555, 0.0
        %668 = vst.msk [vmem:[#allocation2 + $0x378] sm:$0xf] %vm562, 0.0
        %669 = vst.msk [vmem:[#allocation2 + $0x380] sm:$0xff] %vm555, 0.0
        %670 = vst.msk [vmem:[#allocation2 + $0x388] sm:$0xff] %vm555, 0.0
        %671 = vst.msk [vmem:[#allocation2 + $0x390] sm:$0xff] %vm555, 0.0
        %672 = vst.msk [vmem:[#allocation2 + $0x398] sm:$0xff] %vm555, 0.0
        %673 = vst.msk [vmem:[#allocation2 + $0x3a0] sm:$0xff] %vm555, 0.0
        %674 = vst.msk [vmem:[#allocation2 + $0x3a8] sm:$0xff] %vm555, 0.0
        %675 = vst.msk [vmem:[#allocation2 + $0x3b0] sm:$0xf] %vm562, 0.0
        %676 = vst.msk [vmem:[#allocation2 + $0x3b8] sm:$0xff] %vm555, 0.0
        %677 = vst.msk [vmem:[#allocation2 + $0x3c0] sm:$0xff] %vm555, 0.0
        %678 = vst.msk [vmem:[#allocation2 + $0x3c8] sm:$0xff] %vm555, 0.0
        %679 = vst.msk [vmem:[#allocation2 + $0x3d0] sm:$0xff] %vm555, 0.0
        %680 = vst.msk [vmem:[#allocation2 + $0x3d8] sm:$0xff] %vm555, 0.0
        %681 = vst.msk [vmem:[#allocation2 + $0x3e0] sm:$0xff] %vm555, 0.0
        %682 = vst.msk [vmem:[#allocation2 + $0x3e8] sm:$0xf] %vm562, 0.0
        %s683 = scalar_lea.vmem [#allocation2], 1904
        %684 = vst.msk [vmem:[%s683] sm:$0xff] %vm555, 0.0
        %685 = vst.msk [vmem:[%s683 + $0x8] sm:$0xff] %vm555, 0.0
        %686 = vst.msk [vmem:[%s683 + $0x10] sm:$0xff] %vm555, 0.0
        %687 = vst.msk [vmem:[%s683 + $0x18] sm:$0xff] %vm555, 0.0
        %688 = vst.msk [vmem:[%s683 + $0x20] sm:$0xff] %vm555, 0.0
        %689 = vst.msk [vmem:[%s683 + $0x28] sm:$0xff] %vm555, 0.0
        %690 = vst.msk [vmem:[%s683 + $0x30] sm:$0xf] %vm562, 0.0
        %691 = vst.msk [vmem:[%s683 + $0x38] sm:$0xff] %vm555, 0.0
        %692 = vst.msk [vmem:[%s683 + $0x40] sm:$0xff] %vm555, 0.0
        %693 = vst.msk [vmem:[%s683 + $0x48] sm:$0xff] %vm555, 0.0
        %694 = vst.msk [vmem:[%s683 + $0x50] sm:$0xff] %vm555, 0.0
        %695 = vst.msk [vmem:[%s683 + $0x58] sm:$0xff] %vm555, 0.0
        %696 = vst.msk [vmem:[%s683 + $0x60] sm:$0xff] %vm555, 0.0
        %697 = vst.msk [vmem:[%s683 + $0x68] sm:$0xf] %vm562, 0.0
        %698 = vst.msk [vmem:[%s683 + $0x70] sm:$0xff] %vm555, 0.0
        %699 = vst.msk [vmem:[%s683 + $0x78] sm:$0xff] %vm555, 0.0
        %700 = vst.msk [vmem:[%s683 + $0x80] sm:$0xff] %vm555, 0.0
        %701 = vst.msk [vmem:[%s683 + $0x88] sm:$0xff] %vm555, 0.0
        %702 = vst.msk [vmem:[%s683 + $0x90] sm:$0xff] %vm555, 0.0
        %703 = vst.msk [vmem:[%s683 + $0x98] sm:$0xff] %vm555, 0.0
        %704 = vst.msk [vmem:[%s683 + $0xa0] sm:$0xf] %vm562, 0.0
        %705 = vst.msk [vmem:[%s683 + $0xa8] sm:$0xff] %vm555, 0.0
        %706 = vst.msk [vmem:[%s683 + $0xb0] sm:$0xff] %vm555, 0.0
        %707 = vst.msk [vmem:[%s683 + $0xb8] sm:$0xff] %vm555, 0.0
        %708 = vst.msk [vmem:[%s683 + $0xc0] sm:$0xff] %vm555, 0.0
        %709 = vst.msk [vmem:[%s683 + $0xc8] sm:$0xff] %vm555, 0.0
        %710 = vst.msk [vmem:[%s683 + $0xd0] sm:$0xff] %vm555, 0.0
        %711 = vst.msk [vmem:[%s683 + $0xd8] sm:$0xf] %vm562, 0.0
        %712 = vst.msk [vmem:[%s683 + $0xe0] sm:$0xff] %vm555, 0.0
        %713 = vst.msk [vmem:[%s683 + $0xe8] sm:$0xff] %vm555, 0.0
        %714 = vst.msk [vmem:[%s683 + $0xf0] sm:$0xff] %vm555, 0.0
        %715 = vst.msk [vmem:[%s683 + $0xf8] sm:$0xff] %vm555, 0.0
        %716 = vst.msk [vmem:[%s683 + $0x100] sm:$0xff] %vm555, 0.0
        %717 = vst.msk [vmem:[%s683 + $0x108] sm:$0xff] %vm555, 0.0
        %718 = vst.msk [vmem:[%s683 + $0x110] sm:$0xf] %vm562, 0.0
        %719 = vst.msk [vmem:[%s683 + $0x118] sm:$0xff] %vm555, 0.0
        %720 = vst.msk [vmem:[%s683 + $0x120] sm:$0xff] %vm555, 0.0
        %721 = vst.msk [vmem:[%s683 + $0x128] sm:$0xff] %vm555, 0.0
        %722 = vst.msk [vmem:[%s683 + $0x130] sm:$0xff] %vm555, 0.0
        %723 = vst.msk [vmem:[%s683 + $0x138] sm:$0xff] %vm555, 0.0
        %724 = vst.msk [vmem:[%s683 + $0x140] sm:$0xff] %vm555, 0.0
        %725 = vst.msk [vmem:[%s683 + $0x148] sm:$0xf] %vm562, 0.0
        %726 = vst.msk [vmem:[%s683 + $0x150] sm:$0xff] %vm555, 0.0
        %727 = vst.msk [vmem:[%s683 + $0x158] sm:$0xff] %vm555, 0.0
        %728 = vst.msk [vmem:[%s683 + $0x160] sm:$0xff] %vm555, 0.0
        %729 = vst.msk [vmem:[%s683 + $0x168] sm:$0xff] %vm555, 0.0
        %730 = vst.msk [vmem:[%s683 + $0x170] sm:$0xff] %vm555, 0.0
        %731 = vst.msk [vmem:[%s683 + $0x178] sm:$0xff] %vm555, 0.0
        %732 = vst.msk [vmem:[%s683 + $0x180] sm:$0xf] %vm562, 0.0
        %733 = vst.msk [vmem:[%s683 + $0x188] sm:$0xff] %vm555, 0.0
        %734 = vst.msk [vmem:[%s683 + $0x190] sm:$0xff] %vm555, 0.0
        %735 = vst.msk [vmem:[%s683 + $0x198] sm:$0xff] %vm555, 0.0
        %736 = vst.msk [vmem:[%s683 + $0x1a0] sm:$0xff] %vm555, 0.0
        %737 = vst.msk [vmem:[%s683 + $0x1a8] sm:$0xff] %vm555, 0.0
        %738 = vst.msk [vmem:[%s683 + $0x1b0] sm:$0xff] %vm555, 0.0
        %739 = vst.msk [vmem:[%s683 + $0x1b8] sm:$0xf] %vm562, 0.0
        %740 = vst.msk [vmem:[%s683 + $0x1c0] sm:$0xff] %vm555, 0.0
        %741 = vst.msk [vmem:[%s683 + $0x1c8] sm:$0xff] %vm555, 0.0
        %742 = vst.msk [vmem:[%s683 + $0x1d0] sm:$0xff] %vm555, 0.0
        %743 = vst.msk [vmem:[%s683 + $0x1d8] sm:$0xff] %vm555, 0.0
        %744 = vst.msk [vmem:[%s683 + $0x1e0] sm:$0xff] %vm555, 0.0
        %745 = vst.msk [vmem:[%s683 + $0x1e8] sm:$0xff] %vm555, 0.0
        %746 = vst.msk [vmem:[%s683 + $0x1f0] sm:$0xf] %vm562, 0.0
        %747 = vst.msk [vmem:[%s683 + $0x1f8] sm:$0xff] %vm555, 0.0
        %748 = vst.msk [vmem:[%s683 + $0x200] sm:$0xff] %vm555, 0.0
        %749 = vst.msk [vmem:[%s683 + $0x208] sm:$0xff] %vm555, 0.0
        %750 = vst.msk [vmem:[%s683 + $0x210] sm:$0xff] %vm555, 0.0
        %751 = vst.msk [vmem:[%s683 + $0x218] sm:$0xff] %vm555, 0.0
        %752 = vst.msk [vmem:[%s683 + $0x220] sm:$0xff] %vm555, 0.0
        %753 = vst.msk [vmem:[%s683 + $0x228] sm:$0xf] %vm562, 0.0
        %754 = vst.msk [vmem:[%s683 + $0x230] sm:$0xff] %vm555, 0.0
        %755 = vst.msk [vmem:[%s683 + $0x238] sm:$0xff] %vm555, 0.0
        %756 = vst.msk [vmem:[%s683 + $0x240] sm:$0xff] %vm555, 0.0
        %757 = vst.msk [vmem:[%s683 + $0x248] sm:$0xff] %vm555, 0.0
        %758 = vst.msk [vmem:[%s683 + $0x250] sm:$0xff] %vm555, 0.0
        %759 = vst.msk [vmem:[%s683 + $0x258] sm:$0xff] %vm555, 0.0
        %760 = vst.msk [vmem:[%s683 + $0x260] sm:$0xf] %vm562, 0.0
        %761 = vst.msk [vmem:[%s683 + $0x268] sm:$0xff] %vm555, 0.0
        %762 = vst.msk [vmem:[%s683 + $0x270] sm:$0xff] %vm555, 0.0
        %763 = vst.msk [vmem:[%s683 + $0x278] sm:$0xff] %vm555, 0.0
        %764 = vst.msk [vmem:[%s683 + $0x280] sm:$0xff] %vm555, 0.0
        %765 = vst.msk [vmem:[%s683 + $0x288] sm:$0xff] %vm555, 0.0
        %766 = vst.msk [vmem:[%s683 + $0x290] sm:$0xff] %vm555, 0.0
        %767 = vst.msk [vmem:[%s683 + $0x298] sm:$0xf] %vm562, 0.0
        %768 = vst.msk [vmem:[%s683 + $0x2a0] sm:$0xff] %vm555, 0.0
        %769 = vst.msk [vmem:[%s683 + $0x2a8] sm:$0xff] %vm555, 0.0
        %770 = vst.msk [vmem:[%s683 + $0x2b0] sm:$0xff] %vm555, 0.0
        %771 = vst.msk [vmem:[%s683 + $0x2b8] sm:$0xff] %vm555, 0.0
        %772 = vst.msk [vmem:[%s683 + $0x2c0] sm:$0xff] %vm555, 0.0
        %773 = vst.msk [vmem:[%s683 + $0x2c8] sm:$0xff] %vm555, 0.0
        %774 = vst.msk [vmem:[%s683 + $0x2d0] sm:$0xf] %vm562, 0.0
        %775 = vst.msk [vmem:[%s683 + $0x2d8] sm:$0xff] %vm555, 0.0
        %776 = vst.msk [vmem:[%s683 + $0x2e0] sm:$0xff] %vm555, 0.0
        %777 = vst.msk [vmem:[%s683 + $0x2e8] sm:$0xff] %vm555, 0.0
        %778 = vst.msk [vmem:[%s683 + $0x2f0] sm:$0xff] %vm555, 0.0
        %779 = vst.msk [vmem:[%s683 + $0x2f8] sm:$0xff] %vm555, 0.0
        %780 = vst.msk [vmem:[%s683 + $0x300] sm:$0xff] %vm555, 0.0
        %781 = vst.msk [vmem:[%s683 + $0x308] sm:$0xf] %vm562, 0.0
        %782 = vst.msk [vmem:[%s683 + $0x310] sm:$0xff] %vm555, 0.0
        %783 = vst.msk [vmem:[%s683 + $0x318] sm:$0xff] %vm555, 0.0
        %784 = vst.msk [vmem:[%s683 + $0x320] sm:$0xff] %vm555, 0.0
        %785 = vst.msk [vmem:[%s683 + $0x328] sm:$0xff] %vm555, 0.0
        %786 = vst.msk [vmem:[%s683 + $0x330] sm:$0xff] %vm555, 0.0
        %787 = vst.msk [vmem:[%s683 + $0x338] sm:$0xff] %vm555, 0.0
        %788 = vst.msk [vmem:[%s683 + $0x340] sm:$0xf] %vm562, 0.0
        %789 = vst.msk [vmem:[%s683 + $0x348] sm:$0xff] %vm555, 0.0
        %790 = vst.msk [vmem:[%s683 + $0x350] sm:$0xff] %vm555, 0.0
        %791 = vst.msk [vmem:[%s683 + $0x358] sm:$0xff] %vm555, 0.0
        %792 = vst.msk [vmem:[%s683 + $0x360] sm:$0xff] %vm555, 0.0
        %793 = vst.msk [vmem:[%s683 + $0x368] sm:$0xff] %vm555, 0.0
        %794 = vst.msk [vmem:[%s683 + $0x370] sm:$0xff] %vm555, 0.0
        %795 = vst.msk [vmem:[%s683 + $0x378] sm:$0xf] %vm562, 0.0
        %796 = vst.msk [vmem:[%s683 + $0x380] sm:$0xff] %vm555, 0.0
        %797 = vst.msk [vmem:[%s683 + $0x388] sm:$0xff] %vm555, 0.0
        %798 = vst.msk [vmem:[%s683 + $0x390] sm:$0xff] %vm555, 0.0
        %799 = vst.msk [vmem:[%s683 + $0x398] sm:$0xff] %vm555, 0.0
        %800 = vst.msk [vmem:[%s683 + $0x3a0] sm:$0xff] %vm555, 0.0
        %801 = vst.msk [vmem:[%s683 + $0x3a8] sm:$0xff] %vm555, 0.0
        %802 = vst.msk [vmem:[%s683 + $0x3b0] sm:$0xf] %vm562, 0.0
        %803 = vst.msk [vmem:[%s683 + $0x3b8] sm:$0xff] %vm555, 0.0
        %804 = vst.msk [vmem:[%s683 + $0x3c0] sm:$0xff] %vm555, 0.0
        %805 = vst.msk [vmem:[%s683 + $0x3c8] sm:$0xff] %vm555, 0.0
        %806 = vst.msk [vmem:[%s683 + $0x3d0] sm:$0xff] %vm555, 0.0
        %807 = vst.msk [vmem:[%s683 + $0x3d8] sm:$0xff] %vm555, 0.0
        %808 = vst.msk [vmem:[%s683 + $0x3e0] sm:$0xff] %vm555, 0.0
        %809 = vst.msk [vmem:[%s683 + $0x3e8] sm:$0xf] %vm562, 0.0
        %s810 = scalar_lea.vmem [#allocation2], 1008
        %811 = vst.msk [vmem:[%s810] sm:$0xff] %vm555, 0.0
        %812 = vst.msk [vmem:[%s810 + $0x8] sm:$0xff] %vm555, 0.0
        %vm813 = vcmask 254976
        %814 = vst.msk [vmem:[%s810 + $0x10] sm:$0x3] %vm813, 0.0
        %815 = vst.msk [vmem:[%s810 + $0x38] sm:$0xff] %vm555, 0.0
        %816 = vst.msk [vmem:[%s810 + $0x40] sm:$0xff] %vm555, 0.0
        %817 = vst.msk [vmem:[%s810 + $0x48] sm:$0x3] %vm813, 0.0
        %818 = vst.msk [vmem:[%s810 + $0x70] sm:$0xff] %vm555, 0.0
        %819 = vst.msk [vmem:[%s810 + $0x78] sm:$0xff] %vm555, 0.0
        %820 = vst.msk [vmem:[%s810 + $0x80] sm:$0x3] %vm813, 0.0
        %821 = vst.msk [vmem:[%s810 + $0xa8] sm:$0xff] %vm555, 0.0
        %822 = vst.msk [vmem:[%s810 + $0xb0] sm:$0xff] %vm555, 0.0
        %823 = vst.msk [vmem:[%s810 + $0xb8] sm:$0x3] %vm813, 0.0
        %824 = vst.msk [vmem:[%s810 + $0xe0] sm:$0xff] %vm555, 0.0
        %825 = vst.msk [vmem:[%s810 + $0xe8] sm:$0xff] %vm555, 0.0
        %826 = vst.msk [vmem:[%s810 + $0xf0] sm:$0x3] %vm813, 0.0
        %827 = vst.msk [vmem:[%s810 + $0x118] sm:$0xff] %vm555, 0.0
        %828 = vst.msk [vmem:[%s810 + $0x120] sm:$0xff] %vm555, 0.0
        %829 = vst.msk [vmem:[%s810 + $0x128] sm:$0x3] %vm813, 0.0
        %830 = vst.msk [vmem:[%s810 + $0x150] sm:$0xff] %vm555, 0.0
        %831 = vst.msk [vmem:[%s810 + $0x158] sm:$0xff] %vm555, 0.0
        %832 = vst.msk [vmem:[%s810 + $0x160] sm:$0x3] %vm813, 0.0
        %833 = vst.msk [vmem:[%s810 + $0x188] sm:$0xff] %vm555, 0.0
        %834 = vst.msk [vmem:[%s810 + $0x190] sm:$0xff] %vm555, 0.0
        %835 = vst.msk [vmem:[%s810 + $0x198] sm:$0x3] %vm813, 0.0
        %836 = vst.msk [vmem:[%s810 + $0x1c0] sm:$0xff] %vm555, 0.0
        %837 = vst.msk [vmem:[%s810 + $0x1c8] sm:$0xff] %vm555, 0.0
        %838 = vst.msk [vmem:[%s810 + $0x1d0] sm:$0x3] %vm813, 0.0
        %839 = vst.msk [vmem:[%s810 + $0x1f8] sm:$0xff] %vm555, 0.0
        %840 = vst.msk [vmem:[%s810 + $0x200] sm:$0xff] %vm555, 0.0
        %841 = vst.msk [vmem:[%s810 + $0x208] sm:$0x3] %vm813, 0.0
        %842 = vst.msk [vmem:[%s810 + $0x230] sm:$0xff] %vm555, 0.0
        %843 = vst.msk [vmem:[%s810 + $0x238] sm:$0xff] %vm555, 0.0
        %844 = vst.msk [vmem:[%s810 + $0x240] sm:$0x3] %vm813, 0.0
        %845 = vst.msk [vmem:[%s810 + $0x268] sm:$0xff] %vm555, 0.0
        %846 = vst.msk [vmem:[%s810 + $0x270] sm:$0xff] %vm555, 0.0
        %847 = vst.msk [vmem:[%s810 + $0x278] sm:$0x3] %vm813, 0.0
        %848 = vst.msk [vmem:[%s810 + $0x2a0] sm:$0xff] %vm555, 0.0
        %849 = vst.msk [vmem:[%s810 + $0x2a8] sm:$0xff] %vm555, 0.0
        %850 = vst.msk [vmem:[%s810 + $0x2b0] sm:$0x3] %vm813, 0.0
        %851 = vst.msk [vmem:[%s810 + $0x2d8] sm:$0xff] %vm555, 0.0
        %852 = vst.msk [vmem:[%s810 + $0x2e0] sm:$0xff] %vm555, 0.0
        %853 = vst.msk [vmem:[%s810 + $0x2e8] sm:$0x3] %vm813, 0.0
        %854 = vst.msk [vmem:[%s810 + $0x310] sm:$0xff] %vm555, 0.0
        %855 = vst.msk [vmem:[%s810 + $0x318] sm:$0xff] %vm555, 0.0
        %856 = vst.msk [vmem:[%s810 + $0x320] sm:$0x3] %vm813, 0.0
        %857 = vst.msk [vmem:[%s810 + $0x348] sm:$0xff] %vm555, 0.0
        %858 = vst.msk [vmem:[%s810 + $0x350] sm:$0xff] %vm555, 0.0
        %859 = vst.msk [vmem:[%s810 + $0x358] sm:$0x3] %vm813, 0.0
        %860 = vst.msk [vmem:[%s810 + $0x22] sm:$0xff] %vm555, 0.0
        %861 = vst.msk [vmem:[%s810 + $0x2a] sm:$0xff] %vm555, 0.0
        %862 = vst.msk [vmem:[%s810 + $0x32] sm:$0x3] %vm813, 0.0
        %863 = vst.msk [vmem:[%s810 + $0x5a] sm:$0xff] %vm555, 0.0
        %864 = vst.msk [vmem:[%s810 + $0x62] sm:$0xff] %vm555, 0.0
        %865 = vst.msk [vmem:[%s810 + $0x6a] sm:$0x3] %vm813, 0.0
        %866 = vst.msk [vmem:[%s810 + $0x92] sm:$0xff] %vm555, 0.0
        %867 = vst.msk [vmem:[%s810 + $0x9a] sm:$0xff] %vm555, 0.0
        %868 = vst.msk [vmem:[%s810 + $0xa2] sm:$0x3] %vm813, 0.0
        %869 = vst.msk [vmem:[%s810 + $0xca] sm:$0xff] %vm555, 0.0
        %870 = vst.msk [vmem:[%s810 + $0xd2] sm:$0xff] %vm555, 0.0
        %871 = vst.msk [vmem:[%s810 + $0xda] sm:$0x3] %vm813, 0.0
        %872 = vst.msk [vmem:[%s810 + $0x102] sm:$0xff] %vm555, 0.0
        %873 = vst.msk [vmem:[%s810 + $0x10a] sm:$0xff] %vm555, 0.0
        %874 = vst.msk [vmem:[%s810 + $0x112] sm:$0x3] %vm813, 0.0
        %875 = vst.msk [vmem:[%s810 + $0x13a] sm:$0xff] %vm555, 0.0
        %876 = vst.msk [vmem:[%s810 + $0x142] sm:$0xff] %vm555, 0.0
        %877 = vst.msk [vmem:[%s810 + $0x14a] sm:$0x3] %vm813, 0.0
        %878 = vst.msk [vmem:[%s810 + $0x172] sm:$0xff] %vm555, 0.0
        %879 = vst.msk [vmem:[%s810 + $0x17a] sm:$0xff] %vm555, 0.0
        %880 = vst.msk [vmem:[%s810 + $0x182] sm:$0x3] %vm813, 0.0
        %881 = vst.msk [vmem:[%s810 + $0x1aa] sm:$0xff] %vm555, 0.0
        %882 = vst.msk [vmem:[%s810 + $0x1b2] sm:$0xff] %vm555, 0.0
        %883 = vst.msk [vmem:[%s810 + $0x1ba] sm:$0x3] %vm813, 0.0
        %884 = vst.msk [vmem:[%s810 + $0x1e2] sm:$0xff] %vm555, 0.0
        %885 = vst.msk [vmem:[%s810 + $0x1ea] sm:$0xff] %vm555, 0.0
        %886 = vst.msk [vmem:[%s810 + $0x1f2] sm:$0x3] %vm813, 0.0
        %887 = vst.msk [vmem:[%s810 + $0x21a] sm:$0xff] %vm555, 0.0
        %888 = vst.msk [vmem:[%s810 + $0x222] sm:$0xff] %vm555, 0.0
        %889 = vst.msk [vmem:[%s810 + $0x22a] sm:$0x3] %vm813, 0.0
        %890 = vst.msk [vmem:[%s810 + $0x252] sm:$0xff] %vm555, 0.0
        %891 = vst.msk [vmem:[%s810 + $0x25a] sm:$0xff] %vm555, 0.0
        %892 = vst.msk [vmem:[%s810 + $0x262] sm:$0x3] %vm813, 0.0
        %893 = vst.msk [vmem:[%s810 + $0x28a] sm:$0xff] %vm555, 0.0
        %894 = vst.msk [vmem:[%s810 + $0x292] sm:$0xff] %vm555, 0.0
        %895 = vst.msk [vmem:[%s810 + $0x29a] sm:$0x3] %vm813, 0.0
        %896 = vst.msk [vmem:[%s810 + $0x2c2] sm:$0xff] %vm555, 0.0
        %897 = vst.msk [vmem:[%s810 + $0x2ca] sm:$0xff] %vm555, 0.0
        %898 = vst.msk [vmem:[%s810 + $0x2d2] sm:$0x3] %vm813, 0.0
        %899 = vst.msk [vmem:[%s810 + $0x2fa] sm:$0xff] %vm555, 0.0
        %900 = vst.msk [vmem:[%s810 + $0x302] sm:$0xff] %vm555, 0.0
        %901 = vst.msk [vmem:[%s810 + $0x30a] sm:$0x3] %vm813, 0.0
        %902 = vst.msk [vmem:[%s810 + $0x332] sm:$0xff] %vm555, 0.0
        %903 = vst.msk [vmem:[%s810 + $0x33a] sm:$0xff] %vm555, 0.0
        %904 = vst.msk [vmem:[%s810 + $0x342] sm:$0x3] %vm813, 0.0
        %905 = vst.msk [vmem:[%s810 + $0x36a] sm:$0xff] %vm555, 0.0
        %906 = vst.msk [vmem:[%s810 + $0x372] sm:$0xff] %vm555, 0.0
        %907 = vst.msk [vmem:[%s810 + $0x37a] sm:$0x3] %vm813, 0.0
        %908 = vst.msk [vmem:[%s810 + $0x12] sm:$0xff] %vm555, %v523
        %909 = vst.msk [vmem:[%s810 + $0x1a] sm:$0xff] %vm555, %v524
        %910 = vst.msk [vmem:[%s810 + $0x4a] sm:$0xff] %vm555, %v525
        %911 = vst.msk [vmem:[%s810 + $0x52] sm:$0xff] %vm555, %v526
        %912 = vst.msk [vmem:[%s810 + $0x82] sm:$0xff] %vm555, %v527
        %913 = vst.msk [vmem:[%s810 + $0x8a] sm:$0xff] %vm555, %v528
        %914 = vst.msk [vmem:[%s810 + $0xba] sm:$0xff] %vm555, %v529
        %915 = vst.msk [vmem:[%s810 + $0xc2] sm:$0xff] %vm555, %v530
        %916 = vst.msk [vmem:[%s810 + $0xf2] sm:$0xff] %vm555, %v531
        %917 = vst.msk [vmem:[%s810 + $0xfa] sm:$0xff] %vm555, %v532
        %918 = vst.msk [vmem:[%s810 + $0x12a] sm:$0xff] %vm555, %v533
        %919 = vst.msk [vmem:[%s810 + $0x132] sm:$0xff] %vm555, %v534
        %920 = vst.msk [vmem:[%s810 + $0x162] sm:$0xff] %vm555, %v535
        %921 = vst.msk [vmem:[%s810 + $0x16a] sm:$0xff] %vm555, %v536
        %922 = vst.msk [vmem:[%s810 + $0x19a] sm:$0xff] %vm555, %v537
        %923 = vst.msk [vmem:[%s810 + $0x1a2] sm:$0xff] %vm555, %v538
        %924 = vst.msk [vmem:[%s810 + $0x1d2] sm:$0xff] %vm555, %v539
        %925 = vst.msk [vmem:[%s810 + $0x1da] sm:$0xff] %vm555, %v540
        %926 = vst.msk [vmem:[%s810 + $0x20a] sm:$0xff] %vm555, %v541
        %927 = vst.msk [vmem:[%s810 + $0x212] sm:$0xff] %vm555, %v542
        %928 = vst.msk [vmem:[%s810 + $0x242] sm:$0xff] %vm555, %v543
        %929 = vst.msk [vmem:[%s810 + $0x24a] sm:$0xff] %vm555, %v544
        %930 = vst.msk [vmem:[%s810 + $0x27a] sm:$0xff] %vm555, %v545
        %931 = vst.msk [vmem:[%s810 + $0x282] sm:$0xff] %vm555, %v546
        %932 = vst.msk [vmem:[%s810 + $0x2b2] sm:$0xff] %vm555, %v547
        %933 = vst.msk [vmem:[%s810 + $0x2ba] sm:$0xff] %vm555, %v548
        %934 = vst.msk [vmem:[%s810 + $0x2ea] sm:$0xff] %vm555, %v549
        %935 = vst.msk [vmem:[%s810 + $0x2f2] sm:$0xff] %vm555, %v550
        %936 = vst.msk [vmem:[%s810 + $0x322] sm:$0xff] %vm555, %v551
        %937 = vst.msk [vmem:[%s810 + $0x32a] sm:$0xff] %vm555, %v552
        %938 = vst.msk [vmem:[%s810 + $0x35a] sm:$0xff] %vm555, %v553
        %939 = vst.msk [vmem:[%s810 + $0x362] sm:$0xff] %vm555, %v554
        %v940 = vld [vmem:[#allocation9] sm:$0xff]
        %v941 = vld [vmem:[#allocation9 + $0x8] sm:$0xff]
        %v942 = vld [vmem:[#allocation9 + $0x10] sm:$0xff]
        %v943 = vld [vmem:[#allocation9 + $0x18] sm:$0xff]
        %v944 = vld [vmem:[#allocation14] sm:$0x1]
        %v946 = vperm.slane %v944, 0
        %v949 = vsel %vm555, %v523, 0
        %v952 = vsel %vm555, %v524, 0
        %v955 = vsel %vm555, %v525, 0
        %v958 = vsel %vm555, %v526, 0
        %v961 = vsel %vm555, %v527, 0
        %v964 = vsel %vm555, %v528, 0
        %v967 = vsel %vm555, %v529, 0
        %v970 = vsel %vm555, %v530, 0
        %v973 = vsel %vm555, %v531, 0
        %v976 = vsel %vm555, %v532, 0
        %v979 = vsel %vm555, %v533, 0
        %v982 = vsel %vm555, %v534, 0
        %v985 = vsel %vm555, %v535, 0
        %v988 = vsel %vm555, %v536, 0
        %v991 = vsel %vm555, %v537, 0
        %v994 = vsel %vm555, %v538, 0
        %v997 = vsel %vm555, %v539, 0
        %v1000 = vsel %vm555, %v540, 0
        %v1003 = vsel %vm555, %v541, 0
        %v1006 = vsel %vm555, %v542, 0
        %v1009 = vsel %vm555, %v543, 0
        %v1012 = vsel %vm555, %v544, 0
        %v1015 = vsel %vm555, %v545, 0
        %v1018 = vsel %vm555, %v546, 0
        %v1021 = vsel %vm555, %v547, 0
        %v1024 = vsel %vm555, %v548, 0
        %v1027 = vsel %vm555, %v549, 0
        %v1030 = vsel %vm555, %v550, 0
        %v1033 = vsel %vm555, %v551, 0
        %v1036 = vsel %vm555, %v552, 0
        %v1039 = vsel %vm555, %v553, 0
        %v1042 = vsel %vm555, %v554, 0
        %1044 = vmatpush.msra.mxu0 0.0
        %1045 = vmatpush.msra.mxu0 0.0
        %1046 = vmatpush.msra.mxu0 0.0
        %1047 = vmatpush.msra.mxu0 0.0
        %1048 = vmatpush.msra.mxu0 0.0
        %1049 = vmatpush.msra.mxu0 0.0
        %1050 = vmatpush.msra.mxu0 0.0
        %1051 = vmatpush.msra.mxu0 0.0
        %1052 = vmatpush.msra.mxu0 0.0
        %1053 = vmatpush.msra.mxu0 0.0
        %1054 = vmatpush.msra.mxu0 0.0
        %1055 = vmatpush.msra.mxu0 0.0
        %1056 = vmatpush.msra.mxu0 %v943
        %1057 = vmatpush.msra.mxu0 %v942
        %1058 = vmatpush.msra.mxu0 %v941
        %1059 = vmatpush.msra.mxu0 %v940
        %1060 = vmatmul.f32.gmra.mxu0 %v949
        %v1061 = vpop.f32.mrf.mxu0
        %v1062 = vadd.f32 %v946, %v1061
        %1063 = vmatmul.f32.gmra.mxu0 %v952
        %v1064 = vpop.f32.mrf.mxu0
        %v1065 = vadd.f32 %v946, %v1064
        %1066 = vmatmul.f32.gmra.mxu0 %v955
        %v1067 = vpop.f32.mrf.mxu0
        %v1068 = vadd.f32 %v946, %v1067
        %1069 = vmatmul.f32.gmra.mxu0 %v958
        %v1070 = vpop.f32.mrf.mxu0
        %v1071 = vadd.f32 %v946, %v1070
        %1072 = vmatmul.f32.gmra.mxu0 %v961
        %v1073 = vpop.f32.mrf.mxu0
        %v1074 = vadd.f32 %v946, %v1073
        %1075 = vmatmul.f32.gmra.mxu0 %v964
        %v1076 = vpop.f32.mrf.mxu0
        %v1077 = vadd.f32 %v946, %v1076
        %1078 = vmatmul.f32.gmra.mxu0 %v967
        %v1079 = vpop.f32.mrf.mxu0
        %v1080 = vadd.f32 %v946, %v1079
        %1081 = vmatmul.f32.gmra.mxu0 %v970
        %v1082 = vpop.f32.mrf.mxu0
        %v1083 = vadd.f32 %v946, %v1082
        %1084 = vmatmul.f32.gmra.mxu0 %v973
        %v1085 = vpop.f32.mrf.mxu0
        %v1086 = vadd.f32 %v946, %v1085
        %1087 = vmatmul.f32.gmra.mxu0 %v976
        %v1088 = vpop.f32.mrf.mxu0
        %v1089 = vadd.f32 %v946, %v1088
        %1090 = vmatmul.f32.gmra.mxu0 %v979
        %v1091 = vpop.f32.mrf.mxu0
        %v1092 = vadd.f32 %v946, %v1091
        %1093 = vmatmul.f32.gmra.mxu0 %v982
        %v1094 = vpop.f32.mrf.mxu0
        %v1095 = vadd.f32 %v946, %v1094
        %1096 = vmatmul.f32.gmra.mxu0 %v985
        %v1097 = vpop.f32.mrf.mxu0
        %v1098 = vadd.f32 %v946, %v1097
        %1099 = vmatmul.f32.gmra.mxu0 %v988
        %v1100 = vpop.f32.mrf.mxu0
        %v1101 = vadd.f32 %v946, %v1100
        %1102 = vmatmul.f32.gmra.mxu0 %v991
        %v1103 = vpop.f32.mrf.mxu0
        %v1104 = vadd.f32 %v946, %v1103
        %1105 = vmatmul.f32.gmra.mxu0 %v994
        %v1106 = vpop.f32.mrf.mxu0
        %v1107 = vadd.f32 %v946, %v1106
        %1108 = vmatmul.f32.gmra.mxu0 %v997
        %v1109 = vpop.f32.mrf.mxu0
        %v1110 = vadd.f32 %v946, %v1109
        %1111 = vmatmul.f32.gmra.mxu0 %v1000
        %v1112 = vpop.f32.mrf.mxu0
        %v1113 = vadd.f32 %v946, %v1112
        %1114 = vmatmul.f32.gmra.mxu0 %v1003
        %v1115 = vpop.f32.mrf.mxu0
        %v1116 = vadd.f32 %v946, %v1115
        %1117 = vmatmul.f32.gmra.mxu0 %v1006
        %v1118 = vpop.f32.mrf.mxu0
        %v1119 = vadd.f32 %v946, %v1118
        %1120 = vmatmul.f32.gmra.mxu0 %v1009
        %v1121 = vpop.f32.mrf.mxu0
        %v1122 = vadd.f32 %v946, %v1121
        %1123 = vmatmul.f32.gmra.mxu0 %v1012
        %v1124 = vpop.f32.mrf.mxu0
        %v1125 = vadd.f32 %v946, %v1124
        %1126 = vmatmul.f32.gmra.mxu0 %v1015
        %v1127 = vpop.f32.mrf.mxu0
        %v1128 = vadd.f32 %v946, %v1127
        %1129 = vmatmul.f32.gmra.mxu0 %v1018
        %v1130 = vpop.f32.mrf.mxu0
        %v1131 = vadd.f32 %v946, %v1130
        %1132 = vmatmul.f32.gmra.mxu0 %v1021
        %v1133 = vpop.f32.mrf.mxu0
        %v1134 = vadd.f32 %v946, %v1133
        %1135 = vmatmul.f32.gmra.mxu0 %v1024
        %v1136 = vpop.f32.mrf.mxu0
        %v1137 = vadd.f32 %v946, %v1136
        %1138 = vmatmul.f32.gmra.mxu0 %v1027
        %v1139 = vpop.f32.mrf.mxu0
        %v1140 = vadd.f32 %v946, %v1139
        %1141 = vmatmul.f32.gmra.mxu0 %v1030
        %v1142 = vpop.f32.mrf.mxu0
        %v1143 = vadd.f32 %v946, %v1142
        %1144 = vmatmul.f32.gmra.mxu0 %v1033
        %v1145 = vpop.f32.mrf.mxu0
        %v1146 = vadd.f32 %v946, %v1145
        %1147 = vmatmul.f32.gmra.mxu0 %v1036
        %v1148 = vpop.f32.mrf.mxu0
        %v1149 = vadd.f32 %v946, %v1148
        %1150 = vmatmul.f32.gmra.mxu0 %v1039
        %v1151 = vpop.f32.mrf.mxu0
        %v1152 = vadd.f32 %v946, %v1151
        %1153 = vmatmul.f32.gmra.mxu0 %v1042
        %v1154 = vpop.f32.mrf.mxu0
        %v1155 = vadd.f32 %v946, %v1154
        %1156 = vdwg.mxu0
        %v1157 = vmax.f32 %v1062, 0.0
        %v1158 = vmax.f32 %v1065, 0.0
        %v1159 = vmax.f32 %v1068, 0.0
        %v1160 = vmax.f32 %v1071, 0.0
        %v1161 = vmax.f32 %v1074, 0.0
        %v1162 = vmax.f32 %v1077, 0.0
        %v1163 = vmax.f32 %v1080, 0.0
        %v1164 = vmax.f32 %v1083, 0.0
        %v1165 = vmax.f32 %v1086, 0.0
        %v1166 = vmax.f32 %v1089, 0.0
        %v1167 = vmax.f32 %v1092, 0.0
        %v1168 = vmax.f32 %v1095, 0.0
        %v1169 = vmax.f32 %v1098, 0.0
        %v1170 = vmax.f32 %v1101, 0.0
        %v1171 = vmax.f32 %v1104, 0.0
        %v1172 = vmax.f32 %v1107, 0.0
        %v1173 = vmax.f32 %v1110, 0.0
        %v1174 = vmax.f32 %v1113, 0.0
        %v1175 = vmax.f32 %v1116, 0.0
        %v1176 = vmax.f32 %v1119, 0.0
        %v1177 = vmax.f32 %v1122, 0.0
        %v1178 = vmax.f32 %v1125, 0.0
        %v1179 = vmax.f32 %v1128, 0.0
        %v1180 = vmax.f32 %v1131, 0.0
        %v1181 = vmax.f32 %v1134, 0.0
        %v1182 = vmax.f32 %v1137, 0.0
        %v1183 = vmax.f32 %v1140, 0.0
        %v1184 = vmax.f32 %v1143, 0.0
        %v1185 = vmax.f32 %v1146, 0.0
        %v1186 = vmax.f32 %v1149, 0.0
        %v1187 = vmax.f32 %v1152, 0.0
        %v1188 = vmax.f32 %v1155, 0.0
        %vm1189 = vcmask 130048
        %1190 = vst.msk [vmem:[#allocation4] sm:$0xff] %vm1189, %v1157
        %1191 = vst.msk [vmem:[#allocation4 + $0x8] sm:$0xff] %vm1189, %v1158
        %1192 = vst.msk [vmem:[#allocation4 + $0x10] sm:$0xff] %vm1189, %v1159
        %1193 = vst.msk [vmem:[#allocation4 + $0x18] sm:$0xff] %vm1189, %v1160
        %1194 = vst.msk [vmem:[#allocation4 + $0x20] sm:$0xff] %vm1189, %v1161
        %1195 = vst.msk [vmem:[#allocation4 + $0x28] sm:$0xff] %vm1189, %v1162
        %1196 = vst.msk [vmem:[#allocation4 + $0x30] sm:$0xff] %vm1189, %v1163
        %1197 = vst.msk [vmem:[#allocation4 + $0x38] sm:$0xff] %vm1189, %v1164
        %1198 = vst.msk [vmem:[#allocation4 + $0x40] sm:$0xff] %vm1189, %v1165
        %1199 = vst.msk [vmem:[#allocation4 + $0x48] sm:$0xff] %vm1189, %v1166
        %1200 = vst.msk [vmem:[#allocation4 + $0x50] sm:$0xff] %vm1189, %v1167
        %1201 = vst.msk [vmem:[#allocation4 + $0x58] sm:$0xff] %vm1189, %v1168
        %1202 = vst.msk [vmem:[#allocation4 + $0x60] sm:$0xff] %vm1189, %v1169
        %1203 = vst.msk [vmem:[#allocation4 + $0x68] sm:$0xff] %vm1189, %v1170
        %1204 = vst.msk [vmem:[#allocation4 + $0x70] sm:$0xff] %vm1189, %v1171
        %1205 = vst.msk [vmem:[#allocation4 + $0x78] sm:$0xff] %vm1189, %v1172
        %1206 = vst.msk [vmem:[#allocation4 + $0x80] sm:$0xff] %vm1189, %v1173
        %1207 = vst.msk [vmem:[#allocation4 + $0x88] sm:$0xff] %vm1189, %v1174
        %1208 = vst.msk [vmem:[#allocation4 + $0x90] sm:$0xff] %vm1189, %v1175
        %1209 = vst.msk [vmem:[#allocation4 + $0x98] sm:$0xff] %vm1189, %v1176
        %1210 = vst.msk [vmem:[#allocation4 + $0xa0] sm:$0xff] %vm1189, %v1177
        %1211 = vst.msk [vmem:[#allocation4 + $0xa8] sm:$0xff] %vm1189, %v1178
        %1212 = vst.msk [vmem:[#allocation4 + $0xb0] sm:$0xff] %vm1189, %v1179
        %1213 = vst.msk [vmem:[#allocation4 + $0xb8] sm:$0xff] %vm1189, %v1180
        %1214 = vst.msk [vmem:[#allocation4 + $0xc0] sm:$0xff] %vm1189, %v1181
        %1215 = vst.msk [vmem:[#allocation4 + $0xc8] sm:$0xff] %vm1189, %v1182
        %1216 = vst.msk [vmem:[#allocation4 + $0xd0] sm:$0xff] %vm1189, %v1183
        %1217 = vst.msk [vmem:[#allocation4 + $0xd8] sm:$0xff] %vm1189, %v1184
        %1218 = vst.msk [vmem:[#allocation4 + $0xe0] sm:$0xff] %vm1189, %v1185
        %1219 = vst.msk [vmem:[#allocation4 + $0xe8] sm:$0xff] %vm1189, %v1186
        %1220 = vst.msk [vmem:[#allocation4 + $0xf0] sm:$0xff] %vm1189, %v1187
        %1221 = vst.msk [vmem:[#allocation4 + $0xf8] sm:$0xff] %vm1189, %v1188
        %v1222 = vsel %vm1189, %v1157, 0.0
        %v1223 = vsel %vm1189, %v1158, 0.0
        %v1224 = vadd.f32 %v1222, %v1223
        %v1225 = vsel %vm1189, %v1159, 0.0
        %v1226 = vadd.f32 %v1224, %v1225
        %v1227 = vsel %vm1189, %v1160, 0.0
        %v1228 = vadd.f32 %v1226, %v1227
        %v1229 = vsel %vm1189, %v1161, 0.0
        %v1230 = vadd.f32 %v1228, %v1229
        %v1231 = vsel %vm1189, %v1162, 0.0
        %v1232 = vadd.f32 %v1230, %v1231
        %v1233 = vsel %vm1189, %v1163, 0.0
        %v1234 = vadd.f32 %v1232, %v1233
        %v1235 = vsel %vm1189, %v1164, 0.0
        %v1236 = vadd.f32 %v1234, %v1235
        %v1237 = vsel %vm1189, %v1165, 0.0
        %v1238 = vadd.f32 %v1236, %v1237
        %v1239 = vsel %vm1189, %v1166, 0.0
        %v1240 = vadd.f32 %v1238, %v1239
        %v1241 = vsel %vm1189, %v1167, 0.0
        %v1242 = vadd.f32 %v1240, %v1241
        %v1243 = vsel %vm1189, %v1168, 0.0
        %v1244 = vadd.f32 %v1242, %v1243
        %v1245 = vsel %vm1189, %v1169, 0.0
        %v1246 = vadd.f32 %v1244, %v1245
        %v1247 = vsel %vm1189, %v1170, 0.0
        %v1248 = vadd.f32 %v1246, %v1247
        %v1249 = vsel %vm1189, %v1171, 0.0
        %v1250 = vadd.f32 %v1248, %v1249
        %v1251 = vsel %vm1189, %v1172, 0.0
        %v1252 = vadd.f32 %v1250, %v1251
        %v1253 = vsel %vm1189, %v1173, 0.0
        %v1254 = vadd.f32 %v1252, %v1253
        %v1255 = vsel %vm1189, %v1174, 0.0
        %v1256 = vadd.f32 %v1254, %v1255
        %v1257 = vsel %vm1189, %v1175, 0.0
        %v1258 = vadd.f32 %v1256, %v1257
        %v1259 = vsel %vm1189, %v1176, 0.0
        %v1260 = vadd.f32 %v1258, %v1259
        %v1261 = vsel %vm1189, %v1177, 0.0
        %v1262 = vadd.f32 %v1260, %v1261
        %v1263 = vsel %vm1189, %v1178, 0.0
        %v1264 = vadd.f32 %v1262, %v1263
        %v1265 = vsel %vm1189, %v1179, 0.0
        %v1266 = vadd.f32 %v1264, %v1265
        %v1267 = vsel %vm1189, %v1180, 0.0
        %v1268 = vadd.f32 %v1266, %v1267
        %v1269 = vsel %vm1189, %v1181, 0.0
        %v1270 = vadd.f32 %v1268, %v1269
        %v1271 = vsel %vm1189, %v1182, 0.0
        %v1272 = vadd.f32 %v1270, %v1271
        %v1273 = vsel %vm1189, %v1183, 0.0
        %v1274 = vadd.f32 %v1272, %v1273
        %v1275 = vsel %vm1189, %v1184, 0.0
        %v1276 = vadd.f32 %v1274, %v1275
        %v1277 = vsel %vm1189, %v1185, 0.0
        %v1278 = vadd.f32 %v1276, %v1277
        %v1279 = vsel %vm1189, %v1186, 0.0
        %v1280 = vadd.f32 %v1278, %v1279
        %v1281 = vsel %vm1189, %v1187, 0.0
        %v1282 = vadd.f32 %v1280, %v1281
        %v1283 = vsel %vm1189, %v1188, 0.0
        %v1284 = vadd.f32 %v1282, %v1283
        %v1285 = vrot.slane %v1284, 4
        %v1286 = vadd.f32 %v1284, %v1285
        %v1287 = vrot.slane %v1286, 2
        %v1288 = vadd.f32 %v1286, %v1287
        %v1289 = vrot.slane %v1288, 1
        %v1290 = vadd.f32 %v1288, %v1289
        %v1291 = vrcp.pop 256.0
        %v1292 = vmul.f32 256.0, %v1291
        %v1293 = vsub.f32 1.0, %v1292
        %v1294 = vmul.f32 %v1291, %v1293
        %v1295 = vadd.f32 %v1291, %v1294
        %vm1296 = vweird.f32 %v1291
        %v1297 = vsel %vm1296, %v1291, %v1295
        %v1298 = vmul.f32 %v1290, %v1297
        %s1299 = scalar_lea.vmem [#allocation2], 672
        %v1300 = vld [vmem:[%s1299 + $0xc] sm:$0xff]
        %v1301 = vld [vmem:[%s1299 + $0x14] sm:$0xff]
        %v1302 = vld [vmem:[%s1299 + $0x44] sm:$0xff]
        %v1303 = vld [vmem:[%s1299 + $0x4c] sm:$0xff]
        %v1304 = vld [vmem:[%s1299 + $0x7c] sm:$0xff]
        %v1305 = vld [vmem:[%s1299 + $0x84] sm:$0xff]
        %v1306 = vld [vmem:[%s1299 + $0xb4] sm:$0xff]
        %v1307 = vld [vmem:[%s1299 + $0xbc] sm:$0xff]
        %v1308 = vld [vmem:[%s1299 + $0xec] sm:$0xff]
        %v1309 = vld [vmem:[%s1299 + $0xf4] sm:$0xff]
        %v1310 = vld [vmem:[%s1299 + $0x124] sm:$0xff]
        %v1311 = vld [vmem:[%s1299 + $0x12c] sm:$0xff]
        %v1312 = vld [vmem:[%s1299 + $0x15c] sm:$0xff]
        %v1313 = vld [vmem:[%s1299 + $0x164] sm:$0xff]
        %v1314 = vld [vmem:[%s1299 + $0x194] sm:$0xff]
        %v1315 = vld [vmem:[%s1299 + $0x19c] sm:$0xff]
        %v1316 = vld [vmem:[%s1299 + $0x1cc] sm:$0xff]
        %v1317 = vld [vmem:[%s1299 + $0x1d4] sm:$0xff]
        %v1318 = vld [vmem:[%s1299 + $0x204] sm:$0xff]
        %v1319 = vld [vmem:[%s1299 + $0x20c] sm:$0xff]
        %v1320 = vld [vmem:[%s1299 + $0x23c] sm:$0xff]
        %v1321 = vld [vmem:[%s1299 + $0x244] sm:$0xff]
        %v1322 = vld [vmem:[%s1299 + $0x274] sm:$0xff]
        %v1323 = vld [vmem:[%s1299 + $0x27c] sm:$0xff]
        %v1324 = vld [vmem:[%s1299 + $0x2ac] sm:$0xff]
        %v1325 = vld [vmem:[%s1299 + $0x2b4] sm:$0xff]
        %v1326 = vld [vmem:[%s1299 + $0x2e4] sm:$0xff]
        %v1327 = vld [vmem:[%s1299 + $0x2ec] sm:$0xff]
        %v1328 = vld [vmem:[%s1299 + $0x31c] sm:$0xff]
        %v1329 = vld [vmem:[%s1299 + $0x324] sm:$0xff]
        %v1330 = vld [vmem:[%s1299 + $0x354] sm:$0xff]
        %v1331 = vld [vmem:[%s1299 + $0x35c] sm:$0xff]
        %1332 = vst.msk [vmem:[#allocation3] sm:$0xff] %vm555, %v1300
        %1333 = vst.msk [vmem:[#allocation3 + $0x18] sm:$0xff] %vm555, %v1301
        %1334 = vst.msk [vmem:[#allocation3 + $0x30] sm:$0xff] %vm555, %v1302
        %1335 = vst.msk [vmem:[#allocation3 + $0x48] sm:$0xff] %vm555, %v1303
        %1336 = vst.msk [vmem:[#allocation3 + $0x60] sm:$0xff] %vm555, %v1304
        %1337 = vst.msk [vmem:[#allocation3 + $0x78] sm:$0xff] %vm555, %v1305
        %1338 = vst.msk [vmem:[#allocation3 + $0x90] sm:$0xff] %vm555, %v1306
        %1339 = vst.msk [vmem:[#allocation3 + $0xa8] sm:$0xff] %vm555, %v1307
        %1340 = vst.msk [vmem:[#allocation3 + $0xc0] sm:$0xff] %vm555, %v1308
        %1341 = vst.msk [vmem:[#allocation3 + $0xd8] sm:$0xff] %vm555, %v1309
        %1342 = vst.msk [vmem:[#allocation3 + $0xf0] sm:$0xff] %vm555, %v1310
        %1343 = vst.msk [vmem:[#allocation3 + $0x108] sm:$0xff] %vm555, %v1311
        %1344 = vst.msk [vmem:[#allocation3 + $0x120] sm:$0xff] %vm555, %v1312
        %1345 = vst.msk [vmem:[#allocation3 + $0x138] sm:$0xff] %vm555, %v1313
        %1346 = vst.msk [vmem:[#allocation3 + $0x150] sm:$0xff] %vm555, %v1314
        %1347 = vst.msk [vmem:[#allocation3 + $0x168] sm:$0xff] %vm555, %v1315
        %1348 = vst.msk [vmem:[#allocation3 + $0x180] sm:$0xff] %vm555, %v1316
        %1349 = vst.msk [vmem:[#allocation3 + $0x198] sm:$0xff] %vm555, %v1317
        %1350 = vst.msk [vmem:[#allocation3 + $0x1b0] sm:$0xff] %vm555, %v1318
        %1351 = vst.msk [vmem:[#allocation3 + $0x1c8] sm:$0xff] %vm555, %v1319
        %1352 = vst.msk [vmem:[#allocation3 + $0x1e0] sm:$0xff] %vm555, %v1320
        %1353 = vst.msk [vmem:[#allocation3 + $0x1f8] sm:$0xff] %vm555, %v1321
        %1354 = vst.msk [vmem:[#allocation3 + $0x210] sm:$0xff] %vm555, %v1322
        %1355 = vst.msk [vmem:[#allocation3 + $0x228] sm:$0xff] %vm555, %v1323
        %1356 = vst.msk [vmem:[#allocation3 + $0x240] sm:$0xff] %vm555, %v1324
        %1357 = vst.msk [vmem:[#allocation3 + $0x258] sm:$0xff] %vm555, %v1325
        %1358 = vst.msk [vmem:[#allocation3 + $0x270] sm:$0xff] %vm555, %v1326
        %1359 = vst.msk [vmem:[#allocation3 + $0x288] sm:$0xff] %vm555, %v1327
        %1360 = vst.msk [vmem:[#allocation3 + $0x2a0] sm:$0xff] %vm555, %v1328
        %1361 = vst.msk [vmem:[#allocation3 + $0x2b8] sm:$0xff] %vm555, %v1329
        %1362 = vst.msk [vmem:[#allocation3 + $0x2d0] sm:$0xff] %vm555, %v1330
        %1363 = vst.msk [vmem:[#allocation3 + $0x2e8] sm:$0xff] %vm555, %v1331
        %v1364 = vld [vmem:[%s1299 + $0x12] sm:$0xff]
        %v1365 = vld [vmem:[%s1299 + $0x1a] sm:$0xff]
        %v1366 = vld [vmem:[%s1299 + $0x4a] sm:$0xff]
        %v1367 = vld [vmem:[%s1299 + $0x52] sm:$0xff]
        %v1368 = vld [vmem:[%s1299 + $0x82] sm:$0xff]
        %v1369 = vld [vmem:[%s1299 + $0x8a] sm:$0xff]
        %v1370 = vld [vmem:[%s1299 + $0xba] sm:$0xff]
        %v1371 = vld [vmem:[%s1299 + $0xc2] sm:$0xff]
        %v1372 = vld [vmem:[%s1299 + $0xf2] sm:$0xff]
        %v1373 = vld [vmem:[%s1299 + $0xfa] sm:$0xff]
        %v1374 = vld [vmem:[%s1299 + $0x12a] sm:$0xff]
        %v1375 = vld [vmem:[%s1299 + $0x132] sm:$0xff]
        %v1376 = vld [vmem:[%s1299 + $0x162] sm:$0xff]
        %v1377 = vld [vmem:[%s1299 + $0x16a] sm:$0xff]
        %v1378 = vld [vmem:[%s1299 + $0x19a] sm:$0xff]
        %v1379 = vld [vmem:[%s1299 + $0x1a2] sm:$0xff]
        %v1380 = vld [vmem:[%s1299 + $0x1d2] sm:$0xff]
        %v1381 = vld [vmem:[%s1299 + $0x1da] sm:$0xff]
        %v1382 = vld [vmem:[%s1299 + $0x20a] sm:$0xff]
        %v1383 = vld [vmem:[%s1299 + $0x212] sm:$0xff]
        %v1384 = vld [vmem:[%s1299 + $0x242] sm:$0xff]
        %v1385 = vld [vmem:[%s1299 + $0x24a] sm:$0xff]
        %v1386 = vld [vmem:[%s1299 + $0x27a] sm:$0xff]
        %v1387 = vld [vmem:[%s1299 + $0x282] sm:$0xff]
        %v1388 = vld [vmem:[%s1299 + $0x2b2] sm:$0xff]
        %v1389 = vld [vmem:[%s1299 + $0x2ba] sm:$0xff]
        %v1390 = vld [vmem:[%s1299 + $0x2ea] sm:$0xff]
        %v1391 = vld [vmem:[%s1299 + $0x2f2] sm:$0xff]
        %v1392 = vld [vmem:[%s1299 + $0x322] sm:$0xff]
        %v1393 = vld [vmem:[%s1299 + $0x32a] sm:$0xff]
        %v1394 = vld [vmem:[%s1299 + $0x35a] sm:$0xff]
        %v1395 = vld [vmem:[%s1299 + $0x362] sm:$0xff]
        %1428 = vrot.lane.b32.xlu0 %v1364, 32
        %v1429 = vpop.permute.xlu0 %1428
        %1430 = vrot.lane.b32.xlu0 %v1365, 32
        %v1431 = vpop.permute.xlu0 %1430
        %1432 = vrot.lane.b32.xlu0 %v1366, 32
        %v1433 = vpop.permute.xlu0 %1432
        %1434 = vrot.lane.b32.xlu0 %v1367, 32
        %v1435 = vpop.permute.xlu0 %1434
        %1436 = vrot.lane.b32.xlu0 %v1368, 32
        %v1437 = vpop.permute.xlu0 %1436
        %1438 = vrot.lane.b32.xlu0 %v1369, 32
        %v1439 = vpop.permute.xlu0 %1438
        %1440 = vrot.lane.b32.xlu0 %v1370, 32
        %v1441 = vpop.permute.xlu0 %1440
        %1442 = vrot.lane.b32.xlu0 %v1371, 32
        %v1443 = vpop.permute.xlu0 %1442
        %1444 = vrot.lane.b32.xlu0 %v1372, 32
        %v1445 = vpop.permute.xlu0 %1444
        %1446 = vrot.lane.b32.xlu0 %v1373, 32
        %v1447 = vpop.permute.xlu0 %1446
        %1448 = vrot.lane.b32.xlu0 %v1374, 32
        %v1449 = vpop.permute.xlu0 %1448
        %1450 = vrot.lane.b32.xlu0 %v1375, 32
        %v1451 = vpop.permute.xlu0 %1450
        %1452 = vrot.lane.b32.xlu0 %v1376, 32
        %v1453 = vpop.permute.xlu0 %1452
        %1454 = vrot.lane.b32.xlu0 %v1377, 32
        %v1455 = vpop.permute.xlu0 %1454
        %1456 = vrot.lane.b32.xlu0 %v1378, 32
        %v1457 = vpop.permute.xlu0 %1456
        %1458 = vrot.lane.b32.xlu0 %v1379, 32
        %v1459 = vpop.permute.xlu0 %1458
        %1460 = vrot.lane.b32.xlu0 %v1380, 32
        %v1461 = vpop.permute.xlu0 %1460
        %1462 = vrot.lane.b32.xlu0 %v1381, 32
        %v1463 = vpop.permute.xlu0 %1462
        %1464 = vrot.lane.b32.xlu0 %v1382, 32
        %v1465 = vpop.permute.xlu0 %1464
        %1466 = vrot.lane.b32.xlu0 %v1383, 32
        %v1467 = vpop.permute.xlu0 %1466
        %1468 = vrot.lane.b32.xlu0 %v1384, 32
        %v1469 = vpop.permute.xlu0 %1468
        %1470 = vrot.lane.b32.xlu0 %v1385, 32
        %v1471 = vpop.permute.xlu0 %1470
        %1472 = vrot.lane.b32.xlu0 %v1386, 32
        %v1473 = vpop.permute.xlu0 %1472
        %1474 = vrot.lane.b32.xlu0 %v1387, 32
        %v1475 = vpop.permute.xlu0 %1474
        %1476 = vrot.lane.b32.xlu0 %v1388, 32
        %v1477 = vpop.permute.xlu0 %1476
        %1478 = vrot.lane.b32.xlu0 %v1389, 32
        %v1479 = vpop.permute.xlu0 %1478
        %1480 = vrot.lane.b32.xlu0 %v1390, 32
        %v1481 = vpop.permute.xlu0 %1480
        %1482 = vrot.lane.b32.xlu0 %v1391, 32
        %v1483 = vpop.permute.xlu0 %1482
        %1484 = vrot.lane.b32.xlu0 %v1392, 32
        %v1485 = vpop.permute.xlu0 %1484
        %1486 = vrot.lane.b32.xlu0 %v1393, 32
        %v1487 = vpop.permute.xlu0 %1486
        %1488 = vrot.lane.b32.xlu0 %v1394, 32
        %v1489 = vpop.permute.xlu0 %1488
        %1490 = vrot.lane.b32.xlu0 %v1395, 32
        %v1491 = vpop.permute.xlu0 %1490
        %vm1524 = vcmask 523520
        %1525 = vst.msk [vmem:[#allocation3] sm:$0xff] %vm1524, %v1429
        %1526 = vst.msk [vmem:[#allocation3 + $0x18] sm:$0xff] %vm1524, %v1431
        %1527 = vst.msk [vmem:[#allocation3 + $0x30] sm:$0xff] %vm1524, %v1433
        %1528 = vst.msk [vmem:[#allocation3 + $0x48] sm:$0xff] %vm1524, %v1435
        %1529 = vst.msk [vmem:[#allocation3 + $0x60] sm:$0xff] %vm1524, %v1437
        %1530 = vst.msk [vmem:[#allocation3 + $0x78] sm:$0xff] %vm1524, %v1439
        %1531 = vst.msk [vmem:[#allocation3 + $0x90] sm:$0xff] %vm1524, %v1441
        %1532 = vst.msk [vmem:[#allocation3 + $0xa8] sm:$0xff] %vm1524, %v1443
        %1533 = vst.msk [vmem:[#allocation3 + $0xc0] sm:$0xff] %vm1524, %v1445
        %1534 = vst.msk [vmem:[#allocation3 + $0xd8] sm:$0xff] %vm1524, %v1447
        %1535 = vst.msk [vmem:[#allocation3 + $0xf0] sm:$0xff] %vm1524, %v1449
        %1536 = vst.msk [vmem:[#allocation3 + $0x108] sm:$0xff] %vm1524, %v1451
        %1537 = vst.msk [vmem:[#allocation3 + $0x120] sm:$0xff] %vm1524, %v1453
        %1538 = vst.msk [vmem:[#allocation3 + $0x138] sm:$0xff] %vm1524, %v1455
        %1539 = vst.msk [vmem:[#allocation3 + $0x150] sm:$0xff] %vm1524, %v1457
        %1540 = vst.msk [vmem:[#allocation3 + $0x168] sm:$0xff] %vm1524, %v1459
        %1541 = vst.msk [vmem:[#allocation3 + $0x180] sm:$0xff] %vm1524, %v1461
        %1542 = vst.msk [vmem:[#allocation3 + $0x198] sm:$0xff] %vm1524, %v1463
        %1543 = vst.msk [vmem:[#allocation3 + $0x1b0] sm:$0xff] %vm1524, %v1465
        %1544 = vst.msk [vmem:[#allocation3 + $0x1c8] sm:$0xff] %vm1524, %v1467
        %1545 = vst.msk [vmem:[#allocation3 + $0x1e0] sm:$0xff] %vm1524, %v1469
        %1546 = vst.msk [vmem:[#allocation3 + $0x1f8] sm:$0xff] %vm1524, %v1471
        %1547 = vst.msk [vmem:[#allocation3 + $0x210] sm:$0xff] %vm1524, %v1473
        %1548 = vst.msk [vmem:[#allocation3 + $0x228] sm:$0xff] %vm1524, %v1475
        %1549 = vst.msk [vmem:[#allocation3 + $0x240] sm:$0xff] %vm1524, %v1477
        %1550 = vst.msk [vmem:[#allocation3 + $0x258] sm:$0xff] %vm1524, %v1479
        %1551 = vst.msk [vmem:[#allocation3 + $0x270] sm:$0xff] %vm1524, %v1481
        %1552 = vst.msk [vmem:[#allocation3 + $0x288] sm:$0xff] %vm1524, %v1483
        %1553 = vst.msk [vmem:[#allocation3 + $0x2a0] sm:$0xff] %vm1524, %v1485
        %1554 = vst.msk [vmem:[#allocation3 + $0x2b8] sm:$0xff] %vm1524, %v1487
        %1555 = vst.msk [vmem:[#allocation3 + $0x2d0] sm:$0xff] %vm1524, %v1489
        %1556 = vst.msk [vmem:[#allocation3 + $0x2e8] sm:$0xff] %vm1524, %v1491
        %v1557 = vld [vmem:[%s1299 + $0x18] sm:$0xff]
        %v1558 = vld [vmem:[%s1299 + $0x20] sm:$0xff]
        %v1559 = vld [vmem:[%s1299 + $0x50] sm:$0xff]
        %v1560 = vld [vmem:[%s1299 + $0x58] sm:$0xff]
        %v1561 = vld [vmem:[%s1299 + $0x88] sm:$0xff]
        %v1562 = vld [vmem:[%s1299 + $0x90] sm:$0xff]
        %v1563 = vld [vmem:[%s1299 + $0xc0] sm:$0xff]
        %v1564 = vld [vmem:[%s1299 + $0xc8] sm:$0xff]
        %v1565 = vld [vmem:[%s1299 + $0xf8] sm:$0xff]
        %v1566 = vld [vmem:[%s1299 + $0x100] sm:$0xff]
        %v1567 = vld [vmem:[%s1299 + $0x130] sm:$0xff]
        %v1568 = vld [vmem:[%s1299 + $0x138] sm:$0xff]
        %v1569 = vld [vmem:[%s1299 + $0x168] sm:$0xff]
        %v1570 = vld [vmem:[%s1299 + $0x170] sm:$0xff]
        %v1571 = vld [vmem:[%s1299 + $0x1a0] sm:$0xff]
        %v1572 = vld [vmem:[%s1299 + $0x1a8] sm:$0xff]
        %v1573 = vld [vmem:[%s1299 + $0x1d8] sm:$0xff]
        %v1574 = vld [vmem:[%s1299 + $0x1e0] sm:$0xff]
        %v1575 = vld [vmem:[%s1299 + $0x210] sm:$0xff]
        %v1576 = vld [vmem:[%s1299 + $0x218] sm:$0xff]
        %v1577 = vld [vmem:[%s1299 + $0x248] sm:$0xff]
        %v1578 = vld [vmem:[%s1299 + $0x250] sm:$0xff]
        %v1579 = vld [vmem:[%s1299 + $0x280] sm:$0xff]
        %v1580 = vld [vmem:[%s1299 + $0x288] sm:$0xff]
        %v1581 = vld [vmem:[%s1299 + $0x2b8] sm:$0xff]
        %v1582 = vld [vmem:[%s1299 + $0x2c0] sm:$0xff]
        %v1583 = vld [vmem:[%s1299 + $0x2f0] sm:$0xff]
        %v1584 = vld [vmem:[%s1299 + $0x2f8] sm:$0xff]
        %v1585 = vld [vmem:[%s1299 + $0x328] sm:$0xff]
        %v1586 = vld [vmem:[%s1299 + $0x330] sm:$0xff]
        %v1587 = vld [vmem:[%s1299 + $0x360] sm:$0xff]
        %v1588 = vld [vmem:[%s1299 + $0x368] sm:$0xff]
        %1621 = vrot.lane.b32.xlu0 %v1557, 64
        %v1622 = vpop.permute.xlu0 %1621
        %1623 = vrot.lane.b32.xlu0 %v1558, 64
        %v1624 = vpop.permute.xlu0 %1623
        %1625 = vrot.lane.b32.xlu0 %v1559, 64
        %v1626 = vpop.permute.xlu0 %1625
        %1627 = vrot.lane.b32.xlu0 %v1560, 64
        %v1628 = vpop.permute.xlu0 %1627
        %1629 = vrot.lane.b32.xlu0 %v1561, 64
        %v1630 = vpop.permute.xlu0 %1629
        %1631 = vrot.lane.b32.xlu0 %v1562, 64
        %v1632 = vpop.permute.xlu0 %1631
        %1633 = vrot.lane.b32.xlu0 %v1563, 64
        %v1634 = vpop.permute.xlu0 %1633
        %1635 = vrot.lane.b32.xlu0 %v1564, 64
        %v1636 = vpop.permute.xlu0 %1635
        %1637 = vrot.lane.b32.xlu0 %v1565, 64
        %v1638 = vpop.permute.xlu0 %1637
        %1639 = vrot.lane.b32.xlu0 %v1566, 64
        %v1640 = vpop.permute.xlu0 %1639
        %1641 = vrot.lane.b32.xlu0 %v1567, 64
        %v1642 = vpop.permute.xlu0 %1641
        %1643 = vrot.lane.b32.xlu0 %v1568, 64
        %v1644 = vpop.permute.xlu0 %1643
        %1645 = vrot.lane.b32.xlu0 %v1569, 64
        %v1646 = vpop.permute.xlu0 %1645
        %1647 = vrot.lane.b32.xlu0 %v1570, 64
        %v1648 = vpop.permute.xlu0 %1647
        %1649 = vrot.lane.b32.xlu0 %v1571, 64
        %v1650 = vpop.permute.xlu0 %1649
        %1651 = vrot.lane.b32.xlu0 %v1572, 64
        %v1652 = vpop.permute.xlu0 %1651
        %1653 = vrot.lane.b32.xlu0 %v1573, 64
        %v1654 = vpop.permute.xlu0 %1653
        %1655 = vrot.lane.b32.xlu0 %v1574, 64
        %v1656 = vpop.permute.xlu0 %1655
        %1657 = vrot.lane.b32.xlu0 %v1575, 64
        %v1658 = vpop.permute.xlu0 %1657
        %1659 = vrot.lane.b32.xlu0 %v1576, 64
        %v1660 = vpop.permute.xlu0 %1659
        %1661 = vrot.lane.b32.xlu0 %v1577, 64
        %v1662 = vpop.permute.xlu0 %1661
        %1663 = vrot.lane.b32.xlu0 %v1578, 64
        %v1664 = vpop.permute.xlu0 %1663
        %1665 = vrot.lane.b32.xlu0 %v1579, 64
        %v1666 = vpop.permute.xlu0 %1665
        %1667 = vrot.lane.b32.xlu0 %v1580, 64
        %v1668 = vpop.permute.xlu0 %1667
        %1669 = vrot.lane.b32.xlu0 %v1581, 64
        %v1670 = vpop.permute.xlu0 %1669
        %1671 = vrot.lane.b32.xlu0 %v1582, 64
        %v1672 = vpop.permute.xlu0 %1671
        %1673 = vrot.lane.b32.xlu0 %v1583, 64
        %v1674 = vpop.permute.xlu0 %1673
        %1675 = vrot.lane.b32.xlu0 %v1584, 64
        %v1676 = vpop.permute.xlu0 %1675
        %1677 = vrot.lane.b32.xlu0 %v1585, 64
        %v1678 = vpop.permute.xlu0 %1677
        %1679 = vrot.lane.b32.xlu0 %v1586, 64
        %v1680 = vpop.permute.xlu0 %1679
        %1681 = vrot.lane.b32.xlu0 %v1587, 64
        %v1682 = vpop.permute.xlu0 %1681
        %1683 = vrot.lane.b32.xlu0 %v1588, 64
        %v1684 = vpop.permute.xlu0 %1683
        %vm1717 = vcmask 785920
        %1718 = vst.msk [vmem:[#allocation3] sm:$0xff] %vm1717, %v1622
        %1719 = vst.msk [vmem:[#allocation3 + $0x18] sm:$0xff] %vm1717, %v1624
        %1720 = vst.msk [vmem:[#allocation3 + $0x30] sm:$0xff] %vm1717, %v1626
        %1721 = vst.msk [vmem:[#allocation3 + $0x48] sm:$0xff] %vm1717, %v1628
        %1722 = vst.msk [vmem:[#allocation3 + $0x60] sm:$0xff] %vm1717, %v1630
        %1723 = vst.msk [vmem:[#allocation3 + $0x78] sm:$0xff] %vm1717, %v1632
        %1724 = vst.msk [vmem:[#allocation3 + $0x90] sm:$0xff] %vm1717, %v1634
        %1725 = vst.msk [vmem:[#allocation3 + $0xa8] sm:$0xff] %vm1717, %v1636
        %1726 = vst.msk [vmem:[#allocation3 + $0xc0] sm:$0xff] %vm1717, %v1638
        %1727 = vst.msk [vmem:[#allocation3 + $0xd8] sm:$0xff] %vm1717, %v1640
        %1728 = vst.msk [vmem:[#allocation3 + $0xf0] sm:$0xff] %vm1717, %v1642
        %1729 = vst.msk [vmem:[#allocation3 + $0x108] sm:$0xff] %vm1717, %v1644
        %1730 = vst.msk [vmem:[#allocation3 + $0x120] sm:$0xff] %vm1717, %v1646
        %1731 = vst.msk [vmem:[#allocation3 + $0x138] sm:$0xff] %vm1717, %v1648
        %1732 = vst.msk [vmem:[#allocation3 + $0x150] sm:$0xff] %vm1717, %v1650
        %1733 = vst.msk [vmem:[#allocation3 + $0x168] sm:$0xff] %vm1717, %v1652
        %1734 = vst.msk [vmem:[#allocation3 + $0x180] sm:$0xff] %vm1717, %v1654
        %1735 = vst.msk [vmem:[#allocation3 + $0x198] sm:$0xff] %vm1717, %v1656
        %1736 = vst.msk [vmem:[#allocation3 + $0x1b0] sm:$0xff] %vm1717, %v1658
        %1737 = vst.msk [vmem:[#allocation3 + $0x1c8] sm:$0xff] %vm1717, %v1660
        %1738 = vst.msk [vmem:[#allocation3 + $0x1e0] sm:$0xff] %vm1717, %v1662
        %1739 = vst.msk [vmem:[#allocation3 + $0x1f8] sm:$0xff] %vm1717, %v1664
        %1740 = vst.msk [vmem:[#allocation3 + $0x210] sm:$0xff] %vm1717, %v1666
        %1741 = vst.msk [vmem:[#allocation3 + $0x228] sm:$0xff] %vm1717, %v1668
        %1742 = vst.msk [vmem:[#allocation3 + $0x240] sm:$0xff] %vm1717, %v1670
        %1743 = vst.msk [vmem:[#allocation3 + $0x258] sm:$0xff] %vm1717, %v1672
        %1744 = vst.msk [vmem:[#allocation3 + $0x270] sm:$0xff] %vm1717, %v1674
        %1745 = vst.msk [vmem:[#allocation3 + $0x288] sm:$0xff] %vm1717, %v1676
        %1746 = vst.msk [vmem:[#allocation3 + $0x2a0] sm:$0xff] %vm1717, %v1678
        %1747 = vst.msk [vmem:[#allocation3 + $0x2b8] sm:$0xff] %vm1717, %v1680
        %1748 = vst.msk [vmem:[#allocation3 + $0x2d0] sm:$0xff] %vm1717, %v1682
        %1749 = vst.msk [vmem:[#allocation3 + $0x2e8] sm:$0xff] %vm1717, %v1684
        %v1750 = vld [vmem:[%s810 + $0xc] sm:$0xff]
        %v1751 = vld [vmem:[%s810 + $0x14] sm:$0xff]
        %v1752 = vld [vmem:[%s810 + $0x44] sm:$0xff]
        %v1753 = vld [vmem:[%s810 + $0x4c] sm:$0xff]
        %v1754 = vld [vmem:[%s810 + $0x7c] sm:$0xff]
        %v1755 = vld [vmem:[%s810 + $0x84] sm:$0xff]
        %v1756 = vld [vmem:[%s810 + $0xb4] sm:$0xff]
        %v1757 = vld [vmem:[%s810 + $0xbc] sm:$0xff]
        %v1758 = vld [vmem:[%s810 + $0xec] sm:$0xff]
        %v1759 = vld [vmem:[%s810 + $0xf4] sm:$0xff]
        %v1760 = vld [vmem:[%s810 + $0x124] sm:$0xff]
        %v1761 = vld [vmem:[%s810 + $0x12c] sm:$0xff]
        %v1762 = vld [vmem:[%s810 + $0x15c] sm:$0xff]
        %v1763 = vld [vmem:[%s810 + $0x164] sm:$0xff]
        %v1764 = vld [vmem:[%s810 + $0x194] sm:$0xff]
        %v1765 = vld [vmem:[%s810 + $0x19c] sm:$0xff]
        %v1766 = vld [vmem:[%s810 + $0x1cc] sm:$0xff]
        %v1767 = vld [vmem:[%s810 + $0x1d4] sm:$0xff]
        %v1768 = vld [vmem:[%s810 + $0x204] sm:$0xff]
        %v1769 = vld [vmem:[%s810 + $0x20c] sm:$0xff]
        %v1770 = vld [vmem:[%s810 + $0x23c] sm:$0xff]
        %v1771 = vld [vmem:[%s810 + $0x244] sm:$0xff]
        %v1772 = vld [vmem:[%s810 + $0x274] sm:$0xff]
        %v1773 = vld [vmem:[%s810 + $0x27c] sm:$0xff]
        %v1774 = vld [vmem:[%s810 + $0x2ac] sm:$0xff]
        %v1775 = vld [vmem:[%s810 + $0x2b4] sm:$0xff]
        %v1776 = vld [vmem:[%s810 + $0x2e4] sm:$0xff]
        %v1777 = vld [vmem:[%s810 + $0x2ec] sm:$0xff]
        %v1778 = vld [vmem:[%s810 + $0x31c] sm:$0xff]
        %v1779 = vld [vmem:[%s810 + $0x324] sm:$0xff]
        %v1780 = vld [vmem:[%s810 + $0x354] sm:$0xff]
        %v1781 = vld [vmem:[%s810 + $0x35c] sm:$0xff]
        %1814 = vrot.lane.b32.xlu0 %v1750, 96
        %v1815 = vpop.permute.xlu0 %1814
        %1816 = vrot.lane.b32.xlu0 %v1751, 96
        %v1817 = vpop.permute.xlu0 %1816
        %1818 = vrot.lane.b32.xlu0 %v1752, 96
        %v1819 = vpop.permute.xlu0 %1818
        %1820 = vrot.lane.b32.xlu0 %v1753, 96
        %v1821 = vpop.permute.xlu0 %1820
        %1822 = vrot.lane.b32.xlu0 %v1754, 96
        %v1823 = vpop.permute.xlu0 %1822
        %1824 = vrot.lane.b32.xlu0 %v1755, 96
        %v1825 = vpop.permute.xlu0 %1824
        %1826 = vrot.lane.b32.xlu0 %v1756, 96
        %v1827 = vpop.permute.xlu0 %1826
        %1828 = vrot.lane.b32.xlu0 %v1757, 96
        %v1829 = vpop.permute.xlu0 %1828
        %1830 = vrot.lane.b32.xlu0 %v1758, 96
        %v1831 = vpop.permute.xlu0 %1830
        %1832 = vrot.lane.b32.xlu0 %v1759, 96
        %v1833 = vpop.permute.xlu0 %1832
        %1834 = vrot.lane.b32.xlu0 %v1760, 96
        %v1835 = vpop.permute.xlu0 %1834
        %1836 = vrot.lane.b32.xlu0 %v1761, 96
        %v1837 = vpop.permute.xlu0 %1836
        %1838 = vrot.lane.b32.xlu0 %v1762, 96
        %v1839 = vpop.permute.xlu0 %1838
        %1840 = vrot.lane.b32.xlu0 %v1763, 96
        %v1841 = vpop.permute.xlu0 %1840
        %1842 = vrot.lane.b32.xlu0 %v1764, 96
        %v1843 = vpop.permute.xlu0 %1842
        %1844 = vrot.lane.b32.xlu0 %v1765, 96
        %v1845 = vpop.permute.xlu0 %1844
        %1846 = vrot.lane.b32.xlu0 %v1766, 96
        %v1847 = vpop.permute.xlu0 %1846
        %1848 = vrot.lane.b32.xlu0 %v1767, 96
        %v1849 = vpop.permute.xlu0 %1848
        %1850 = vrot.lane.b32.xlu0 %v1768, 96
        %v1851 = vpop.permute.xlu0 %1850
        %1852 = vrot.lane.b32.xlu0 %v1769, 96
        %v1853 = vpop.permute.xlu0 %1852
        %1854 = vrot.lane.b32.xlu0 %v1770, 96
        %v1855 = vpop.permute.xlu0 %1854
        %1856 = vrot.lane.b32.xlu0 %v1771, 96
        %v1857 = vpop.permute.xlu0 %1856
        %1858 = vrot.lane.b32.xlu0 %v1772, 96
        %v1859 = vpop.permute.xlu0 %1858
        %1860 = vrot.lane.b32.xlu0 %v1773, 96
        %v1861 = vpop.permute.xlu0 %1860
        %1862 = vrot.lane.b32.xlu0 %v1774, 96
        %v1863 = vpop.permute.xlu0 %1862
        %1864 = vrot.lane.b32.xlu0 %v1775, 96
        %v1865 = vpop.permute.xlu0 %1864
        %1866 = vrot.lane.b32.xlu0 %v1776, 96
        %v1867 = vpop.permute.xlu0 %1866
        %1868 = vrot.lane.b32.xlu0 %v1777, 96
        %v1869 = vpop.permute.xlu0 %1868
        %1870 = vrot.lane.b32.xlu0 %v1778, 96
        %v1871 = vpop.permute.xlu0 %1870
        %1872 = vrot.lane.b32.xlu0 %v1779, 96
        %v1873 = vpop.permute.xlu0 %1872
        %1874 = vrot.lane.b32.xlu0 %v1780, 96
        %v1875 = vpop.permute.xlu0 %1874
        %1876 = vrot.lane.b32.xlu0 %v1781, 96
        %v1877 = vpop.permute.xlu0 %1876
        %vm1910 = vcmask 1048320
        %1911 = vst.msk [vmem:[#allocation3] sm:$0xff] %vm1910, %v1815
        %1912 = vst.msk [vmem:[#allocation3 + $0x18] sm:$0xff] %vm1910, %v1817
        %1913 = vst.msk [vmem:[#allocation3 + $0x30] sm:$0xff] %vm1910, %v1819
        %1914 = vst.msk [vmem:[#allocation3 + $0x48] sm:$0xff] %vm1910, %v1821
        %1915 = vst.msk [vmem:[#allocation3 + $0x60] sm:$0xff] %vm1910, %v1823
        %1916 = vst.msk [vmem:[#allocation3 + $0x78] sm:$0xff] %vm1910, %v1825
        %1917 = vst.msk [vmem:[#allocation3 + $0x90] sm:$0xff] %vm1910, %v1827
        %1918 = vst.msk [vmem:[#allocation3 + $0xa8] sm:$0xff] %vm1910, %v1829
        %1919 = vst.msk [vmem:[#allocation3 + $0xc0] sm:$0xff] %vm1910, %v1831
        %1920 = vst.msk [vmem:[#allocation3 + $0xd8] sm:$0xff] %vm1910, %v1833
        %1921 = vst.msk [vmem:[#allocation3 + $0xf0] sm:$0xff] %vm1910, %v1835
        %1922 = vst.msk [vmem:[#allocation3 + $0x108] sm:$0xff] %vm1910, %v1837
        %1923 = vst.msk [vmem:[#allocation3 + $0x120] sm:$0xff] %vm1910, %v1839
        %1924 = vst.msk [vmem:[#allocation3 + $0x138] sm:$0xff] %vm1910, %v1841
        %1925 = vst.msk [vmem:[#allocation3 + $0x150] sm:$0xff] %vm1910, %v1843
        %1926 = vst.msk [vmem:[#allocation3 + $0x168] sm:$0xff] %vm1910, %v1845
        %1927 = vst.msk [vmem:[#allocation3 + $0x180] sm:$0xff] %vm1910, %v1847
        %1928 = vst.msk [vmem:[#allocation3 + $0x198] sm:$0xff] %vm1910, %v1849
        %1929 = vst.msk [vmem:[#allocation3 + $0x1b0] sm:$0xff] %vm1910, %v1851
        %1930 = vst.msk [vmem:[#allocation3 + $0x1c8] sm:$0xff] %vm1910, %v1853
        %1931 = vst.msk [vmem:[#allocation3 + $0x1e0] sm:$0xff] %vm1910, %v1855
        %1932 = vst.msk [vmem:[#allocation3 + $0x1f8] sm:$0xff] %vm1910, %v1857
        %1933 = vst.msk [vmem:[#allocation3 + $0x210] sm:$0xff] %vm1910, %v1859
        %1934 = vst.msk [vmem:[#allocation3 + $0x228] sm:$0xff] %vm1910, %v1861
        %1935 = vst.msk [vmem:[#allocation3 + $0x240] sm:$0xff] %vm1910, %v1863
        %1936 = vst.msk [vmem:[#allocation3 + $0x258] sm:$0xff] %vm1910, %v1865
        %1937 = vst.msk [vmem:[#allocation3 + $0x270] sm:$0xff] %vm1910, %v1867
        %1938 = vst.msk [vmem:[#allocation3 + $0x288] sm:$0xff] %vm1910, %v1869
        %1939 = vst.msk [vmem:[#allocation3 + $0x2a0] sm:$0xff] %vm1910, %v1871
        %1940 = vst.msk [vmem:[#allocation3 + $0x2b8] sm:$0xff] %vm1910, %v1873
        %1941 = vst.msk [vmem:[#allocation3 + $0x2d0] sm:$0xff] %vm1910, %v1875
        %1942 = vst.msk [vmem:[#allocation3 + $0x2e8] sm:$0xff] %vm1910, %v1877
        %v1943 = vld [vmem:[%s810 + $0x12] sm:$0xff]
        %v1944 = vld [vmem:[%s810 + $0x1a] sm:$0xff]
        %v1945 = vld [vmem:[%s810 + $0x4a] sm:$0xff]
        %v1946 = vld [vmem:[%s810 + $0x52] sm:$0xff]
        %v1947 = vld [vmem:[%s810 + $0x82] sm:$0xff]
        %v1948 = vld [vmem:[%s810 + $0x8a] sm:$0xff]
        %v1949 = vld [vmem:[%s810 + $0xba] sm:$0xff]
        %v1950 = vld [vmem:[%s810 + $0xc2] sm:$0xff]
        %v1951 = vld [vmem:[%s810 + $0xf2] sm:$0xff]
        %v1952 = vld [vmem:[%s810 + $0xfa] sm:$0xff]
        %v1953 = vld [vmem:[%s810 + $0x12a] sm:$0xff]
        %v1954 = vld [vmem:[%s810 + $0x132] sm:$0xff]
        %v1955 = vld [vmem:[%s810 + $0x162] sm:$0xff]
        %v1956 = vld [vmem:[%s810 + $0x16a] sm:$0xff]
        %v1957 = vld [vmem:[%s810 + $0x19a] sm:$0xff]
        %v1958 = vld [vmem:[%s810 + $0x1a2] sm:$0xff]
        %v1959 = vld [vmem:[%s810 + $0x1d2] sm:$0xff]
        %v1960 = vld [vmem:[%s810 + $0x1da] sm:$0xff]
        %v1961 = vld [vmem:[%s810 + $0x20a] sm:$0xff]
        %v1962 = vld [vmem:[%s810 + $0x212] sm:$0xff]
        %v1963 = vld [vmem:[%s810 + $0x242] sm:$0xff]
        %v1964 = vld [vmem:[%s810 + $0x24a] sm:$0xff]
        %v1965 = vld [vmem:[%s810 + $0x27a] sm:$0xff]
        %v1966 = vld [vmem:[%s810 + $0x282] sm:$0xff]
        %v1967 = vld [vmem:[%s810 + $0x2b2] sm:$0xff]
        %v1968 = vld [vmem:[%s810 + $0x2ba] sm:$0xff]
        %v1969 = vld [vmem:[%s810 + $0x2ea] sm:$0xff]
        %v1970 = vld [vmem:[%s810 + $0x2f2] sm:$0xff]
        %v1971 = vld [vmem:[%s810 + $0x322] sm:$0xff]
        %v1972 = vld [vmem:[%s810 + $0x32a] sm:$0xff]
        %v1973 = vld [vmem:[%s810 + $0x35a] sm:$0xff]
        %v1974 = vld [vmem:[%s810 + $0x362] sm:$0xff]
        %1975 = vst.msk [vmem:[#allocation3 + $0x8] sm:$0xff] %vm555, %v1943
        %1976 = vst.msk [vmem:[#allocation3 + $0x20] sm:$0xff] %vm555, %v1944
        %1977 = vst.msk [vmem:[#allocation3 + $0x38] sm:$0xff] %vm555, %v1945
        %1978 = vst.msk [vmem:[#allocation3 + $0x50] sm:$0xff] %vm555, %v1946
        %1979 = vst.msk [vmem:[#allocation3 + $0x68] sm:$0xff] %vm555, %v1947
        %1980 = vst.msk [vmem:[#allocation3 + $0x80] sm:$0xff] %vm555, %v1948
        %1981 = vst.msk [vmem:[#allocation3 + $0x98] sm:$0xff] %vm555, %v1949
        %1982 = vst.msk [vmem:[#allocation3 + $0xb0] sm:$0xff] %vm555, %v1950
        %1983 = vst.msk [vmem:[#allocation3 + $0xc8] sm:$0xff] %vm555, %v1951
        %1984 = vst.msk [vmem:[#allocation3 + $0xe0] sm:$0xff] %vm555, %v1952
        %1985 = vst.msk [vmem:[#allocation3 + $0xf8] sm:$0xff] %vm555, %v1953
        %1986 = vst.msk [vmem:[#allocation3 + $0x110] sm:$0xff] %vm555, %v1954
        %1987 = vst.msk [vmem:[#allocation3 + $0x128] sm:$0xff] %vm555, %v1955
        %1988 = vst.msk [vmem:[#allocation3 + $0x140] sm:$0xff] %vm555, %v1956
        %1989 = vst.msk [vmem:[#allocation3 + $0x158] sm:$0xff] %vm555, %v1957
        %1990 = vst.msk [vmem:[#allocation3 + $0x170] sm:$0xff] %vm555, %v1958
        %1991 = vst.msk [vmem:[#allocation3 + $0x188] sm:$0xff] %vm555, %v1959
        %1992 = vst.msk [vmem:[#allocation3 + $0x1a0] sm:$0xff] %vm555, %v1960
        %1993 = vst.msk [vmem:[#allocation3 + $0x1b8] sm:$0xff] %vm555, %v1961
        %1994 = vst.msk [vmem:[#allocation3 + $0x1d0] sm:$0xff] %vm555, %v1962
        %1995 = vst.msk [vmem:[#allocation3 + $0x1e8] sm:$0xff] %vm555, %v1963
        %1996 = vst.msk [vmem:[#allocation3 + $0x200] sm:$0xff] %vm555, %v1964
        %1997 = vst.msk [vmem:[#allocation3 + $0x218] sm:$0xff] %vm555, %v1965
        %1998 = vst.msk [vmem:[#allocation3 + $0x230] sm:$0xff] %vm555, %v1966
        %1999 = vst.msk [vmem:[#allocation3 + $0x248] sm:$0xff] %vm555, %v1967
        %2000 = vst.msk [vmem:[#allocation3 + $0x260] sm:$0xff] %vm555, %v1968
        %2001 = vst.msk [vmem:[#allocation3 + $0x278] sm:$0xff] %vm555, %v1969
        %2002 = vst.msk [vmem:[#allocation3 + $0x290] sm:$0xff] %vm555, %v1970
        %2003 = vst.msk [vmem:[#allocation3 + $0x2a8] sm:$0xff] %vm555, %v1971
        %2004 = vst.msk [vmem:[#allocation3 + $0x2c0] sm:$0xff] %vm555, %v1972
        %2005 = vst.msk [vmem:[#allocation3 + $0x2d8] sm:$0xff] %vm555, %v1973
        %2006 = vst.msk [vmem:[#allocation3 + $0x2f0] sm:$0xff] %vm555, %v1974
        %v2007 = vld [vmem:[%s810 + $0x18] sm:$0xff]
        %v2008 = vld [vmem:[%s810 + $0x20] sm:$0xff]
        %v2009 = vld [vmem:[%s810 + $0x50] sm:$0xff]
        %v2010 = vld [vmem:[%s810 + $0x58] sm:$0xff]
        %v2011 = vld [vmem:[%s810 + $0x88] sm:$0xff]
        %v2012 = vld [vmem:[%s810 + $0x90] sm:$0xff]
        %v2013 = vld [vmem:[%s810 + $0xc0] sm:$0xff]
        %v2014 = vld [vmem:[%s810 + $0xc8] sm:$0xff]
        %v2015 = vld [vmem:[%s810 + $0xf8] sm:$0xff]
        %v2016 = vld [vmem:[%s810 + $0x100] sm:$0xff]
        %v2017 = vld [vmem:[%s810 + $0x130] sm:$0xff]
        %v2018 = vld [vmem:[%s810 + $0x138] sm:$0xff]
        %v2019 = vld [vmem:[%s810 + $0x168] sm:$0xff]
        %v2020 = vld [vmem:[%s810 + $0x170] sm:$0xff]
        %v2021 = vld [vmem:[%s810 + $0x1a0] sm:$0xff]
        %v2022 = vld [vmem:[%s810 + $0x1a8] sm:$0xff]
        %v2023 = vld [vmem:[%s810 + $0x1d8] sm:$0xff]
        %v2024 = vld [vmem:[%s810 + $0x1e0] sm:$0xff]
        %v2025 = vld [vmem:[%s810 + $0x210] sm:$0xff]
        %v2026 = vld [vmem:[%s810 + $0x218] sm:$0xff]
        %v2027 = vld [vmem:[%s810 + $0x248] sm:$0xff]
        %v2028 = vld [vmem:[%s810 + $0x250] sm:$0xff]
        %v2029 = vld [vmem:[%s810 + $0x280] sm:$0xff]
        %v2030 = vld [vmem:[%s810 + $0x288] sm:$0xff]
        %v2031 = vld [vmem:[%s810 + $0x2b8] sm:$0xff]
        %v2032 = vld [vmem:[%s810 + $0x2c0] sm:$0xff]
        %v2033 = vld [vmem:[%s810 + $0x2f0] sm:$0xff]
        %v2034 = vld [vmem:[%s810 + $0x2f8] sm:$0xff]
        %v2035 = vld [vmem:[%s810 + $0x328] sm:$0xff]
        %v2036 = vld [vmem:[%s810 + $0x330] sm:$0xff]
        %v2037 = vld [vmem:[%s810 + $0x360] sm:$0xff]
        %v2038 = vld [vmem:[%s810 + $0x368] sm:$0xff]
        %2071 = vrot.lane.b32.xlu0 %v2007, 32
        %v2072 = vpop.permute.xlu0 %2071
        %2073 = vrot.lane.b32.xlu0 %v2008, 32
        %v2074 = vpop.permute.xlu0 %2073
        %2075 = vrot.lane.b32.xlu0 %v2009, 32
        %v2076 = vpop.permute.xlu0 %2075
        %2077 = vrot.lane.b32.xlu0 %v2010, 32
        %v2078 = vpop.permute.xlu0 %2077
        %2079 = vrot.lane.b32.xlu0 %v2011, 32
        %v2080 = vpop.permute.xlu0 %2079
        %2081 = vrot.lane.b32.xlu0 %v2012, 32
        %v2082 = vpop.permute.xlu0 %2081
        %2083 = vrot.lane.b32.xlu0 %v2013, 32
        %v2084 = vpop.permute.xlu0 %2083
        %2085 = vrot.lane.b32.xlu0 %v2014, 32
        %v2086 = vpop.permute.xlu0 %2085
        %2087 = vrot.lane.b32.xlu0 %v2015, 32
        %v2088 = vpop.permute.xlu0 %2087
        %2089 = vrot.lane.b32.xlu0 %v2016, 32
        %v2090 = vpop.permute.xlu0 %2089
        %2091 = vrot.lane.b32.xlu0 %v2017, 32
        %v2092 = vpop.permute.xlu0 %2091
        %2093 = vrot.lane.b32.xlu0 %v2018, 32
        %v2094 = vpop.permute.xlu0 %2093
        %2095 = vrot.lane.b32.xlu0 %v2019, 32
        %v2096 = vpop.permute.xlu0 %2095
        %2097 = vrot.lane.b32.xlu0 %v2020, 32
        %v2098 = vpop.permute.xlu0 %2097
        %2099 = vrot.lane.b32.xlu0 %v2021, 32
        %v2100 = vpop.permute.xlu0 %2099
        %2101 = vrot.lane.b32.xlu0 %v2022, 32
        %v2102 = vpop.permute.xlu0 %2101
        %2103 = vrot.lane.b32.xlu0 %v2023, 32
        %v2104 = vpop.permute.xlu0 %2103
        %2105 = vrot.lane.b32.xlu0 %v2024, 32
        %v2106 = vpop.permute.xlu0 %2105
        %2107 = vrot.lane.b32.xlu0 %v2025, 32
        %v2108 = vpop.permute.xlu0 %2107
        %2109 = vrot.lane.b32.xlu0 %v2026, 32
        %v2110 = vpop.permute.xlu0 %2109
        %2111 = vrot.lane.b32.xlu0 %v2027, 32
        %v2112 = vpop.permute.xlu0 %2111
        %2113 = vrot.lane.b32.xlu0 %v2028, 32
        %v2114 = vpop.permute.xlu0 %2113
        %2115 = vrot.lane.b32.xlu0 %v2029, 32
        %v2116 = vpop.permute.xlu0 %2115
        %2117 = vrot.lane.b32.xlu0 %v2030, 32
        %v2118 = vpop.permute.xlu0 %2117
        %2119 = vrot.lane.b32.xlu0 %v2031, 32
        %v2120 = vpop.permute.xlu0 %2119
        %2121 = vrot.lane.b32.xlu0 %v2032, 32
        %v2122 = vpop.permute.xlu0 %2121
        %2123 = vrot.lane.b32.xlu0 %v2033, 32
        %v2124 = vpop.permute.xlu0 %2123
        %2125 = vrot.lane.b32.xlu0 %v2034, 32
        %v2126 = vpop.permute.xlu0 %2125
        %2127 = vrot.lane.b32.xlu0 %v2035, 32
        %v2128 = vpop.permute.xlu0 %2127
        %2129 = vrot.lane.b32.xlu0 %v2036, 32
        %v2130 = vpop.permute.xlu0 %2129
        %2131 = vrot.lane.b32.xlu0 %v2037, 32
        %v2132 = vpop.permute.xlu0 %2131
        %2133 = vrot.lane.b32.xlu0 %v2038, 32
        %v2134 = vpop.permute.xlu0 %2133
        %2167 = vst.msk [vmem:[#allocation3 + $0x8] sm:$0xff] %vm1524, %v2072
        %2168 = vst.msk [vmem:[#allocation3 + $0x20] sm:$0xff] %vm1524, %v2074
        %2169 = vst.msk [vmem:[#allocation3 + $0x38] sm:$0xff] %vm1524, %v2076
        %2170 = vst.msk [vmem:[#allocation3 + $0x50] sm:$0xff] %vm1524, %v2078
        %2171 = vst.msk [vmem:[#allocation3 + $0x68] sm:$0xff] %vm1524, %v2080
        %2172 = vst.msk [vmem:[#allocation3 + $0x80] sm:$0xff] %vm1524, %v2082
        %2173 = vst.msk [vmem:[#allocation3 + $0x98] sm:$0xff] %vm1524, %v2084
        %2174 = vst.msk [vmem:[#allocation3 + $0xb0] sm:$0xff] %vm1524, %v2086
        %2175 = vst.msk [vmem:[#allocation3 + $0xc8] sm:$0xff] %vm1524, %v2088
        %2176 = vst.msk [vmem:[#allocation3 + $0xe0] sm:$0xff] %vm1524, %v2090
        %2177 = vst.msk [vmem:[#allocation3 + $0xf8] sm:$0xff] %vm1524, %v2092
        %2178 = vst.msk [vmem:[#allocation3 + $0x110] sm:$0xff] %vm1524, %v2094
        %2179 = vst.msk [vmem:[#allocation3 + $0x128] sm:$0xff] %vm1524, %v2096
        %2180 = vst.msk [vmem:[#allocation3 + $0x140] sm:$0xff] %vm1524, %v2098
        %2181 = vst.msk [vmem:[#allocation3 + $0x158] sm:$0xff] %vm1524, %v2100
        %2182 = vst.msk [vmem:[#allocation3 + $0x170] sm:$0xff] %vm1524, %v2102
        %2183 = vst.msk [vmem:[#allocation3 + $0x188] sm:$0xff] %vm1524, %v2104
        %2184 = vst.msk [vmem:[#allocation3 + $0x1a0] sm:$0xff] %vm1524, %v2106
        %2185 = vst.msk [vmem:[#allocation3 + $0x1b8] sm:$0xff] %vm1524, %v2108
        %2186 = vst.msk [vmem:[#allocation3 + $0x1d0] sm:$0xff] %vm1524, %v2110
        %2187 = vst.msk [vmem:[#allocation3 + $0x1e8] sm:$0xff] %vm1524, %v2112
        %2188 = vst.msk [vmem:[#allocation3 + $0x200] sm:$0xff] %vm1524, %v2114
        %2189 = vst.msk [vmem:[#allocation3 + $0x218] sm:$0xff] %vm1524, %v2116
        %2190 = vst.msk [vmem:[#allocation3 + $0x230] sm:$0xff] %vm1524, %v2118
        %2191 = vst.msk [vmem:[#allocation3 + $0x248] sm:$0xff] %vm1524, %v2120
        %2192 = vst.msk [vmem:[#allocation3 + $0x260] sm:$0xff] %vm1524, %v2122
        %2193 = vst.msk [vmem:[#allocation3 + $0x278] sm:$0xff] %vm1524, %v2124
        %2194 = vst.msk [vmem:[#allocation3 + $0x290] sm:$0xff] %vm1524, %v2126
        %2195 = vst.msk [vmem:[#allocation3 + $0x2a8] sm:$0xff] %vm1524, %v2128
        %2196 = vst.msk [vmem:[#allocation3 + $0x2c0] sm:$0xff] %vm1524, %v2130
        %2197 = vst.msk [vmem:[#allocation3 + $0x2d8] sm:$0xff] %vm1524, %v2132
        %2198 = vst.msk [vmem:[#allocation3 + $0x2f0] sm:$0xff] %vm1524, %v2134
        %s2199 = scalar_lea.vmem [#allocation2], 1344
        %v2200 = vld [vmem:[%s2199 + $0xc] sm:$0xff]
        %v2201 = vld [vmem:[%s2199 + $0x14] sm:$0xff]
        %v2202 = vld [vmem:[%s2199 + $0x44] sm:$0xff]
        %v2203 = vld [vmem:[%s2199 + $0x4c] sm:$0xff]
        %v2204 = vld [vmem:[%s2199 + $0x7c] sm:$0xff]
        %v2205 = vld [vmem:[%s2199 + $0x84] sm:$0xff]
        %v2206 = vld [vmem:[%s2199 + $0xb4] sm:$0xff]
        %v2207 = vld [vmem:[%s2199 + $0xbc] sm:$0xff]
        %v2208 = vld [vmem:[%s2199 + $0xec] sm:$0xff]
        %v2209 = vld [vmem:[%s2199 + $0xf4] sm:$0xff]
        %v2210 = vld [vmem:[%s2199 + $0x124] sm:$0xff]
        %v2211 = vld [vmem:[%s2199 + $0x12c] sm:$0xff]
        %v2212 = vld [vmem:[%s2199 + $0x15c] sm:$0xff]
        %v2213 = vld [vmem:[%s2199 + $0x164] sm:$0xff]
        %v2214 = vld [vmem:[%s2199 + $0x194] sm:$0xff]
        %v2215 = vld [vmem:[%s2199 + $0x19c] sm:$0xff]
        %v2216 = vld [vmem:[%s2199 + $0x1cc] sm:$0xff]
        %v2217 = vld [vmem:[%s2199 + $0x1d4] sm:$0xff]
        %v2218 = vld [vmem:[%s2199 + $0x204] sm:$0xff]
        %v2219 = vld [vmem:[%s2199 + $0x20c] sm:$0xff]
        %v2220 = vld [vmem:[%s2199 + $0x23c] sm:$0xff]
        %v2221 = vld [vmem:[%s2199 + $0x244] sm:$0xff]
        %v2222 = vld [vmem:[%s2199 + $0x274] sm:$0xff]
        %v2223 = vld [vmem:[%s2199 + $0x27c] sm:$0xff]
        %v2224 = vld [vmem:[%s2199 + $0x2ac] sm:$0xff]
        %v2225 = vld [vmem:[%s2199 + $0x2b4] sm:$0xff]
        %v2226 = vld [vmem:[%s2199 + $0x2e4] sm:$0xff]
        %v2227 = vld [vmem:[%s2199 + $0x2ec] sm:$0xff]
        %v2228 = vld [vmem:[%s2199 + $0x31c] sm:$0xff]
        %v2229 = vld [vmem:[%s2199 + $0x324] sm:$0xff]
        %v2230 = vld [vmem:[%s2199 + $0x354] sm:$0xff]
        %v2231 = vld [vmem:[%s2199 + $0x35c] sm:$0xff]
        %2264 = vrot.lane.b32.xlu0 %v2200, 64
        %v2265 = vpop.permute.xlu0 %2264
        %2266 = vrot.lane.b32.xlu0 %v2201, 64
        %v2267 = vpop.permute.xlu0 %2266
        %2268 = vrot.lane.b32.xlu0 %v2202, 64
        %v2269 = vpop.permute.xlu0 %2268
        %2270 = vrot.lane.b32.xlu0 %v2203, 64
        %v2271 = vpop.permute.xlu0 %2270
        %2272 = vrot.lane.b32.xlu0 %v2204, 64
        %v2273 = vpop.permute.xlu0 %2272
        %2274 = vrot.lane.b32.xlu0 %v2205, 64
        %v2275 = vpop.permute.xlu0 %2274
        %2276 = vrot.lane.b32.xlu0 %v2206, 64
        %v2277 = vpop.permute.xlu0 %2276
        %2278 = vrot.lane.b32.xlu0 %v2207, 64
        %v2279 = vpop.permute.xlu0 %2278
        %2280 = vrot.lane.b32.xlu0 %v2208, 64
        %v2281 = vpop.permute.xlu0 %2280
        %2282 = vrot.lane.b32.xlu0 %v2209, 64
        %v2283 = vpop.permute.xlu0 %2282
        %2284 = vrot.lane.b32.xlu0 %v2210, 64
        %v2285 = vpop.permute.xlu0 %2284
        %2286 = vrot.lane.b32.xlu0 %v2211, 64
        %v2287 = vpop.permute.xlu0 %2286
        %2288 = vrot.lane.b32.xlu0 %v2212, 64
        %v2289 = vpop.permute.xlu0 %2288
        %2290 = vrot.lane.b32.xlu0 %v2213, 64
        %v2291 = vpop.permute.xlu0 %2290
        %2292 = vrot.lane.b32.xlu0 %v2214, 64
        %v2293 = vpop.permute.xlu0 %2292
        %2294 = vrot.lane.b32.xlu0 %v2215, 64
        %v2295 = vpop.permute.xlu0 %2294
        %2296 = vrot.lane.b32.xlu0 %v2216, 64
        %v2297 = vpop.permute.xlu0 %2296
        %2298 = vrot.lane.b32.xlu0 %v2217, 64
        %v2299 = vpop.permute.xlu0 %2298
        %2300 = vrot.lane.b32.xlu0 %v2218, 64
        %v2301 = vpop.permute.xlu0 %2300
        %2302 = vrot.lane.b32.xlu0 %v2219, 64
        %v2303 = vpop.permute.xlu0 %2302
        %2304 = vrot.lane.b32.xlu0 %v2220, 64
        %v2305 = vpop.permute.xlu0 %2304
        %2306 = vrot.lane.b32.xlu0 %v2221, 64
        %v2307 = vpop.permute.xlu0 %2306
        %2308 = vrot.lane.b32.xlu0 %v2222, 64
        %v2309 = vpop.permute.xlu0 %2308
        %2310 = vrot.lane.b32.xlu0 %v2223, 64
        %v2311 = vpop.permute.xlu0 %2310
        %2312 = vrot.lane.b32.xlu0 %v2224, 64
        %v2313 = vpop.permute.xlu0 %2312
        %2314 = vrot.lane.b32.xlu0 %v2225, 64
        %v2315 = vpop.permute.xlu0 %2314
        %2316 = vrot.lane.b32.xlu0 %v2226, 64
        %v2317 = vpop.permute.xlu0 %2316
        %2318 = vrot.lane.b32.xlu0 %v2227, 64
        %v2319 = vpop.permute.xlu0 %2318
        %2320 = vrot.lane.b32.xlu0 %v2228, 64
        %v2321 = vpop.permute.xlu0 %2320
        %2322 = vrot.lane.b32.xlu0 %v2229, 64
        %v2323 = vpop.permute.xlu0 %2322
        %2324 = vrot.lane.b32.xlu0 %v2230, 64
        %v2325 = vpop.permute.xlu0 %2324
        %2326 = vrot.lane.b32.xlu0 %v2231, 64
        %v2327 = vpop.permute.xlu0 %2326
        %2360 = vst.msk [vmem:[#allocation3 + $0x8] sm:$0xff] %vm1717, %v2265
        %2361 = vst.msk [vmem:[#allocation3 + $0x20] sm:$0xff] %vm1717, %v2267
        %2362 = vst.msk [vmem:[#allocation3 + $0x38] sm:$0xff] %vm1717, %v2269
        %2363 = vst.msk [vmem:[#allocation3 + $0x50] sm:$0xff] %vm1717, %v2271
        %2364 = vst.msk [vmem:[#allocation3 + $0x68] sm:$0xff] %vm1717, %v2273
        %2365 = vst.msk [vmem:[#allocation3 + $0x80] sm:$0xff] %vm1717, %v2275
        %2366 = vst.msk [vmem:[#allocation3 + $0x98] sm:$0xff] %vm1717, %v2277
        %2367 = vst.msk [vmem:[#allocation3 + $0xb0] sm:$0xff] %vm1717, %v2279
        %2368 = vst.msk [vmem:[#allocation3 + $0xc8] sm:$0xff] %vm1717, %v2281
        %2369 = vst.msk [vmem:[#allocation3 + $0xe0] sm:$0xff] %vm1717, %v2283
        %2370 = vst.msk [vmem:[#allocation3 + $0xf8] sm:$0xff] %vm1717, %v2285
        %2371 = vst.msk [vmem:[#allocation3 + $0x110] sm:$0xff] %vm1717, %v2287
        %2372 = vst.msk [vmem:[#allocation3 + $0x128] sm:$0xff] %vm1717, %v2289
        %2373 = vst.msk [vmem:[#allocation3 + $0x140] sm:$0xff] %vm1717, %v2291
        %2374 = vst.msk [vmem:[#allocation3 + $0x158] sm:$0xff] %vm1717, %v2293
        %2375 = vst.msk [vmem:[#allocation3 + $0x170] sm:$0xff] %vm1717, %v2295
        %2376 = vst.msk [vmem:[#allocation3 + $0x188] sm:$0xff] %vm1717, %v2297
        %2377 = vst.msk [vmem:[#allocation3 + $0x1a0] sm:$0xff] %vm1717, %v2299
        %2378 = vst.msk [vmem:[#allocation3 + $0x1b8] sm:$0xff] %vm1717, %v2301
        %2379 = vst.msk [vmem:[#allocation3 + $0x1d0] sm:$0xff] %vm1717, %v2303
        %2380 = vst.msk [vmem:[#allocation3 + $0x1e8] sm:$0xff] %vm1717, %v2305
        %2381 = vst.msk [vmem:[#allocation3 + $0x200] sm:$0xff] %vm1717, %v2307
        %2382 = vst.msk [vmem:[#allocation3 + $0x218] sm:$0xff] %vm1717, %v2309
        %2383 = vst.msk [vmem:[#allocation3 + $0x230] sm:$0xff] %vm1717, %v2311
        %2384 = vst.msk [vmem:[#allocation3 + $0x248] sm:$0xff] %vm1717, %v2313
        %2385 = vst.msk [vmem:[#allocation3 + $0x260] sm:$0xff] %vm1717, %v2315
        %2386 = vst.msk [vmem:[#allocation3 + $0x278] sm:$0xff] %vm1717, %v2317
        %2387 = vst.msk [vmem:[#allocation3 + $0x290] sm:$0xff] %vm1717, %v2319
        %2388 = vst.msk [vmem:[#allocation3 + $0x2a8] sm:$0xff] %vm1717, %v2321
        %2389 = vst.msk [vmem:[#allocation3 + $0x2c0] sm:$0xff] %vm1717, %v2323
        %2390 = vst.msk [vmem:[#allocation3 + $0x2d8] sm:$0xff] %vm1717, %v2325
        %2391 = vst.msk [vmem:[#allocation3 + $0x2f0] sm:$0xff] %vm1717, %v2327
        %v2392 = vld [vmem:[%s2199 + $0x12] sm:$0xff]
        %v2393 = vld [vmem:[%s2199 + $0x1a] sm:$0xff]
        %v2394 = vld [vmem:[%s2199 + $0x4a] sm:$0xff]
        %v2395 = vld [vmem:[%s2199 + $0x52] sm:$0xff]
        %v2396 = vld [vmem:[%s2199 + $0x82] sm:$0xff]
        %v2397 = vld [vmem:[%s2199 + $0x8a] sm:$0xff]
        %v2398 = vld [vmem:[%s2199 + $0xba] sm:$0xff]
        %v2399 = vld [vmem:[%s2199 + $0xc2] sm:$0xff]
        %v2400 = vld [vmem:[%s2199 + $0xf2] sm:$0xff]
        %v2401 = vld [vmem:[%s2199 + $0xfa] sm:$0xff]
        %v2402 = vld [vmem:[%s2199 + $0x12a] sm:$0xff]
        %v2403 = vld [vmem:[%s2199 + $0x132] sm:$0xff]
        %v2404 = vld [vmem:[%s2199 + $0x162] sm:$0xff]
        %v2405 = vld [vmem:[%s2199 + $0x16a] sm:$0xff]
        %v2406 = vld [vmem:[%s2199 + $0x19a] sm:$0xff]
        %v2407 = vld [vmem:[%s2199 + $0x1a2] sm:$0xff]
        %v2408 = vld [vmem:[%s2199 + $0x1d2] sm:$0xff]
        %v2409 = vld [vmem:[%s2199 + $0x1da] sm:$0xff]
        %v2410 = vld [vmem:[%s2199 + $0x20a] sm:$0xff]
        %v2411 = vld [vmem:[%s2199 + $0x212] sm:$0xff]
        %v2412 = vld [vmem:[%s2199 + $0x242] sm:$0xff]
        %v2413 = vld [vmem:[%s2199 + $0x24a] sm:$0xff]
        %v2414 = vld [vmem:[%s2199 + $0x27a] sm:$0xff]
        %v2415 = vld [vmem:[%s2199 + $0x282] sm:$0xff]
        %v2416 = vld [vmem:[%s2199 + $0x2b2] sm:$0xff]
        %v2417 = vld [vmem:[%s2199 + $0x2ba] sm:$0xff]
        %v2418 = vld [vmem:[%s2199 + $0x2ea] sm:$0xff]
        %v2419 = vld [vmem:[%s2199 + $0x2f2] sm:$0xff]
        %v2420 = vld [vmem:[%s2199 + $0x322] sm:$0xff]
        %v2421 = vld [vmem:[%s2199 + $0x32a] sm:$0xff]
        %v2422 = vld [vmem:[%s2199 + $0x35a] sm:$0xff]
        %v2423 = vld [vmem:[%s2199 + $0x362] sm:$0xff]
        %2456 = vrot.lane.b32.xlu0 %v2392, 96
        %v2457 = vpop.permute.xlu0 %2456
        %2458 = vrot.lane.b32.xlu0 %v2393, 96
        %v2459 = vpop.permute.xlu0 %2458
        %2460 = vrot.lane.b32.xlu0 %v2394, 96
        %v2461 = vpop.permute.xlu0 %2460
        %2462 = vrot.lane.b32.xlu0 %v2395, 96
        %v2463 = vpop.permute.xlu0 %2462
        %2464 = vrot.lane.b32.xlu0 %v2396, 96
        %v2465 = vpop.permute.xlu0 %2464
        %2466 = vrot.lane.b32.xlu0 %v2397, 96
        %v2467 = vpop.permute.xlu0 %2466
        %2468 = vrot.lane.b32.xlu0 %v2398, 96
        %v2469 = vpop.permute.xlu0 %2468
        %2470 = vrot.lane.b32.xlu0 %v2399, 96
        %v2471 = vpop.permute.xlu0 %2470
        %2472 = vrot.lane.b32.xlu0 %v2400, 96
        %v2473 = vpop.permute.xlu0 %2472
        %2474 = vrot.lane.b32.xlu0 %v2401, 96
        %v2475 = vpop.permute.xlu0 %2474
        %2476 = vrot.lane.b32.xlu0 %v2402, 96
        %v2477 = vpop.permute.xlu0 %2476
        %2478 = vrot.lane.b32.xlu0 %v2403, 96
        %v2479 = vpop.permute.xlu0 %2478
        %2480 = vrot.lane.b32.xlu0 %v2404, 96
        %v2481 = vpop.permute.xlu0 %2480
        %2482 = vrot.lane.b32.xlu0 %v2405, 96
        %v2483 = vpop.permute.xlu0 %2482
        %2484 = vrot.lane.b32.xlu0 %v2406, 96
        %v2485 = vpop.permute.xlu0 %2484
        %2486 = vrot.lane.b32.xlu0 %v2407, 96
        %v2487 = vpop.permute.xlu0 %2486
        %2488 = vrot.lane.b32.xlu0 %v2408, 96
        %v2489 = vpop.permute.xlu0 %2488
        %2490 = vrot.lane.b32.xlu0 %v2409, 96
        %v2491 = vpop.permute.xlu0 %2490
        %2492 = vrot.lane.b32.xlu0 %v2410, 96
        %v2493 = vpop.permute.xlu0 %2492
        %2494 = vrot.lane.b32.xlu0 %v2411, 96
        %v2495 = vpop.permute.xlu0 %2494
        %2496 = vrot.lane.b32.xlu0 %v2412, 96
        %v2497 = vpop.permute.xlu0 %2496
        %2498 = vrot.lane.b32.xlu0 %v2413, 96
        %v2499 = vpop.permute.xlu0 %2498
        %2500 = vrot.lane.b32.xlu0 %v2414, 96
        %v2501 = vpop.permute.xlu0 %2500
        %2502 = vrot.lane.b32.xlu0 %v2415, 96
        %v2503 = vpop.permute.xlu0 %2502
        %2504 = vrot.lane.b32.xlu0 %v2416, 96
        %v2505 = vpop.permute.xlu0 %2504
        %2506 = vrot.lane.b32.xlu0 %v2417, 96
        %v2507 = vpop.permute.xlu0 %2506
        %2508 = vrot.lane.b32.xlu0 %v2418, 96
        %v2509 = vpop.permute.xlu0 %2508
        %2510 = vrot.lane.b32.xlu0 %v2419, 96
        %v2511 = vpop.permute.xlu0 %2510
        %2512 = vrot.lane.b32.xlu0 %v2420, 96
        %v2513 = vpop.permute.xlu0 %2512
        %2514 = vrot.lane.b32.xlu0 %v2421, 96
        %v2515 = vpop.permute.xlu0 %2514
        %2516 = vrot.lane.b32.xlu0 %v2422, 96
        %v2517 = vpop.permute.xlu0 %2516
        %2518 = vrot.lane.b32.xlu0 %v2423, 96
        %v2519 = vpop.permute.xlu0 %2518
        %2552 = vst.msk [vmem:[#allocation3 + $0x8] sm:$0xff] %vm1910, %v2457
        %2553 = vst.msk [vmem:[#allocation3 + $0x20] sm:$0xff] %vm1910, %v2459
        %2554 = vst.msk [vmem:[#allocation3 + $0x38] sm:$0xff] %vm1910, %v2461
        %2555 = vst.msk [vmem:[#allocation3 + $0x50] sm:$0xff] %vm1910, %v2463
        %2556 = vst.msk [vmem:[#allocation3 + $0x68] sm:$0xff] %vm1910, %v2465
        %2557 = vst.msk [vmem:[#allocation3 + $0x80] sm:$0xff] %vm1910, %v2467
        %2558 = vst.msk [vmem:[#allocation3 + $0x98] sm:$0xff] %vm1910, %v2469
        %2559 = vst.msk [vmem:[#allocation3 + $0xb0] sm:$0xff] %vm1910, %v2471
        %2560 = vst.msk [vmem:[#allocation3 + $0xc8] sm:$0xff] %vm1910, %v2473
        %2561 = vst.msk [vmem:[#allocation3 + $0xe0] sm:$0xff] %vm1910, %v2475
        %2562 = vst.msk [vmem:[#allocation3 + $0xf8] sm:$0xff] %vm1910, %v2477
        %2563 = vst.msk [vmem:[#allocation3 + $0x110] sm:$0xff] %vm1910, %v2479
        %2564 = vst.msk [vmem:[#allocation3 + $0x128] sm:$0xff] %vm1910, %v2481
        %2565 = vst.msk [vmem:[#allocation3 + $0x140] sm:$0xff] %vm1910, %v2483
        %2566 = vst.msk [vmem:[#allocation3 + $0x158] sm:$0xff] %vm1910, %v2485
        %2567 = vst.msk [vmem:[#allocation3 + $0x170] sm:$0xff] %vm1910, %v2487
        %2568 = vst.msk [vmem:[#allocation3 + $0x188] sm:$0xff] %vm1910, %v2489
        %2569 = vst.msk [vmem:[#allocation3 + $0x1a0] sm:$0xff] %vm1910, %v2491
        %2570 = vst.msk [vmem:[#allocation3 + $0x1b8] sm:$0xff] %vm1910, %v2493
        %2571 = vst.msk [vmem:[#allocation3 + $0x1d0] sm:$0xff] %vm1910, %v2495
        %2572 = vst.msk [vmem:[#allocation3 + $0x1e8] sm:$0xff] %vm1910, %v2497
        %2573 = vst.msk [vmem:[#allocation3 + $0x200] sm:$0xff] %vm1910, %v2499
        %2574 = vst.msk [vmem:[#allocation3 + $0x218] sm:$0xff] %vm1910, %v2501
        %2575 = vst.msk [vmem:[#allocation3 + $0x230] sm:$0xff] %vm1910, %v2503
        %2576 = vst.msk [vmem:[#allocation3 + $0x248] sm:$0xff] %vm1910, %v2505
        %2577 = vst.msk [vmem:[#allocation3 + $0x260] sm:$0xff] %vm1910, %v2507
        %2578 = vst.msk [vmem:[#allocation3 + $0x278] sm:$0xff] %vm1910, %v2509
        %2579 = vst.msk [vmem:[#allocation3 + $0x290] sm:$0xff] %vm1910, %v2511
        %2580 = vst.msk [vmem:[#allocation3 + $0x2a8] sm:$0xff] %vm1910, %v2513
        %2581 = vst.msk [vmem:[#allocation3 + $0x2c0] sm:$0xff] %vm1910, %v2515
        %2582 = vst.msk [vmem:[#allocation3 + $0x2d8] sm:$0xff] %vm1910, %v2517
        %2583 = vst.msk [vmem:[#allocation3 + $0x2f0] sm:$0xff] %vm1910, %v2519
        %v2584 = vld [vmem:[%s2199 + $0x18] sm:$0xff]
        %v2585 = vld [vmem:[%s2199 + $0x20] sm:$0xff]
        %v2586 = vld [vmem:[%s2199 + $0x50] sm:$0xff]
        %v2587 = vld [vmem:[%s2199 + $0x58] sm:$0xff]
        %v2588 = vld [vmem:[%s2199 + $0x88] sm:$0xff]
        %v2589 = vld [vmem:[%s2199 + $0x90] sm:$0xff]
        %v2590 = vld [vmem:[%s2199 + $0xc0] sm:$0xff]
        %v2591 = vld [vmem:[%s2199 + $0xc8] sm:$0xff]
        %v2592 = vld [vmem:[%s2199 + $0xf8] sm:$0xff]
        %v2593 = vld [vmem:[%s2199 + $0x100] sm:$0xff]
        %v2594 = vld [vmem:[%s2199 + $0x130] sm:$0xff]
        %v2595 = vld [vmem:[%s2199 + $0x138] sm:$0xff]
        %v2596 = vld [vmem:[%s2199 + $0x168] sm:$0xff]
        %v2597 = vld [vmem:[%s2199 + $0x170] sm:$0xff]
        %v2598 = vld [vmem:[%s2199 + $0x1a0] sm:$0xff]
        %v2599 = vld [vmem:[%s2199 + $0x1a8] sm:$0xff]
        %v2600 = vld [vmem:[%s2199 + $0x1d8] sm:$0xff]
        %v2601 = vld [vmem:[%s2199 + $0x1e0] sm:$0xff]
        %v2602 = vld [vmem:[%s2199 + $0x210] sm:$0xff]
        %v2603 = vld [vmem:[%s2199 + $0x218] sm:$0xff]
        %v2604 = vld [vmem:[%s2199 + $0x248] sm:$0xff]
        %v2605 = vld [vmem:[%s2199 + $0x250] sm:$0xff]
        %v2606 = vld [vmem:[%s2199 + $0x280] sm:$0xff]
        %v2607 = vld [vmem:[%s2199 + $0x288] sm:$0xff]
        %v2608 = vld [vmem:[%s2199 + $0x2b8] sm:$0xff]
        %v2609 = vld [vmem:[%s2199 + $0x2c0] sm:$0xff]
        %v2610 = vld [vmem:[%s2199 + $0x2f0] sm:$0xff]
        %v2611 = vld [vmem:[%s2199 + $0x2f8] sm:$0xff]
        %v2612 = vld [vmem:[%s2199 + $0x328] sm:$0xff]
        %v2613 = vld [vmem:[%s2199 + $0x330] sm:$0xff]
        %v2614 = vld [vmem:[%s2199 + $0x360] sm:$0xff]
        %v2615 = vld [vmem:[%s2199 + $0x368] sm:$0xff]
        %2616 = vst.msk [vmem:[#allocation3 + $0x10] sm:$0xff] %vm555, %v2584
        %2617 = vst.msk [vmem:[#allocation3 + $0x28] sm:$0xff] %vm555, %v2585
        %2618 = vst.msk [vmem:[#allocation3 + $0x40] sm:$0xff] %vm555, %v2586
        %2619 = vst.msk [vmem:[#allocation3 + $0x58] sm:$0xff] %vm555, %v2587
        %2620 = vst.msk [vmem:[#allocation3 + $0x70] sm:$0xff] %vm555, %v2588
        %2621 = vst.msk [vmem:[#allocation3 + $0x88] sm:$0xff] %vm555, %v2589
        %2622 = vst.msk [vmem:[#allocation3 + $0xa0] sm:$0xff] %vm555, %v2590
        %2623 = vst.msk [vmem:[#allocation3 + $0xb8] sm:$0xff] %vm555, %v2591
        %2624 = vst.msk [vmem:[#allocation3 + $0xd0] sm:$0xff] %vm555, %v2592
        %2625 = vst.msk [vmem:[#allocation3 + $0xe8] sm:$0xff] %vm555, %v2593
        %2626 = vst.msk [vmem:[#allocation3 + $0x100] sm:$0xff] %vm555, %v2594
        %2627 = vst.msk [vmem:[#allocation3 + $0x118] sm:$0xff] %vm555, %v2595
        %2628 = vst.msk [vmem:[#allocation3 + $0x130] sm:$0xff] %vm555, %v2596
        %2629 = vst.msk [vmem:[#allocation3 + $0x148] sm:$0xff] %vm555, %v2597
        %2630 = vst.msk [vmem:[#allocation3 + $0x160] sm:$0xff] %vm555, %v2598
        %2631 = vst.msk [vmem:[#allocation3 + $0x178] sm:$0xff] %vm555, %v2599
        %2632 = vst.msk [vmem:[#allocation3 + $0x190] sm:$0xff] %vm555, %v2600
        %2633 = vst.msk [vmem:[#allocation3 + $0x1a8] sm:$0xff] %vm555, %v2601
        %2634 = vst.msk [vmem:[#allocation3 + $0x1c0] sm:$0xff] %vm555, %v2602
        %2635 = vst.msk [vmem:[#allocation3 + $0x1d8] sm:$0xff] %vm555, %v2603
        %2636 = vst.msk [vmem:[#allocation3 + $0x1f0] sm:$0xff] %vm555, %v2604
        %2637 = vst.msk [vmem:[#allocation3 + $0x208] sm:$0xff] %vm555, %v2605
        %2638 = vst.msk [vmem:[#allocation3 + $0x220] sm:$0xff] %vm555, %v2606
        %2639 = vst.msk [vmem:[#allocation3 + $0x238] sm:$0xff] %vm555, %v2607
        %2640 = vst.msk [vmem:[#allocation3 + $0x250] sm:$0xff] %vm555, %v2608
        %2641 = vst.msk [vmem:[#allocation3 + $0x268] sm:$0xff] %vm555, %v2609
        %2642 = vst.msk [vmem:[#allocation3 + $0x280] sm:$0xff] %vm555, %v2610
        %2643 = vst.msk [vmem:[#allocation3 + $0x298] sm:$0xff] %vm555, %v2611
        %2644 = vst.msk [vmem:[#allocation3 + $0x2b0] sm:$0xff] %vm555, %v2612
        %2645 = vst.msk [vmem:[#allocation3 + $0x2c8] sm:$0xff] %vm555, %v2613
        %2646 = vst.msk [vmem:[#allocation3 + $0x2e0] sm:$0xff] %vm555, %v2614
        %2647 = vst.msk [vmem:[#allocation3 + $0x2f8] sm:$0xff] %vm555, %v2615
        %v2648 = vld [vmem:[#allocation3] sm:$0xff]
        %v2649 = vld [vmem:[#allocation3 + $0x8] sm:$0xff]
        %v2650 = vld [vmem:[#allocation3 + $0x10] sm:$0xff]
        %v2651 = vld [vmem:[#allocation3 + $0x18] sm:$0xff]
        %v2652 = vld [vmem:[#allocation3 + $0x20] sm:$0xff]
        %v2653 = vld [vmem:[#allocation3 + $0x28] sm:$0xff]
        %v2654 = vld [vmem:[#allocation3 + $0x30] sm:$0xff]
        %v2655 = vld [vmem:[#allocation3 + $0x38] sm:$0xff]
        %v2656 = vld [vmem:[#allocation3 + $0x40] sm:$0xff]
        %v2657 = vld [vmem:[#allocation3 + $0x48] sm:$0xff]
        %v2658 = vld [vmem:[#allocation3 + $0x50] sm:$0xff]
        %v2659 = vld [vmem:[#allocation3 + $0x58] sm:$0xff]
        %v2660 = vld [vmem:[#allocation3 + $0x60] sm:$0xff]
        %v2661 = vld [vmem:[#allocation3 + $0x68] sm:$0xff]
        %v2662 = vld [vmem:[#allocation3 + $0x70] sm:$0xff]
        %v2663 = vld [vmem:[#allocation3 + $0x78] sm:$0xff]
        %v2664 = vld [vmem:[#allocation3 + $0x80] sm:$0xff]
        %v2665 = vld [vmem:[#allocation3 + $0x88] sm:$0xff]
        %v2666 = vld [vmem:[#allocation3 + $0x90] sm:$0xff]
        %v2667 = vld [vmem:[#allocation3 + $0x98] sm:$0xff]
        %v2668 = vld [vmem:[#allocation3 + $0xa0] sm:$0xff]
        %v2669 = vld [vmem:[#allocation3 + $0xa8] sm:$0xff]
        %v2670 = vld [vmem:[#allocation3 + $0xb0] sm:$0xff]
        %v2671 = vld [vmem:[#allocation3 + $0xb8] sm:$0xff]
        %v2672 = vld [vmem:[#allocation3 + $0xc0] sm:$0xff]
        %v2673 = vld [vmem:[#allocation3 + $0xc8] sm:$0xff]
        %v2674 = vld [vmem:[#allocation3 + $0xd0] sm:$0xff]
        %v2675 = vld [vmem:[#allocation3 + $0xd8] sm:$0xff]
        %v2676 = vld [vmem:[#allocation3 + $0xe0] sm:$0xff]
        %v2677 = vld [vmem:[#allocation3 + $0xe8] sm:$0xff]
        %v2678 = vld [vmem:[#allocation3 + $0xf0] sm:$0xff]
        %v2679 = vld [vmem:[#allocation3 + $0xf8] sm:$0xff]
        %v2680 = vld [vmem:[#allocation3 + $0x100] sm:$0xff]
        %v2681 = vld [vmem:[#allocation3 + $0x108] sm:$0xff]
        %v2682 = vld [vmem:[#allocation3 + $0x110] sm:$0xff]
        %v2683 = vld [vmem:[#allocation3 + $0x118] sm:$0xff]
        %v2684 = vld [vmem:[#allocation3 + $0x120] sm:$0xff]
        %v2685 = vld [vmem:[#allocation3 + $0x128] sm:$0xff]
        %v2686 = vld [vmem:[#allocation3 + $0x130] sm:$0xff]
        %v2687 = vld [vmem:[#allocation3 + $0x138] sm:$0xff]
        %v2688 = vld [vmem:[#allocation3 + $0x140] sm:$0xff]
        %v2689 = vld [vmem:[#allocation3 + $0x148] sm:$0xff]
        %v2690 = vld [vmem:[#allocation3 + $0x150] sm:$0xff]
        %v2691 = vld [vmem:[#allocation3 + $0x158] sm:$0xff]
        %v2692 = vld [vmem:[#allocation3 + $0x160] sm:$0xff]
        %v2693 = vld [vmem:[#allocation3 + $0x168] sm:$0xff]
        %v2694 = vld [vmem:[#allocation3 + $0x170] sm:$0xff]
        %v2695 = vld [vmem:[#allocation3 + $0x178] sm:$0xff]
        %v2696 = vld [vmem:[#allocation3 + $0x180] sm:$0xff]
        %v2697 = vld [vmem:[#allocation3 + $0x188] sm:$0xff]
        %v2698 = vld [vmem:[#allocation3 + $0x190] sm:$0xff]
        %v2699 = vld [vmem:[#allocation3 + $0x198] sm:$0xff]
        %v2700 = vld [vmem:[#allocation3 + $0x1a0] sm:$0xff]
        %v2701 = vld [vmem:[#allocation3 + $0x1a8] sm:$0xff]
        %v2702 = vld [vmem:[#allocation3 + $0x1b0] sm:$0xff]
        %v2703 = vld [vmem:[#allocation3 + $0x1b8] sm:$0xff]
        %v2704 = vld [vmem:[#allocation3 + $0x1c0] sm:$0xff]
        %v2705 = vld [vmem:[#allocation3 + $0x1c8] sm:$0xff]
        %v2706 = vld [vmem:[#allocation3 + $0x1d0] sm:$0xff]
        %v2707 = vld [vmem:[#allocation3 + $0x1d8] sm:$0xff]
        %v2708 = vld [vmem:[#allocation3 + $0x1e0] sm:$0xff]
        %v2709 = vld [vmem:[#allocation3 + $0x1e8] sm:$0xff]
        %v2710 = vld [vmem:[#allocation3 + $0x1f0] sm:$0xff]
        %v2711 = vld [vmem:[#allocation3 + $0x1f8] sm:$0xff]
        %v2712 = vld [vmem:[#allocation3 + $0x200] sm:$0xff]
        %v2713 = vld [vmem:[#allocation3 + $0x208] sm:$0xff]
        %v2714 = vld [vmem:[#allocation3 + $0x210] sm:$0xff]
        %v2715 = vld [vmem:[#allocation3 + $0x218] sm:$0xff]
        %v2716 = vld [vmem:[#allocation3 + $0x220] sm:$0xff]
        %v2717 = vld [vmem:[#allocation3 + $0x228] sm:$0xff]
        %v2718 = vld [vmem:[#allocation3 + $0x230] sm:$0xff]
        %v2719 = vld [vmem:[#allocation3 + $0x238] sm:$0xff]
        %v2720 = vld [vmem:[#allocation3 + $0x240] sm:$0xff]
        %v2721 = vld [vmem:[#allocation3 + $0x248] sm:$0xff]
        %v2722 = vld [vmem:[#allocation3 + $0x250] sm:$0xff]
        %v2723 = vld [vmem:[#allocation3 + $0x258] sm:$0xff]
        %v2724 = vld [vmem:[#allocation3 + $0x260] sm:$0xff]
        %v2725 = vld [vmem:[#allocation3 + $0x268] sm:$0xff]
        %v2726 = vld [vmem:[#allocation3 + $0x270] sm:$0xff]
        %v2727 = vld [vmem:[#allocation3 + $0x278] sm:$0xff]
        %v2728 = vld [vmem:[#allocation3 + $0x280] sm:$0xff]
        %v2729 = vld [vmem:[#allocation3 + $0x288] sm:$0xff]
        %v2730 = vld [vmem:[#allocation3 + $0x290] sm:$0xff]
        %v2731 = vld [vmem:[#allocation3 + $0x298] sm:$0xff]
        %v2732 = vld [vmem:[#allocation3 + $0x2a0] sm:$0xff]
        %v2733 = vld [vmem:[#allocation3 + $0x2a8] sm:$0xff]
        %v2734 = vld [vmem:[#allocation3 + $0x2b0] sm:$0xff]
        %v2735 = vld [vmem:[#allocation3 + $0x2b8] sm:$0xff]
        %v2736 = vld [vmem:[#allocation3 + $0x2c0] sm:$0xff]
        %v2737 = vld [vmem:[#allocation3 + $0x2c8] sm:$0xff]
        %v2738 = vld [vmem:[#allocation3 + $0x2d0] sm:$0xff]
        %v2739 = vld [vmem:[#allocation3 + $0x2d8] sm:$0xff]
        %v2740 = vld [vmem:[#allocation3 + $0x2e0] sm:$0xff]
        %v2741 = vld [vmem:[#allocation3 + $0x2e8] sm:$0xff]
        %v2742 = vld [vmem:[#allocation3 + $0x2f0] sm:$0xff]
        %v2743 = vld [vmem:[#allocation3 + $0x2f8] sm:$0xff]
        %v2744 = vld [vmem:[#allocation11] sm:$0xff]
        %v2745 = vld [vmem:[#allocation11 + $0x8] sm:$0xff]
        %v2746 = vld [vmem:[#allocation11 + $0x10] sm:$0xff]
        %v2747 = vld [vmem:[#allocation11 + $0x18] sm:$0xff]
        %v2748 = vld [vmem:[#allocation11 + $0x20] sm:$0xff]
        %v2749 = vld [vmem:[#allocation11 + $0x28] sm:$0xff]
        %v2750 = vld [vmem:[#allocation11 + $0x30] sm:$0xff]
        %v2751 = vld [vmem:[#allocation11 + $0x38] sm:$0xff]
        %v2752 = vld [vmem:[#allocation11 + $0x40] sm:$0xff]
        %v2753 = vld [vmem:[#allocation11 + $0x48] sm:$0xff]
        %v2754 = vld [vmem:[#allocation11 + $0x50] sm:$0xff]
        %v2755 = vld [vmem:[#allocation11 + $0x58] sm:$0xff]
        %v2756 = vld [vmem:[#allocation11 + $0x60] sm:$0xff]
        %v2757 = vld [vmem:[#allocation11 + $0x68] sm:$0xff]
        %v2758 = vld [vmem:[#allocation11 + $0x70] sm:$0xff]
        %v2759 = vld [vmem:[#allocation11 + $0x78] sm:$0xff]
        %v2760 = vld [vmem:[#allocation11 + $0x80] sm:$0xff]
        %v2761 = vld [vmem:[#allocation11 + $0x88] sm:$0xff]
        %v2762 = vld [vmem:[#allocation11 + $0x90] sm:$0xff]
        %v2763 = vld [vmem:[#allocation11 + $0x98] sm:$0xff]
        %v2764 = vld [vmem:[#allocation11 + $0xa0] sm:$0xff]
        %v2765 = vld [vmem:[#allocation11 + $0xa8] sm:$0xff]
        %v2766 = vld [vmem:[#allocation11 + $0xb0] sm:$0xff]
        %v2767 = vld [vmem:[#allocation11 + $0xb8] sm:$0xff]
        %v2768 = vld [vmem:[#allocation11 + $0xc0] sm:$0xff]
        %v2769 = vld [vmem:[#allocation11 + $0xc8] sm:$0xff]
        %v2770 = vld [vmem:[#allocation11 + $0xd0] sm:$0xff]
        %v2771 = vld [vmem:[#allocation11 + $0xd8] sm:$0xff]
        %v2772 = vld [vmem:[#allocation11 + $0xe0] sm:$0xff]
        %v2773 = vld [vmem:[#allocation11 + $0xe8] sm:$0xff]
        %v2774 = vld [vmem:[#allocation11 + $0xf0] sm:$0xff]
        %v2775 = vld [vmem:[#allocation11 + $0xf8] sm:$0xff]
        %v2776 = vld [vmem:[#allocation11 + $0x100] sm:$0xff]
        %v2777 = vld [vmem:[#allocation11 + $0x108] sm:$0xff]
        %v2778 = vld [vmem:[#allocation11 + $0x110] sm:$0xff]
        %v2779 = vld [vmem:[#allocation11 + $0x118] sm:$0xff]
        %s2780 = scalar_lea.vmem [#allocation14], 1
        %v2781 = vld [vmem:[%s2780] sm:$0x1]
        %v2783 = vperm.slane %v2781, 0
        %v2786 = vsel %vm555, %v2650, 0
        %v2789 = vsel %vm555, %v2653, 0
        %v2792 = vsel %vm555, %v2656, 0
        %v2795 = vsel %vm555, %v2659, 0
        %v2798 = vsel %vm555, %v2662, 0
        %v2801 = vsel %vm555, %v2665, 0
        %v2804 = vsel %vm555, %v2668, 0
        %v2807 = vsel %vm555, %v2671, 0
        %v2810 = vsel %vm555, %v2674, 0
        %v2813 = vsel %vm555, %v2677, 0
        %v2816 = vsel %vm555, %v2680, 0
        %v2819 = vsel %vm555, %v2683, 0
        %v2822 = vsel %vm555, %v2686, 0
        %v2825 = vsel %vm555, %v2689, 0
        %v2828 = vsel %vm555, %v2692, 0
        %v2831 = vsel %vm555, %v2695, 0
        %v2834 = vsel %vm555, %v2698, 0
        %v2837 = vsel %vm555, %v2701, 0
        %v2840 = vsel %vm555, %v2704, 0
        %v2843 = vsel %vm555, %v2707, 0
        %v2846 = vsel %vm555, %v2710, 0
        %v2849 = vsel %vm555, %v2713, 0
        %v2852 = vsel %vm555, %v2716, 0
        %v2855 = vsel %vm555, %v2719, 0
        %v2858 = vsel %vm555, %v2722, 0
        %v2861 = vsel %vm555, %v2725, 0
        %v2864 = vsel %vm555, %v2728, 0
        %v2867 = vsel %vm555, %v2731, 0
        %v2870 = vsel %vm555, %v2734, 0
        %v2873 = vsel %vm555, %v2737, 0
        %v2876 = vsel %vm555, %v2740, 0
        %v2879 = vsel %vm555, %v2743, 0
        %2881 = vmatpush.msra.mxu0 %v2759
        %2882 = vmatpush.msra.mxu0 %v2758
        %2883 = vmatpush.msra.mxu0 %v2757
        %2884 = vmatpush.msra.mxu0 %v2756
        %2885 = vmatpush.msra.mxu0 %v2755
        %2886 = vmatpush.msra.mxu0 %v2754
        %2887 = vmatpush.msra.mxu0 %v2753
        %2888 = vmatpush.msra.mxu0 %v2752
        %2889 = vmatpush.msra.mxu0 %v2751
        %2890 = vmatpush.msra.mxu0 %v2750
        %2891 = vmatpush.msra.mxu0 %v2749
        %2892 = vmatpush.msra.mxu0 %v2748
        %2893 = vmatpush.msra.mxu0 %v2747
        %2894 = vmatpush.msra.mxu0 %v2746
        %2895 = vmatpush.msra.mxu0 %v2745
        %2896 = vmatpush.msra.mxu0 %v2744
        %2897 = vmatmul.f32.gmra.mxu0 %v2648
        %v2898 = vpop.f32.mrf.mxu0
        %v2899 = vadd.f32 %v2783, %v2898
        %2900 = vmatmul.f32.gmra.mxu0 %v2651
        %v2901 = vpop.f32.mrf.mxu0
        %v2902 = vadd.f32 %v2783, %v2901
        %2903 = vmatmul.f32.gmra.mxu0 %v2654
        %v2904 = vpop.f32.mrf.mxu0
        %v2905 = vadd.f32 %v2783, %v2904
        %2906 = vmatmul.f32.gmra.mxu0 %v2657
        %v2907 = vpop.f32.mrf.mxu0
        %v2908 = vadd.f32 %v2783, %v2907
        %2909 = vmatmul.f32.gmra.mxu0 %v2660
        %v2910 = vpop.f32.mrf.mxu0
        %v2911 = vadd.f32 %v2783, %v2910
        %2912 = vmatmul.f32.gmra.mxu0 %v2663
        %v2913 = vpop.f32.mrf.mxu0
        %v2914 = vadd.f32 %v2783, %v2913
        %2915 = vmatmul.f32.gmra.mxu0 %v2666
        %v2916 = vpop.f32.mrf.mxu0
        %v2917 = vadd.f32 %v2783, %v2916
        %2918 = vmatmul.f32.gmra.mxu0 %v2669
        %v2919 = vpop.f32.mrf.mxu0
        %v2920 = vadd.f32 %v2783, %v2919
        %2921 = vmatmul.f32.gmra.mxu0 %v2672
        %v2922 = vpop.f32.mrf.mxu0
        %v2923 = vadd.f32 %v2783, %v2922
        %2924 = vmatmul.f32.gmra.mxu0 %v2675
        %v2925 = vpop.f32.mrf.mxu0
        %v2926 = vadd.f32 %v2783, %v2925
        %2927 = vmatmul.f32.gmra.mxu0 %v2678
        %v2928 = vpop.f32.mrf.mxu0
        %v2929 = vadd.f32 %v2783, %v2928
        %2930 = vmatmul.f32.gmra.mxu0 %v2681
        %v2931 = vpop.f32.mrf.mxu0
        %v2932 = vadd.f32 %v2783, %v2931
        %2933 = vmatmul.f32.gmra.mxu0 %v2684
        %v2934 = vpop.f32.mrf.mxu0
        %v2935 = vadd.f32 %v2783, %v2934
        %2936 = vmatmul.f32.gmra.mxu0 %v2687
        %v2937 = vpop.f32.mrf.mxu0
        %v2938 = vadd.f32 %v2783, %v2937
        %2939 = vmatmul.f32.gmra.mxu0 %v2690
        %v2940 = vpop.f32.mrf.mxu0
        %v2941 = vadd.f32 %v2783, %v2940
        %2942 = vmatmul.f32.gmra.mxu0 %v2693
        %v2943 = vpop.f32.mrf.mxu0
        %v2944 = vadd.f32 %v2783, %v2943
        %2945 = vmatmul.f32.gmra.mxu0 %v2696
        %v2946 = vpop.f32.mrf.mxu0
        %v2947 = vadd.f32 %v2783, %v2946
        %2948 = vmatmul.f32.gmra.mxu0 %v2699
        %v2949 = vpop.f32.mrf.mxu0
        %v2950 = vadd.f32 %v2783, %v2949
        %2951 = vmatmul.f32.gmra.mxu0 %v2702
        %v2952 = vpop.f32.mrf.mxu0
        %v2953 = vadd.f32 %v2783, %v2952
        %2954 = vmatmul.f32.gmra.mxu0 %v2705
        %v2955 = vpop.f32.mrf.mxu0
        %v2956 = vadd.f32 %v2783, %v2955
        %2957 = vmatmul.f32.gmra.mxu0 %v2708
        %v2958 = vpop.f32.mrf.mxu0
        %v2959 = vadd.f32 %v2783, %v2958
        %2960 = vmatmul.f32.gmra.mxu0 %v2711
        %v2961 = vpop.f32.mrf.mxu0
        %v2962 = vadd.f32 %v2783, %v2961
        %2963 = vmatmul.f32.gmra.mxu0 %v2714
        %v2964 = vpop.f32.mrf.mxu0
        %v2965 = vadd.f32 %v2783, %v2964
        %2966 = vmatmul.f32.gmra.mxu0 %v2717
        %v2967 = vpop.f32.mrf.mxu0
        %v2968 = vadd.f32 %v2783, %v2967
        %2969 = vmatmul.f32.gmra.mxu0 %v2720
        %v2970 = vpop.f32.mrf.mxu0
        %v2971 = vadd.f32 %v2783, %v2970
        %2972 = vmatmul.f32.gmra.mxu0 %v2723
        %v2973 = vpop.f32.mrf.mxu0
        %v2974 = vadd.f32 %v2783, %v2973
        %2975 = vmatmul.f32.gmra.mxu0 %v2726
        %v2976 = vpop.f32.mrf.mxu0
        %v2977 = vadd.f32 %v2783, %v2976
        %2978 = vmatmul.f32.gmra.mxu0 %v2729
        %v2979 = vpop.f32.mrf.mxu0
        %v2980 = vadd.f32 %v2783, %v2979
        %2981 = vmatmul.f32.gmra.mxu0 %v2732
        %v2982 = vpop.f32.mrf.mxu0
        %v2983 = vadd.f32 %v2783, %v2982
        %2984 = vmatmul.f32.gmra.mxu0 %v2735
        %v2985 = vpop.f32.mrf.mxu0
        %v2986 = vadd.f32 %v2783, %v2985
        %2987 = vmatmul.f32.gmra.mxu0 %v2738
        %v2988 = vpop.f32.mrf.mxu0
        %v2989 = vadd.f32 %v2783, %v2988
        %2990 = vmatmul.f32.gmra.mxu0 %v2741
        %v2991 = vpop.f32.mrf.mxu0
        %v2992 = vadd.f32 %v2783, %v2991
        %2993 = vdwg.mxu0
        %2994 = vmatpush.msra.mxu0 %v2775
        %2995 = vmatpush.msra.mxu0 %v2774
        %2996 = vmatpush.msra.mxu0 %v2773
        %2997 = vmatpush.msra.mxu0 %v2772
        %2998 = vmatpush.msra.mxu0 %v2771
        %2999 = vmatpush.msra.mxu0 %v2770
        %3000 = vmatpush.msra.mxu0 %v2769
        %3001 = vmatpush.msra.mxu0 %v2768
        %3002 = vmatpush.msra.mxu0 %v2767
        %3003 = vmatpush.msra.mxu0 %v2766
        %3004 = vmatpush.msra.mxu0 %v2765
        %3005 = vmatpush.msra.mxu0 %v2764
        %3006 = vmatpush.msra.mxu0 %v2763
        %3007 = vmatpush.msra.mxu0 %v2762
        %3008 = vmatpush.msra.mxu0 %v2761
        %3009 = vmatpush.msra.mxu0 %v2760
        %3010 = vmatmul.f32.gmra.mxu0 %v2649
        %v3011 = vpop.f32.mrf.mxu0
        %v3012 = vadd.f32 %v2899, %v3011
        %3013 = vmatmul.f32.gmra.mxu0 %v2652
        %v3014 = vpop.f32.mrf.mxu0
        %v3015 = vadd.f32 %v2902, %v3014
        %3016 = vmatmul.f32.gmra.mxu0 %v2655
        %v3017 = vpop.f32.mrf.mxu0
        %v3018 = vadd.f32 %v2905, %v3017
        %3019 = vmatmul.f32.gmra.mxu0 %v2658
        %v3020 = vpop.f32.mrf.mxu0
        %v3021 = vadd.f32 %v2908, %v3020
        %3022 = vmatmul.f32.gmra.mxu0 %v2661
        %v3023 = vpop.f32.mrf.mxu0
        %v3024 = vadd.f32 %v2911, %v3023
        %3025 = vmatmul.f32.gmra.mxu0 %v2664
        %v3026 = vpop.f32.mrf.mxu0
        %v3027 = vadd.f32 %v2914, %v3026
        %3028 = vmatmul.f32.gmra.mxu0 %v2667
        %v3029 = vpop.f32.mrf.mxu0
        %v3030 = vadd.f32 %v2917, %v3029
        %3031 = vmatmul.f32.gmra.mxu0 %v2670
        %v3032 = vpop.f32.mrf.mxu0
        %v3033 = vadd.f32 %v2920, %v3032
        %3034 = vmatmul.f32.gmra.mxu0 %v2673
        %v3035 = vpop.f32.mrf.mxu0
        %v3036 = vadd.f32 %v2923, %v3035
        %3037 = vmatmul.f32.gmra.mxu0 %v2676
        %v3038 = vpop.f32.mrf.mxu0
        %v3039 = vadd.f32 %v2926, %v3038
        %3040 = vmatmul.f32.gmra.mxu0 %v2679
        %v3041 = vpop.f32.mrf.mxu0
        %v3042 = vadd.f32 %v2929, %v3041
        %3043 = vmatmul.f32.gmra.mxu0 %v2682
        %v3044 = vpop.f32.mrf.mxu0
        %v3045 = vadd.f32 %v2932, %v3044
        %3046 = vmatmul.f32.gmra.mxu0 %v2685
        %v3047 = vpop.f32.mrf.mxu0
        %v3048 = vadd.f32 %v2935, %v3047
        %3049 = vmatmul.f32.gmra.mxu0 %v2688
        %v3050 = vpop.f32.mrf.mxu0
        %v3051 = vadd.f32 %v2938, %v3050
        %3052 = vmatmul.f32.gmra.mxu0 %v2691
        %v3053 = vpop.f32.mrf.mxu0
        %v3054 = vadd.f32 %v2941, %v3053
        %3055 = vmatmul.f32.gmra.mxu0 %v2694
        %v3056 = vpop.f32.mrf.mxu0
        %v3057 = vadd.f32 %v2944, %v3056
        %3058 = vmatmul.f32.gmra.mxu0 %v2697
        %v3059 = vpop.f32.mrf.mxu0
        %v3060 = vadd.f32 %v2947, %v3059
        %3061 = vmatmul.f32.gmra.mxu0 %v2700
        %v3062 = vpop.f32.mrf.mxu0
        %v3063 = vadd.f32 %v2950, %v3062
        %3064 = vmatmul.f32.gmra.mxu0 %v2703
        %v3065 = vpop.f32.mrf.mxu0
        %v3066 = vadd.f32 %v2953, %v3065
        %3067 = vmatmul.f32.gmra.mxu0 %v2706
        %v3068 = vpop.f32.mrf.mxu0
        %v3069 = vadd.f32 %v2956, %v3068
        %3070 = vmatmul.f32.gmra.mxu0 %v2709
        %v3071 = vpop.f32.mrf.mxu0
        %v3072 = vadd.f32 %v2959, %v3071
        %3073 = vmatmul.f32.gmra.mxu0 %v2712
        %v3074 = vpop.f32.mrf.mxu0
        %v3075 = vadd.f32 %v2962, %v3074
        %3076 = vmatmul.f32.gmra.mxu0 %v2715
        %v3077 = vpop.f32.mrf.mxu0
        %v3078 = vadd.f32 %v2965, %v3077
        %3079 = vmatmul.f32.gmra.mxu0 %v2718
        %v3080 = vpop.f32.mrf.mxu0
        %v3081 = vadd.f32 %v2968, %v3080
        %3082 = vmatmul.f32.gmra.mxu0 %v2721
        %v3083 = vpop.f32.mrf.mxu0
        %v3084 = vadd.f32 %v2971, %v3083
        %3085 = vmatmul.f32.gmra.mxu0 %v2724
        %v3086 = vpop.f32.mrf.mxu0
        %v3087 = vadd.f32 %v2974, %v3086
        %3088 = vmatmul.f32.gmra.mxu0 %v2727
        %v3089 = vpop.f32.mrf.mxu0
        %v3090 = vadd.f32 %v2977, %v3089
        %3091 = vmatmul.f32.gmra.mxu0 %v2730
        %v3092 = vpop.f32.mrf.mxu0
        %v3093 = vadd.f32 %v2980, %v3092
        %3094 = vmatmul.f32.gmra.mxu0 %v2733
        %v3095 = vpop.f32.mrf.mxu0
        %v3096 = vadd.f32 %v2983, %v3095
        %3097 = vmatmul.f32.gmra.mxu0 %v2736
        %v3098 = vpop.f32.mrf.mxu0
        %v3099 = vadd.f32 %v2986, %v3098
        %3100 = vmatmul.f32.gmra.mxu0 %v2739
        %v3101 = vpop.f32.mrf.mxu0
        %v3102 = vadd.f32 %v2989, %v3101
        %3103 = vmatmul.f32.gmra.mxu0 %v2742
        %v3104 = vpop.f32.mrf.mxu0
        %v3105 = vadd.f32 %v2992, %v3104
        %3106 = vdwg.mxu0
        %3107 = vmatpush.msra.mxu0 0.0
        %3108 = vmatpush.msra.mxu0 0.0
        %3109 = vmatpush.msra.mxu0 0.0
        %3110 = vmatpush.msra.mxu0 0.0
        %3111 = vmatpush.msra.mxu0 0.0
        %3112 = vmatpush.msra.mxu0 0.0
        %3113 = vmatpush.msra.mxu0 0.0
        %3114 = vmatpush.msra.mxu0 0.0
        %3115 = vmatpush.msra.mxu0 0.0
        %3116 = vmatpush.msra.mxu0 0.0
        %3117 = vmatpush.msra.mxu0 0.0
        %3118 = vmatpush.msra.mxu0 0.0
        %3119 = vmatpush.msra.mxu0 %v2779
        %3120 = vmatpush.msra.mxu0 %v2778
        %3121 = vmatpush.msra.mxu0 %v2777
        %3122 = vmatpush.msra.mxu0 %v2776
        %3123 = vmatmul.f32.gmra.mxu0 %v2786
        %v3124 = vpop.f32.mrf.mxu0
        %v3125 = vadd.f32 %v3012, %v3124
        %3126 = vmatmul.f32.gmra.mxu0 %v2789
        %v3127 = vpop.f32.mrf.mxu0
        %v3128 = vadd.f32 %v3015, %v3127
        %3129 = vmatmul.f32.gmra.mxu0 %v2792
        %v3130 = vpop.f32.mrf.mxu0
        %v3131 = vadd.f32 %v3018, %v3130
        %3132 = vmatmul.f32.gmra.mxu0 %v2795
        %v3133 = vpop.f32.mrf.mxu0
        %v3134 = vadd.f32 %v3021, %v3133
        %3135 = vmatmul.f32.gmra.mxu0 %v2798
        %v3136 = vpop.f32.mrf.mxu0
        %v3137 = vadd.f32 %v3024, %v3136
        %3138 = vmatmul.f32.gmra.mxu0 %v2801
        %v3139 = vpop.f32.mrf.mxu0
        %v3140 = vadd.f32 %v3027, %v3139
        %3141 = vmatmul.f32.gmra.mxu0 %v2804
        %v3142 = vpop.f32.mrf.mxu0
        %v3143 = vadd.f32 %v3030, %v3142
        %3144 = vmatmul.f32.gmra.mxu0 %v2807
        %v3145 = vpop.f32.mrf.mxu0
        %v3146 = vadd.f32 %v3033, %v3145
        %3147 = vmatmul.f32.gmra.mxu0 %v2810
        %v3148 = vpop.f32.mrf.mxu0
        %v3149 = vadd.f32 %v3036, %v3148
        %3150 = vmatmul.f32.gmra.mxu0 %v2813
        %v3151 = vpop.f32.mrf.mxu0
        %v3152 = vadd.f32 %v3039, %v3151
        %3153 = vmatmul.f32.gmra.mxu0 %v2816
        %v3154 = vpop.f32.mrf.mxu0
        %v3155 = vadd.f32 %v3042, %v3154
        %3156 = vmatmul.f32.gmra.mxu0 %v2819
        %v3157 = vpop.f32.mrf.mxu0
        %v3158 = vadd.f32 %v3045, %v3157
        %3159 = vmatmul.f32.gmra.mxu0 %v2822
        %v3160 = vpop.f32.mrf.mxu0
        %v3161 = vadd.f32 %v3048, %v3160
        %3162 = vmatmul.f32.gmra.mxu0 %v2825
        %v3163 = vpop.f32.mrf.mxu0
        %v3164 = vadd.f32 %v3051, %v3163
        %3165 = vmatmul.f32.gmra.mxu0 %v2828
        %v3166 = vpop.f32.mrf.mxu0
        %v3167 = vadd.f32 %v3054, %v3166
        %3168 = vmatmul.f32.gmra.mxu0 %v2831
        %v3169 = vpop.f32.mrf.mxu0
        %v3170 = vadd.f32 %v3057, %v3169
        %3171 = vmatmul.f32.gmra.mxu0 %v2834
        %v3172 = vpop.f32.mrf.mxu0
        %v3173 = vadd.f32 %v3060, %v3172
        %3174 = vmatmul.f32.gmra.mxu0 %v2837
        %v3175 = vpop.f32.mrf.mxu0
        %v3176 = vadd.f32 %v3063, %v3175
        %3177 = vmatmul.f32.gmra.mxu0 %v2840
        %v3178 = vpop.f32.mrf.mxu0
        %v3179 = vadd.f32 %v3066, %v3178
        %3180 = vmatmul.f32.gmra.mxu0 %v2843
        %v3181 = vpop.f32.mrf.mxu0
        %v3182 = vadd.f32 %v3069, %v3181
        %3183 = vmatmul.f32.gmra.mxu0 %v2846
        %v3184 = vpop.f32.mrf.mxu0
        %v3185 = vadd.f32 %v3072, %v3184
        %3186 = vmatmul.f32.gmra.mxu0 %v2849
        %v3187 = vpop.f32.mrf.mxu0
        %v3188 = vadd.f32 %v3075, %v3187
        %3189 = vmatmul.f32.gmra.mxu0 %v2852
        %v3190 = vpop.f32.mrf.mxu0
        %v3191 = vadd.f32 %v3078, %v3190
        %3192 = vmatmul.f32.gmra.mxu0 %v2855
        %v3193 = vpop.f32.mrf.mxu0
        %v3194 = vadd.f32 %v3081, %v3193
        %3195 = vmatmul.f32.gmra.mxu0 %v2858
        %v3196 = vpop.f32.mrf.mxu0
        %v3197 = vadd.f32 %v3084, %v3196
        %3198 = vmatmul.f32.gmra.mxu0 %v2861
        %v3199 = vpop.f32.mrf.mxu0
        %v3200 = vadd.f32 %v3087, %v3199
        %3201 = vmatmul.f32.gmra.mxu0 %v2864
        %v3202 = vpop.f32.mrf.mxu0
        %v3203 = vadd.f32 %v3090, %v3202
        %3204 = vmatmul.f32.gmra.mxu0 %v2867
        %v3205 = vpop.f32.mrf.mxu0
        %v3206 = vadd.f32 %v3093, %v3205
        %3207 = vmatmul.f32.gmra.mxu0 %v2870
        %v3208 = vpop.f32.mrf.mxu0
        %v3209 = vadd.f32 %v3096, %v3208
        %3210 = vmatmul.f32.gmra.mxu0 %v2873
        %v3211 = vpop.f32.mrf.mxu0
        %v3212 = vadd.f32 %v3099, %v3211
        %3213 = vmatmul.f32.gmra.mxu0 %v2876
        %v3214 = vpop.f32.mrf.mxu0
        %v3215 = vadd.f32 %v3102, %v3214
        %3216 = vmatmul.f32.gmra.mxu0 %v2879
        %v3217 = vpop.f32.mrf.mxu0
        %v3218 = vadd.f32 %v3105, %v3217
        %3219 = vdwg.mxu0
        %v3220 = vmax.f32 %v3125, 0.0
        %v3221 = vmax.f32 %v3128, 0.0
        %v3222 = vmax.f32 %v3131, 0.0
        %v3223 = vmax.f32 %v3134, 0.0
        %v3224 = vmax.f32 %v3137, 0.0
        %v3225 = vmax.f32 %v3140, 0.0
        %v3226 = vmax.f32 %v3143, 0.0
        %v3227 = vmax.f32 %v3146, 0.0
        %v3228 = vmax.f32 %v3149, 0.0
        %v3229 = vmax.f32 %v3152, 0.0
        %v3230 = vmax.f32 %v3155, 0.0
        %v3231 = vmax.f32 %v3158, 0.0
        %v3232 = vmax.f32 %v3161, 0.0
        %v3233 = vmax.f32 %v3164, 0.0
        %v3234 = vmax.f32 %v3167, 0.0
        %v3235 = vmax.f32 %v3170, 0.0
        %v3236 = vmax.f32 %v3173, 0.0
        %v3237 = vmax.f32 %v3176, 0.0
        %v3238 = vmax.f32 %v3179, 0.0
        %v3239 = vmax.f32 %v3182, 0.0
        %v3240 = vmax.f32 %v3185, 0.0
        %v3241 = vmax.f32 %v3188, 0.0
        %v3242 = vmax.f32 %v3191, 0.0
        %v3243 = vmax.f32 %v3194, 0.0
        %v3244 = vmax.f32 %v3197, 0.0
        %v3245 = vmax.f32 %v3200, 0.0
        %v3246 = vmax.f32 %v3203, 0.0
        %v3247 = vmax.f32 %v3206, 0.0
        %v3248 = vmax.f32 %v3209, 0.0
        %v3249 = vmax.f32 %v3212, 0.0
        %v3250 = vmax.f32 %v3215, 0.0
        %v3251 = vmax.f32 %v3218, 0.0
        %s3252 = scalar_lea.vmem [#allocation4], 256
        %3253 = vst.msk [vmem:[%s3252] sm:$0xff] %vm1189, %v3220
        %3254 = vst.msk [vmem:[%s3252 + $0x8] sm:$0xff] %vm1189, %v3221
        %3255 = vst.msk [vmem:[%s3252 + $0x10] sm:$0xff] %vm1189, %v3222
        %3256 = vst.msk [vmem:[%s3252 + $0x18] sm:$0xff] %vm1189, %v3223
        %3257 = vst.msk [vmem:[%s3252 + $0x20] sm:$0xff] %vm1189, %v3224
        %3258 = vst.msk [vmem:[%s3252 + $0x28] sm:$0xff] %vm1189, %v3225
        %3259 = vst.msk [vmem:[%s3252 + $0x30] sm:$0xff] %vm1189, %v3226
        %3260 = vst.msk [vmem:[%s3252 + $0x38] sm:$0xff] %vm1189, %v3227
        %3261 = vst.msk [vmem:[%s3252 + $0x40] sm:$0xff] %vm1189, %v3228
        %3262 = vst.msk [vmem:[%s3252 + $0x48] sm:$0xff] %vm1189, %v3229
        %3263 = vst.msk [vmem:[%s3252 + $0x50] sm:$0xff] %vm1189, %v3230
        %3264 = vst.msk [vmem:[%s3252 + $0x58] sm:$0xff] %vm1189, %v3231
        %3265 = vst.msk [vmem:[%s3252 + $0x60] sm:$0xff] %vm1189, %v3232
        %3266 = vst.msk [vmem:[%s3252 + $0x68] sm:$0xff] %vm1189, %v3233
        %3267 = vst.msk [vmem:[%s3252 + $0x70] sm:$0xff] %vm1189, %v3234
        %3268 = vst.msk [vmem:[%s3252 + $0x78] sm:$0xff] %vm1189, %v3235
        %3269 = vst.msk [vmem:[%s3252 + $0x80] sm:$0xff] %vm1189, %v3236
        %3270 = vst.msk [vmem:[%s3252 + $0x88] sm:$0xff] %vm1189, %v3237
        %3271 = vst.msk [vmem:[%s3252 + $0x90] sm:$0xff] %vm1189, %v3238
        %3272 = vst.msk [vmem:[%s3252 + $0x98] sm:$0xff] %vm1189, %v3239
        %3273 = vst.msk [vmem:[%s3252 + $0xa0] sm:$0xff] %vm1189, %v3240
        %3274 = vst.msk [vmem:[%s3252 + $0xa8] sm:$0xff] %vm1189, %v3241
        %3275 = vst.msk [vmem:[%s3252 + $0xb0] sm:$0xff] %vm1189, %v3242
        %3276 = vst.msk [vmem:[%s3252 + $0xb8] sm:$0xff] %vm1189, %v3243
        %3277 = vst.msk [vmem:[%s3252 + $0xc0] sm:$0xff] %vm1189, %v3244
        %3278 = vst.msk [vmem:[%s3252 + $0xc8] sm:$0xff] %vm1189, %v3245
        %3279 = vst.msk [vmem:[%s3252 + $0xd0] sm:$0xff] %vm1189, %v3246
        %3280 = vst.msk [vmem:[%s3252 + $0xd8] sm:$0xff] %vm1189, %v3247
        %3281 = vst.msk [vmem:[%s3252 + $0xe0] sm:$0xff] %vm1189, %v3248
        %3282 = vst.msk [vmem:[%s3252 + $0xe8] sm:$0xff] %vm1189, %v3249
        %3283 = vst.msk [vmem:[%s3252 + $0xf0] sm:$0xff] %vm1189, %v3250
        %3284 = vst.msk [vmem:[%s3252 + $0xf8] sm:$0xff] %vm1189, %v3251
        %v3285 = vsel %vm1189, %v3220, 0.0
        %v3286 = vsel %vm1189, %v3221, 0.0
        %v3287 = vadd.f32 %v3285, %v3286
        %v3288 = vsel %vm1189, %v3222, 0.0
        %v3289 = vadd.f32 %v3287, %v3288
        %v3290 = vsel %vm1189, %v3223, 0.0
        %v3291 = vadd.f32 %v3289, %v3290
        %v3292 = vsel %vm1189, %v3224, 0.0
        %v3293 = vadd.f32 %v3291, %v3292
        %v3294 = vsel %vm1189, %v3225, 0.0
        %v3295 = vadd.f32 %v3293, %v3294
        %v3296 = vsel %vm1189, %v3226, 0.0
        %v3297 = vadd.f32 %v3295, %v3296
        %v3298 = vsel %vm1189, %v3227, 0.0
        %v3299 = vadd.f32 %v3297, %v3298
        %v3300 = vsel %vm1189, %v3228, 0.0
        %v3301 = vadd.f32 %v3299, %v3300
        %v3302 = vsel %vm1189, %v3229, 0.0
        %v3303 = vadd.f32 %v3301, %v3302
        %v3304 = vsel %vm1189, %v3230, 0.0
        %v3305 = vadd.f32 %v3303, %v3304
        %v3306 = vsel %vm1189, %v3231, 0.0
        %v3307 = vadd.f32 %v3305, %v3306
        %v3308 = vsel %vm1189, %v3232, 0.0
        %v3309 = vadd.f32 %v3307, %v3308
        %v3310 = vsel %vm1189, %v3233, 0.0
        %v3311 = vadd.f32 %v3309, %v3310
        %v3312 = vsel %vm1189, %v3234, 0.0
        %v3313 = vadd.f32 %v3311, %v3312
        %v3314 = vsel %vm1189, %v3235, 0.0
        %v3315 = vadd.f32 %v3313, %v3314
        %v3316 = vsel %vm1189, %v3236, 0.0
        %v3317 = vadd.f32 %v3315, %v3316
        %v3318 = vsel %vm1189, %v3237, 0.0
        %v3319 = vadd.f32 %v3317, %v3318
        %v3320 = vsel %vm1189, %v3238, 0.0
        %v3321 = vadd.f32 %v3319, %v3320
        %v3322 = vsel %vm1189, %v3239, 0.0
        %v3323 = vadd.f32 %v3321, %v3322
        %v3324 = vsel %vm1189, %v3240, 0.0
        %v3325 = vadd.f32 %v3323, %v3324
        %v3326 = vsel %vm1189, %v3241, 0.0
        %v3327 = vadd.f32 %v3325, %v3326
        %v3328 = vsel %vm1189, %v3242, 0.0
        %v3329 = vadd.f32 %v3327, %v3328
        %v3330 = vsel %vm1189, %v3243, 0.0
        %v3331 = vadd.f32 %v3329, %v3330
        %v3332 = vsel %vm1189, %v3244, 0.0
        %v3333 = vadd.f32 %v3331, %v3332
        %v3334 = vsel %vm1189, %v3245, 0.0
        %v3335 = vadd.f32 %v3333, %v3334
        %v3336 = vsel %vm1189, %v3246, 0.0
        %v3337 = vadd.f32 %v3335, %v3336
        %v3338 = vsel %vm1189, %v3247, 0.0
        %v3339 = vadd.f32 %v3337, %v3338
        %v3340 = vsel %vm1189, %v3248, 0.0
        %v3341 = vadd.f32 %v3339, %v3340
        %v3342 = vsel %vm1189, %v3249, 0.0
        %v3343 = vadd.f32 %v3341, %v3342
        %v3344 = vsel %vm1189, %v3250, 0.0
        %v3345 = vadd.f32 %v3343, %v3344
        %v3346 = vsel %vm1189, %v3251, 0.0
        %v3347 = vadd.f32 %v3345, %v3346
        %v3348 = vrot.slane %v3347, 4
        %v3349 = vadd.f32 %v3347, %v3348
        %v3350 = vrot.slane %v3349, 2
        %v3351 = vadd.f32 %v3349, %v3350
        %v3352 = vrot.slane %v3351, 1
        %v3353 = vadd.f32 %v3351, %v3352
        %v3354 = vmul.f32 %v3353, %v1297
        %s3355 = scalar_lea.vmem [#allocation2], 336
        %v3356 = vld [vmem:[%s3355 + $0x6] sm:$0xff]
        %v3357 = vld [vmem:[%s3355 + $0xe] sm:$0xff]
        %v3358 = vld [vmem:[%s3355 + $0x3e] sm:$0xff]
        %v3359 = vld [vmem:[%s3355 + $0x46] sm:$0xff]
        %v3360 = vld [vmem:[%s3355 + $0x76] sm:$0xff]
        %v3361 = vld [vmem:[%s3355 + $0x7e] sm:$0xff]
        %v3362 = vld [vmem:[%s3355 + $0xae] sm:$0xff]
        %v3363 = vld [vmem:[%s3355 + $0xb6] sm:$0xff]
        %v3364 = vld [vmem:[%s3355 + $0xe6] sm:$0xff]
        %v3365 = vld [vmem:[%s3355 + $0xee] sm:$0xff]
        %v3366 = vld [vmem:[%s3355 + $0x11e] sm:$0xff]
        %v3367 = vld [vmem:[%s3355 + $0x126] sm:$0xff]
        %v3368 = vld [vmem:[%s3355 + $0x156] sm:$0xff]
        %v3369 = vld [vmem:[%s3355 + $0x15e] sm:$0xff]
        %v3370 = vld [vmem:[%s3355 + $0x18e] sm:$0xff]
        %v3371 = vld [vmem:[%s3355 + $0x196] sm:$0xff]
        %v3372 = vld [vmem:[%s3355 + $0x1c6] sm:$0xff]
        %v3373 = vld [vmem:[%s3355 + $0x1ce] sm:$0xff]
        %v3374 = vld [vmem:[%s3355 + $0x1fe] sm:$0xff]
        %v3375 = vld [vmem:[%s3355 + $0x206] sm:$0xff]
        %v3376 = vld [vmem:[%s3355 + $0x236] sm:$0xff]
        %v3377 = vld [vmem:[%s3355 + $0x23e] sm:$0xff]
        %v3378 = vld [vmem:[%s3355 + $0x26e] sm:$0xff]
        %v3379 = vld [vmem:[%s3355 + $0x276] sm:$0xff]
        %v3380 = vld [vmem:[%s3355 + $0x2a6] sm:$0xff]
        %v3381 = vld [vmem:[%s3355 + $0x2ae] sm:$0xff]
        %v3382 = vld [vmem:[%s3355 + $0x2de] sm:$0xff]
        %v3383 = vld [vmem:[%s3355 + $0x2e6] sm:$0xff]
        %v3384 = vld [vmem:[%s3355 + $0x316] sm:$0xff]
        %v3385 = vld [vmem:[%s3355 + $0x31e] sm:$0xff]
        %v3386 = vld [vmem:[%s3355 + $0x34e] sm:$0xff]
        %v3387 = vld [vmem:[%s3355 + $0x356] sm:$0xff]
        %3388 = vst.msk [vmem:[#allocation3] sm:$0xff] %vm555, %v3356
        %3389 = vst.msk [vmem:[#allocation3 + $0x18] sm:$0xff] %vm555, %v3357
        %3390 = vst.msk [vmem:[#allocation3 + $0x30] sm:$0xff] %vm555, %v3358
        %3391 = vst.msk [vmem:[#allocation3 + $0x48] sm:$0xff] %vm555, %v3359
        %3392 = vst.msk [vmem:[#allocation3 + $0x60] sm:$0xff] %vm555, %v3360
        %3393 = vst.msk [vmem:[#allocation3 + $0x78] sm:$0xff] %vm555, %v3361
        %3394 = vst.msk [vmem:[#allocation3 + $0x90] sm:$0xff] %vm555, %v3362
        %3395 = vst.msk [vmem:[#allocation3 + $0xa8] sm:$0xff] %vm555, %v3363
        %3396 = vst.msk [vmem:[#allocation3 + $0xc0] sm:$0xff] %vm555, %v3364
        %3397 = vst.msk [vmem:[#allocation3 + $0xd8] sm:$0xff] %vm555, %v3365
        %3398 = vst.msk [vmem:[#allocation3 + $0xf0] sm:$0xff] %vm555, %v3366
        %3399 = vst.msk [vmem:[#allocation3 + $0x108] sm:$0xff] %vm555, %v3367
        %3400 = vst.msk [vmem:[#allocation3 + $0x120] sm:$0xff] %vm555, %v3368
        %3401 = vst.msk [vmem:[#allocation3 + $0x138] sm:$0xff] %vm555, %v3369
        %3402 = vst.msk [vmem:[#allocation3 + $0x150] sm:$0xff] %vm555, %v3370
        %3403 = vst.msk [vmem:[#allocation3 + $0x168] sm:$0xff] %vm555, %v3371
        %3404 = vst.msk [vmem:[#allocation3 + $0x180] sm:$0xff] %vm555, %v3372
        %3405 = vst.msk [vmem:[#allocation3 + $0x198] sm:$0xff] %vm555, %v3373
        %3406 = vst.msk [vmem:[#allocation3 + $0x1b0] sm:$0xff] %vm555, %v3374
        %3407 = vst.msk [vmem:[#allocation3 + $0x1c8] sm:$0xff] %vm555, %v3375
        %3408 = vst.msk [vmem:[#allocation3 + $0x1e0] sm:$0xff] %vm555, %v3376
        %3409 = vst.msk [vmem:[#allocation3 + $0x1f8] sm:$0xff] %vm555, %v3377
        %3410 = vst.msk [vmem:[#allocation3 + $0x210] sm:$0xff] %vm555, %v3378
        %3411 = vst.msk [vmem:[#allocation3 + $0x228] sm:$0xff] %vm555, %v3379
        %3412 = vst.msk [vmem:[#allocation3 + $0x240] sm:$0xff] %vm555, %v3380
        %3413 = vst.msk [vmem:[#allocation3 + $0x258] sm:$0xff] %vm555, %v3381
        %3414 = vst.msk [vmem:[#allocation3 + $0x270] sm:$0xff] %vm555, %v3382
        %3415 = vst.msk [vmem:[#allocation3 + $0x288] sm:$0xff] %vm555, %v3383
        %3416 = vst.msk [vmem:[#allocation3 + $0x2a0] sm:$0xff] %vm555, %v3384
        %3417 = vst.msk [vmem:[#allocation3 + $0x2b8] sm:$0xff] %vm555, %v3385
        %3418 = vst.msk [vmem:[#allocation3 + $0x2d0] sm:$0xff] %vm555, %v3386
        %3419 = vst.msk [vmem:[#allocation3 + $0x2e8] sm:$0xff] %vm555, %v3387
        %v3420 = vld [vmem:[%s3355 + $0x12] sm:$0xff]
        %v3421 = vld [vmem:[%s3355 + $0x1a] sm:$0xff]
        %v3422 = vld [vmem:[%s3355 + $0x4a] sm:$0xff]
        %v3423 = vld [vmem:[%s3355 + $0x52] sm:$0xff]
        %v3424 = vld [vmem:[%s3355 + $0x82] sm:$0xff]
        %v3425 = vld [vmem:[%s3355 + $0x8a] sm:$0xff]
        %v3426 = vld [vmem:[%s3355 + $0xba] sm:$0xff]
        %v3427 = vld [vmem:[%s3355 + $0xc2] sm:$0xff]
        %v3428 = vld [vmem:[%s3355 + $0xf2] sm:$0xff]
        %v3429 = vld [vmem:[%s3355 + $0xfa] sm:$0xff]
        %v3430 = vld [vmem:[%s3355 + $0x12a] sm:$0xff]
        %v3431 = vld [vmem:[%s3355 + $0x132] sm:$0xff]
        %v3432 = vld [vmem:[%s3355 + $0x162] sm:$0xff]
        %v3433 = vld [vmem:[%s3355 + $0x16a] sm:$0xff]
        %v3434 = vld [vmem:[%s3355 + $0x19a] sm:$0xff]
        %v3435 = vld [vmem:[%s3355 + $0x1a2] sm:$0xff]
        %v3436 = vld [vmem:[%s3355 + $0x1d2] sm:$0xff]
        %v3437 = vld [vmem:[%s3355 + $0x1da] sm:$0xff]
        %v3438 = vld [vmem:[%s3355 + $0x20a] sm:$0xff]
        %v3439 = vld [vmem:[%s3355 + $0x212] sm:$0xff]
        %v3440 = vld [vmem:[%s3355 + $0x242] sm:$0xff]
        %v3441 = vld [vmem:[%s3355 + $0x24a] sm:$0xff]
        %v3442 = vld [vmem:[%s3355 + $0x27a] sm:$0xff]
        %v3443 = vld [vmem:[%s3355 + $0x282] sm:$0xff]
        %v3444 = vld [vmem:[%s3355 + $0x2b2] sm:$0xff]
        %v3445 = vld [vmem:[%s3355 + $0x2ba] sm:$0xff]
        %v3446 = vld [vmem:[%s3355 + $0x2ea] sm:$0xff]
        %v3447 = vld [vmem:[%s3355 + $0x2f2] sm:$0xff]
        %v3448 = vld [vmem:[%s3355 + $0x322] sm:$0xff]
        %v3449 = vld [vmem:[%s3355 + $0x32a] sm:$0xff]
        %v3450 = vld [vmem:[%s3355 + $0x35a] sm:$0xff]
        %v3451 = vld [vmem:[%s3355 + $0x362] sm:$0xff]
        %3484 = vrot.lane.b32.xlu0 %v3420, 32
        %v3485 = vpop.permute.xlu0 %3484
        %3486 = vrot.lane.b32.xlu0 %v3421, 32
        %v3487 = vpop.permute.xlu0 %3486
        %3488 = vrot.lane.b32.xlu0 %v3422, 32
        %v3489 = vpop.permute.xlu0 %3488
        %3490 = vrot.lane.b32.xlu0 %v3423, 32
        %v3491 = vpop.permute.xlu0 %3490
        %3492 = vrot.lane.b32.xlu0 %v3424, 32
        %v3493 = vpop.permute.xlu0 %3492
        %3494 = vrot.lane.b32.xlu0 %v3425, 32
        %v3495 = vpop.permute.xlu0 %3494
        %3496 = vrot.lane.b32.xlu0 %v3426, 32
        %v3497 = vpop.permute.xlu0 %3496
        %3498 = vrot.lane.b32.xlu0 %v3427, 32
        %v3499 = vpop.permute.xlu0 %3498
        %3500 = vrot.lane.b32.xlu0 %v3428, 32
        %v3501 = vpop.permute.xlu0 %3500
        %3502 = vrot.lane.b32.xlu0 %v3429, 32
        %v3503 = vpop.permute.xlu0 %3502
        %3504 = vrot.lane.b32.xlu0 %v3430, 32
        %v3505 = vpop.permute.xlu0 %3504
        %3506 = vrot.lane.b32.xlu0 %v3431, 32
        %v3507 = vpop.permute.xlu0 %3506
        %3508 = vrot.lane.b32.xlu0 %v3432, 32
        %v3509 = vpop.permute.xlu0 %3508
        %3510 = vrot.lane.b32.xlu0 %v3433, 32
        %v3511 = vpop.permute.xlu0 %3510
        %3512 = vrot.lane.b32.xlu0 %v3434, 32
        %v3513 = vpop.permute.xlu0 %3512
        %3514 = vrot.lane.b32.xlu0 %v3435, 32
        %v3515 = vpop.permute.xlu0 %3514
        %3516 = vrot.lane.b32.xlu0 %v3436, 32
        %v3517 = vpop.permute.xlu0 %3516
        %3518 = vrot.lane.b32.xlu0 %v3437, 32
        %v3519 = vpop.permute.xlu0 %3518
        %3520 = vrot.lane.b32.xlu0 %v3438, 32
        %v3521 = vpop.permute.xlu0 %3520
        %3522 = vrot.lane.b32.xlu0 %v3439, 32
        %v3523 = vpop.permute.xlu0 %3522
        %3524 = vrot.lane.b32.xlu0 %v3440, 32
        %v3525 = vpop.permute.xlu0 %3524
        %3526 = vrot.lane.b32.xlu0 %v3441, 32
        %v3527 = vpop.permute.xlu0 %3526
        %3528 = vrot.lane.b32.xlu0 %v3442, 32
        %v3529 = vpop.permute.xlu0 %3528
        %3530 = vrot.lane.b32.xlu0 %v3443, 32
        %v3531 = vpop.permute.xlu0 %3530
        %3532 = vrot.lane.b32.xlu0 %v3444, 32
        %v3533 = vpop.permute.xlu0 %3532
        %3534 = vrot.lane.b32.xlu0 %v3445, 32
        %v3535 = vpop.permute.xlu0 %3534
        %3536 = vrot.lane.b32.xlu0 %v3446, 32
        %v3537 = vpop.permute.xlu0 %3536
        %3538 = vrot.lane.b32.xlu0 %v3447, 32
        %v3539 = vpop.permute.xlu0 %3538
        %3540 = vrot.lane.b32.xlu0 %v3448, 32
        %v3541 = vpop.permute.xlu0 %3540
        %3542 = vrot.lane.b32.xlu0 %v3449, 32
        %v3543 = vpop.permute.xlu0 %3542
        %3544 = vrot.lane.b32.xlu0 %v3450, 32
        %v3545 = vpop.permute.xlu0 %3544
        %3546 = vrot.lane.b32.xlu0 %v3451, 32
        %v3547 = vpop.permute.xlu0 %3546
        %3580 = vst.msk [vmem:[#allocation3] sm:$0xff] %vm1524, %v3485
        %3581 = vst.msk [vmem:[#allocation3 + $0x18] sm:$0xff] %vm1524, %v3487
        %3582 = vst.msk [vmem:[#allocation3 + $0x30] sm:$0xff] %vm1524, %v3489
        %3583 = vst.msk [vmem:[#allocation3 + $0x48] sm:$0xff] %vm1524, %v3491
        %3584 = vst.msk [vmem:[#allocation3 + $0x60] sm:$0xff] %vm1524, %v3493
        %3585 = vst.msk [vmem:[#allocation3 + $0x78] sm:$0xff] %vm1524, %v3495
        %3586 = vst.msk [vmem:[#allocation3 + $0x90] sm:$0xff] %vm1524, %v3497
        %3587 = vst.msk [vmem:[#allocation3 + $0xa8] sm:$0xff] %vm1524, %v3499
        %3588 = vst.msk [vmem:[#allocation3 + $0xc0] sm:$0xff] %vm1524, %v3501
        %3589 = vst.msk [vmem:[#allocation3 + $0xd8] sm:$0xff] %vm1524, %v3503
        %3590 = vst.msk [vmem:[#allocation3 + $0xf0] sm:$0xff] %vm1524, %v3505
        %3591 = vst.msk [vmem:[#allocation3 + $0x108] sm:$0xff] %vm1524, %v3507
        %3592 = vst.msk [vmem:[#allocation3 + $0x120] sm:$0xff] %vm1524, %v3509
        %3593 = vst.msk [vmem:[#allocation3 + $0x138] sm:$0xff] %vm1524, %v3511
        %3594 = vst.msk [vmem:[#allocation3 + $0x150] sm:$0xff] %vm1524, %v3513
        %3595 = vst.msk [vmem:[#allocation3 + $0x168] sm:$0xff] %vm1524, %v3515
        %3596 = vst.msk [vmem:[#allocation3 + $0x180] sm:$0xff] %vm1524, %v3517
        %3597 = vst.msk [vmem:[#allocation3 + $0x198] sm:$0xff] %vm1524, %v3519
        %3598 = vst.msk [vmem:[#allocation3 + $0x1b0] sm:$0xff] %vm1524, %v3521
        %3599 = vst.msk [vmem:[#allocation3 + $0x1c8] sm:$0xff] %vm1524, %v3523
        %3600 = vst.msk [vmem:[#allocation3 + $0x1e0] sm:$0xff] %vm1524, %v3525
        %3601 = vst.msk [vmem:[#allocation3 + $0x1f8] sm:$0xff] %vm1524, %v3527
        %3602 = vst.msk [vmem:[#allocation3 + $0x210] sm:$0xff] %vm1524, %v3529
        %3603 = vst.msk [vmem:[#allocation3 + $0x228] sm:$0xff] %vm1524, %v3531
        %3604 = vst.msk [vmem:[#allocation3 + $0x240] sm:$0xff] %vm1524, %v3533
        %3605 = vst.msk [vmem:[#allocation3 + $0x258] sm:$0xff] %vm1524, %v3535
        %3606 = vst.msk [vmem:[#allocation3 + $0x270] sm:$0xff] %vm1524, %v3537
        %3607 = vst.msk [vmem:[#allocation3 + $0x288] sm:$0xff] %vm1524, %v3539
        %3608 = vst.msk [vmem:[#allocation3 + $0x2a0] sm:$0xff] %vm1524, %v3541
        %3609 = vst.msk [vmem:[#allocation3 + $0x2b8] sm:$0xff] %vm1524, %v3543
        %3610 = vst.msk [vmem:[#allocation3 + $0x2d0] sm:$0xff] %vm1524, %v3545
        %3611 = vst.msk [vmem:[#allocation3 + $0x2e8] sm:$0xff] %vm1524, %v3547
        %v3612 = vld [vmem:[%s3355 + $0x1e] sm:$0xff]
        %v3613 = vld [vmem:[%s3355 + $0x26] sm:$0xff]
        %v3614 = vld [vmem:[%s3355 + $0x56] sm:$0xff]
        %v3615 = vld [vmem:[%s3355 + $0x5e] sm:$0xff]
        %v3616 = vld [vmem:[%s3355 + $0x8e] sm:$0xff]
        %v3617 = vld [vmem:[%s3355 + $0x96] sm:$0xff]
        %v3618 = vld [vmem:[%s3355 + $0xc6] sm:$0xff]
        %v3619 = vld [vmem:[%s3355 + $0xce] sm:$0xff]
        %v3620 = vld [vmem:[%s3355 + $0xfe] sm:$0xff]
        %v3621 = vld [vmem:[%s3355 + $0x106] sm:$0xff]
        %v3622 = vld [vmem:[%s3355 + $0x136] sm:$0xff]
        %v3623 = vld [vmem:[%s3355 + $0x13e] sm:$0xff]
        %v3624 = vld [vmem:[%s3355 + $0x16e] sm:$0xff]
        %v3625 = vld [vmem:[%s3355 + $0x176] sm:$0xff]
        %v3626 = vld [vmem:[%s3355 + $0x1a6] sm:$0xff]
        %v3627 = vld [vmem:[%s3355 + $0x1ae] sm:$0xff]
        %v3628 = vld [vmem:[%s3355 + $0x1de] sm:$0xff]
        %v3629 = vld [vmem:[%s3355 + $0x1e6] sm:$0xff]
        %v3630 = vld [vmem:[%s3355 + $0x216] sm:$0xff]
        %v3631 = vld [vmem:[%s3355 + $0x21e] sm:$0xff]
        %v3632 = vld [vmem:[%s3355 + $0x24e] sm:$0xff]
        %v3633 = vld [vmem:[%s3355 + $0x256] sm:$0xff]
        %v3634 = vld [vmem:[%s3355 + $0x286] sm:$0xff]
        %v3635 = vld [vmem:[%s3355 + $0x28e] sm:$0xff]
        %v3636 = vld [vmem:[%s3355 + $0x2be] sm:$0xff]
        %v3637 = vld [vmem:[%s3355 + $0x2c6] sm:$0xff]
        %v3638 = vld [vmem:[%s3355 + $0x2f6] sm:$0xff]
        %v3639 = vld [vmem:[%s3355 + $0x2fe] sm:$0xff]
        %v3640 = vld [vmem:[%s3355 + $0x32e] sm:$0xff]
        %v3641 = vld [vmem:[%s3355 + $0x336] sm:$0xff]
        %v3642 = vld [vmem:[%s3355 + $0x366] sm:$0xff]
        %v3643 = vld [vmem:[%s3355 + $0x36e] sm:$0xff]
        %3676 = vrot.lane.b32.xlu0 %v3612, 64
        %v3677 = vpop.permute.xlu0 %3676
        %3678 = vrot.lane.b32.xlu0 %v3613, 64
        %v3679 = vpop.permute.xlu0 %3678
        %3680 = vrot.lane.b32.xlu0 %v3614, 64
        %v3681 = vpop.permute.xlu0 %3680
        %3682 = vrot.lane.b32.xlu0 %v3615, 64
        %v3683 = vpop.permute.xlu0 %3682
        %3684 = vrot.lane.b32.xlu0 %v3616, 64
        %v3685 = vpop.permute.xlu0 %3684
        %3686 = vrot.lane.b32.xlu0 %v3617, 64
        %v3687 = vpop.permute.xlu0 %3686
        %3688 = vrot.lane.b32.xlu0 %v3618, 64
        %v3689 = vpop.permute.xlu0 %3688
        %3690 = vrot.lane.b32.xlu0 %v3619, 64
        %v3691 = vpop.permute.xlu0 %3690
        %3692 = vrot.lane.b32.xlu0 %v3620, 64
        %v3693 = vpop.permute.xlu0 %3692
        %3694 = vrot.lane.b32.xlu0 %v3621, 64
        %v3695 = vpop.permute.xlu0 %3694
        %3696 = vrot.lane.b32.xlu0 %v3622, 64
        %v3697 = vpop.permute.xlu0 %3696
        %3698 = vrot.lane.b32.xlu0 %v3623, 64
        %v3699 = vpop.permute.xlu0 %3698
        %3700 = vrot.lane.b32.xlu0 %v3624, 64
        %v3701 = vpop.permute.xlu0 %3700
        %3702 = vrot.lane.b32.xlu0 %v3625, 64
        %v3703 = vpop.permute.xlu0 %3702
        %3704 = vrot.lane.b32.xlu0 %v3626, 64
        %v3705 = vpop.permute.xlu0 %3704
        %3706 = vrot.lane.b32.xlu0 %v3627, 64
        %v3707 = vpop.permute.xlu0 %3706
        %3708 = vrot.lane.b32.xlu0 %v3628, 64
        %v3709 = vpop.permute.xlu0 %3708
        %3710 = vrot.lane.b32.xlu0 %v3629, 64
        %v3711 = vpop.permute.xlu0 %3710
        %3712 = vrot.lane.b32.xlu0 %v3630, 64
        %v3713 = vpop.permute.xlu0 %3712
        %3714 = vrot.lane.b32.xlu0 %v3631, 64
        %v3715 = vpop.permute.xlu0 %3714
        %3716 = vrot.lane.b32.xlu0 %v3632, 64
        %v3717 = vpop.permute.xlu0 %3716
        %3718 = vrot.lane.b32.xlu0 %v3633, 64
        %v3719 = vpop.permute.xlu0 %3718
        %3720 = vrot.lane.b32.xlu0 %v3634, 64
        %v3721 = vpop.permute.xlu0 %3720
        %3722 = vrot.lane.b32.xlu0 %v3635, 64
        %v3723 = vpop.permute.xlu0 %3722
        %3724 = vrot.lane.b32.xlu0 %v3636, 64
        %v3725 = vpop.permute.xlu0 %3724
        %3726 = vrot.lane.b32.xlu0 %v3637, 64
        %v3727 = vpop.permute.xlu0 %3726
        %3728 = vrot.lane.b32.xlu0 %v3638, 64
        %v3729 = vpop.permute.xlu0 %3728
        %3730 = vrot.lane.b32.xlu0 %v3639, 64
        %v3731 = vpop.permute.xlu0 %3730
        %3732 = vrot.lane.b32.xlu0 %v3640, 64
        %v3733 = vpop.permute.xlu0 %3732
        %3734 = vrot.lane.b32.xlu0 %v3641, 64
        %v3735 = vpop.permute.xlu0 %3734
        %3736 = vrot.lane.b32.xlu0 %v3642, 64
        %v3737 = vpop.permute.xlu0 %3736
        %3738 = vrot.lane.b32.xlu0 %v3643, 64
        %v3739 = vpop.permute.xlu0 %3738
        %3772 = vst.msk [vmem:[#allocation3] sm:$0xff] %vm1717, %v3677
        %3773 = vst.msk [vmem:[#allocation3 + $0x18] sm:$0xff] %vm1717, %v3679
        %3774 = vst.msk [vmem:[#allocation3 + $0x30] sm:$0xff] %vm1717, %v3681
        %3775 = vst.msk [vmem:[#allocation3 + $0x48] sm:$0xff] %vm1717, %v3683
        %3776 = vst.msk [vmem:[#allocation3 + $0x60] sm:$0xff] %vm1717, %v3685
        %3777 = vst.msk [vmem:[#allocation3 + $0x78] sm:$0xff] %vm1717, %v3687
        %3778 = vst.msk [vmem:[#allocation3 + $0x90] sm:$0xff] %vm1717, %v3689
        %3779 = vst.msk [vmem:[#allocation3 + $0xa8] sm:$0xff] %vm1717, %v3691
        %3780 = vst.msk [vmem:[#allocation3 + $0xc0] sm:$0xff] %vm1717, %v3693
        %3781 = vst.msk [vmem:[#allocation3 + $0xd8] sm:$0xff] %vm1717, %v3695
        %3782 = vst.msk [vmem:[#allocation3 + $0xf0] sm:$0xff] %vm1717, %v3697
        %3783 = vst.msk [vmem:[#allocation3 + $0x108] sm:$0xff] %vm1717, %v3699
        %3784 = vst.msk [vmem:[#allocation3 + $0x120] sm:$0xff] %vm1717, %v3701
        %3785 = vst.msk [vmem:[#allocation3 + $0x138] sm:$0xff] %vm1717, %v3703
        %3786 = vst.msk [vmem:[#allocation3 + $0x150] sm:$0xff] %vm1717, %v3705
        %3787 = vst.msk [vmem:[#allocation3 + $0x168] sm:$0xff] %vm1717, %v3707
        %3788 = vst.msk [vmem:[#allocation3 + $0x180] sm:$0xff] %vm1717, %v3709
        %3789 = vst.msk [vmem:[#allocation3 + $0x198] sm:$0xff] %vm1717, %v3711
        %3790 = vst.msk [vmem:[#allocation3 + $0x1b0] sm:$0xff] %vm1717, %v3713
        %3791 = vst.msk [vmem:[#allocation3 + $0x1c8] sm:$0xff] %vm1717, %v3715
        %3792 = vst.msk [vmem:[#allocation3 + $0x1e0] sm:$0xff] %vm1717, %v3717
        %3793 = vst.msk [vmem:[#allocation3 + $0x1f8] sm:$0xff] %vm1717, %v3719
        %3794 = vst.msk [vmem:[#allocation3 + $0x210] sm:$0xff] %vm1717, %v3721
        %3795 = vst.msk [vmem:[#allocation3 + $0x228] sm:$0xff] %vm1717, %v3723
        %3796 = vst.msk [vmem:[#allocation3 + $0x240] sm:$0xff] %vm1717, %v3725
        %3797 = vst.msk [vmem:[#allocation3 + $0x258] sm:$0xff] %vm1717, %v3727
        %3798 = vst.msk [vmem:[#allocation3 + $0x270] sm:$0xff] %vm1717, %v3729
        %3799 = vst.msk [vmem:[#allocation3 + $0x288] sm:$0xff] %vm1717, %v3731
        %3800 = vst.msk [vmem:[#allocation3 + $0x2a0] sm:$0xff] %vm1717, %v3733
        %3801 = vst.msk [vmem:[#allocation3 + $0x2b8] sm:$0xff] %vm1717, %v3735
        %3802 = vst.msk [vmem:[#allocation3 + $0x2d0] sm:$0xff] %vm1717, %v3737
        %3803 = vst.msk [vmem:[#allocation3 + $0x2e8] sm:$0xff] %vm1717, %v3739
        %v3804 = vld [vmem:[%s810 + $0x6] sm:$0xff]
        %v3805 = vld [vmem:[%s810 + $0xe] sm:$0xff]
        %v3806 = vld [vmem:[%s810 + $0x3e] sm:$0xff]
        %v3807 = vld [vmem:[%s810 + $0x46] sm:$0xff]
        %v3808 = vld [vmem:[%s810 + $0x76] sm:$0xff]
        %v3809 = vld [vmem:[%s810 + $0x7e] sm:$0xff]
        %v3810 = vld [vmem:[%s810 + $0xae] sm:$0xff]
        %v3811 = vld [vmem:[%s810 + $0xb6] sm:$0xff]
        %v3812 = vld [vmem:[%s810 + $0xe6] sm:$0xff]
        %v3813 = vld [vmem:[%s810 + $0xee] sm:$0xff]
        %v3814 = vld [vmem:[%s810 + $0x11e] sm:$0xff]
        %v3815 = vld [vmem:[%s810 + $0x126] sm:$0xff]
        %v3816 = vld [vmem:[%s810 + $0x156] sm:$0xff]
        %v3817 = vld [vmem:[%s810 + $0x15e] sm:$0xff]
        %v3818 = vld [vmem:[%s810 + $0x18e] sm:$0xff]
        %v3819 = vld [vmem:[%s810 + $0x196] sm:$0xff]
        %v3820 = vld [vmem:[%s810 + $0x1c6] sm:$0xff]
        %v3821 = vld [vmem:[%s810 + $0x1ce] sm:$0xff]
        %v3822 = vld [vmem:[%s810 + $0x1fe] sm:$0xff]
        %v3823 = vld [vmem:[%s810 + $0x206] sm:$0xff]
        %v3824 = vld [vmem:[%s810 + $0x236] sm:$0xff]
        %v3825 = vld [vmem:[%s810 + $0x23e] sm:$0xff]
        %v3826 = vld [vmem:[%s810 + $0x26e] sm:$0xff]
        %v3827 = vld [vmem:[%s810 + $0x276] sm:$0xff]
        %v3828 = vld [vmem:[%s810 + $0x2a6] sm:$0xff]
        %v3829 = vld [vmem:[%s810 + $0x2ae] sm:$0xff]
        %v3830 = vld [vmem:[%s810 + $0x2de] sm:$0xff]
        %v3831 = vld [vmem:[%s810 + $0x2e6] sm:$0xff]
        %v3832 = vld [vmem:[%s810 + $0x316] sm:$0xff]
        %v3833 = vld [vmem:[%s810 + $0x31e] sm:$0xff]
        %v3834 = vld [vmem:[%s810 + $0x34e] sm:$0xff]
        %v3835 = vld [vmem:[%s810 + $0x356] sm:$0xff]
        %3868 = vrot.lane.b32.xlu0 %v3804, 96
        %v3869 = vpop.permute.xlu0 %3868
        %3870 = vrot.lane.b32.xlu0 %v3805, 96
        %v3871 = vpop.permute.xlu0 %3870
        %3872 = vrot.lane.b32.xlu0 %v3806, 96
        %v3873 = vpop.permute.xlu0 %3872
        %3874 = vrot.lane.b32.xlu0 %v3807, 96
        %v3875 = vpop.permute.xlu0 %3874
        %3876 = vrot.lane.b32.xlu0 %v3808, 96
        %v3877 = vpop.permute.xlu0 %3876
        %3878 = vrot.lane.b32.xlu0 %v3809, 96
        %v3879 = vpop.permute.xlu0 %3878
        %3880 = vrot.lane.b32.xlu0 %v3810, 96
        %v3881 = vpop.permute.xlu0 %3880
        %3882 = vrot.lane.b32.xlu0 %v3811, 96
        %v3883 = vpop.permute.xlu0 %3882
        %3884 = vrot.lane.b32.xlu0 %v3812, 96
        %v3885 = vpop.permute.xlu0 %3884
        %3886 = vrot.lane.b32.xlu0 %v3813, 96
        %v3887 = vpop.permute.xlu0 %3886
        %3888 = vrot.lane.b32.xlu0 %v3814, 96
        %v3889 = vpop.permute.xlu0 %3888
        %3890 = vrot.lane.b32.xlu0 %v3815, 96
        %v3891 = vpop.permute.xlu0 %3890
        %3892 = vrot.lane.b32.xlu0 %v3816, 96
        %v3893 = vpop.permute.xlu0 %3892
        %3894 = vrot.lane.b32.xlu0 %v3817, 96
        %v3895 = vpop.permute.xlu0 %3894
        %3896 = vrot.lane.b32.xlu0 %v3818, 96
        %v3897 = vpop.permute.xlu0 %3896
        %3898 = vrot.lane.b32.xlu0 %v3819, 96
        %v3899 = vpop.permute.xlu0 %3898
        %3900 = vrot.lane.b32.xlu0 %v3820, 96
        %v3901 = vpop.permute.xlu0 %3900
        %3902 = vrot.lane.b32.xlu0 %v3821, 96
        %v3903 = vpop.permute.xlu0 %3902
        %3904 = vrot.lane.b32.xlu0 %v3822, 96
        %v3905 = vpop.permute.xlu0 %3904
        %3906 = vrot.lane.b32.xlu0 %v3823, 96
        %v3907 = vpop.permute.xlu0 %3906
        %3908 = vrot.lane.b32.xlu0 %v3824, 96
        %v3909 = vpop.permute.xlu0 %3908
        %3910 = vrot.lane.b32.xlu0 %v3825, 96
        %v3911 = vpop.permute.xlu0 %3910
        %3912 = vrot.lane.b32.xlu0 %v3826, 96
        %v3913 = vpop.permute.xlu0 %3912
        %3914 = vrot.lane.b32.xlu0 %v3827, 96
        %v3915 = vpop.permute.xlu0 %3914
        %3916 = vrot.lane.b32.xlu0 %v3828, 96
        %v3917 = vpop.permute.xlu0 %3916
        %3918 = vrot.lane.b32.xlu0 %v3829, 96
        %v3919 = vpop.permute.xlu0 %3918
        %3920 = vrot.lane.b32.xlu0 %v3830, 96
        %v3921 = vpop.permute.xlu0 %3920
        %3922 = vrot.lane.b32.xlu0 %v3831, 96
        %v3923 = vpop.permute.xlu0 %3922
        %3924 = vrot.lane.b32.xlu0 %v3832, 96
        %v3925 = vpop.permute.xlu0 %3924
        %3926 = vrot.lane.b32.xlu0 %v3833, 96
        %v3927 = vpop.permute.xlu0 %3926
        %3928 = vrot.lane.b32.xlu0 %v3834, 96
        %v3929 = vpop.permute.xlu0 %3928
        %3930 = vrot.lane.b32.xlu0 %v3835, 96
        %v3931 = vpop.permute.xlu0 %3930
        %3964 = vst.msk [vmem:[#allocation3] sm:$0xff] %vm1910, %v3869
        %3965 = vst.msk [vmem:[#allocation3 + $0x18] sm:$0xff] %vm1910, %v3871
        %3966 = vst.msk [vmem:[#allocation3 + $0x30] sm:$0xff] %vm1910, %v3873
        %3967 = vst.msk [vmem:[#allocation3 + $0x48] sm:$0xff] %vm1910, %v3875
        %3968 = vst.msk [vmem:[#allocation3 + $0x60] sm:$0xff] %vm1910, %v3877
        %3969 = vst.msk [vmem:[#allocation3 + $0x78] sm:$0xff] %vm1910, %v3879
        %3970 = vst.msk [vmem:[#allocation3 + $0x90] sm:$0xff] %vm1910, %v3881
        %3971 = vst.msk [vmem:[#allocation3 + $0xa8] sm:$0xff] %vm1910, %v3883
        %3972 = vst.msk [vmem:[#allocation3 + $0xc0] sm:$0xff] %vm1910, %v3885
        %3973 = vst.msk [vmem:[#allocation3 + $0xd8] sm:$0xff] %vm1910, %v3887
        %3974 = vst.msk [vmem:[#allocation3 + $0xf0] sm:$0xff] %vm1910, %v3889
        %3975 = vst.msk [vmem:[#allocation3 + $0x108] sm:$0xff] %vm1910, %v3891
        %3976 = vst.msk [vmem:[#allocation3 + $0x120] sm:$0xff] %vm1910, %v3893
        %3977 = vst.msk [vmem:[#allocation3 + $0x138] sm:$0xff] %vm1910, %v3895
        %3978 = vst.msk [vmem:[#allocation3 + $0x150] sm:$0xff] %vm1910, %v3897
        %3979 = vst.msk [vmem:[#allocation3 + $0x168] sm:$0xff] %vm1910, %v3899
        %3980 = vst.msk [vmem:[#allocation3 + $0x180] sm:$0xff] %vm1910, %v3901
        %3981 = vst.msk [vmem:[#allocation3 + $0x198] sm:$0xff] %vm1910, %v3903
        %3982 = vst.msk [vmem:[#allocation3 + $0x1b0] sm:$0xff] %vm1910, %v3905
        %3983 = vst.msk [vmem:[#allocation3 + $0x1c8] sm:$0xff] %vm1910, %v3907
        %3984 = vst.msk [vmem:[#allocation3 + $0x1e0] sm:$0xff] %vm1910, %v3909
        %3985 = vst.msk [vmem:[#allocation3 + $0x1f8] sm:$0xff] %vm1910, %v3911
        %3986 = vst.msk [vmem:[#allocation3 + $0x210] sm:$0xff] %vm1910, %v3913
        %3987 = vst.msk [vmem:[#allocation3 + $0x228] sm:$0xff] %vm1910, %v3915
        %3988 = vst.msk [vmem:[#allocation3 + $0x240] sm:$0xff] %vm1910, %v3917
        %3989 = vst.msk [vmem:[#allocation3 + $0x258] sm:$0xff] %vm1910, %v3919
        %3990 = vst.msk [vmem:[#allocation3 + $0x270] sm:$0xff] %vm1910, %v3921
        %3991 = vst.msk [vmem:[#allocation3 + $0x288] sm:$0xff] %vm1910, %v3923
        %3992 = vst.msk [vmem:[#allocation3 + $0x2a0] sm:$0xff] %vm1910, %v3925
        %3993 = vst.msk [vmem:[#allocation3 + $0x2b8] sm:$0xff] %vm1910, %v3927
        %3994 = vst.msk [vmem:[#allocation3 + $0x2d0] sm:$0xff] %vm1910, %v3929
        %3995 = vst.msk [vmem:[#allocation3 + $0x2e8] sm:$0xff] %vm1910, %v3931
        %v3996 = vld [vmem:[%s810 + $0x12] sm:$0xff]
        %v3997 = vld [vmem:[%s810 + $0x1a] sm:$0xff]
        %v3998 = vld [vmem:[%s810 + $0x4a] sm:$0xff]
        %v3999 = vld [vmem:[%s810 + $0x52] sm:$0xff]
        %v4000 = vld [vmem:[%s810 + $0x82] sm:$0xff]
        %v4001 = vld [vmem:[%s810 + $0x8a] sm:$0xff]
        %v4002 = vld [vmem:[%s810 + $0xba] sm:$0xff]
        %v4003 = vld [vmem:[%s810 + $0xc2] sm:$0xff]
        %v4004 = vld [vmem:[%s810 + $0xf2] sm:$0xff]
        %v4005 = vld [vmem:[%s810 + $0xfa] sm:$0xff]
        %v4006 = vld [vmem:[%s810 + $0x12a] sm:$0xff]
        %v4007 = vld [vmem:[%s810 + $0x132] sm:$0xff]
        %v4008 = vld [vmem:[%s810 + $0x162] sm:$0xff]
        %v4009 = vld [vmem:[%s810 + $0x16a] sm:$0xff]
        %v4010 = vld [vmem:[%s810 + $0x19a] sm:$0xff]
        %v4011 = vld [vmem:[%s810 + $0x1a2] sm:$0xff]
        %v4012 = vld [vmem:[%s810 + $0x1d2] sm:$0xff]
        %v4013 = vld [vmem:[%s810 + $0x1da] sm:$0xff]
        %v4014 = vld [vmem:[%s810 + $0x20a] sm:$0xff]
        %v4015 = vld [vmem:[%s810 + $0x212] sm:$0xff]
        %v4016 = vld [vmem:[%s810 + $0x242] sm:$0xff]
        %v4017 = vld [vmem:[%s810 + $0x24a] sm:$0xff]
        %v4018 = vld [vmem:[%s810 + $0x27a] sm:$0xff]
        %v4019 = vld [vmem:[%s810 + $0x282] sm:$0xff]
        %v4020 = vld [vmem:[%s810 + $0x2b2] sm:$0xff]
        %v4021 = vld [vmem:[%s810 + $0x2ba] sm:$0xff]
        %v4022 = vld [vmem:[%s810 + $0x2ea] sm:$0xff]
        %v4023 = vld [vmem:[%s810 + $0x2f2] sm:$0xff]
        %v4024 = vld [vmem:[%s810 + $0x322] sm:$0xff]
        %v4025 = vld [vmem:[%s810 + $0x32a] sm:$0xff]
        %v4026 = vld [vmem:[%s810 + $0x35a] sm:$0xff]
        %v4027 = vld [vmem:[%s810 + $0x362] sm:$0xff]
        %4028 = vst.msk [vmem:[#allocation3 + $0x8] sm:$0xff] %vm555, %v3996
        %4029 = vst.msk [vmem:[#allocation3 + $0x20] sm:$0xff] %vm555, %v3997
        %4030 = vst.msk [vmem:[#allocation3 + $0x38] sm:$0xff] %vm555, %v3998
        %4031 = vst.msk [vmem:[#allocation3 + $0x50] sm:$0xff] %vm555, %v3999
        %4032 = vst.msk [vmem:[#allocation3 + $0x68] sm:$0xff] %vm555, %v4000
        %4033 = vst.msk [vmem:[#allocation3 + $0x80] sm:$0xff] %vm555, %v4001
        %4034 = vst.msk [vmem:[#allocation3 + $0x98] sm:$0xff] %vm555, %v4002
        %4035 = vst.msk [vmem:[#allocation3 + $0xb0] sm:$0xff] %vm555, %v4003
        %4036 = vst.msk [vmem:[#allocation3 + $0xc8] sm:$0xff] %vm555, %v4004
        %4037 = vst.msk [vmem:[#allocation3 + $0xe0] sm:$0xff] %vm555, %v4005
        %4038 = vst.msk [vmem:[#allocation3 + $0xf8] sm:$0xff] %vm555, %v4006
        %4039 = vst.msk [vmem:[#allocation3 + $0x110] sm:$0xff] %vm555, %v4007
        %4040 = vst.msk [vmem:[#allocation3 + $0x128] sm:$0xff] %vm555, %v4008
        %4041 = vst.msk [vmem:[#allocation3 + $0x140] sm:$0xff] %vm555, %v4009
        %4042 = vst.msk [vmem:[#allocation3 + $0x158] sm:$0xff] %vm555, %v4010
        %4043 = vst.msk [vmem:[#allocation3 + $0x170] sm:$0xff] %vm555, %v4011
        %4044 = vst.msk [vmem:[#allocation3 + $0x188] sm:$0xff] %vm555, %v4012
        %4045 = vst.msk [vmem:[#allocation3 + $0x1a0] sm:$0xff] %vm555, %v4013
        %4046 = vst.msk [vmem:[#allocation3 + $0x1b8] sm:$0xff] %vm555, %v4014
        %4047 = vst.msk [vmem:[#allocation3 + $0x1d0] sm:$0xff] %vm555, %v4015
        %4048 = vst.msk [vmem:[#allocation3 + $0x1e8] sm:$0xff] %vm555, %v4016
        %4049 = vst.msk [vmem:[#allocation3 + $0x200] sm:$0xff] %vm555, %v4017
        %4050 = vst.msk [vmem:[#allocation3 + $0x218] sm:$0xff] %vm555, %v4018
        %4051 = vst.msk [vmem:[#allocation3 + $0x230] sm:$0xff] %vm555, %v4019
        %4052 = vst.msk [vmem:[#allocation3 + $0x248] sm:$0xff] %vm555, %v4020
        %4053 = vst.msk [vmem:[#allocation3 + $0x260] sm:$0xff] %vm555, %v4021
        %4054 = vst.msk [vmem:[#allocation3 + $0x278] sm:$0xff] %vm555, %v4022
        %4055 = vst.msk [vmem:[#allocation3 + $0x290] sm:$0xff] %vm555, %v4023
        %4056 = vst.msk [vmem:[#allocation3 + $0x2a8] sm:$0xff] %vm555, %v4024
        %4057 = vst.msk [vmem:[#allocation3 + $0x2c0] sm:$0xff] %vm555, %v4025
        %4058 = vst.msk [vmem:[#allocation3 + $0x2d8] sm:$0xff] %vm555, %v4026
        %4059 = vst.msk [vmem:[#allocation3 + $0x2f0] sm:$0xff] %vm555, %v4027
        %v4060 = vld [vmem:[%s810 + $0x1e] sm:$0xff]
        %v4061 = vld [vmem:[%s810 + $0x26] sm:$0xff]
        %v4062 = vld [vmem:[%s810 + $0x56] sm:$0xff]
        %v4063 = vld [vmem:[%s810 + $0x5e] sm:$0xff]
        %v4064 = vld [vmem:[%s810 + $0x8e] sm:$0xff]
        %v4065 = vld [vmem:[%s810 + $0x96] sm:$0xff]
        %v4066 = vld [vmem:[%s810 + $0xc6] sm:$0xff]
        %v4067 = vld [vmem:[%s810 + $0xce] sm:$0xff]
        %v4068 = vld [vmem:[%s810 + $0xfe] sm:$0xff]
        %v4069 = vld [vmem:[%s810 + $0x106] sm:$0xff]
        %v4070 = vld [vmem:[%s810 + $0x136] sm:$0xff]
        %v4071 = vld [vmem:[%s810 + $0x13e] sm:$0xff]
        %v4072 = vld [vmem:[%s810 + $0x16e] sm:$0xff]
        %v4073 = vld [vmem:[%s810 + $0x176] sm:$0xff]
        %v4074 = vld [vmem:[%s810 + $0x1a6] sm:$0xff]
        %v4075 = vld [vmem:[%s810 + $0x1ae] sm:$0xff]
        %v4076 = vld [vmem:[%s810 + $0x1de] sm:$0xff]
        %v4077 = vld [vmem:[%s810 + $0x1e6] sm:$0xff]
        %v4078 = vld [vmem:[%s810 + $0x216] sm:$0xff]
        %v4079 = vld [vmem:[%s810 + $0x21e] sm:$0xff]
        %v4080 = vld [vmem:[%s810 + $0x24e] sm:$0xff]
        %v4081 = vld [vmem:[%s810 + $0x256] sm:$0xff]
        %v4082 = vld [vmem:[%s810 + $0x286] sm:$0xff]
        %v4083 = vld [vmem:[%s810 + $0x28e] sm:$0xff]
        %v4084 = vld [vmem:[%s810 + $0x2be] sm:$0xff]
        %v4085 = vld [vmem:[%s810 + $0x2c6] sm:$0xff]
        %v4086 = vld [vmem:[%s810 + $0x2f6] sm:$0xff]
        %v4087 = vld [vmem:[%s810 + $0x2fe] sm:$0xff]
        %v4088 = vld [vmem:[%s810 + $0x32e] sm:$0xff]
        %v4089 = vld [vmem:[%s810 + $0x336] sm:$0xff]
        %v4090 = vld [vmem:[%s810 + $0x366] sm:$0xff]
        %v4091 = vld [vmem:[%s810 + $0x36e] sm:$0xff]
        %4124 = vrot.lane.b32.xlu0 %v4060, 32
        %v4125 = vpop.permute.xlu0 %4124
        %4126 = vrot.lane.b32.xlu0 %v4061, 32
        %v4127 = vpop.permute.xlu0 %4126
        %4128 = vrot.lane.b32.xlu0 %v4062, 32
        %v4129 = vpop.permute.xlu0 %4128
        %4130 = vrot.lane.b32.xlu0 %v4063, 32
        %v4131 = vpop.permute.xlu0 %4130
        %4132 = vrot.lane.b32.xlu0 %v4064, 32
        %v4133 = vpop.permute.xlu0 %4132
        %4134 = vrot.lane.b32.xlu0 %v4065, 32
        %v4135 = vpop.permute.xlu0 %4134
        %4136 = vrot.lane.b32.xlu0 %v4066, 32
        %v4137 = vpop.permute.xlu0 %4136
        %4138 = vrot.lane.b32.xlu0 %v4067, 32
        %v4139 = vpop.permute.xlu0 %4138
        %4140 = vrot.lane.b32.xlu0 %v4068, 32
        %v4141 = vpop.permute.xlu0 %4140
        %4142 = vrot.lane.b32.xlu0 %v4069, 32
        %v4143 = vpop.permute.xlu0 %4142
        %4144 = vrot.lane.b32.xlu0 %v4070, 32
        %v4145 = vpop.permute.xlu0 %4144
        %4146 = vrot.lane.b32.xlu0 %v4071, 32
        %v4147 = vpop.permute.xlu0 %4146
        %4148 = vrot.lane.b32.xlu0 %v4072, 32
        %v4149 = vpop.permute.xlu0 %4148
        %4150 = vrot.lane.b32.xlu0 %v4073, 32
        %v4151 = vpop.permute.xlu0 %4150
        %4152 = vrot.lane.b32.xlu0 %v4074, 32
        %v4153 = vpop.permute.xlu0 %4152
        %4154 = vrot.lane.b32.xlu0 %v4075, 32
        %v4155 = vpop.permute.xlu0 %4154
        %4156 = vrot.lane.b32.xlu0 %v4076, 32
        %v4157 = vpop.permute.xlu0 %4156
        %4158 = vrot.lane.b32.xlu0 %v4077, 32
        %v4159 = vpop.permute.xlu0 %4158
        %4160 = vrot.lane.b32.xlu0 %v4078, 32
        %v4161 = vpop.permute.xlu0 %4160
        %4162 = vrot.lane.b32.xlu0 %v4079, 32
        %v4163 = vpop.permute.xlu0 %4162
        %4164 = vrot.lane.b32.xlu0 %v4080, 32
        %v4165 = vpop.permute.xlu0 %4164
        %4166 = vrot.lane.b32.xlu0 %v4081, 32
        %v4167 = vpop.permute.xlu0 %4166
        %4168 = vrot.lane.b32.xlu0 %v4082, 32
        %v4169 = vpop.permute.xlu0 %4168
        %4170 = vrot.lane.b32.xlu0 %v4083, 32
        %v4171 = vpop.permute.xlu0 %4170
        %4172 = vrot.lane.b32.xlu0 %v4084, 32
        %v4173 = vpop.permute.xlu0 %4172
        %4174 = vrot.lane.b32.xlu0 %v4085, 32
        %v4175 = vpop.permute.xlu0 %4174
        %4176 = vrot.lane.b32.xlu0 %v4086, 32
        %v4177 = vpop.permute.xlu0 %4176
        %4178 = vrot.lane.b32.xlu0 %v4087, 32
        %v4179 = vpop.permute.xlu0 %4178
        %4180 = vrot.lane.b32.xlu0 %v4088, 32
        %v4181 = vpop.permute.xlu0 %4180
        %4182 = vrot.lane.b32.xlu0 %v4089, 32
        %v4183 = vpop.permute.xlu0 %4182
        %4184 = vrot.lane.b32.xlu0 %v4090, 32
        %v4185 = vpop.permute.xlu0 %4184
        %4186 = vrot.lane.b32.xlu0 %v4091, 32
        %v4187 = vpop.permute.xlu0 %4186
        %4220 = vst.msk [vmem:[#allocation3 + $0x8] sm:$0xff] %vm1524, %v4125
        %4221 = vst.msk [vmem:[#allocation3 + $0x20] sm:$0xff] %vm1524, %v4127
        %4222 = vst.msk [vmem:[#allocation3 + $0x38] sm:$0xff] %vm1524, %v4129
        %4223 = vst.msk [vmem:[#allocation3 + $0x50] sm:$0xff] %vm1524, %v4131
        %4224 = vst.msk [vmem:[#allocation3 + $0x68] sm:$0xff] %vm1524, %v4133
        %4225 = vst.msk [vmem:[#allocation3 + $0x80] sm:$0xff] %vm1524, %v4135
        %4226 = vst.msk [vmem:[#allocation3 + $0x98] sm:$0xff] %vm1524, %v4137
        %4227 = vst.msk [vmem:[#allocation3 + $0xb0] sm:$0xff] %vm1524, %v4139
        %4228 = vst.msk [vmem:[#allocation3 + $0xc8] sm:$0xff] %vm1524, %v4141
        %4229 = vst.msk [vmem:[#allocation3 + $0xe0] sm:$0xff] %vm1524, %v4143
        %4230 = vst.msk [vmem:[#allocation3 + $0xf8] sm:$0xff] %vm1524, %v4145
        %4231 = vst.msk [vmem:[#allocation3 + $0x110] sm:$0xff] %vm1524, %v4147
        %4232 = vst.msk [vmem:[#allocation3 + $0x128] sm:$0xff] %vm1524, %v4149
        %4233 = vst.msk [vmem:[#allocation3 + $0x140] sm:$0xff] %vm1524, %v4151
        %4234 = vst.msk [vmem:[#allocation3 + $0x158] sm:$0xff] %vm1524, %v4153
        %4235 = vst.msk [vmem:[#allocation3 + $0x170] sm:$0xff] %vm1524, %v4155
        %4236 = vst.msk [vmem:[#allocation3 + $0x188] sm:$0xff] %vm1524, %v4157
        %4237 = vst.msk [vmem:[#allocation3 + $0x1a0] sm:$0xff] %vm1524, %v4159
        %4238 = vst.msk [vmem:[#allocation3 + $0x1b8] sm:$0xff] %vm1524, %v4161
        %4239 = vst.msk [vmem:[#allocation3 + $0x1d0] sm:$0xff] %vm1524, %v4163
        %4240 = vst.msk [vmem:[#allocation3 + $0x1e8] sm:$0xff] %vm1524, %v4165
        %4241 = vst.msk [vmem:[#allocation3 + $0x200] sm:$0xff] %vm1524, %v4167
        %4242 = vst.msk [vmem:[#allocation3 + $0x218] sm:$0xff] %vm1524, %v4169
        %4243 = vst.msk [vmem:[#allocation3 + $0x230] sm:$0xff] %vm1524, %v4171
        %4244 = vst.msk [vmem:[#allocation3 + $0x248] sm:$0xff] %vm1524, %v4173
        %4245 = vst.msk [vmem:[#allocation3 + $0x260] sm:$0xff] %vm1524, %v4175
        %4246 = vst.msk [vmem:[#allocation3 + $0x278] sm:$0xff] %vm1524, %v4177
        %4247 = vst.msk [vmem:[#allocation3 + $0x290] sm:$0xff] %vm1524, %v4179
        %4248 = vst.msk [vmem:[#allocation3 + $0x2a8] sm:$0xff] %vm1524, %v4181
        %4249 = vst.msk [vmem:[#allocation3 + $0x2c0] sm:$0xff] %vm1524, %v4183
        %4250 = vst.msk [vmem:[#allocation3 + $0x2d8] sm:$0xff] %vm1524, %v4185
        %4251 = vst.msk [vmem:[#allocation3 + $0x2f0] sm:$0xff] %vm1524, %v4187
        %s4252 = scalar_lea.vmem [#allocation2], 1680
        %v4253 = vld [vmem:[%s4252 + $0x6] sm:$0xff]
        %v4254 = vld [vmem:[%s4252 + $0xe] sm:$0xff]
        %v4255 = vld [vmem:[%s4252 + $0x3e] sm:$0xff]
        %v4256 = vld [vmem:[%s4252 + $0x46] sm:$0xff]
        %v4257 = vld [vmem:[%s4252 + $0x76] sm:$0xff]
        %v4258 = vld [vmem:[%s4252 + $0x7e] sm:$0xff]
        %v4259 = vld [vmem:[%s4252 + $0xae] sm:$0xff]
        %v4260 = vld [vmem:[%s4252 + $0xb6] sm:$0xff]
        %v4261 = vld [vmem:[%s4252 + $0xe6] sm:$0xff]
        %v4262 = vld [vmem:[%s4252 + $0xee] sm:$0xff]
        %v4263 = vld [vmem:[%s4252 + $0x11e] sm:$0xff]
        %v4264 = vld [vmem:[%s4252 + $0x126] sm:$0xff]
        %v4265 = vld [vmem:[%s4252 + $0x156] sm:$0xff]
        %v4266 = vld [vmem:[%s4252 + $0x15e] sm:$0xff]
        %v4267 = vld [vmem:[%s4252 + $0x18e] sm:$0xff]
        %v4268 = vld [vmem:[%s4252 + $0x196] sm:$0xff]
        %v4269 = vld [vmem:[%s4252 + $0x1c6] sm:$0xff]
        %v4270 = vld [vmem:[%s4252 + $0x1ce] sm:$0xff]
        %v4271 = vld [vmem:[%s4252 + $0x1fe] sm:$0xff]
        %v4272 = vld [vmem:[%s4252 + $0x206] sm:$0xff]
        %v4273 = vld [vmem:[%s4252 + $0x236] sm:$0xff]
        %v4274 = vld [vmem:[%s4252 + $0x23e] sm:$0xff]
        %v4275 = vld [vmem:[%s4252 + $0x26e] sm:$0xff]
        %v4276 = vld [vmem:[%s4252 + $0x276] sm:$0xff]
        %v4277 = vld [vmem:[%s4252 + $0x2a6] sm:$0xff]
        %v4278 = vld [vmem:[%s4252 + $0x2ae] sm:$0xff]
        %v4279 = vld [vmem:[%s4252 + $0x2de] sm:$0xff]
        %v4280 = vld [vmem:[%s4252 + $0x2e6] sm:$0xff]
        %v4281 = vld [vmem:[%s4252 + $0x316] sm:$0xff]
        %v4282 = vld [vmem:[%s4252 + $0x31e] sm:$0xff]
        %v4283 = vld [vmem:[%s4252 + $0x34e] sm:$0xff]
        %v4284 = vld [vmem:[%s4252 + $0x356] sm:$0xff]
        %4317 = vrot.lane.b32.xlu0 %v4253, 64
        %v4318 = vpop.permute.xlu0 %4317
        %4319 = vrot.lane.b32.xlu0 %v4254, 64
        %v4320 = vpop.permute.xlu0 %4319
        %4321 = vrot.lane.b32.xlu0 %v4255, 64
        %v4322 = vpop.permute.xlu0 %4321
        %4323 = vrot.lane.b32.xlu0 %v4256, 64
        %v4324 = vpop.permute.xlu0 %4323
        %4325 = vrot.lane.b32.xlu0 %v4257, 64
        %v4326 = vpop.permute.xlu0 %4325
        %4327 = vrot.lane.b32.xlu0 %v4258, 64
        %v4328 = vpop.permute.xlu0 %4327
        %4329 = vrot.lane.b32.xlu0 %v4259, 64
        %v4330 = vpop.permute.xlu0 %4329
        %4331 = vrot.lane.b32.xlu0 %v4260, 64
        %v4332 = vpop.permute.xlu0 %4331
        %4333 = vrot.lane.b32.xlu0 %v4261, 64
        %v4334 = vpop.permute.xlu0 %4333
        %4335 = vrot.lane.b32.xlu0 %v4262, 64
        %v4336 = vpop.permute.xlu0 %4335
        %4337 = vrot.lane.b32.xlu0 %v4263, 64
        %v4338 = vpop.permute.xlu0 %4337
        %4339 = vrot.lane.b32.xlu0 %v4264, 64
        %v4340 = vpop.permute.xlu0 %4339
        %4341 = vrot.lane.b32.xlu0 %v4265, 64
        %v4342 = vpop.permute.xlu0 %4341
        %4343 = vrot.lane.b32.xlu0 %v4266, 64
        %v4344 = vpop.permute.xlu0 %4343
        %4345 = vrot.lane.b32.xlu0 %v4267, 64
        %v4346 = vpop.permute.xlu0 %4345
        %4347 = vrot.lane.b32.xlu0 %v4268, 64
        %v4348 = vpop.permute.xlu0 %4347
        %4349 = vrot.lane.b32.xlu0 %v4269, 64
        %v4350 = vpop.permute.xlu0 %4349
        %4351 = vrot.lane.b32.xlu0 %v4270, 64
        %v4352 = vpop.permute.xlu0 %4351
        %4353 = vrot.lane.b32.xlu0 %v4271, 64
        %v4354 = vpop.permute.xlu0 %4353
        %4355 = vrot.lane.b32.xlu0 %v4272, 64
        %v4356 = vpop.permute.xlu0 %4355
        %4357 = vrot.lane.b32.xlu0 %v4273, 64
        %v4358 = vpop.permute.xlu0 %4357
        %4359 = vrot.lane.b32.xlu0 %v4274, 64
        %v4360 = vpop.permute.xlu0 %4359
        %4361 = vrot.lane.b32.xlu0 %v4275, 64
        %v4362 = vpop.permute.xlu0 %4361
        %4363 = vrot.lane.b32.xlu0 %v4276, 64
        %v4364 = vpop.permute.xlu0 %4363
        %4365 = vrot.lane.b32.xlu0 %v4277, 64
        %v4366 = vpop.permute.xlu0 %4365
        %4367 = vrot.lane.b32.xlu0 %v4278, 64
        %v4368 = vpop.permute.xlu0 %4367
        %4369 = vrot.lane.b32.xlu0 %v4279, 64
        %v4370 = vpop.permute.xlu0 %4369
        %4371 = vrot.lane.b32.xlu0 %v4280, 64
        %v4372 = vpop.permute.xlu0 %4371
        %4373 = vrot.lane.b32.xlu0 %v4281, 64
        %v4374 = vpop.permute.xlu0 %4373
        %4375 = vrot.lane.b32.xlu0 %v4282, 64
        %v4376 = vpop.permute.xlu0 %4375
        %4377 = vrot.lane.b32.xlu0 %v4283, 64
        %v4378 = vpop.permute.xlu0 %4377
        %4379 = vrot.lane.b32.xlu0 %v4284, 64
        %v4380 = vpop.permute.xlu0 %4379
        %4413 = vst.msk [vmem:[#allocation3 + $0x8] sm:$0xff] %vm1717, %v4318
        %4414 = vst.msk [vmem:[#allocation3 + $0x20] sm:$0xff] %vm1717, %v4320
        %4415 = vst.msk [vmem:[#allocation3 + $0x38] sm:$0xff] %vm1717, %v4322
        %4416 = vst.msk [vmem:[#allocation3 + $0x50] sm:$0xff] %vm1717, %v4324
        %4417 = vst.msk [vmem:[#allocation3 + $0x68] sm:$0xff] %vm1717, %v4326
        %4418 = vst.msk [vmem:[#allocation3 + $0x80] sm:$0xff] %vm1717, %v4328
        %4419 = vst.msk [vmem:[#allocation3 + $0x98] sm:$0xff] %vm1717, %v4330
        %4420 = vst.msk [vmem:[#allocation3 + $0xb0] sm:$0xff] %vm1717, %v4332
        %4421 = vst.msk [vmem:[#allocation3 + $0xc8] sm:$0xff] %vm1717, %v4334
        %4422 = vst.msk [vmem:[#allocation3 + $0xe0] sm:$0xff] %vm1717, %v4336
        %4423 = vst.msk [vmem:[#allocation3 + $0xf8] sm:$0xff] %vm1717, %v4338
        %4424 = vst.msk [vmem:[#allocation3 + $0x110] sm:$0xff] %vm1717, %v4340
        %4425 = vst.msk [vmem:[#allocation3 + $0x128] sm:$0xff] %vm1717, %v4342
        %4426 = vst.msk [vmem:[#allocation3 + $0x140] sm:$0xff] %vm1717, %v4344
        %4427 = vst.msk [vmem:[#allocation3 + $0x158] sm:$0xff] %vm1717, %v4346
        %4428 = vst.msk [vmem:[#allocation3 + $0x170] sm:$0xff] %vm1717, %v4348
        %4429 = vst.msk [vmem:[#allocation3 + $0x188] sm:$0xff] %vm1717, %v4350
        %4430 = vst.msk [vmem:[#allocation3 + $0x1a0] sm:$0xff] %vm1717, %v4352
        %4431 = vst.msk [vmem:[#allocation3 + $0x1b8] sm:$0xff] %vm1717, %v4354
        %4432 = vst.msk [vmem:[#allocation3 + $0x1d0] sm:$0xff] %vm1717, %v4356
        %4433 = vst.msk [vmem:[#allocation3 + $0x1e8] sm:$0xff] %vm1717, %v4358
        %4434 = vst.msk [vmem:[#allocation3 + $0x200] sm:$0xff] %vm1717, %v4360
        %4435 = vst.msk [vmem:[#allocation3 + $0x218] sm:$0xff] %vm1717, %v4362
        %4436 = vst.msk [vmem:[#allocation3 + $0x230] sm:$0xff] %vm1717, %v4364
        %4437 = vst.msk [vmem:[#allocation3 + $0x248] sm:$0xff] %vm1717, %v4366
        %4438 = vst.msk [vmem:[#allocation3 + $0x260] sm:$0xff] %vm1717, %v4368
        %4439 = vst.msk [vmem:[#allocation3 + $0x278] sm:$0xff] %vm1717, %v4370
        %4440 = vst.msk [vmem:[#allocation3 + $0x290] sm:$0xff] %vm1717, %v4372
        %4441 = vst.msk [vmem:[#allocation3 + $0x2a8] sm:$0xff] %vm1717, %v4374
        %4442 = vst.msk [vmem:[#allocation3 + $0x2c0] sm:$0xff] %vm1717, %v4376
        %4443 = vst.msk [vmem:[#allocation3 + $0x2d8] sm:$0xff] %vm1717, %v4378
        %4444 = vst.msk [vmem:[#allocation3 + $0x2f0] sm:$0xff] %vm1717, %v4380
        %v4445 = vld [vmem:[%s4252 + $0x12] sm:$0xff]
        %v4446 = vld [vmem:[%s4252 + $0x1a] sm:$0xff]
        %v4447 = vld [vmem:[%s4252 + $0x4a] sm:$0xff]
        %v4448 = vld [vmem:[%s4252 + $0x52] sm:$0xff]
        %v4449 = vld [vmem:[%s4252 + $0x82] sm:$0xff]
        %v4450 = vld [vmem:[%s4252 + $0x8a] sm:$0xff]
        %v4451 = vld [vmem:[%s4252 + $0xba] sm:$0xff]
        %v4452 = vld [vmem:[%s4252 + $0xc2] sm:$0xff]
        %v4453 = vld [vmem:[%s4252 + $0xf2] sm:$0xff]
        %v4454 = vld [vmem:[%s4252 + $0xfa] sm:$0xff]
        %v4455 = vld [vmem:[%s4252 + $0x12a] sm:$0xff]
        %v4456 = vld [vmem:[%s4252 + $0x132] sm:$0xff]
        %v4457 = vld [vmem:[%s4252 + $0x162] sm:$0xff]
        %v4458 = vld [vmem:[%s4252 + $0x16a] sm:$0xff]
        %v4459 = vld [vmem:[%s4252 + $0x19a] sm:$0xff]
        %v4460 = vld [vmem:[%s4252 + $0x1a2] sm:$0xff]
        %v4461 = vld [vmem:[%s4252 + $0x1d2] sm:$0xff]
        %v4462 = vld [vmem:[%s4252 + $0x1da] sm:$0xff]
        %v4463 = vld [vmem:[%s4252 + $0x20a] sm:$0xff]
        %v4464 = vld [vmem:[%s4252 + $0x212] sm:$0xff]
        %v4465 = vld [vmem:[%s4252 + $0x242] sm:$0xff]
        %v4466 = vld [vmem:[%s4252 + $0x24a] sm:$0xff]
        %v4467 = vld [vmem:[%s4252 + $0x27a] sm:$0xff]
        %v4468 = vld [vmem:[%s4252 + $0x282] sm:$0xff]
        %v4469 = vld [vmem:[%s4252 + $0x2b2] sm:$0xff]
        %v4470 = vld [vmem:[%s4252 + $0x2ba] sm:$0xff]
        %v4471 = vld [vmem:[%s4252 + $0x2ea] sm:$0xff]
        %v4472 = vld [vmem:[%s4252 + $0x2f2] sm:$0xff]
        %v4473 = vld [vmem:[%s4252 + $0x322] sm:$0xff]
        %v4474 = vld [vmem:[%s4252 + $0x32a] sm:$0xff]
        %v4475 = vld [vmem:[%s4252 + $0x35a] sm:$0xff]
        %v4476 = vld [vmem:[%s4252 + $0x362] sm:$0xff]
        %4509 = vrot.lane.b32.xlu0 %v4445, 96
        %v4510 = vpop.permute.xlu0 %4509
        %4511 = vrot.lane.b32.xlu0 %v4446, 96
        %v4512 = vpop.permute.xlu0 %4511
        %4513 = vrot.lane.b32.xlu0 %v4447, 96
        %v4514 = vpop.permute.xlu0 %4513
        %4515 = vrot.lane.b32.xlu0 %v4448, 96
        %v4516 = vpop.permute.xlu0 %4515
        %4517 = vrot.lane.b32.xlu0 %v4449, 96
        %v4518 = vpop.permute.xlu0 %4517
        %4519 = vrot.lane.b32.xlu0 %v4450, 96
        %v4520 = vpop.permute.xlu0 %4519
        %4521 = vrot.lane.b32.xlu0 %v4451, 96
        %v4522 = vpop.permute.xlu0 %4521
        %4523 = vrot.lane.b32.xlu0 %v4452, 96
        %v4524 = vpop.permute.xlu0 %4523
        %4525 = vrot.lane.b32.xlu0 %v4453, 96
        %v4526 = vpop.permute.xlu0 %4525
        %4527 = vrot.lane.b32.xlu0 %v4454, 96
        %v4528 = vpop.permute.xlu0 %4527
        %4529 = vrot.lane.b32.xlu0 %v4455, 96
        %v4530 = vpop.permute.xlu0 %4529
        %4531 = vrot.lane.b32.xlu0 %v4456, 96
        %v4532 = vpop.permute.xlu0 %4531
        %4533 = vrot.lane.b32.xlu0 %v4457, 96
        %v4534 = vpop.permute.xlu0 %4533
        %4535 = vrot.lane.b32.xlu0 %v4458, 96
        %v4536 = vpop.permute.xlu0 %4535
        %4537 = vrot.lane.b32.xlu0 %v4459, 96
        %v4538 = vpop.permute.xlu0 %4537
        %4539 = vrot.lane.b32.xlu0 %v4460, 96
        %v4540 = vpop.permute.xlu0 %4539
        %4541 = vrot.lane.b32.xlu0 %v4461, 96
        %v4542 = vpop.permute.xlu0 %4541
        %4543 = vrot.lane.b32.xlu0 %v4462, 96
        %v4544 = vpop.permute.xlu0 %4543
        %4545 = vrot.lane.b32.xlu0 %v4463, 96
        %v4546 = vpop.permute.xlu0 %4545
        %4547 = vrot.lane.b32.xlu0 %v4464, 96
        %v4548 = vpop.permute.xlu0 %4547
        %4549 = vrot.lane.b32.xlu0 %v4465, 96
        %v4550 = vpop.permute.xlu0 %4549
        %4551 = vrot.lane.b32.xlu0 %v4466, 96
        %v4552 = vpop.permute.xlu0 %4551
        %4553 = vrot.lane.b32.xlu0 %v4467, 96
        %v4554 = vpop.permute.xlu0 %4553
        %4555 = vrot.lane.b32.xlu0 %v4468, 96
        %v4556 = vpop.permute.xlu0 %4555
        %4557 = vrot.lane.b32.xlu0 %v4469, 96
        %v4558 = vpop.permute.xlu0 %4557
        %4559 = vrot.lane.b32.xlu0 %v4470, 96
        %v4560 = vpop.permute.xlu0 %4559
        %4561 = vrot.lane.b32.xlu0 %v4471, 96
        %v4562 = vpop.permute.xlu0 %4561
        %4563 = vrot.lane.b32.xlu0 %v4472, 96
        %v4564 = vpop.permute.xlu0 %4563
        %4565 = vrot.lane.b32.xlu0 %v4473, 96
        %v4566 = vpop.permute.xlu0 %4565
        %4567 = vrot.lane.b32.xlu0 %v4474, 96
        %v4568 = vpop.permute.xlu0 %4567
        %4569 = vrot.lane.b32.xlu0 %v4475, 96
        %v4570 = vpop.permute.xlu0 %4569
        %4571 = vrot.lane.b32.xlu0 %v4476, 96
        %v4572 = vpop.permute.xlu0 %4571
        %4605 = vst.msk [vmem:[#allocation3 + $0x8] sm:$0xff] %vm1910, %v4510
        %4606 = vst.msk [vmem:[#allocation3 + $0x20] sm:$0xff] %vm1910, %v4512
        %4607 = vst.msk [vmem:[#allocation3 + $0x38] sm:$0xff] %vm1910, %v4514
        %4608 = vst.msk [vmem:[#allocation3 + $0x50] sm:$0xff] %vm1910, %v4516
        %4609 = vst.msk [vmem:[#allocation3 + $0x68] sm:$0xff] %vm1910, %v4518
        %4610 = vst.msk [vmem:[#allocation3 + $0x80] sm:$0xff] %vm1910, %v4520
        %4611 = vst.msk [vmem:[#allocation3 + $0x98] sm:$0xff] %vm1910, %v4522
        %4612 = vst.msk [vmem:[#allocation3 + $0xb0] sm:$0xff] %vm1910, %v4524
        %4613 = vst.msk [vmem:[#allocation3 + $0xc8] sm:$0xff] %vm1910, %v4526
        %4614 = vst.msk [vmem:[#allocation3 + $0xe0] sm:$0xff] %vm1910, %v4528
        %4615 = vst.msk [vmem:[#allocation3 + $0xf8] sm:$0xff] %vm1910, %v4530
        %4616 = vst.msk [vmem:[#allocation3 + $0x110] sm:$0xff] %vm1910, %v4532
        %4617 = vst.msk [vmem:[#allocation3 + $0x128] sm:$0xff] %vm1910, %v4534
        %4618 = vst.msk [vmem:[#allocation3 + $0x140] sm:$0xff] %vm1910, %v4536
        %4619 = vst.msk [vmem:[#allocation3 + $0x158] sm:$0xff] %vm1910, %v4538
        %4620 = vst.msk [vmem:[#allocation3 + $0x170] sm:$0xff] %vm1910, %v4540
        %4621 = vst.msk [vmem:[#allocation3 + $0x188] sm:$0xff] %vm1910, %v4542
        %4622 = vst.msk [vmem:[#allocation3 + $0x1a0] sm:$0xff] %vm1910, %v4544
        %4623 = vst.msk [vmem:[#allocation3 + $0x1b8] sm:$0xff] %vm1910, %v4546
        %4624 = vst.msk [vmem:[#allocation3 + $0x1d0] sm:$0xff] %vm1910, %v4548
        %4625 = vst.msk [vmem:[#allocation3 + $0x1e8] sm:$0xff] %vm1910, %v4550
        %4626 = vst.msk [vmem:[#allocation3 + $0x200] sm:$0xff] %vm1910, %v4552
        %4627 = vst.msk [vmem:[#allocation3 + $0x218] sm:$0xff] %vm1910, %v4554
        %4628 = vst.msk [vmem:[#allocation3 + $0x230] sm:$0xff] %vm1910, %v4556
        %4629 = vst.msk [vmem:[#allocation3 + $0x248] sm:$0xff] %vm1910, %v4558
        %4630 = vst.msk [vmem:[#allocation3 + $0x260] sm:$0xff] %vm1910, %v4560
        %4631 = vst.msk [vmem:[#allocation3 + $0x278] sm:$0xff] %vm1910, %v4562
        %4632 = vst.msk [vmem:[#allocation3 + $0x290] sm:$0xff] %vm1910, %v4564
        %4633 = vst.msk [vmem:[#allocation3 + $0x2a8] sm:$0xff] %vm1910, %v4566
        %4634 = vst.msk [vmem:[#allocation3 + $0x2c0] sm:$0xff] %vm1910, %v4568
        %4635 = vst.msk [vmem:[#allocation3 + $0x2d8] sm:$0xff] %vm1910, %v4570
        %4636 = vst.msk [vmem:[#allocation3 + $0x2f0] sm:$0xff] %vm1910, %v4572
        %v4637 = vld [vmem:[%s4252 + $0x1e] sm:$0xff]
        %v4638 = vld [vmem:[%s4252 + $0x26] sm:$0xff]
        %v4639 = vld [vmem:[%s4252 + $0x56] sm:$0xff]
        %v4640 = vld [vmem:[%s4252 + $0x5e] sm:$0xff]
        %v4641 = vld [vmem:[%s4252 + $0x8e] sm:$0xff]
        %v4642 = vld [vmem:[%s4252 + $0x96] sm:$0xff]
        %v4643 = vld [vmem:[%s4252 + $0xc6] sm:$0xff]
        %v4644 = vld [vmem:[%s4252 + $0xce] sm:$0xff]
        %v4645 = vld [vmem:[%s4252 + $0xfe] sm:$0xff]
        %v4646 = vld [vmem:[%s4252 + $0x106] sm:$0xff]
        %v4647 = vld [vmem:[%s4252 + $0x136] sm:$0xff]
        %v4648 = vld [vmem:[%s4252 + $0x13e] sm:$0xff]
        %v4649 = vld [vmem:[%s4252 + $0x16e] sm:$0xff]
        %v4650 = vld [vmem:[%s4252 + $0x176] sm:$0xff]
        %v4651 = vld [vmem:[%s4252 + $0x1a6] sm:$0xff]
        %v4652 = vld [vmem:[%s4252 + $0x1ae] sm:$0xff]
        %v4653 = vld [vmem:[%s4252 + $0x1de] sm:$0xff]
        %v4654 = vld [vmem:[%s4252 + $0x1e6] sm:$0xff]
        %v4655 = vld [vmem:[%s4252 + $0x216] sm:$0xff]
        %v4656 = vld [vmem:[%s4252 + $0x21e] sm:$0xff]
        %v4657 = vld [vmem:[%s4252 + $0x24e] sm:$0xff]
        %v4658 = vld [vmem:[%s4252 + $0x256] sm:$0xff]
        %v4659 = vld [vmem:[%s4252 + $0x286] sm:$0xff]
        %v4660 = vld [vmem:[%s4252 + $0x28e] sm:$0xff]
        %v4661 = vld [vmem:[%s4252 + $0x2be] sm:$0xff]
        %v4662 = vld [vmem:[%s4252 + $0x2c6] sm:$0xff]
        %v4663 = vld [vmem:[%s4252 + $0x2f6] sm:$0xff]
        %v4664 = vld [vmem:[%s4252 + $0x2fe] sm:$0xff]
        %v4665 = vld [vmem:[%s4252 + $0x32e] sm:$0xff]
        %v4666 = vld [vmem:[%s4252 + $0x336] sm:$0xff]
        %v4667 = vld [vmem:[%s4252 + $0x366] sm:$0xff]
        %v4668 = vld [vmem:[%s4252 + $0x36e] sm:$0xff]
        %4669 = vst.msk [vmem:[#allocation3 + $0x10] sm:$0xff] %vm555, %v4637
        %4670 = vst.msk [vmem:[#allocation3 + $0x28] sm:$0xff] %vm555, %v4638
        %4671 = vst.msk [vmem:[#allocation3 + $0x40] sm:$0xff] %vm555, %v4639
        %4672 = vst.msk [vmem:[#allocation3 + $0x58] sm:$0xff] %vm555, %v4640
        %4673 = vst.msk [vmem:[#allocation3 + $0x70] sm:$0xff] %vm555, %v4641
        %4674 = vst.msk [vmem:[#allocation3 + $0x88] sm:$0xff] %vm555, %v4642
        %4675 = vst.msk [vmem:[#allocation3 + $0xa0] sm:$0xff] %vm555, %v4643
        %4676 = vst.msk [vmem:[#allocation3 + $0xb8] sm:$0xff] %vm555, %v4644
        %4677 = vst.msk [vmem:[#allocation3 + $0xd0] sm:$0xff] %vm555, %v4645
        %4678 = vst.msk [vmem:[#allocation3 + $0xe8] sm:$0xff] %vm555, %v4646
        %4679 = vst.msk [vmem:[#allocation3 + $0x100] sm:$0xff] %vm555, %v4647
        %4680 = vst.msk [vmem:[#allocation3 + $0x118] sm:$0xff] %vm555, %v4648
        %4681 = vst.msk [vmem:[#allocation3 + $0x130] sm:$0xff] %vm555, %v4649
        %4682 = vst.msk [vmem:[#allocation3 + $0x148] sm:$0xff] %vm555, %v4650
        %4683 = vst.msk [vmem:[#allocation3 + $0x160] sm:$0xff] %vm555, %v4651
        %4684 = vst.msk [vmem:[#allocation3 + $0x178] sm:$0xff] %vm555, %v4652
        %4685 = vst.msk [vmem:[#allocation3 + $0x190] sm:$0xff] %vm555, %v4653
        %4686 = vst.msk [vmem:[#allocation3 + $0x1a8] sm:$0xff] %vm555, %v4654
        %4687 = vst.msk [vmem:[#allocation3 + $0x1c0] sm:$0xff] %vm555, %v4655
        %4688 = vst.msk [vmem:[#allocation3 + $0x1d8] sm:$0xff] %vm555, %v4656
        %4689 = vst.msk [vmem:[#allocation3 + $0x1f0] sm:$0xff] %vm555, %v4657
        %4690 = vst.msk [vmem:[#allocation3 + $0x208] sm:$0xff] %vm555, %v4658
        %4691 = vst.msk [vmem:[#allocation3 + $0x220] sm:$0xff] %vm555, %v4659
        %4692 = vst.msk [vmem:[#allocation3 + $0x238] sm:$0xff] %vm555, %v4660
        %4693 = vst.msk [vmem:[#allocation3 + $0x250] sm:$0xff] %vm555, %v4661
        %4694 = vst.msk [vmem:[#allocation3 + $0x268] sm:$0xff] %vm555, %v4662
        %4695 = vst.msk [vmem:[#allocation3 + $0x280] sm:$0xff] %vm555, %v4663
        %4696 = vst.msk [vmem:[#allocation3 + $0x298] sm:$0xff] %vm555, %v4664
        %4697 = vst.msk [vmem:[#allocation3 + $0x2b0] sm:$0xff] %vm555, %v4665
        %4698 = vst.msk [vmem:[#allocation3 + $0x2c8] sm:$0xff] %vm555, %v4666
        %4699 = vst.msk [vmem:[#allocation3 + $0x2e0] sm:$0xff] %vm555, %v4667
        %4700 = vst.msk [vmem:[#allocation3 + $0x2f8] sm:$0xff] %vm555, %v4668
        %v4701 = vld [vmem:[#allocation3] sm:$0xff]
        %v4702 = vld [vmem:[#allocation3 + $0x8] sm:$0xff]
        %v4703 = vld [vmem:[#allocation3 + $0x10] sm:$0xff]
        %v4704 = vld [vmem:[#allocation3 + $0x18] sm:$0xff]
        %v4705 = vld [vmem:[#allocation3 + $0x20] sm:$0xff]
        %v4706 = vld [vmem:[#allocation3 + $0x28] sm:$0xff]
        %v4707 = vld [vmem:[#allocation3 + $0x30] sm:$0xff]
        %v4708 = vld [vmem:[#allocation3 + $0x38] sm:$0xff]
        %v4709 = vld [vmem:[#allocation3 + $0x40] sm:$0xff]
        %v4710 = vld [vmem:[#allocation3 + $0x48] sm:$0xff]
        %v4711 = vld [vmem:[#allocation3 + $0x50] sm:$0xff]
        %v4712 = vld [vmem:[#allocation3 + $0x58] sm:$0xff]
        %v4713 = vld [vmem:[#allocation3 + $0x60] sm:$0xff]
        %v4714 = vld [vmem:[#allocation3 + $0x68] sm:$0xff]
        %v4715 = vld [vmem:[#allocation3 + $0x70] sm:$0xff]
        %v4716 = vld [vmem:[#allocation3 + $0x78] sm:$0xff]
        %v4717 = vld [vmem:[#allocation3 + $0x80] sm:$0xff]
        %v4718 = vld [vmem:[#allocation3 + $0x88] sm:$0xff]
        %v4719 = vld [vmem:[#allocation3 + $0x90] sm:$0xff]
        %v4720 = vld [vmem:[#allocation3 + $0x98] sm:$0xff]
        %v4721 = vld [vmem:[#allocation3 + $0xa0] sm:$0xff]
        %v4722 = vld [vmem:[#allocation3 + $0xa8] sm:$0xff]
        %v4723 = vld [vmem:[#allocation3 + $0xb0] sm:$0xff]
        %v4724 = vld [vmem:[#allocation3 + $0xb8] sm:$0xff]
        %v4725 = vld [vmem:[#allocation3 + $0xc0] sm:$0xff]
        %v4726 = vld [vmem:[#allocation3 + $0xc8] sm:$0xff]
        %v4727 = vld [vmem:[#allocation3 + $0xd0] sm:$0xff]
        %v4728 = vld [vmem:[#allocation3 + $0xd8] sm:$0xff]
        %v4729 = vld [vmem:[#allocation3 + $0xe0] sm:$0xff]
        %v4730 = vld [vmem:[#allocation3 + $0xe8] sm:$0xff]
        %v4731 = vld [vmem:[#allocation3 + $0xf0] sm:$0xff]
        %v4732 = vld [vmem:[#allocation3 + $0xf8] sm:$0xff]
        %v4733 = vld [vmem:[#allocation3 + $0x100] sm:$0xff]
        %v4734 = vld [vmem:[#allocation3 + $0x108] sm:$0xff]
        %v4735 = vld [vmem:[#allocation3 + $0x110] sm:$0xff]
        %v4736 = vld [vmem:[#allocation3 + $0x118] sm:$0xff]
        %v4737 = vld [vmem:[#allocation3 + $0x120] sm:$0xff]
        %v4738 = vld [vmem:[#allocation3 + $0x128] sm:$0xff]
        %v4739 = vld [vmem:[#allocation3 + $0x130] sm:$0xff]
        %v4740 = vld [vmem:[#allocation3 + $0x138] sm:$0xff]
        %v4741 = vld [vmem:[#allocation3 + $0x140] sm:$0xff]
        %v4742 = vld [vmem:[#allocation3 + $0x148] sm:$0xff]
        %v4743 = vld [vmem:[#allocation3 + $0x150] sm:$0xff]
        %v4744 = vld [vmem:[#allocation3 + $0x158] sm:$0xff]
        %v4745 = vld [vmem:[#allocation3 + $0x160] sm:$0xff]
        %v4746 = vld [vmem:[#allocation3 + $0x168] sm:$0xff]
        %v4747 = vld [vmem:[#allocation3 + $0x170] sm:$0xff]
        %v4748 = vld [vmem:[#allocation3 + $0x178] sm:$0xff]
        %v4749 = vld [vmem:[#allocation3 + $0x180] sm:$0xff]
        %v4750 = vld [vmem:[#allocation3 + $0x188] sm:$0xff]
        %v4751 = vld [vmem:[#allocation3 + $0x190] sm:$0xff]
        %v4752 = vld [vmem:[#allocation3 + $0x198] sm:$0xff]
        %v4753 = vld [vmem:[#allocation3 + $0x1a0] sm:$0xff]
        %v4754 = vld [vmem:[#allocation3 + $0x1a8] sm:$0xff]
        %v4755 = vld [vmem:[#allocation3 + $0x1b0] sm:$0xff]
        %v4756 = vld [vmem:[#allocation3 + $0x1b8] sm:$0xff]
        %v4757 = vld [vmem:[#allocation3 + $0x1c0] sm:$0xff]
        %v4758 = vld [vmem:[#allocation3 + $0x1c8] sm:$0xff]
        %v4759 = vld [vmem:[#allocation3 + $0x1d0] sm:$0xff]
        %v4760 = vld [vmem:[#allocation3 + $0x1d8] sm:$0xff]
        %v4761 = vld [vmem:[#allocation3 + $0x1e0] sm:$0xff]
        %v4762 = vld [vmem:[#allocation3 + $0x1e8] sm:$0xff]
        %v4763 = vld [vmem:[#allocation3 + $0x1f0] sm:$0xff]
        %v4764 = vld [vmem:[#allocation3 + $0x1f8] sm:$0xff]
        %v4765 = vld [vmem:[#allocation3 + $0x200] sm:$0xff]
        %v4766 = vld [vmem:[#allocation3 + $0x208] sm:$0xff]
        %v4767 = vld [vmem:[#allocation3 + $0x210] sm:$0xff]
        %v4768 = vld [vmem:[#allocation3 + $0x218] sm:$0xff]
        %v4769 = vld [vmem:[#allocation3 + $0x220] sm:$0xff]
        %v4770 = vld [vmem:[#allocation3 + $0x228] sm:$0xff]
        %v4771 = vld [vmem:[#allocation3 + $0x230] sm:$0xff]
        %v4772 = vld [vmem:[#allocation3 + $0x238] sm:$0xff]
        %v4773 = vld [vmem:[#allocation3 + $0x240] sm:$0xff]
        %v4774 = vld [vmem:[#allocation3 + $0x248] sm:$0xff]
        %v4775 = vld [vmem:[#allocation3 + $0x250] sm:$0xff]
        %v4776 = vld [vmem:[#allocation3 + $0x258] sm:$0xff]
        %v4777 = vld [vmem:[#allocation3 + $0x260] sm:$0xff]
        %v4778 = vld [vmem:[#allocation3 + $0x268] sm:$0xff]
        %v4779 = vld [vmem:[#allocation3 + $0x270] sm:$0xff]
        %v4780 = vld [vmem:[#allocation3 + $0x278] sm:$0xff]
        %v4781 = vld [vmem:[#allocation3 + $0x280] sm:$0xff]
        %v4782 = vld [vmem:[#allocation3 + $0x288] sm:$0xff]
        %v4783 = vld [vmem:[#allocation3 + $0x290] sm:$0xff]
        %v4784 = vld [vmem:[#allocation3 + $0x298] sm:$0xff]
        %v4785 = vld [vmem:[#allocation3 + $0x2a0] sm:$0xff]
        %v4786 = vld [vmem:[#allocation3 + $0x2a8] sm:$0xff]
        %v4787 = vld [vmem:[#allocation3 + $0x2b0] sm:$0xff]
        %v4788 = vld [vmem:[#allocation3 + $0x2b8] sm:$0xff]
        %v4789 = vld [vmem:[#allocation3 + $0x2c0] sm:$0xff]
        %v4790 = vld [vmem:[#allocation3 + $0x2c8] sm:$0xff]
        %v4791 = vld [vmem:[#allocation3 + $0x2d0] sm:$0xff]
        %v4792 = vld [vmem:[#allocation3 + $0x2d8] sm:$0xff]
        %v4793 = vld [vmem:[#allocation3 + $0x2e0] sm:$0xff]
        %v4794 = vld [vmem:[#allocation3 + $0x2e8] sm:$0xff]
        %v4795 = vld [vmem:[#allocation3 + $0x2f0] sm:$0xff]
        %v4796 = vld [vmem:[#allocation3 + $0x2f8] sm:$0xff]
        %s4797 = scalar_lea.vmem [#allocation11], 288
        %v4798 = vld [vmem:[%s4797] sm:$0xff]
        %v4799 = vld [vmem:[%s4797 + $0x8] sm:$0xff]
        %v4800 = vld [vmem:[%s4797 + $0x10] sm:$0xff]
        %v4801 = vld [vmem:[%s4797 + $0x18] sm:$0xff]
        %v4802 = vld [vmem:[%s4797 + $0x20] sm:$0xff]
        %v4803 = vld [vmem:[%s4797 + $0x28] sm:$0xff]
        %v4804 = vld [vmem:[%s4797 + $0x30] sm:$0xff]
        %v4805 = vld [vmem:[%s4797 + $0x38] sm:$0xff]
        %v4806 = vld [vmem:[%s4797 + $0x40] sm:$0xff]
        %v4807 = vld [vmem:[%s4797 + $0x48] sm:$0xff]
        %v4808 = vld [vmem:[%s4797 + $0x50] sm:$0xff]
        %v4809 = vld [vmem:[%s4797 + $0x58] sm:$0xff]
        %v4810 = vld [vmem:[%s4797 + $0x60] sm:$0xff]
        %v4811 = vld [vmem:[%s4797 + $0x68] sm:$0xff]
        %v4812 = vld [vmem:[%s4797 + $0x70] sm:$0xff]
        %v4813 = vld [vmem:[%s4797 + $0x78] sm:$0xff]
        %v4814 = vld [vmem:[%s4797 + $0x80] sm:$0xff]
        %v4815 = vld [vmem:[%s4797 + $0x88] sm:$0xff]
        %v4816 = vld [vmem:[%s4797 + $0x90] sm:$0xff]
        %v4817 = vld [vmem:[%s4797 + $0x98] sm:$0xff]
        %v4818 = vld [vmem:[%s4797 + $0xa0] sm:$0xff]
        %v4819 = vld [vmem:[%s4797 + $0xa8] sm:$0xff]
        %v4820 = vld [vmem:[%s4797 + $0xb0] sm:$0xff]
        %v4821 = vld [vmem:[%s4797 + $0xb8] sm:$0xff]
        %v4822 = vld [vmem:[%s4797 + $0xc0] sm:$0xff]
        %v4823 = vld [vmem:[%s4797 + $0xc8] sm:$0xff]
        %v4824 = vld [vmem:[%s4797 + $0xd0] sm:$0xff]
        %v4825 = vld [vmem:[%s4797 + $0xd8] sm:$0xff]
        %v4826 = vld [vmem:[%s4797 + $0xe0] sm:$0xff]
        %v4827 = vld [vmem:[%s4797 + $0xe8] sm:$0xff]
        %v4828 = vld [vmem:[%s4797 + $0xf0] sm:$0xff]
        %v4829 = vld [vmem:[%s4797 + $0xf8] sm:$0xff]
        %v4830 = vld [vmem:[%s4797 + $0x100] sm:$0xff]
        %v4831 = vld [vmem:[%s4797 + $0x108] sm:$0xff]
        %v4832 = vld [vmem:[%s4797 + $0x110] sm:$0xff]
        %v4833 = vld [vmem:[%s4797 + $0x118] sm:$0xff]
        %s4834 = scalar_lea.vmem [#allocation14], 2
        %v4835 = vld [vmem:[%s4834] sm:$0x1]
        %v4837 = vperm.slane %v4835, 0
        %v4840 = vsel %vm555, %v4703, 0
        %v4843 = vsel %vm555, %v4706, 0
        %v4846 = vsel %vm555, %v4709, 0
        %v4849 = vsel %vm555, %v4712, 0
        %v4852 = vsel %vm555, %v4715, 0
        %v4855 = vsel %vm555, %v4718, 0
        %v4858 = vsel %vm555, %v4721, 0
        %v4861 = vsel %vm555, %v4724, 0
        %v4864 = vsel %vm555, %v4727, 0
        %v4867 = vsel %vm555, %v4730, 0
        %v4870 = vsel %vm555, %v4733, 0
        %v4873 = vsel %vm555, %v4736, 0
        %v4876 = vsel %vm555, %v4739, 0
        %v4879 = vsel %vm555, %v4742, 0
        %v4882 = vsel %vm555, %v4745, 0
        %v4885 = vsel %vm555, %v4748, 0
        %v4888 = vsel %vm555, %v4751, 0
        %v4891 = vsel %vm555, %v4754, 0
        %v4894 = vsel %vm555, %v4757, 0
        %v4897 = vsel %vm555, %v4760, 0
        %v4900 = vsel %vm555, %v4763, 0
        %v4903 = vsel %vm555, %v4766, 0
        %v4906 = vsel %vm555, %v4769, 0
        %v4909 = vsel %vm555, %v4772, 0
        %v4912 = vsel %vm555, %v4775, 0
        %v4915 = vsel %vm555, %v4778, 0
        %v4918 = vsel %vm555, %v4781, 0
        %v4921 = vsel %vm555, %v4784, 0
        %v4924 = vsel %vm555, %v4787, 0
        %v4927 = vsel %vm555, %v4790, 0
        %v4930 = vsel %vm555, %v4793, 0
        %v4933 = vsel %vm555, %v4796, 0
        %4935 = vmatpush.msra.mxu0 %v4813
        %4936 = vmatpush.msra.mxu0 %v4812
        %4937 = vmatpush.msra.mxu0 %v4811
        %4938 = vmatpush.msra.mxu0 %v4810
        %4939 = vmatpush.msra.mxu0 %v4809
        %4940 = vmatpush.msra.mxu0 %v4808
        %4941 = vmatpush.msra.mxu0 %v4807
        %4942 = vmatpush.msra.mxu0 %v4806
        %4943 = vmatpush.msra.mxu0 %v4805
        %4944 = vmatpush.msra.mxu0 %v4804
        %4945 = vmatpush.msra.mxu0 %v4803
        %4946 = vmatpush.msra.mxu0 %v4802
        %4947 = vmatpush.msra.mxu0 %v4801
        %4948 = vmatpush.msra.mxu0 %v4800
        %4949 = vmatpush.msra.mxu0 %v4799
        %4950 = vmatpush.msra.mxu0 %v4798
        %4951 = vmatmul.f32.gmra.mxu0 %v4701
        %v4952 = vpop.f32.mrf.mxu0
        %v4953 = vadd.f32 %v4837, %v4952
        %4954 = vmatmul.f32.gmra.mxu0 %v4704
        %v4955 = vpop.f32.mrf.mxu0
        %v4956 = vadd.f32 %v4837, %v4955
        %4957 = vmatmul.f32.gmra.mxu0 %v4707
        %v4958 = vpop.f32.mrf.mxu0
        %v4959 = vadd.f32 %v4837, %v4958
        %4960 = vmatmul.f32.gmra.mxu0 %v4710
        %v4961 = vpop.f32.mrf.mxu0
        %v4962 = vadd.f32 %v4837, %v4961
        %4963 = vmatmul.f32.gmra.mxu0 %v4713
        %v4964 = vpop.f32.mrf.mxu0
        %v4965 = vadd.f32 %v4837, %v4964
        %4966 = vmatmul.f32.gmra.mxu0 %v4716
        %v4967 = vpop.f32.mrf.mxu0
        %v4968 = vadd.f32 %v4837, %v4967
        %4969 = vmatmul.f32.gmra.mxu0 %v4719
        %v4970 = vpop.f32.mrf.mxu0
        %v4971 = vadd.f32 %v4837, %v4970
        %4972 = vmatmul.f32.gmra.mxu0 %v4722
        %v4973 = vpop.f32.mrf.mxu0
        %v4974 = vadd.f32 %v4837, %v4973
        %4975 = vmatmul.f32.gmra.mxu0 %v4725
        %v4976 = vpop.f32.mrf.mxu0
        %v4977 = vadd.f32 %v4837, %v4976
        %4978 = vmatmul.f32.gmra.mxu0 %v4728
        %v4979 = vpop.f32.mrf.mxu0
        %v4980 = vadd.f32 %v4837, %v4979
        %4981 = vmatmul.f32.gmra.mxu0 %v4731
        %v4982 = vpop.f32.mrf.mxu0
        %v4983 = vadd.f32 %v4837, %v4982
        %4984 = vmatmul.f32.gmra.mxu0 %v4734
        %v4985 = vpop.f32.mrf.mxu0
        %v4986 = vadd.f32 %v4837, %v4985
        %4987 = vmatmul.f32.gmra.mxu0 %v4737
        %v4988 = vpop.f32.mrf.mxu0
        %v4989 = vadd.f32 %v4837, %v4988
        %4990 = vmatmul.f32.gmra.mxu0 %v4740
        %v4991 = vpop.f32.mrf.mxu0
        %v4992 = vadd.f32 %v4837, %v4991
        %4993 = vmatmul.f32.gmra.mxu0 %v4743
        %v4994 = vpop.f32.mrf.mxu0
        %v4995 = vadd.f32 %v4837, %v4994
        %4996 = vmatmul.f32.gmra.mxu0 %v4746
        %v4997 = vpop.f32.mrf.mxu0
        %v4998 = vadd.f32 %v4837, %v4997
        %4999 = vmatmul.f32.gmra.mxu0 %v4749
        %v5000 = vpop.f32.mrf.mxu0
        %v5001 = vadd.f32 %v4837, %v5000
        %5002 = vmatmul.f32.gmra.mxu0 %v4752
        %v5003 = vpop.f32.mrf.mxu0
        %v5004 = vadd.f32 %v4837, %v5003
        %5005 = vmatmul.f32.gmra.mxu0 %v4755
        %v5006 = vpop.f32.mrf.mxu0
        %v5007 = vadd.f32 %v4837, %v5006
        %5008 = vmatmul.f32.gmra.mxu0 %v4758
        %v5009 = vpop.f32.mrf.mxu0
        %v5010 = vadd.f32 %v4837, %v5009
        %5011 = vmatmul.f32.gmra.mxu0 %v4761
        %v5012 = vpop.f32.mrf.mxu0
        %v5013 = vadd.f32 %v4837, %v5012
        %5014 = vmatmul.f32.gmra.mxu0 %v4764
        %v5015 = vpop.f32.mrf.mxu0
        %v5016 = vadd.f32 %v4837, %v5015
        %5017 = vmatmul.f32.gmra.mxu0 %v4767
        %v5018 = vpop.f32.mrf.mxu0
        %v5019 = vadd.f32 %v4837, %v5018
        %5020 = vmatmul.f32.gmra.mxu0 %v4770
        %v5021 = vpop.f32.mrf.mxu0
        %v5022 = vadd.f32 %v4837, %v5021
        %5023 = vmatmul.f32.gmra.mxu0 %v4773
        %v5024 = vpop.f32.mrf.mxu0
        %v5025 = vadd.f32 %v4837, %v5024
        %5026 = vmatmul.f32.gmra.mxu0 %v4776
        %v5027 = vpop.f32.mrf.mxu0
        %v5028 = vadd.f32 %v4837, %v5027
        %5029 = vmatmul.f32.gmra.mxu0 %v4779
        %v5030 = vpop.f32.mrf.mxu0
        %v5031 = vadd.f32 %v4837, %v5030
        %5032 = vmatmul.f32.gmra.mxu0 %v4782
        %v5033 = vpop.f32.mrf.mxu0
        %v5034 = vadd.f32 %v4837, %v5033
        %5035 = vmatmul.f32.gmra.mxu0 %v4785
        %v5036 = vpop.f32.mrf.mxu0
        %v5037 = vadd.f32 %v4837, %v5036
        %5038 = vmatmul.f32.gmra.mxu0 %v4788
        %v5039 = vpop.f32.mrf.mxu0
        %v5040 = vadd.f32 %v4837, %v5039
        %5041 = vmatmul.f32.gmra.mxu0 %v4791
        %v5042 = vpop.f32.mrf.mxu0
        %v5043 = vadd.f32 %v4837, %v5042
        %5044 = vmatmul.f32.gmra.mxu0 %v4794
        %v5045 = vpop.f32.mrf.mxu0
        %v5046 = vadd.f32 %v4837, %v5045
        %5047 = vdwg.mxu0
        %5048 = vmatpush.msra.mxu0 %v4829
        %5049 = vmatpush.msra.mxu0 %v4828
        %5050 = vmatpush.msra.mxu0 %v4827
        %5051 = vmatpush.msra.mxu0 %v4826
        %5052 = vmatpush.msra.mxu0 %v4825
        %5053 = vmatpush.msra.mxu0 %v4824
        %5054 = vmatpush.msra.mxu0 %v4823
        %5055 = vmatpush.msra.mxu0 %v4822
        %5056 = vmatpush.msra.mxu0 %v4821
        %5057 = vmatpush.msra.mxu0 %v4820
        %5058 = vmatpush.msra.mxu0 %v4819
        %5059 = vmatpush.msra.mxu0 %v4818
        %5060 = vmatpush.msra.mxu0 %v4817
        %5061 = vmatpush.msra.mxu0 %v4816
        %5062 = vmatpush.msra.mxu0 %v4815
        %5063 = vmatpush.msra.mxu0 %v4814
        %5064 = vmatmul.f32.gmra.mxu0 %v4702
        %v5065 = vpop.f32.mrf.mxu0
        %v5066 = vadd.f32 %v4953, %v5065
        %5067 = vmatmul.f32.gmra.mxu0 %v4705
        %v5068 = vpop.f32.mrf.mxu0
        %v5069 = vadd.f32 %v4956, %v5068
        %5070 = vmatmul.f32.gmra.mxu0 %v4708
        %v5071 = vpop.f32.mrf.mxu0
        %v5072 = vadd.f32 %v4959, %v5071
        %5073 = vmatmul.f32.gmra.mxu0 %v4711
        %v5074 = vpop.f32.mrf.mxu0
        %v5075 = vadd.f32 %v4962, %v5074
        %5076 = vmatmul.f32.gmra.mxu0 %v4714
        %v5077 = vpop.f32.mrf.mxu0
        %v5078 = vadd.f32 %v4965, %v5077
        %5079 = vmatmul.f32.gmra.mxu0 %v4717
        %v5080 = vpop.f32.mrf.mxu0
        %v5081 = vadd.f32 %v4968, %v5080
        %5082 = vmatmul.f32.gmra.mxu0 %v4720
        %v5083 = vpop.f32.mrf.mxu0
        %v5084 = vadd.f32 %v4971, %v5083
        %5085 = vmatmul.f32.gmra.mxu0 %v4723
        %v5086 = vpop.f32.mrf.mxu0
        %v5087 = vadd.f32 %v4974, %v5086
        %5088 = vmatmul.f32.gmra.mxu0 %v4726
        %v5089 = vpop.f32.mrf.mxu0
        %v5090 = vadd.f32 %v4977, %v5089
        %5091 = vmatmul.f32.gmra.mxu0 %v4729
        %v5092 = vpop.f32.mrf.mxu0
        %v5093 = vadd.f32 %v4980, %v5092
        %5094 = vmatmul.f32.gmra.mxu0 %v4732
        %v5095 = vpop.f32.mrf.mxu0
        %v5096 = vadd.f32 %v4983, %v5095
        %5097 = vmatmul.f32.gmra.mxu0 %v4735
        %v5098 = vpop.f32.mrf.mxu0
        %v5099 = vadd.f32 %v4986, %v5098
        %5100 = vmatmul.f32.gmra.mxu0 %v4738
        %v5101 = vpop.f32.mrf.mxu0
        %v5102 = vadd.f32 %v4989, %v5101
        %5103 = vmatmul.f32.gmra.mxu0 %v4741
        %v5104 = vpop.f32.mrf.mxu0
        %v5105 = vadd.f32 %v4992, %v5104
        %5106 = vmatmul.f32.gmra.mxu0 %v4744
        %v5107 = vpop.f32.mrf.mxu0
        %v5108 = vadd.f32 %v4995, %v5107
        %5109 = vmatmul.f32.gmra.mxu0 %v4747
        %v5110 = vpop.f32.mrf.mxu0
        %v5111 = vadd.f32 %v4998, %v5110
        %5112 = vmatmul.f32.gmra.mxu0 %v4750
        %v5113 = vpop.f32.mrf.mxu0
        %v5114 = vadd.f32 %v5001, %v5113
        %5115 = vmatmul.f32.gmra.mxu0 %v4753
        %v5116 = vpop.f32.mrf.mxu0
        %v5117 = vadd.f32 %v5004, %v5116
        %5118 = vmatmul.f32.gmra.mxu0 %v4756
        %v5119 = vpop.f32.mrf.mxu0
        %v5120 = vadd.f32 %v5007, %v5119
        %5121 = vmatmul.f32.gmra.mxu0 %v4759
        %v5122 = vpop.f32.mrf.mxu0
        %v5123 = vadd.f32 %v5010, %v5122
        %5124 = vmatmul.f32.gmra.mxu0 %v4762
        %v5125 = vpop.f32.mrf.mxu0
        %v5126 = vadd.f32 %v5013, %v5125
        %5127 = vmatmul.f32.gmra.mxu0 %v4765
        %v5128 = vpop.f32.mrf.mxu0
        %v5129 = vadd.f32 %v5016, %v5128
        %5130 = vmatmul.f32.gmra.mxu0 %v4768
        %v5131 = vpop.f32.mrf.mxu0
        %v5132 = vadd.f32 %v5019, %v5131
        %5133 = vmatmul.f32.gmra.mxu0 %v4771
        %v5134 = vpop.f32.mrf.mxu0
        %v5135 = vadd.f32 %v5022, %v5134
        %5136 = vmatmul.f32.gmra.mxu0 %v4774
        %v5137 = vpop.f32.mrf.mxu0
        %v5138 = vadd.f32 %v5025, %v5137
        %5139 = vmatmul.f32.gmra.mxu0 %v4777
        %v5140 = vpop.f32.mrf.mxu0
        %v5141 = vadd.f32 %v5028, %v5140
        %5142 = vmatmul.f32.gmra.mxu0 %v4780
        %v5143 = vpop.f32.mrf.mxu0
        %v5144 = vadd.f32 %v5031, %v5143
        %5145 = vmatmul.f32.gmra.mxu0 %v4783
        %v5146 = vpop.f32.mrf.mxu0
        %v5147 = vadd.f32 %v5034, %v5146
        %5148 = vmatmul.f32.gmra.mxu0 %v4786
        %v5149 = vpop.f32.mrf.mxu0
        %v5150 = vadd.f32 %v5037, %v5149
        %5151 = vmatmul.f32.gmra.mxu0 %v4789
        %v5152 = vpop.f32.mrf.mxu0
        %v5153 = vadd.f32 %v5040, %v5152
        %5154 = vmatmul.f32.gmra.mxu0 %v4792
        %v5155 = vpop.f32.mrf.mxu0
        %v5156 = vadd.f32 %v5043, %v5155
        %5157 = vmatmul.f32.gmra.mxu0 %v4795
        %v5158 = vpop.f32.mrf.mxu0
        %v5159 = vadd.f32 %v5046, %v5158
        %5160 = vdwg.mxu0
        %5161 = vmatpush.msra.mxu0 0.0
        %5162 = vmatpush.msra.mxu0 0.0
        %5163 = vmatpush.msra.mxu0 0.0
        %5164 = vmatpush.msra.mxu0 0.0
        %5165 = vmatpush.msra.mxu0 0.0
        %5166 = vmatpush.msra.mxu0 0.0
        %5167 = vmatpush.msra.mxu0 0.0
        %5168 = vmatpush.msra.mxu0 0.0
        %5169 = vmatpush.msra.mxu0 0.0
        %5170 = vmatpush.msra.mxu0 0.0
        %5171 = vmatpush.msra.mxu0 0.0
        %5172 = vmatpush.msra.mxu0 0.0
        %5173 = vmatpush.msra.mxu0 %v4833
        %5174 = vmatpush.msra.mxu0 %v4832
        %5175 = vmatpush.msra.mxu0 %v4831
        %5176 = vmatpush.msra.mxu0 %v4830
        %5177 = vmatmul.f32.gmra.mxu0 %v4840
        %v5178 = vpop.f32.mrf.mxu0
        %v5179 = vadd.f32 %v5066, %v5178
        %5180 = vmatmul.f32.gmra.mxu0 %v4843
        %v5181 = vpop.f32.mrf.mxu0
        %v5182 = vadd.f32 %v5069, %v5181
        %5183 = vmatmul.f32.gmra.mxu0 %v4846
        %v5184 = vpop.f32.mrf.mxu0
        %v5185 = vadd.f32 %v5072, %v5184
        %5186 = vmatmul.f32.gmra.mxu0 %v4849
        %v5187 = vpop.f32.mrf.mxu0
        %v5188 = vadd.f32 %v5075, %v5187
        %5189 = vmatmul.f32.gmra.mxu0 %v4852
        %v5190 = vpop.f32.mrf.mxu0
        %v5191 = vadd.f32 %v5078, %v5190
        %5192 = vmatmul.f32.gmra.mxu0 %v4855
        %v5193 = vpop.f32.mrf.mxu0
        %v5194 = vadd.f32 %v5081, %v5193
        %5195 = vmatmul.f32.gmra.mxu0 %v4858
        %v5196 = vpop.f32.mrf.mxu0
        %v5197 = vadd.f32 %v5084, %v5196
        %5198 = vmatmul.f32.gmra.mxu0 %v4861
        %v5199 = vpop.f32.mrf.mxu0
        %v5200 = vadd.f32 %v5087, %v5199
        %5201 = vmatmul.f32.gmra.mxu0 %v4864
        %v5202 = vpop.f32.mrf.mxu0
        %v5203 = vadd.f32 %v5090, %v5202
        %5204 = vmatmul.f32.gmra.mxu0 %v4867
        %v5205 = vpop.f32.mrf.mxu0
        %v5206 = vadd.f32 %v5093, %v5205
        %5207 = vmatmul.f32.gmra.mxu0 %v4870
        %v5208 = vpop.f32.mrf.mxu0
        %v5209 = vadd.f32 %v5096, %v5208
        %5210 = vmatmul.f32.gmra.mxu0 %v4873
        %v5211 = vpop.f32.mrf.mxu0
        %v5212 = vadd.f32 %v5099, %v5211
        %5213 = vmatmul.f32.gmra.mxu0 %v4876
        %v5214 = vpop.f32.mrf.mxu0
        %v5215 = vadd.f32 %v5102, %v5214
        %5216 = vmatmul.f32.gmra.mxu0 %v4879
        %v5217 = vpop.f32.mrf.mxu0
        %v5218 = vadd.f32 %v5105, %v5217
        %5219 = vmatmul.f32.gmra.mxu0 %v4882
        %v5220 = vpop.f32.mrf.mxu0
        %v5221 = vadd.f32 %v5108, %v5220
        %5222 = vmatmul.f32.gmra.mxu0 %v4885
        %v5223 = vpop.f32.mrf.mxu0
        %v5224 = vadd.f32 %v5111, %v5223
        %5225 = vmatmul.f32.gmra.mxu0 %v4888
        %v5226 = vpop.f32.mrf.mxu0
        %v5227 = vadd.f32 %v5114, %v5226
        %5228 = vmatmul.f32.gmra.mxu0 %v4891
        %v5229 = vpop.f32.mrf.mxu0
        %v5230 = vadd.f32 %v5117, %v5229
        %5231 = vmatmul.f32.gmra.mxu0 %v4894
        %v5232 = vpop.f32.mrf.mxu0
        %v5233 = vadd.f32 %v5120, %v5232
        %5234 = vmatmul.f32.gmra.mxu0 %v4897
        %v5235 = vpop.f32.mrf.mxu0
        %v5236 = vadd.f32 %v5123, %v5235
        %5237 = vmatmul.f32.gmra.mxu0 %v4900
        %v5238 = vpop.f32.mrf.mxu0
        %v5239 = vadd.f32 %v5126, %v5238
        %5240 = vmatmul.f32.gmra.mxu0 %v4903
        %v5241 = vpop.f32.mrf.mxu0
        %v5242 = vadd.f32 %v5129, %v5241
        %5243 = vmatmul.f32.gmra.mxu0 %v4906
        %v5244 = vpop.f32.mrf.mxu0
        %v5245 = vadd.f32 %v5132, %v5244
        %5246 = vmatmul.f32.gmra.mxu0 %v4909
        %v5247 = vpop.f32.mrf.mxu0
        %v5248 = vadd.f32 %v5135, %v5247
        %5249 = vmatmul.f32.gmra.mxu0 %v4912
        %v5250 = vpop.f32.mrf.mxu0
        %v5251 = vadd.f32 %v5138, %v5250
        %5252 = vmatmul.f32.gmra.mxu0 %v4915
        %v5253 = vpop.f32.mrf.mxu0
        %v5254 = vadd.f32 %v5141, %v5253
        %5255 = vmatmul.f32.gmra.mxu0 %v4918
        %v5256 = vpop.f32.mrf.mxu0
        %v5257 = vadd.f32 %v5144, %v5256
        %5258 = vmatmul.f32.gmra.mxu0 %v4921
        %v5259 = vpop.f32.mrf.mxu0
        %v5260 = vadd.f32 %v5147, %v5259
        %5261 = vmatmul.f32.gmra.mxu0 %v4924
        %v5262 = vpop.f32.mrf.mxu0
        %v5263 = vadd.f32 %v5150, %v5262
        %5264 = vmatmul.f32.gmra.mxu0 %v4927
        %v5265 = vpop.f32.mrf.mxu0
        %v5266 = vadd.f32 %v5153, %v5265
        %5267 = vmatmul.f32.gmra.mxu0 %v4930
        %v5268 = vpop.f32.mrf.mxu0
        %v5269 = vadd.f32 %v5156, %v5268
        %5270 = vmatmul.f32.gmra.mxu0 %v4933
        %v5271 = vpop.f32.mrf.mxu0
        %v5272 = vadd.f32 %v5159, %v5271
        %5273 = vdwg.mxu0
        %v5274 = vmax.f32 %v5179, 0.0
        %v5275 = vmax.f32 %v5182, 0.0
        %v5276 = vmax.f32 %v5185, 0.0
        %v5277 = vmax.f32 %v5188, 0.0
        %v5278 = vmax.f32 %v5191, 0.0
        %v5279 = vmax.f32 %v5194, 0.0
        %v5280 = vmax.f32 %v5197, 0.0
        %v5281 = vmax.f32 %v5200, 0.0
        %v5282 = vmax.f32 %v5203, 0.0
        %v5283 = vmax.f32 %v5206, 0.0
        %v5284 = vmax.f32 %v5209, 0.0
        %v5285 = vmax.f32 %v5212, 0.0
        %v5286 = vmax.f32 %v5215, 0.0
        %v5287 = vmax.f32 %v5218, 0.0
        %v5288 = vmax.f32 %v5221, 0.0
        %v5289 = vmax.f32 %v5224, 0.0
        %v5290 = vmax.f32 %v5227, 0.0
        %v5291 = vmax.f32 %v5230, 0.0
        %v5292 = vmax.f32 %v5233, 0.0
        %v5293 = vmax.f32 %v5236, 0.0
        %v5294 = vmax.f32 %v5239, 0.0
        %v5295 = vmax.f32 %v5242, 0.0
        %v5296 = vmax.f32 %v5245, 0.0
        %v5297 = vmax.f32 %v5248, 0.0
        %v5298 = vmax.f32 %v5251, 0.0
        %v5299 = vmax.f32 %v5254, 0.0
        %v5300 = vmax.f32 %v5257, 0.0
        %v5301 = vmax.f32 %v5260, 0.0
        %v5302 = vmax.f32 %v5263, 0.0
        %v5303 = vmax.f32 %v5266, 0.0
        %v5304 = vmax.f32 %v5269, 0.0
        %v5305 = vmax.f32 %v5272, 0.0
        %s5306 = scalar_lea.vmem [#allocation4], 512
        %5307 = vst.msk [vmem:[%s5306] sm:$0xff] %vm1189, %v5274
        %5308 = vst.msk [vmem:[%s5306 + $0x8] sm:$0xff] %vm1189, %v5275
        %5309 = vst.msk [vmem:[%s5306 + $0x10] sm:$0xff] %vm1189, %v5276
        %5310 = vst.msk [vmem:[%s5306 + $0x18] sm:$0xff] %vm1189, %v5277
        %5311 = vst.msk [vmem:[%s5306 + $0x20] sm:$0xff] %vm1189, %v5278
        %5312 = vst.msk [vmem:[%s5306 + $0x28] sm:$0xff] %vm1189, %v5279
        %5313 = vst.msk [vmem:[%s5306 + $0x30] sm:$0xff] %vm1189, %v5280
        %5314 = vst.msk [vmem:[%s5306 + $0x38] sm:$0xff] %vm1189, %v5281
        %5315 = vst.msk [vmem:[%s5306 + $0x40] sm:$0xff] %vm1189, %v5282
        %5316 = vst.msk [vmem:[%s5306 + $0x48] sm:$0xff] %vm1189, %v5283
        %5317 = vst.msk [vmem:[%s5306 + $0x50] sm:$0xff] %vm1189, %v5284
        %5318 = vst.msk [vmem:[%s5306 + $0x58] sm:$0xff] %vm1189, %v5285
        %5319 = vst.msk [vmem:[%s5306 + $0x60] sm:$0xff] %vm1189, %v5286
        %5320 = vst.msk [vmem:[%s5306 + $0x68] sm:$0xff] %vm1189, %v5287
        %5321 = vst.msk [vmem:[%s5306 + $0x70] sm:$0xff] %vm1189, %v5288
        %5322 = vst.msk [vmem:[%s5306 + $0x78] sm:$0xff] %vm1189, %v5289
        %5323 = vst.msk [vmem:[%s5306 + $0x80] sm:$0xff] %vm1189, %v5290
        %5324 = vst.msk [vmem:[%s5306 + $0x88] sm:$0xff] %vm1189, %v5291
        %5325 = vst.msk [vmem:[%s5306 + $0x90] sm:$0xff] %vm1189, %v5292
        %5326 = vst.msk [vmem:[%s5306 + $0x98] sm:$0xff] %vm1189, %v5293
        %5327 = vst.msk [vmem:[%s5306 + $0xa0] sm:$0xff] %vm1189, %v5294
        %5328 = vst.msk [vmem:[%s5306 + $0xa8] sm:$0xff] %vm1189, %v5295
        %5329 = vst.msk [vmem:[%s5306 + $0xb0] sm:$0xff] %vm1189, %v5296
        %5330 = vst.msk [vmem:[%s5306 + $0xb8] sm:$0xff] %vm1189, %v5297
        %5331 = vst.msk [vmem:[%s5306 + $0xc0] sm:$0xff] %vm1189, %v5298
        %5332 = vst.msk [vmem:[%s5306 + $0xc8] sm:$0xff] %vm1189, %v5299
        %5333 = vst.msk [vmem:[%s5306 + $0xd0] sm:$0xff] %vm1189, %v5300
        %5334 = vst.msk [vmem:[%s5306 + $0xd8] sm:$0xff] %vm1189, %v5301
        %5335 = vst.msk [vmem:[%s5306 + $0xe0] sm:$0xff] %vm1189, %v5302
        %5336 = vst.msk [vmem:[%s5306 + $0xe8] sm:$0xff] %vm1189, %v5303
        %5337 = vst.msk [vmem:[%s5306 + $0xf0] sm:$0xff] %vm1189, %v5304
        %5338 = vst.msk [vmem:[%s5306 + $0xf8] sm:$0xff] %vm1189, %v5305
        %v5339 = vsel %vm1189, %v5274, 0.0
        %v5340 = vsel %vm1189, %v5275, 0.0
        %v5341 = vadd.f32 %v5339, %v5340
        %v5342 = vsel %vm1189, %v5276, 0.0
        %v5343 = vadd.f32 %v5341, %v5342
        %v5344 = vsel %vm1189, %v5277, 0.0
        %v5345 = vadd.f32 %v5343, %v5344
        %v5346 = vsel %vm1189, %v5278, 0.0
        %v5347 = vadd.f32 %v5345, %v5346
        %v5348 = vsel %vm1189, %v5279, 0.0
        %v5349 = vadd.f32 %v5347, %v5348
        %v5350 = vsel %vm1189, %v5280, 0.0
        %v5351 = vadd.f32 %v5349, %v5350
        %v5352 = vsel %vm1189, %v5281, 0.0
        %v5353 = vadd.f32 %v5351, %v5352
        %v5354 = vsel %vm1189, %v5282, 0.0
        %v5355 = vadd.f32 %v5353, %v5354
        %v5356 = vsel %vm1189, %v5283, 0.0
        %v5357 = vadd.f32 %v5355, %v5356
        %v5358 = vsel %vm1189, %v5284, 0.0
        %v5359 = vadd.f32 %v5357, %v5358
        %v5360 = vsel %vm1189, %v5285, 0.0
        %v5361 = vadd.f32 %v5359, %v5360
        %v5362 = vsel %vm1189, %v5286, 0.0
        %v5363 = vadd.f32 %v5361, %v5362
        %v5364 = vsel %vm1189, %v5287, 0.0
        %v5365 = vadd.f32 %v5363, %v5364
        %v5366 = vsel %vm1189, %v5288, 0.0
        %v5367 = vadd.f32 %v5365, %v5366
        %v5368 = vsel %vm1189, %v5289, 0.0
        %v5369 = vadd.f32 %v5367, %v5368
        %v5370 = vsel %vm1189, %v5290, 0.0
        %v5371 = vadd.f32 %v5369, %v5370
        %v5372 = vsel %vm1189, %v5291, 0.0
        %v5373 = vadd.f32 %v5371, %v5372
        %v5374 = vsel %vm1189, %v5292, 0.0
        %v5375 = vadd.f32 %v5373, %v5374
        %v5376 = vsel %vm1189, %v5293, 0.0
        %v5377 = vadd.f32 %v5375, %v5376
        %v5378 = vsel %vm1189, %v5294, 0.0
        %v5379 = vadd.f32 %v5377, %v5378
        %v5380 = vsel %vm1189, %v5295, 0.0
        %v5381 = vadd.f32 %v5379, %v5380
        %v5382 = vsel %vm1189, %v5296, 0.0
        %v5383 = vadd.f32 %v5381, %v5382
        %v5384 = vsel %vm1189, %v5297, 0.0
        %v5385 = vadd.f32 %v5383, %v5384
        %v5386 = vsel %vm1189, %v5298, 0.0
        %v5387 = vadd.f32 %v5385, %v5386
        %v5388 = vsel %vm1189, %v5299, 0.0
        %v5389 = vadd.f32 %v5387, %v5388
        %v5390 = vsel %vm1189, %v5300, 0.0
        %v5391 = vadd.f32 %v5389, %v5390
        %v5392 = vsel %vm1189, %v5301, 0.0
        %v5393 = vadd.f32 %v5391, %v5392
        %v5394 = vsel %vm1189, %v5302, 0.0
        %v5395 = vadd.f32 %v5393, %v5394
        %v5396 = vsel %vm1189, %v5303, 0.0
        %v5397 = vadd.f32 %v5395, %v5396
        %v5398 = vsel %vm1189, %v5304, 0.0
        %v5399 = vadd.f32 %v5397, %v5398
        %v5400 = vsel %vm1189, %v5305, 0.0
        %v5401 = vadd.f32 %v5399, %v5400
        %v5402 = vrot.slane %v5401, 4
        %v5403 = vadd.f32 %v5401, %v5402
        %v5404 = vrot.slane %v5403, 2
        %v5405 = vadd.f32 %v5403, %v5404
        %v5406 = vrot.slane %v5405, 1
        %v5407 = vadd.f32 %v5405, %v5406
        %v5408 = vmul.f32 %v5407, %v1297
        %v5409 = vld [vmem:[#allocation2] sm:$0xff]
        %v5410 = vld [vmem:[#allocation2 + $0x8] sm:$0xff]
        %v5411 = vld [vmem:[#allocation2 + $0x38] sm:$0xff]
        %v5412 = vld [vmem:[#allocation2 + $0x40] sm:$0xff]
        %v5413 = vld [vmem:[#allocation2 + $0x70] sm:$0xff]
        %v5414 = vld [vmem:[#allocation2 + $0x78] sm:$0xff]
        %v5415 = vld [vmem:[#allocation2 + $0xa8] sm:$0xff]
        %v5416 = vld [vmem:[#allocation2 + $0xb0] sm:$0xff]
        %v5417 = vld [vmem:[#allocation2 + $0xe0] sm:$0xff]
        %v5418 = vld [vmem:[#allocation2 + $0xe8] sm:$0xff]
        %v5419 = vld [vmem:[#allocation2 + $0x118] sm:$0xff]
        %v5420 = vld [vmem:[#allocation2 + $0x120] sm:$0xff]
        %v5421 = vld [vmem:[#allocation2 + $0x150] sm:$0xff]
        %v5422 = vld [vmem:[#allocation2 + $0x158] sm:$0xff]
        %v5423 = vld [vmem:[#allocation2 + $0x188] sm:$0xff]
        %v5424 = vld [vmem:[#allocation2 + $0x190] sm:$0xff]
        %v5425 = vld [vmem:[#allocation2 + $0x1c0] sm:$0xff]
        %v5426 = vld [vmem:[#allocation2 + $0x1c8] sm:$0xff]
        %v5427 = vld [vmem:[#allocation2 + $0x1f8] sm:$0xff]
        %v5428 = vld [vmem:[#allocation2 + $0x200] sm:$0xff]
        %v5429 = vld [vmem:[#allocation2 + $0x230] sm:$0xff]
        %v5430 = vld [vmem:[#allocation2 + $0x238] sm:$0xff]
        %v5431 = vld [vmem:[#allocation2 + $0x268] sm:$0xff]
        %v5432 = vld [vmem:[#allocation2 + $0x270] sm:$0xff]
        %v5433 = vld [vmem:[#allocation2 + $0x2a0] sm:$0xff]
        %v5434 = vld [vmem:[#allocation2 + $0x2a8] sm:$0xff]
        %v5435 = vld [vmem:[#allocation2 + $0x2d8] sm:$0xff]
        %v5436 = vld [vmem:[#allocation2 + $0x2e0] sm:$0xff]
        %v5437 = vld [vmem:[#allocation2 + $0x310] sm:$0xff]
        %v5438 = vld [vmem:[#allocation2 + $0x318] sm:$0xff]
        %v5439 = vld [vmem:[#allocation2 + $0x348] sm:$0xff]
        %v5440 = vld [vmem:[#allocation2 + $0x350] sm:$0xff]
        %5441 = vst.msk [vmem:[#allocation3] sm:$0xff] %vm555, %v5409
        %5442 = vst.msk [vmem:[#allocation3 + $0x18] sm:$0xff] %vm555, %v5410
        %5443 = vst.msk [vmem:[#allocation3 + $0x30] sm:$0xff] %vm555, %v5411
        %5444 = vst.msk [vmem:[#allocation3 + $0x48] sm:$0xff] %vm555, %v5412
        %5445 = vst.msk [vmem:[#allocation3 + $0x60] sm:$0xff] %vm555, %v5413
        %5446 = vst.msk [vmem:[#allocation3 + $0x78] sm:$0xff] %vm555, %v5414
        %5447 = vst.msk [vmem:[#allocation3 + $0x90] sm:$0xff] %vm555, %v5415
        %5448 = vst.msk [vmem:[#allocation3 + $0xa8] sm:$0xff] %vm555, %v5416
        %5449 = vst.msk [vmem:[#allocation3 + $0xc0] sm:$0xff] %vm555, %v5417
        %5450 = vst.msk [vmem:[#allocation3 + $0xd8] sm:$0xff] %vm555, %v5418
        %5451 = vst.msk [vmem:[#allocation3 + $0xf0] sm:$0xff] %vm555, %v5419
        %5452 = vst.msk [vmem:[#allocation3 + $0x108] sm:$0xff] %vm555, %v5420
        %5453 = vst.msk [vmem:[#allocation3 + $0x120] sm:$0xff] %vm555, %v5421
        %5454 = vst.msk [vmem:[#allocation3 + $0x138] sm:$0xff] %vm555, %v5422
        %5455 = vst.msk [vmem:[#allocation3 + $0x150] sm:$0xff] %vm555, %v5423
        %5456 = vst.msk [vmem:[#allocation3 + $0x168] sm:$0xff] %vm555, %v5424
        %5457 = vst.msk [vmem:[#allocation3 + $0x180] sm:$0xff] %vm555, %v5425
        %5458 = vst.msk [vmem:[#allocation3 + $0x198] sm:$0xff] %vm555, %v5426
        %5459 = vst.msk [vmem:[#allocation3 + $0x1b0] sm:$0xff] %vm555, %v5427
        %5460 = vst.msk [vmem:[#allocation3 + $0x1c8] sm:$0xff] %vm555, %v5428
        %5461 = vst.msk [vmem:[#allocation3 + $0x1e0] sm:$0xff] %vm555, %v5429
        %5462 = vst.msk [vmem:[#allocation3 + $0x1f8] sm:$0xff] %vm555, %v5430
        %5463 = vst.msk [vmem:[#allocation3 + $0x210] sm:$0xff] %vm555, %v5431
        %5464 = vst.msk [vmem:[#allocation3 + $0x228] sm:$0xff] %vm555, %v5432
        %5465 = vst.msk [vmem:[#allocation3 + $0x240] sm:$0xff] %vm555, %v5433
        %5466 = vst.msk [vmem:[#allocation3 + $0x258] sm:$0xff] %vm555, %v5434
        %5467 = vst.msk [vmem:[#allocation3 + $0x270] sm:$0xff] %vm555, %v5435
        %5468 = vst.msk [vmem:[#allocation3 + $0x288] sm:$0xff] %vm555, %v5436
        %5469 = vst.msk [vmem:[#allocation3 + $0x2a0] sm:$0xff] %vm555, %v5437
        %5470 = vst.msk [vmem:[#allocation3 + $0x2b8] sm:$0xff] %vm555, %v5438
        %5471 = vst.msk [vmem:[#allocation3 + $0x2d0] sm:$0xff] %vm555, %v5439
        %5472 = vst.msk [vmem:[#allocation3 + $0x2e8] sm:$0xff] %vm555, %v5440
        %v5473 = vld [vmem:[#allocation2 + $0x12] sm:$0xff]
        %v5474 = vld [vmem:[#allocation2 + $0x1a] sm:$0xff]
        %v5475 = vld [vmem:[#allocation2 + $0x4a] sm:$0xff]
        %v5476 = vld [vmem:[#allocation2 + $0x52] sm:$0xff]
        %v5477 = vld [vmem:[#allocation2 + $0x82] sm:$0xff]
        %v5478 = vld [vmem:[#allocation2 + $0x8a] sm:$0xff]
        %v5479 = vld [vmem:[#allocation2 + $0xba] sm:$0xff]
        %v5480 = vld [vmem:[#allocation2 + $0xc2] sm:$0xff]
        %v5481 = vld [vmem:[#allocation2 + $0xf2] sm:$0xff]
        %v5482 = vld [vmem:[#allocation2 + $0xfa] sm:$0xff]
        %v5483 = vld [vmem:[#allocation2 + $0x12a] sm:$0xff]
        %v5484 = vld [vmem:[#allocation2 + $0x132] sm:$0xff]
        %v5485 = vld [vmem:[#allocation2 + $0x162] sm:$0xff]
        %v5486 = vld [vmem:[#allocation2 + $0x16a] sm:$0xff]
        %v5487 = vld [vmem:[#allocation2 + $0x19a] sm:$0xff]
        %v5488 = vld [vmem:[#allocation2 + $0x1a2] sm:$0xff]
        %v5489 = vld [vmem:[#allocation2 + $0x1d2] sm:$0xff]
        %v5490 = vld [vmem:[#allocation2 + $0x1da] sm:$0xff]
        %v5491 = vld [vmem:[#allocation2 + $0x20a] sm:$0xff]
        %v5492 = vld [vmem:[#allocation2 + $0x212] sm:$0xff]
        %v5493 = vld [vmem:[#allocation2 + $0x242] sm:$0xff]
        %v5494 = vld [vmem:[#allocation2 + $0x24a] sm:$0xff]
        %v5495 = vld [vmem:[#allocation2 + $0x27a] sm:$0xff]
        %v5496 = vld [vmem:[#allocation2 + $0x282] sm:$0xff]
        %v5497 = vld [vmem:[#allocation2 + $0x2b2] sm:$0xff]
        %v5498 = vld [vmem:[#allocation2 + $0x2ba] sm:$0xff]
        %v5499 = vld [vmem:[#allocation2 + $0x2ea] sm:$0xff]
        %v5500 = vld [vmem:[#allocation2 + $0x2f2] sm:$0xff]
        %v5501 = vld [vmem:[#allocation2 + $0x322] sm:$0xff]
        %v5502 = vld [vmem:[#allocation2 + $0x32a] sm:$0xff]
        %v5503 = vld [vmem:[#allocation2 + $0x35a] sm:$0xff]
        %v5504 = vld [vmem:[#allocation2 + $0x362] sm:$0xff]
        %5537 = vrot.lane.b32.xlu0 %v5473, 32
        %v5538 = vpop.permute.xlu0 %5537
        %5539 = vrot.lane.b32.xlu0 %v5474, 32
        %v5540 = vpop.permute.xlu0 %5539
        %5541 = vrot.lane.b32.xlu0 %v5475, 32
        %v5542 = vpop.permute.xlu0 %5541
        %5543 = vrot.lane.b32.xlu0 %v5476, 32
        %v5544 = vpop.permute.xlu0 %5543
        %5545 = vrot.lane.b32.xlu0 %v5477, 32
        %v5546 = vpop.permute.xlu0 %5545
        %5547 = vrot.lane.b32.xlu0 %v5478, 32
        %v5548 = vpop.permute.xlu0 %5547
        %5549 = vrot.lane.b32.xlu0 %v5479, 32
        %v5550 = vpop.permute.xlu0 %5549
        %5551 = vrot.lane.b32.xlu0 %v5480, 32
        %v5552 = vpop.permute.xlu0 %5551
        %5553 = vrot.lane.b32.xlu0 %v5481, 32
        %v5554 = vpop.permute.xlu0 %5553
        %5555 = vrot.lane.b32.xlu0 %v5482, 32
        %v5556 = vpop.permute.xlu0 %5555
        %5557 = vrot.lane.b32.xlu0 %v5483, 32
        %v5558 = vpop.permute.xlu0 %5557
        %5559 = vrot.lane.b32.xlu0 %v5484, 32
        %v5560 = vpop.permute.xlu0 %5559
        %5561 = vrot.lane.b32.xlu0 %v5485, 32
        %v5562 = vpop.permute.xlu0 %5561
        %5563 = vrot.lane.b32.xlu0 %v5486, 32
        %v5564 = vpop.permute.xlu0 %5563
        %5565 = vrot.lane.b32.xlu0 %v5487, 32
        %v5566 = vpop.permute.xlu0 %5565
        %5567 = vrot.lane.b32.xlu0 %v5488, 32
        %v5568 = vpop.permute.xlu0 %5567
        %5569 = vrot.lane.b32.xlu0 %v5489, 32
        %v5570 = vpop.permute.xlu0 %5569
        %5571 = vrot.lane.b32.xlu0 %v5490, 32
        %v5572 = vpop.permute.xlu0 %5571
        %5573 = vrot.lane.b32.xlu0 %v5491, 32
        %v5574 = vpop.permute.xlu0 %5573
        %5575 = vrot.lane.b32.xlu0 %v5492, 32
        %v5576 = vpop.permute.xlu0 %5575
        %5577 = vrot.lane.b32.xlu0 %v5493, 32
        %v5578 = vpop.permute.xlu0 %5577
        %5579 = vrot.lane.b32.xlu0 %v5494, 32
        %v5580 = vpop.permute.xlu0 %5579
        %5581 = vrot.lane.b32.xlu0 %v5495, 32
        %v5582 = vpop.permute.xlu0 %5581
        %5583 = vrot.lane.b32.xlu0 %v5496, 32
        %v5584 = vpop.permute.xlu0 %5583
        %5585 = vrot.lane.b32.xlu0 %v5497, 32
        %v5586 = vpop.permute.xlu0 %5585
        %5587 = vrot.lane.b32.xlu0 %v5498, 32
        %v5588 = vpop.permute.xlu0 %5587
        %5589 = vrot.lane.b32.xlu0 %v5499, 32
        %v5590 = vpop.permute.xlu0 %5589
        %5591 = vrot.lane.b32.xlu0 %v5500, 32
        %v5592 = vpop.permute.xlu0 %5591
        %5593 = vrot.lane.b32.xlu0 %v5501, 32
        %v5594 = vpop.permute.xlu0 %5593
        %5595 = vrot.lane.b32.xlu0 %v5502, 32
        %v5596 = vpop.permute.xlu0 %5595
        %5597 = vrot.lane.b32.xlu0 %v5503, 32
        %v5598 = vpop.permute.xlu0 %5597
        %5599 = vrot.lane.b32.xlu0 %v5504, 32
        %v5600 = vpop.permute.xlu0 %5599
        %5633 = vst.msk [vmem:[#allocation3] sm:$0xff] %vm1524, %v5538
        %5634 = vst.msk [vmem:[#allocation3 + $0x18] sm:$0xff] %vm1524, %v5540
        %5635 = vst.msk [vmem:[#allocation3 + $0x30] sm:$0xff] %vm1524, %v5542
        %5636 = vst.msk [vmem:[#allocation3 + $0x48] sm:$0xff] %vm1524, %v5544
        %5637 = vst.msk [vmem:[#allocation3 + $0x60] sm:$0xff] %vm1524, %v5546
        %5638 = vst.msk [vmem:[#allocation3 + $0x78] sm:$0xff] %vm1524, %v5548
        %5639 = vst.msk [vmem:[#allocation3 + $0x90] sm:$0xff] %vm1524, %v5550
        %5640 = vst.msk [vmem:[#allocation3 + $0xa8] sm:$0xff] %vm1524, %v5552
        %5641 = vst.msk [vmem:[#allocation3 + $0xc0] sm:$0xff] %vm1524, %v5554
        %5642 = vst.msk [vmem:[#allocation3 + $0xd8] sm:$0xff] %vm1524, %v5556
        %5643 = vst.msk [vmem:[#allocation3 + $0xf0] sm:$0xff] %vm1524, %v5558
        %5644 = vst.msk [vmem:[#allocation3 + $0x108] sm:$0xff] %vm1524, %v5560
        %5645 = vst.msk [vmem:[#allocation3 + $0x120] sm:$0xff] %vm1524, %v5562
        %5646 = vst.msk [vmem:[#allocation3 + $0x138] sm:$0xff] %vm1524, %v5564
        %5647 = vst.msk [vmem:[#allocation3 + $0x150] sm:$0xff] %vm1524, %v5566
        %5648 = vst.msk [vmem:[#allocation3 + $0x168] sm:$0xff] %vm1524, %v5568
        %5649 = vst.msk [vmem:[#allocation3 + $0x180] sm:$0xff] %vm1524, %v5570
        %5650 = vst.msk [vmem:[#allocation3 + $0x198] sm:$0xff] %vm1524, %v5572
        %5651 = vst.msk [vmem:[#allocation3 + $0x1b0] sm:$0xff] %vm1524, %v5574
        %5652 = vst.msk [vmem:[#allocation3 + $0x1c8] sm:$0xff] %vm1524, %v5576
        %5653 = vst.msk [vmem:[#allocation3 + $0x1e0] sm:$0xff] %vm1524, %v5578
        %5654 = vst.msk [vmem:[#allocation3 + $0x1f8] sm:$0xff] %vm1524, %v5580
        %5655 = vst.msk [vmem:[#allocation3 + $0x210] sm:$0xff] %vm1524, %v5582
        %5656 = vst.msk [vmem:[#allocation3 + $0x228] sm:$0xff] %vm1524, %v5584
        %5657 = vst.msk [vmem:[#allocation3 + $0x240] sm:$0xff] %vm1524, %v5586
        %5658 = vst.msk [vmem:[#allocation3 + $0x258] sm:$0xff] %vm1524, %v5588
        %5659 = vst.msk [vmem:[#allocation3 + $0x270] sm:$0xff] %vm1524, %v5590
        %5660 = vst.msk [vmem:[#allocation3 + $0x288] sm:$0xff] %vm1524, %v5592
        %5661 = vst.msk [vmem:[#allocation3 + $0x2a0] sm:$0xff] %vm1524, %v5594
        %5662 = vst.msk [vmem:[#allocation3 + $0x2b8] sm:$0xff] %vm1524, %v5596
        %5663 = vst.msk [vmem:[#allocation3 + $0x2d0] sm:$0xff] %vm1524, %v5598
        %5664 = vst.msk [vmem:[#allocation3 + $0x2e8] sm:$0xff] %vm1524, %v5600
        %v5665 = vld [vmem:[#allocation2 + $0x24] sm:$0xff]
        %v5666 = vld [vmem:[#allocation2 + $0x2c] sm:$0xff]
        %v5667 = vld [vmem:[#allocation2 + $0x5c] sm:$0xff]
        %v5668 = vld [vmem:[#allocation2 + $0x64] sm:$0xff]
        %v5669 = vld [vmem:[#allocation2 + $0x94] sm:$0xff]
        %v5670 = vld [vmem:[#allocation2 + $0x9c] sm:$0xff]
        %v5671 = vld [vmem:[#allocation2 + $0xcc] sm:$0xff]
        %v5672 = vld [vmem:[#allocation2 + $0xd4] sm:$0xff]
        %v5673 = vld [vmem:[#allocation2 + $0x104] sm:$0xff]
        %v5674 = vld [vmem:[#allocation2 + $0x10c] sm:$0xff]
        %v5675 = vld [vmem:[#allocation2 + $0x13c] sm:$0xff]
        %v5676 = vld [vmem:[#allocation2 + $0x144] sm:$0xff]
        %v5677 = vld [vmem:[#allocation2 + $0x174] sm:$0xff]
        %v5678 = vld [vmem:[#allocation2 + $0x17c] sm:$0xff]
        %v5679 = vld [vmem:[#allocation2 + $0x1ac] sm:$0xff]
        %v5680 = vld [vmem:[#allocation2 + $0x1b4] sm:$0xff]
        %v5681 = vld [vmem:[#allocation2 + $0x1e4] sm:$0xff]
        %v5682 = vld [vmem:[#allocation2 + $0x1ec] sm:$0xff]
        %v5683 = vld [vmem:[#allocation2 + $0x21c] sm:$0xff]
        %v5684 = vld [vmem:[#allocation2 + $0x224] sm:$0xff]
        %v5685 = vld [vmem:[#allocation2 + $0x254] sm:$0xff]
        %v5686 = vld [vmem:[#allocation2 + $0x25c] sm:$0xff]
        %v5687 = vld [vmem:[#allocation2 + $0x28c] sm:$0xff]
        %v5688 = vld [vmem:[#allocation2 + $0x294] sm:$0xff]
        %v5689 = vld [vmem:[#allocation2 + $0x2c4] sm:$0xff]
        %v5690 = vld [vmem:[#allocation2 + $0x2cc] sm:$0xff]
        %v5691 = vld [vmem:[#allocation2 + $0x2fc] sm:$0xff]
        %v5692 = vld [vmem:[#allocation2 + $0x304] sm:$0xff]
        %v5693 = vld [vmem:[#allocation2 + $0x334] sm:$0xff]
        %v5694 = vld [vmem:[#allocation2 + $0x33c] sm:$0xff]
        %v5695 = vld [vmem:[#allocation2 + $0x36c] sm:$0xff]
        %v5696 = vld [vmem:[#allocation2 + $0x374] sm:$0xff]
        %5729 = vrot.lane.b32.xlu0 %v5665, 64
        %v5730 = vpop.permute.xlu0 %5729
        %5731 = vrot.lane.b32.xlu0 %v5666, 64
        %v5732 = vpop.permute.xlu0 %5731
        %5733 = vrot.lane.b32.xlu0 %v5667, 64
        %v5734 = vpop.permute.xlu0 %5733
        %5735 = vrot.lane.b32.xlu0 %v5668, 64
        %v5736 = vpop.permute.xlu0 %5735
        %5737 = vrot.lane.b32.xlu0 %v5669, 64
        %v5738 = vpop.permute.xlu0 %5737
        %5739 = vrot.lane.b32.xlu0 %v5670, 64
        %v5740 = vpop.permute.xlu0 %5739
        %5741 = vrot.lane.b32.xlu0 %v5671, 64
        %v5742 = vpop.permute.xlu0 %5741
        %5743 = vrot.lane.b32.xlu0 %v5672, 64
        %v5744 = vpop.permute.xlu0 %5743
        %5745 = vrot.lane.b32.xlu0 %v5673, 64
        %v5746 = vpop.permute.xlu0 %5745
        %5747 = vrot.lane.b32.xlu0 %v5674, 64
        %v5748 = vpop.permute.xlu0 %5747
        %5749 = vrot.lane.b32.xlu0 %v5675, 64
        %v5750 = vpop.permute.xlu0 %5749
        %5751 = vrot.lane.b32.xlu0 %v5676, 64
        %v5752 = vpop.permute.xlu0 %5751
        %5753 = vrot.lane.b32.xlu0 %v5677, 64
        %v5754 = vpop.permute.xlu0 %5753
        %5755 = vrot.lane.b32.xlu0 %v5678, 64
        %v5756 = vpop.permute.xlu0 %5755
        %5757 = vrot.lane.b32.xlu0 %v5679, 64
        %v5758 = vpop.permute.xlu0 %5757
        %5759 = vrot.lane.b32.xlu0 %v5680, 64
        %v5760 = vpop.permute.xlu0 %5759
        %5761 = vrot.lane.b32.xlu0 %v5681, 64
        %v5762 = vpop.permute.xlu0 %5761
        %5763 = vrot.lane.b32.xlu0 %v5682, 64
        %v5764 = vpop.permute.xlu0 %5763
        %5765 = vrot.lane.b32.xlu0 %v5683, 64
        %v5766 = vpop.permute.xlu0 %5765
        %5767 = vrot.lane.b32.xlu0 %v5684, 64
        %v5768 = vpop.permute.xlu0 %5767
        %5769 = vrot.lane.b32.xlu0 %v5685, 64
        %v5770 = vpop.permute.xlu0 %5769
        %5771 = vrot.lane.b32.xlu0 %v5686, 64
        %v5772 = vpop.permute.xlu0 %5771
        %5773 = vrot.lane.b32.xlu0 %v5687, 64
        %v5774 = vpop.permute.xlu0 %5773
        %5775 = vrot.lane.b32.xlu0 %v5688, 64
        %v5776 = vpop.permute.xlu0 %5775
        %5777 = vrot.lane.b32.xlu0 %v5689, 64
        %v5778 = vpop.permute.xlu0 %5777
        %5779 = vrot.lane.b32.xlu0 %v5690, 64
        %v5780 = vpop.permute.xlu0 %5779
        %5781 = vrot.lane.b32.xlu0 %v5691, 64
        %v5782 = vpop.permute.xlu0 %5781
        %5783 = vrot.lane.b32.xlu0 %v5692, 64
        %v5784 = vpop.permute.xlu0 %5783
        %5785 = vrot.lane.b32.xlu0 %v5693, 64
        %v5786 = vpop.permute.xlu0 %5785
        %5787 = vrot.lane.b32.xlu0 %v5694, 64
        %v5788 = vpop.permute.xlu0 %5787
        %5789 = vrot.lane.b32.xlu0 %v5695, 64
        %v5790 = vpop.permute.xlu0 %5789
        %5791 = vrot.lane.b32.xlu0 %v5696, 64
        %v5792 = vpop.permute.xlu0 %5791
        %5825 = vst.msk [vmem:[#allocation3] sm:$0xff] %vm1717, %v5730
        %5826 = vst.msk [vmem:[#allocation3 + $0x18] sm:$0xff] %vm1717, %v5732
        %5827 = vst.msk [vmem:[#allocation3 + $0x30] sm:$0xff] %vm1717, %v5734
        %5828 = vst.msk [vmem:[#allocation3 + $0x48] sm:$0xff] %vm1717, %v5736
        %5829 = vst.msk [vmem:[#allocation3 + $0x60] sm:$0xff] %vm1717, %v5738
        %5830 = vst.msk [vmem:[#allocation3 + $0x78] sm:$0xff] %vm1717, %v5740
        %5831 = vst.msk [vmem:[#allocation3 + $0x90] sm:$0xff] %vm1717, %v5742
        %5832 = vst.msk [vmem:[#allocation3 + $0xa8] sm:$0xff] %vm1717, %v5744
        %5833 = vst.msk [vmem:[#allocation3 + $0xc0] sm:$0xff] %vm1717, %v5746
        %5834 = vst.msk [vmem:[#allocation3 + $0xd8] sm:$0xff] %vm1717, %v5748
        %5835 = vst.msk [vmem:[#allocation3 + $0xf0] sm:$0xff] %vm1717, %v5750
        %5836 = vst.msk [vmem:[#allocation3 + $0x108] sm:$0xff] %vm1717, %v5752
        %5837 = vst.msk [vmem:[#allocation3 + $0x120] sm:$0xff] %vm1717, %v5754
        %5838 = vst.msk [vmem:[#allocation3 + $0x138] sm:$0xff] %vm1717, %v5756
        %5839 = vst.msk [vmem:[#allocation3 + $0x150] sm:$0xff] %vm1717, %v5758
        %5840 = vst.msk [vmem:[#allocation3 + $0x168] sm:$0xff] %vm1717, %v5760
        %5841 = vst.msk [vmem:[#allocation3 + $0x180] sm:$0xff] %vm1717, %v5762
        %5842 = vst.msk [vmem:[#allocation3 + $0x198] sm:$0xff] %vm1717, %v5764
        %5843 = vst.msk [vmem:[#allocation3 + $0x1b0] sm:$0xff] %vm1717, %v5766
        %5844 = vst.msk [vmem:[#allocation3 + $0x1c8] sm:$0xff] %vm1717, %v5768
        %5845 = vst.msk [vmem:[#allocation3 + $0x1e0] sm:$0xff] %vm1717, %v5770
        %5846 = vst.msk [vmem:[#allocation3 + $0x1f8] sm:$0xff] %vm1717, %v5772
        %5847 = vst.msk [vmem:[#allocation3 + $0x210] sm:$0xff] %vm1717, %v5774
        %5848 = vst.msk [vmem:[#allocation3 + $0x228] sm:$0xff] %vm1717, %v5776
        %5849 = vst.msk [vmem:[#allocation3 + $0x240] sm:$0xff] %vm1717, %v5778
        %5850 = vst.msk [vmem:[#allocation3 + $0x258] sm:$0xff] %vm1717, %v5780
        %5851 = vst.msk [vmem:[#allocation3 + $0x270] sm:$0xff] %vm1717, %v5782
        %5852 = vst.msk [vmem:[#allocation3 + $0x288] sm:$0xff] %vm1717, %v5784
        %5853 = vst.msk [vmem:[#allocation3 + $0x2a0] sm:$0xff] %vm1717, %v5786
        %5854 = vst.msk [vmem:[#allocation3 + $0x2b8] sm:$0xff] %vm1717, %v5788
        %5855 = vst.msk [vmem:[#allocation3 + $0x2d0] sm:$0xff] %vm1717, %v5790
        %5856 = vst.msk [vmem:[#allocation3 + $0x2e8] sm:$0xff] %vm1717, %v5792
        %v5857 = vld [vmem:[%s810] sm:$0xff]
        %v5858 = vld [vmem:[%s810 + $0x8] sm:$0xff]
        %v5859 = vld [vmem:[%s810 + $0x38] sm:$0xff]
        %v5860 = vld [vmem:[%s810 + $0x40] sm:$0xff]
        %v5861 = vld [vmem:[%s810 + $0x70] sm:$0xff]
        %v5862 = vld [vmem:[%s810 + $0x78] sm:$0xff]
        %v5863 = vld [vmem:[%s810 + $0xa8] sm:$0xff]
        %v5864 = vld [vmem:[%s810 + $0xb0] sm:$0xff]
        %v5865 = vld [vmem:[%s810 + $0xe0] sm:$0xff]
        %v5866 = vld [vmem:[%s810 + $0xe8] sm:$0xff]
        %v5867 = vld [vmem:[%s810 + $0x118] sm:$0xff]
        %v5868 = vld [vmem:[%s810 + $0x120] sm:$0xff]
        %v5869 = vld [vmem:[%s810 + $0x150] sm:$0xff]
        %v5870 = vld [vmem:[%s810 + $0x158] sm:$0xff]
        %v5871 = vld [vmem:[%s810 + $0x188] sm:$0xff]
        %v5872 = vld [vmem:[%s810 + $0x190] sm:$0xff]
        %v5873 = vld [vmem:[%s810 + $0x1c0] sm:$0xff]
        %v5874 = vld [vmem:[%s810 + $0x1c8] sm:$0xff]
        %v5875 = vld [vmem:[%s810 + $0x1f8] sm:$0xff]
        %v5876 = vld [vmem:[%s810 + $0x200] sm:$0xff]
        %v5877 = vld [vmem:[%s810 + $0x230] sm:$0xff]
        %v5878 = vld [vmem:[%s810 + $0x238] sm:$0xff]
        %v5879 = vld [vmem:[%s810 + $0x268] sm:$0xff]
        %v5880 = vld [vmem:[%s810 + $0x270] sm:$0xff]
        %v5881 = vld [vmem:[%s810 + $0x2a0] sm:$0xff]
        %v5882 = vld [vmem:[%s810 + $0x2a8] sm:$0xff]
        %v5883 = vld [vmem:[%s810 + $0x2d8] sm:$0xff]
        %v5884 = vld [vmem:[%s810 + $0x2e0] sm:$0xff]
        %v5885 = vld [vmem:[%s810 + $0x310] sm:$0xff]
        %v5886 = vld [vmem:[%s810 + $0x318] sm:$0xff]
        %v5887 = vld [vmem:[%s810 + $0x348] sm:$0xff]
        %v5888 = vld [vmem:[%s810 + $0x350] sm:$0xff]
        %5921 = vrot.lane.b32.xlu0 %v5857, 96
        %v5922 = vpop.permute.xlu0 %5921
        %5923 = vrot.lane.b32.xlu0 %v5858, 96
        %v5924 = vpop.permute.xlu0 %5923
        %5925 = vrot.lane.b32.xlu0 %v5859, 96
        %v5926 = vpop.permute.xlu0 %5925
        %5927 = vrot.lane.b32.xlu0 %v5860, 96
        %v5928 = vpop.permute.xlu0 %5927
        %5929 = vrot.lane.b32.xlu0 %v5861, 96
        %v5930 = vpop.permute.xlu0 %5929
        %5931 = vrot.lane.b32.xlu0 %v5862, 96
        %v5932 = vpop.permute.xlu0 %5931
        %5933 = vrot.lane.b32.xlu0 %v5863, 96
        %v5934 = vpop.permute.xlu0 %5933
        %5935 = vrot.lane.b32.xlu0 %v5864, 96
        %v5936 = vpop.permute.xlu0 %5935
        %5937 = vrot.lane.b32.xlu0 %v5865, 96
        %v5938 = vpop.permute.xlu0 %5937
        %5939 = vrot.lane.b32.xlu0 %v5866, 96
        %v5940 = vpop.permute.xlu0 %5939
        %5941 = vrot.lane.b32.xlu0 %v5867, 96
        %v5942 = vpop.permute.xlu0 %5941
        %5943 = vrot.lane.b32.xlu0 %v5868, 96
        %v5944 = vpop.permute.xlu0 %5943
        %5945 = vrot.lane.b32.xlu0 %v5869, 96
        %v5946 = vpop.permute.xlu0 %5945
        %5947 = vrot.lane.b32.xlu0 %v5870, 96
        %v5948 = vpop.permute.xlu0 %5947
        %5949 = vrot.lane.b32.xlu0 %v5871, 96
        %v5950 = vpop.permute.xlu0 %5949
        %5951 = vrot.lane.b32.xlu0 %v5872, 96
        %v5952 = vpop.permute.xlu0 %5951
        %5953 = vrot.lane.b32.xlu0 %v5873, 96
        %v5954 = vpop.permute.xlu0 %5953
        %5955 = vrot.lane.b32.xlu0 %v5874, 96
        %v5956 = vpop.permute.xlu0 %5955
        %5957 = vrot.lane.b32.xlu0 %v5875, 96
        %v5958 = vpop.permute.xlu0 %5957
        %5959 = vrot.lane.b32.xlu0 %v5876, 96
        %v5960 = vpop.permute.xlu0 %5959
        %5961 = vrot.lane.b32.xlu0 %v5877, 96
        %v5962 = vpop.permute.xlu0 %5961
        %5963 = vrot.lane.b32.xlu0 %v5878, 96
        %v5964 = vpop.permute.xlu0 %5963
        %5965 = vrot.lane.b32.xlu0 %v5879, 96
        %v5966 = vpop.permute.xlu0 %5965
        %5967 = vrot.lane.b32.xlu0 %v5880, 96
        %v5968 = vpop.permute.xlu0 %5967
        %5969 = vrot.lane.b32.xlu0 %v5881, 96
        %v5970 = vpop.permute.xlu0 %5969
        %5971 = vrot.lane.b32.xlu0 %v5882, 96
        %v5972 = vpop.permute.xlu0 %5971
        %5973 = vrot.lane.b32.xlu0 %v5883, 96
        %v5974 = vpop.permute.xlu0 %5973
        %5975 = vrot.lane.b32.xlu0 %v5884, 96
        %v5976 = vpop.permute.xlu0 %5975
        %5977 = vrot.lane.b32.xlu0 %v5885, 96
        %v5978 = vpop.permute.xlu0 %5977
        %5979 = vrot.lane.b32.xlu0 %v5886, 96
        %v5980 = vpop.permute.xlu0 %5979
        %5981 = vrot.lane.b32.xlu0 %v5887, 96
        %v5982 = vpop.permute.xlu0 %5981
        %5983 = vrot.lane.b32.xlu0 %v5888, 96
        %v5984 = vpop.permute.xlu0 %5983
        %6017 = vst.msk [vmem:[#allocation3] sm:$0xff] %vm1910, %v5922
        %6018 = vst.msk [vmem:[#allocation3 + $0x18] sm:$0xff] %vm1910, %v5924
        %6019 = vst.msk [vmem:[#allocation3 + $0x30] sm:$0xff] %vm1910, %v5926
        %6020 = vst.msk [vmem:[#allocation3 + $0x48] sm:$0xff] %vm1910, %v5928
        %6021 = vst.msk [vmem:[#allocation3 + $0x60] sm:$0xff] %vm1910, %v5930
        %6022 = vst.msk [vmem:[#allocation3 + $0x78] sm:$0xff] %vm1910, %v5932
        %6023 = vst.msk [vmem:[#allocation3 + $0x90] sm:$0xff] %vm1910, %v5934
        %6024 = vst.msk [vmem:[#allocation3 + $0xa8] sm:$0xff] %vm1910, %v5936
        %6025 = vst.msk [vmem:[#allocation3 + $0xc0] sm:$0xff] %vm1910, %v5938
        %6026 = vst.msk [vmem:[#allocation3 + $0xd8] sm:$0xff] %vm1910, %v5940
        %6027 = vst.msk [vmem:[#allocation3 + $0xf0] sm:$0xff] %vm1910, %v5942
        %6028 = vst.msk [vmem:[#allocation3 + $0x108] sm:$0xff] %vm1910, %v5944
        %6029 = vst.msk [vmem:[#allocation3 + $0x120] sm:$0xff] %vm1910, %v5946
        %6030 = vst.msk [vmem:[#allocation3 + $0x138] sm:$0xff] %vm1910, %v5948
        %6031 = vst.msk [vmem:[#allocation3 + $0x150] sm:$0xff] %vm1910, %v5950
        %6032 = vst.msk [vmem:[#allocation3 + $0x168] sm:$0xff] %vm1910, %v5952
        %6033 = vst.msk [vmem:[#allocation3 + $0x180] sm:$0xff] %vm1910, %v5954
        %6034 = vst.msk [vmem:[#allocation3 + $0x198] sm:$0xff] %vm1910, %v5956
        %6035 = vst.msk [vmem:[#allocation3 + $0x1b0] sm:$0xff] %vm1910, %v5958
        %6036 = vst.msk [vmem:[#allocation3 + $0x1c8] sm:$0xff] %vm1910, %v5960
        %6037 = vst.msk [vmem:[#allocation3 + $0x1e0] sm:$0xff] %vm1910, %v5962
        %6038 = vst.msk [vmem:[#allocation3 + $0x1f8] sm:$0xff] %vm1910, %v5964
        %6039 = vst.msk [vmem:[#allocation3 + $0x210] sm:$0xff] %vm1910, %v5966
        %6040 = vst.msk [vmem:[#allocation3 + $0x228] sm:$0xff] %vm1910, %v5968
        %6041 = vst.msk [vmem:[#allocation3 + $0x240] sm:$0xff] %vm1910, %v5970
        %6042 = vst.msk [vmem:[#allocation3 + $0x258] sm:$0xff] %vm1910, %v5972
        %6043 = vst.msk [vmem:[#allocation3 + $0x270] sm:$0xff] %vm1910, %v5974
        %6044 = vst.msk [vmem:[#allocation3 + $0x288] sm:$0xff] %vm1910, %v5976
        %6045 = vst.msk [vmem:[#allocation3 + $0x2a0] sm:$0xff] %vm1910, %v5978
        %6046 = vst.msk [vmem:[#allocation3 + $0x2b8] sm:$0xff] %vm1910, %v5980
        %6047 = vst.msk [vmem:[#allocation3 + $0x2d0] sm:$0xff] %vm1910, %v5982
        %6048 = vst.msk [vmem:[#allocation3 + $0x2e8] sm:$0xff] %vm1910, %v5984
        %v6049 = vld [vmem:[%s810 + $0x12] sm:$0xff]
        %v6050 = vld [vmem:[%s810 + $0x1a] sm:$0xff]
        %v6051 = vld [vmem:[%s810 + $0x4a] sm:$0xff]
        %v6052 = vld [vmem:[%s810 + $0x52] sm:$0xff]
        %v6053 = vld [vmem:[%s810 + $0x82] sm:$0xff]
        %v6054 = vld [vmem:[%s810 + $0x8a] sm:$0xff]
        %v6055 = vld [vmem:[%s810 + $0xba] sm:$0xff]
        %v6056 = vld [vmem:[%s810 + $0xc2] sm:$0xff]
        %v6057 = vld [vmem:[%s810 + $0xf2] sm:$0xff]
        %v6058 = vld [vmem:[%s810 + $0xfa] sm:$0xff]
        %v6059 = vld [vmem:[%s810 + $0x12a] sm:$0xff]
        %v6060 = vld [vmem:[%s810 + $0x132] sm:$0xff]
        %v6061 = vld [vmem:[%s810 + $0x162] sm:$0xff]
        %v6062 = vld [vmem:[%s810 + $0x16a] sm:$0xff]
        %v6063 = vld [vmem:[%s810 + $0x19a] sm:$0xff]
        %v6064 = vld [vmem:[%s810 + $0x1a2] sm:$0xff]
        %v6065 = vld [vmem:[%s810 + $0x1d2] sm:$0xff]
        %v6066 = vld [vmem:[%s810 + $0x1da] sm:$0xff]
        %v6067 = vld [vmem:[%s810 + $0x20a] sm:$0xff]
        %v6068 = vld [vmem:[%s810 + $0x212] sm:$0xff]
        %v6069 = vld [vmem:[%s810 + $0x242] sm:$0xff]
        %v6070 = vld [vmem:[%s810 + $0x24a] sm:$0xff]
        %v6071 = vld [vmem:[%s810 + $0x27a] sm:$0xff]
        %v6072 = vld [vmem:[%s810 + $0x282] sm:$0xff]
        %v6073 = vld [vmem:[%s810 + $0x2b2] sm:$0xff]
        %v6074 = vld [vmem:[%s810 + $0x2ba] sm:$0xff]
        %v6075 = vld [vmem:[%s810 + $0x2ea] sm:$0xff]
        %v6076 = vld [vmem:[%s810 + $0x2f2] sm:$0xff]
        %v6077 = vld [vmem:[%s810 + $0x322] sm:$0xff]
        %v6078 = vld [vmem:[%s810 + $0x32a] sm:$0xff]
        %v6079 = vld [vmem:[%s810 + $0x35a] sm:$0xff]
        %v6080 = vld [vmem:[%s810 + $0x362] sm:$0xff]
        %6081 = vst.msk [vmem:[#allocation3 + $0x8] sm:$0xff] %vm555, %v6049
        %6082 = vst.msk [vmem:[#allocation3 + $0x20] sm:$0xff] %vm555, %v6050
        %6083 = vst.msk [vmem:[#allocation3 + $0x38] sm:$0xff] %vm555, %v6051
        %6084 = vst.msk [vmem:[#allocation3 + $0x50] sm:$0xff] %vm555, %v6052
        %6085 = vst.msk [vmem:[#allocation3 + $0x68] sm:$0xff] %vm555, %v6053
        %6086 = vst.msk [vmem:[#allocation3 + $0x80] sm:$0xff] %vm555, %v6054
        %6087 = vst.msk [vmem:[#allocation3 + $0x98] sm:$0xff] %vm555, %v6055
        %6088 = vst.msk [vmem:[#allocation3 + $0xb0] sm:$0xff] %vm555, %v6056
        %6089 = vst.msk [vmem:[#allocation3 + $0xc8] sm:$0xff] %vm555, %v6057
        %6090 = vst.msk [vmem:[#allocation3 + $0xe0] sm:$0xff] %vm555, %v6058
        %6091 = vst.msk [vmem:[#allocation3 + $0xf8] sm:$0xff] %vm555, %v6059
        %6092 = vst.msk [vmem:[#allocation3 + $0x110] sm:$0xff] %vm555, %v6060
        %6093 = vst.msk [vmem:[#allocation3 + $0x128] sm:$0xff] %vm555, %v6061
        %6094 = vst.msk [vmem:[#allocation3 + $0x140] sm:$0xff] %vm555, %v6062
        %6095 = vst.msk [vmem:[#allocation3 + $0x158] sm:$0xff] %vm555, %v6063
        %6096 = vst.msk [vmem:[#allocation3 + $0x170] sm:$0xff] %vm555, %v6064
        %6097 = vst.msk [vmem:[#allocation3 + $0x188] sm:$0xff] %vm555, %v6065
        %6098 = vst.msk [vmem:[#allocation3 + $0x1a0] sm:$0xff] %vm555, %v6066
        %6099 = vst.msk [vmem:[#allocation3 + $0x1b8] sm:$0xff] %vm555, %v6067
        %6100 = vst.msk [vmem:[#allocation3 + $0x1d0] sm:$0xff] %vm555, %v6068
        %6101 = vst.msk [vmem:[#allocation3 + $0x1e8] sm:$0xff] %vm555, %v6069
        %6102 = vst.msk [vmem:[#allocation3 + $0x200] sm:$0xff] %vm555, %v6070
        %6103 = vst.msk [vmem:[#allocation3 + $0x218] sm:$0xff] %vm555, %v6071
        %6104 = vst.msk [vmem:[#allocation3 + $0x230] sm:$0xff] %vm555, %v6072
        %6105 = vst.msk [vmem:[#allocation3 + $0x248] sm:$0xff] %vm555, %v6073
        %6106 = vst.msk [vmem:[#allocation3 + $0x260] sm:$0xff] %vm555, %v6074
        %6107 = vst.msk [vmem:[#allocation3 + $0x278] sm:$0xff] %vm555, %v6075
        %6108 = vst.msk [vmem:[#allocation3 + $0x290] sm:$0xff] %vm555, %v6076
        %6109 = vst.msk [vmem:[#allocation3 + $0x2a8] sm:$0xff] %vm555, %v6077
        %6110 = vst.msk [vmem:[#allocation3 + $0x2c0] sm:$0xff] %vm555, %v6078
        %6111 = vst.msk [vmem:[#allocation3 + $0x2d8] sm:$0xff] %vm555, %v6079
        %6112 = vst.msk [vmem:[#allocation3 + $0x2f0] sm:$0xff] %vm555, %v6080
        %v6113 = vld [vmem:[%s810 + $0x24] sm:$0xff]
        %v6114 = vld [vmem:[%s810 + $0x2c] sm:$0xff]
        %v6115 = vld [vmem:[%s810 + $0x5c] sm:$0xff]
        %v6116 = vld [vmem:[%s810 + $0x64] sm:$0xff]
        %v6117 = vld [vmem:[%s810 + $0x94] sm:$0xff]
        %v6118 = vld [vmem:[%s810 + $0x9c] sm:$0xff]
        %v6119 = vld [vmem:[%s810 + $0xcc] sm:$0xff]
        %v6120 = vld [vmem:[%s810 + $0xd4] sm:$0xff]
        %v6121 = vld [vmem:[%s810 + $0x104] sm:$0xff]
        %v6122 = vld [vmem:[%s810 + $0x10c] sm:$0xff]
        %v6123 = vld [vmem:[%s810 + $0x13c] sm:$0xff]
        %v6124 = vld [vmem:[%s810 + $0x144] sm:$0xff]
        %v6125 = vld [vmem:[%s810 + $0x174] sm:$0xff]
        %v6126 = vld [vmem:[%s810 + $0x17c] sm:$0xff]
        %v6127 = vld [vmem:[%s810 + $0x1ac] sm:$0xff]
        %v6128 = vld [vmem:[%s810 + $0x1b4] sm:$0xff]
        %v6129 = vld [vmem:[%s810 + $0x1e4] sm:$0xff]
        %v6130 = vld [vmem:[%s810 + $0x1ec] sm:$0xff]
        %v6131 = vld [vmem:[%s810 + $0x21c] sm:$0xff]
        %v6132 = vld [vmem:[%s810 + $0x224] sm:$0xff]
        %v6133 = vld [vmem:[%s810 + $0x254] sm:$0xff]
        %v6134 = vld [vmem:[%s810 + $0x25c] sm:$0xff]
        %v6135 = vld [vmem:[%s810 + $0x28c] sm:$0xff]
        %v6136 = vld [vmem:[%s810 + $0x294] sm:$0xff]
        %v6137 = vld [vmem:[%s810 + $0x2c4] sm:$0xff]
        %v6138 = vld [vmem:[%s810 + $0x2cc] sm:$0xff]
        %v6139 = vld [vmem:[%s810 + $0x2fc] sm:$0xff]
        %v6140 = vld [vmem:[%s810 + $0x304] sm:$0xff]
        %v6141 = vld [vmem:[%s810 + $0x334] sm:$0xff]
        %v6142 = vld [vmem:[%s810 + $0x33c] sm:$0xff]
        %v6143 = vld [vmem:[%s810 + $0x36c] sm:$0xff]
        %v6144 = vld [vmem:[%s810 + $0x374] sm:$0xff]
        %6177 = vrot.lane.b32.xlu0 %v6113, 32
        %v6178 = vpop.permute.xlu0 %6177
        %6179 = vrot.lane.b32.xlu0 %v6114, 32
        %v6180 = vpop.permute.xlu0 %6179
        %6181 = vrot.lane.b32.xlu0 %v6115, 32
        %v6182 = vpop.permute.xlu0 %6181
        %6183 = vrot.lane.b32.xlu0 %v6116, 32
        %v6184 = vpop.permute.xlu0 %6183
        %6185 = vrot.lane.b32.xlu0 %v6117, 32
        %v6186 = vpop.permute.xlu0 %6185
        %6187 = vrot.lane.b32.xlu0 %v6118, 32
        %v6188 = vpop.permute.xlu0 %6187
        %6189 = vrot.lane.b32.xlu0 %v6119, 32
        %v6190 = vpop.permute.xlu0 %6189
        %6191 = vrot.lane.b32.xlu0 %v6120, 32
        %v6192 = vpop.permute.xlu0 %6191
        %6193 = vrot.lane.b32.xlu0 %v6121, 32
        %v6194 = vpop.permute.xlu0 %6193
        %6195 = vrot.lane.b32.xlu0 %v6122, 32
        %v6196 = vpop.permute.xlu0 %6195
        %6197 = vrot.lane.b32.xlu0 %v6123, 32
        %v6198 = vpop.permute.xlu0 %6197
        %6199 = vrot.lane.b32.xlu0 %v6124, 32
        %v6200 = vpop.permute.xlu0 %6199
        %6201 = vrot.lane.b32.xlu0 %v6125, 32
        %v6202 = vpop.permute.xlu0 %6201
        %6203 = vrot.lane.b32.xlu0 %v6126, 32
        %v6204 = vpop.permute.xlu0 %6203
        %6205 = vrot.lane.b32.xlu0 %v6127, 32
        %v6206 = vpop.permute.xlu0 %6205
        %6207 = vrot.lane.b32.xlu0 %v6128, 32
        %v6208 = vpop.permute.xlu0 %6207
        %6209 = vrot.lane.b32.xlu0 %v6129, 32
        %v6210 = vpop.permute.xlu0 %6209
        %6211 = vrot.lane.b32.xlu0 %v6130, 32
        %v6212 = vpop.permute.xlu0 %6211
        %6213 = vrot.lane.b32.xlu0 %v6131, 32
        %v6214 = vpop.permute.xlu0 %6213
        %6215 = vrot.lane.b32.xlu0 %v6132, 32
        %v6216 = vpop.permute.xlu0 %6215
        %6217 = vrot.lane.b32.xlu0 %v6133, 32
        %v6218 = vpop.permute.xlu0 %6217
        %6219 = vrot.lane.b32.xlu0 %v6134, 32
        %v6220 = vpop.permute.xlu0 %6219
        %6221 = vrot.lane.b32.xlu0 %v6135, 32
        %v6222 = vpop.permute.xlu0 %6221
        %6223 = vrot.lane.b32.xlu0 %v6136, 32
        %v6224 = vpop.permute.xlu0 %6223
        %6225 = vrot.lane.b32.xlu0 %v6137, 32
        %v6226 = vpop.permute.xlu0 %6225
        %6227 = vrot.lane.b32.xlu0 %v6138, 32
        %v6228 = vpop.permute.xlu0 %6227
        %6229 = vrot.lane.b32.xlu0 %v6139, 32
        %v6230 = vpop.permute.xlu0 %6229
        %6231 = vrot.lane.b32.xlu0 %v6140, 32
        %v6232 = vpop.permute.xlu0 %6231
        %6233 = vrot.lane.b32.xlu0 %v6141, 32
        %v6234 = vpop.permute.xlu0 %6233
        %6235 = vrot.lane.b32.xlu0 %v6142, 32
        %v6236 = vpop.permute.xlu0 %6235
        %6237 = vrot.lane.b32.xlu0 %v6143, 32
        %v6238 = vpop.permute.xlu0 %6237
        %6239 = vrot.lane.b32.xlu0 %v6144, 32
        %v6240 = vpop.permute.xlu0 %6239
        %6273 = vst.msk [vmem:[#allocation3 + $0x8] sm:$0xff] %vm1524, %v6178
        %6274 = vst.msk [vmem:[#allocation3 + $0x20] sm:$0xff] %vm1524, %v6180
        %6275 = vst.msk [vmem:[#allocation3 + $0x38] sm:$0xff] %vm1524, %v6182
        %6276 = vst.msk [vmem:[#allocation3 + $0x50] sm:$0xff] %vm1524, %v6184
        %6277 = vst.msk [vmem:[#allocation3 + $0x68] sm:$0xff] %vm1524, %v6186
        %6278 = vst.msk [vmem:[#allocation3 + $0x80] sm:$0xff] %vm1524, %v6188
        %6279 = vst.msk [vmem:[#allocation3 + $0x98] sm:$0xff] %vm1524, %v6190
        %6280 = vst.msk [vmem:[#allocation3 + $0xb0] sm:$0xff] %vm1524, %v6192
        %6281 = vst.msk [vmem:[#allocation3 + $0xc8] sm:$0xff] %vm1524, %v6194
        %6282 = vst.msk [vmem:[#allocation3 + $0xe0] sm:$0xff] %vm1524, %v6196
        %6283 = vst.msk [vmem:[#allocation3 + $0xf8] sm:$0xff] %vm1524, %v6198
        %6284 = vst.msk [vmem:[#allocation3 + $0x110] sm:$0xff] %vm1524, %v6200
        %6285 = vst.msk [vmem:[#allocation3 + $0x128] sm:$0xff] %vm1524, %v6202
        %6286 = vst.msk [vmem:[#allocation3 + $0x140] sm:$0xff] %vm1524, %v6204
        %6287 = vst.msk [vmem:[#allocation3 + $0x158] sm:$0xff] %vm1524, %v6206
        %6288 = vst.msk [vmem:[#allocation3 + $0x170] sm:$0xff] %vm1524, %v6208
        %6289 = vst.msk [vmem:[#allocation3 + $0x188] sm:$0xff] %vm1524, %v6210
        %6290 = vst.msk [vmem:[#allocation3 + $0x1a0] sm:$0xff] %vm1524, %v6212
        %6291 = vst.msk [vmem:[#allocation3 + $0x1b8] sm:$0xff] %vm1524, %v6214
        %6292 = vst.msk [vmem:[#allocation3 + $0x1d0] sm:$0xff] %vm1524, %v6216
        %6293 = vst.msk [vmem:[#allocation3 + $0x1e8] sm:$0xff] %vm1524, %v6218
        %6294 = vst.msk [vmem:[#allocation3 + $0x200] sm:$0xff] %vm1524, %v6220
        %6295 = vst.msk [vmem:[#allocation3 + $0x218] sm:$0xff] %vm1524, %v6222
        %6296 = vst.msk [vmem:[#allocation3 + $0x230] sm:$0xff] %vm1524, %v6224
        %6297 = vst.msk [vmem:[#allocation3 + $0x248] sm:$0xff] %vm1524, %v6226
        %6298 = vst.msk [vmem:[#allocation3 + $0x260] sm:$0xff] %vm1524, %v6228
        %6299 = vst.msk [vmem:[#allocation3 + $0x278] sm:$0xff] %vm1524, %v6230
        %6300 = vst.msk [vmem:[#allocation3 + $0x290] sm:$0xff] %vm1524, %v6232
        %6301 = vst.msk [vmem:[#allocation3 + $0x2a8] sm:$0xff] %vm1524, %v6234
        %6302 = vst.msk [vmem:[#allocation3 + $0x2c0] sm:$0xff] %vm1524, %v6236
        %6303 = vst.msk [vmem:[#allocation3 + $0x2d8] sm:$0xff] %vm1524, %v6238
        %6304 = vst.msk [vmem:[#allocation3 + $0x2f0] sm:$0xff] %vm1524, %v6240
        %s6305 = scalar_lea.vmem [#allocation2], 2016
        %v6306 = vld [vmem:[%s6305] sm:$0xff]
        %v6307 = vld [vmem:[%s6305 + $0x8] sm:$0xff]
        %v6308 = vld [vmem:[%s6305 + $0x38] sm:$0xff]
        %v6309 = vld [vmem:[%s6305 + $0x40] sm:$0xff]
        %v6310 = vld [vmem:[%s6305 + $0x70] sm:$0xff]
        %v6311 = vld [vmem:[%s6305 + $0x78] sm:$0xff]
        %v6312 = vld [vmem:[%s6305 + $0xa8] sm:$0xff]
        %v6313 = vld [vmem:[%s6305 + $0xb0] sm:$0xff]
        %v6314 = vld [vmem:[%s6305 + $0xe0] sm:$0xff]
        %v6315 = vld [vmem:[%s6305 + $0xe8] sm:$0xff]
        %v6316 = vld [vmem:[%s6305 + $0x118] sm:$0xff]
        %v6317 = vld [vmem:[%s6305 + $0x120] sm:$0xff]
        %v6318 = vld [vmem:[%s6305 + $0x150] sm:$0xff]
        %v6319 = vld [vmem:[%s6305 + $0x158] sm:$0xff]
        %v6320 = vld [vmem:[%s6305 + $0x188] sm:$0xff]
        %v6321 = vld [vmem:[%s6305 + $0x190] sm:$0xff]
        %v6322 = vld [vmem:[%s6305 + $0x1c0] sm:$0xff]
        %v6323 = vld [vmem:[%s6305 + $0x1c8] sm:$0xff]
        %v6324 = vld [vmem:[%s6305 + $0x1f8] sm:$0xff]
        %v6325 = vld [vmem:[%s6305 + $0x200] sm:$0xff]
        %v6326 = vld [vmem:[%s6305 + $0x230] sm:$0xff]
        %v6327 = vld [vmem:[%s6305 + $0x238] sm:$0xff]
        %v6328 = vld [vmem:[%s6305 + $0x268] sm:$0xff]
        %v6329 = vld [vmem:[%s6305 + $0x270] sm:$0xff]
        %v6330 = vld [vmem:[%s6305 + $0x2a0] sm:$0xff]
        %v6331 = vld [vmem:[%s6305 + $0x2a8] sm:$0xff]
        %v6332 = vld [vmem:[%s6305 + $0x2d8] sm:$0xff]
        %v6333 = vld [vmem:[%s6305 + $0x2e0] sm:$0xff]
        %v6334 = vld [vmem:[%s6305 + $0x310] sm:$0xff]
        %v6335 = vld [vmem:[%s6305 + $0x318] sm:$0xff]
        %v6336 = vld [vmem:[%s6305 + $0x348] sm:$0xff]
        %v6337 = vld [vmem:[%s6305 + $0x350] sm:$0xff]
        %6370 = vrot.lane.b32.xlu0 %v6306, 64
        %v6371 = vpop.permute.xlu0 %6370
        %6372 = vrot.lane.b32.xlu0 %v6307, 64
        %v6373 = vpop.permute.xlu0 %6372
        %6374 = vrot.lane.b32.xlu0 %v6308, 64
        %v6375 = vpop.permute.xlu0 %6374
        %6376 = vrot.lane.b32.xlu0 %v6309, 64
        %v6377 = vpop.permute.xlu0 %6376
        %6378 = vrot.lane.b32.xlu0 %v6310, 64
        %v6379 = vpop.permute.xlu0 %6378
        %6380 = vrot.lane.b32.xlu0 %v6311, 64
        %v6381 = vpop.permute.xlu0 %6380
        %6382 = vrot.lane.b32.xlu0 %v6312, 64
        %v6383 = vpop.permute.xlu0 %6382
        %6384 = vrot.lane.b32.xlu0 %v6313, 64
        %v6385 = vpop.permute.xlu0 %6384
        %6386 = vrot.lane.b32.xlu0 %v6314, 64
        %v6387 = vpop.permute.xlu0 %6386
        %6388 = vrot.lane.b32.xlu0 %v6315, 64
        %v6389 = vpop.permute.xlu0 %6388
        %6390 = vrot.lane.b32.xlu0 %v6316, 64
        %v6391 = vpop.permute.xlu0 %6390
        %6392 = vrot.lane.b32.xlu0 %v6317, 64
        %v6393 = vpop.permute.xlu0 %6392
        %6394 = vrot.lane.b32.xlu0 %v6318, 64
        %v6395 = vpop.permute.xlu0 %6394
        %6396 = vrot.lane.b32.xlu0 %v6319, 64
        %v6397 = vpop.permute.xlu0 %6396
        %6398 = vrot.lane.b32.xlu0 %v6320, 64
        %v6399 = vpop.permute.xlu0 %6398
        %6400 = vrot.lane.b32.xlu0 %v6321, 64
        %v6401 = vpop.permute.xlu0 %6400
        %6402 = vrot.lane.b32.xlu0 %v6322, 64
        %v6403 = vpop.permute.xlu0 %6402
        %6404 = vrot.lane.b32.xlu0 %v6323, 64
        %v6405 = vpop.permute.xlu0 %6404
        %6406 = vrot.lane.b32.xlu0 %v6324, 64
        %v6407 = vpop.permute.xlu0 %6406
        %6408 = vrot.lane.b32.xlu0 %v6325, 64
        %v6409 = vpop.permute.xlu0 %6408
        %6410 = vrot.lane.b32.xlu0 %v6326, 64
        %v6411 = vpop.permute.xlu0 %6410
        %6412 = vrot.lane.b32.xlu0 %v6327, 64
        %v6413 = vpop.permute.xlu0 %6412
        %6414 = vrot.lane.b32.xlu0 %v6328, 64
        %v6415 = vpop.permute.xlu0 %6414
        %6416 = vrot.lane.b32.xlu0 %v6329, 64
        %v6417 = vpop.permute.xlu0 %6416
        %6418 = vrot.lane.b32.xlu0 %v6330, 64
        %v6419 = vpop.permute.xlu0 %6418
        %6420 = vrot.lane.b32.xlu0 %v6331, 64
        %v6421 = vpop.permute.xlu0 %6420
        %6422 = vrot.lane.b32.xlu0 %v6332, 64
        %v6423 = vpop.permute.xlu0 %6422
        %6424 = vrot.lane.b32.xlu0 %v6333, 64
        %v6425 = vpop.permute.xlu0 %6424
        %6426 = vrot.lane.b32.xlu0 %v6334, 64
        %v6427 = vpop.permute.xlu0 %6426
        %6428 = vrot.lane.b32.xlu0 %v6335, 64
        %v6429 = vpop.permute.xlu0 %6428
        %6430 = vrot.lane.b32.xlu0 %v6336, 64
        %v6431 = vpop.permute.xlu0 %6430
        %6432 = vrot.lane.b32.xlu0 %v6337, 64
        %v6433 = vpop.permute.xlu0 %6432
        %6466 = vst.msk [vmem:[#allocation3 + $0x8] sm:$0xff] %vm1717, %v6371
        %6467 = vst.msk [vmem:[#allocation3 + $0x20] sm:$0xff] %vm1717, %v6373
        %6468 = vst.msk [vmem:[#allocation3 + $0x38] sm:$0xff] %vm1717, %v6375
        %6469 = vst.msk [vmem:[#allocation3 + $0x50] sm:$0xff] %vm1717, %v6377
        %6470 = vst.msk [vmem:[#allocation3 + $0x68] sm:$0xff] %vm1717, %v6379
        %6471 = vst.msk [vmem:[#allocation3 + $0x80] sm:$0xff] %vm1717, %v6381
        %6472 = vst.msk [vmem:[#allocation3 + $0x98] sm:$0xff] %vm1717, %v6383
        %6473 = vst.msk [vmem:[#allocation3 + $0xb0] sm:$0xff] %vm1717, %v6385
        %6474 = vst.msk [vmem:[#allocation3 + $0xc8] sm:$0xff] %vm1717, %v6387
        %6475 = vst.msk [vmem:[#allocation3 + $0xe0] sm:$0xff] %vm1717, %v6389
        %6476 = vst.msk [vmem:[#allocation3 + $0xf8] sm:$0xff] %vm1717, %v6391
        %6477 = vst.msk [vmem:[#allocation3 + $0x110] sm:$0xff] %vm1717, %v6393
        %6478 = vst.msk [vmem:[#allocation3 + $0x128] sm:$0xff] %vm1717, %v6395
        %6479 = vst.msk [vmem:[#allocation3 + $0x140] sm:$0xff] %vm1717, %v6397
        %6480 = vst.msk [vmem:[#allocation3 + $0x158] sm:$0xff] %vm1717, %v6399
        %6481 = vst.msk [vmem:[#allocation3 + $0x170] sm:$0xff] %vm1717, %v6401
        %6482 = vst.msk [vmem:[#allocation3 + $0x188] sm:$0xff] %vm1717, %v6403
        %6483 = vst.msk [vmem:[#allocation3 + $0x1a0] sm:$0xff] %vm1717, %v6405
        %6484 = vst.msk [vmem:[#allocation3 + $0x1b8] sm:$0xff] %vm1717, %v6407
        %6485 = vst.msk [vmem:[#allocation3 + $0x1d0] sm:$0xff] %vm1717, %v6409
        %6486 = vst.msk [vmem:[#allocation3 + $0x1e8] sm:$0xff] %vm1717, %v6411
        %6487 = vst.msk [vmem:[#allocation3 + $0x200] sm:$0xff] %vm1717, %v6413
        %6488 = vst.msk [vmem:[#allocation3 + $0x218] sm:$0xff] %vm1717, %v6415
        %6489 = vst.msk [vmem:[#allocation3 + $0x230] sm:$0xff] %vm1717, %v6417
        %6490 = vst.msk [vmem:[#allocation3 + $0x248] sm:$0xff] %vm1717, %v6419
        %6491 = vst.msk [vmem:[#allocation3 + $0x260] sm:$0xff] %vm1717, %v6421
        %6492 = vst.msk [vmem:[#allocation3 + $0x278] sm:$0xff] %vm1717, %v6423
        %6493 = vst.msk [vmem:[#allocation3 + $0x290] sm:$0xff] %vm1717, %v6425
        %6494 = vst.msk [vmem:[#allocation3 + $0x2a8] sm:$0xff] %vm1717, %v6427
        %6495 = vst.msk [vmem:[#allocation3 + $0x2c0] sm:$0xff] %vm1717, %v6429
        %6496 = vst.msk [vmem:[#allocation3 + $0x2d8] sm:$0xff] %vm1717, %v6431
        %6497 = vst.msk [vmem:[#allocation3 + $0x2f0] sm:$0xff] %vm1717, %v6433
        %v6498 = vld [vmem:[%s6305 + $0x12] sm:$0xff]
        %v6499 = vld [vmem:[%s6305 + $0x1a] sm:$0xff]
        %v6500 = vld [vmem:[%s6305 + $0x4a] sm:$0xff]
        %v6501 = vld [vmem:[%s6305 + $0x52] sm:$0xff]
        %v6502 = vld [vmem:[%s6305 + $0x82] sm:$0xff]
        %v6503 = vld [vmem:[%s6305 + $0x8a] sm:$0xff]
        %v6504 = vld [vmem:[%s6305 + $0xba] sm:$0xff]
        %v6505 = vld [vmem:[%s6305 + $0xc2] sm:$0xff]
        %v6506 = vld [vmem:[%s6305 + $0xf2] sm:$0xff]
        %v6507 = vld [vmem:[%s6305 + $0xfa] sm:$0xff]
        %v6508 = vld [vmem:[%s6305 + $0x12a] sm:$0xff]
        %v6509 = vld [vmem:[%s6305 + $0x132] sm:$0xff]
        %v6510 = vld [vmem:[%s6305 + $0x162] sm:$0xff]
        %v6511 = vld [vmem:[%s6305 + $0x16a] sm:$0xff]
        %v6512 = vld [vmem:[%s6305 + $0x19a] sm:$0xff]
        %v6513 = vld [vmem:[%s6305 + $0x1a2] sm:$0xff]
        %v6514 = vld [vmem:[%s6305 + $0x1d2] sm:$0xff]
        %v6515 = vld [vmem:[%s6305 + $0x1da] sm:$0xff]
        %v6516 = vld [vmem:[%s6305 + $0x20a] sm:$0xff]
        %v6517 = vld [vmem:[%s6305 + $0x212] sm:$0xff]
        %v6518 = vld [vmem:[%s6305 + $0x242] sm:$0xff]
        %v6519 = vld [vmem:[%s6305 + $0x24a] sm:$0xff]
        %v6520 = vld [vmem:[%s6305 + $0x27a] sm:$0xff]
        %v6521 = vld [vmem:[%s6305 + $0x282] sm:$0xff]
        %v6522 = vld [vmem:[%s6305 + $0x2b2] sm:$0xff]
        %v6523 = vld [vmem:[%s6305 + $0x2ba] sm:$0xff]
        %v6524 = vld [vmem:[%s6305 + $0x2ea] sm:$0xff]
        %v6525 = vld [vmem:[%s6305 + $0x2f2] sm:$0xff]
        %v6526 = vld [vmem:[%s6305 + $0x322] sm:$0xff]
        %v6527 = vld [vmem:[%s6305 + $0x32a] sm:$0xff]
        %v6528 = vld [vmem:[%s6305 + $0x35a] sm:$0xff]
        %v6529 = vld [vmem:[%s6305 + $0x362] sm:$0xff]
        %6562 = vrot.lane.b32.xlu0 %v6498, 96
        %v6563 = vpop.permute.xlu0 %6562
        %6564 = vrot.lane.b32.xlu0 %v6499, 96
        %v6565 = vpop.permute.xlu0 %6564
        %6566 = vrot.lane.b32.xlu0 %v6500, 96
        %v6567 = vpop.permute.xlu0 %6566
        %6568 = vrot.lane.b32.xlu0 %v6501, 96
        %v6569 = vpop.permute.xlu0 %6568
        %6570 = vrot.lane.b32.xlu0 %v6502, 96
        %v6571 = vpop.permute.xlu0 %6570
        %6572 = vrot.lane.b32.xlu0 %v6503, 96
        %v6573 = vpop.permute.xlu0 %6572
        %6574 = vrot.lane.b32.xlu0 %v6504, 96
        %v6575 = vpop.permute.xlu0 %6574
        %6576 = vrot.lane.b32.xlu0 %v6505, 96
        %v6577 = vpop.permute.xlu0 %6576
        %6578 = vrot.lane.b32.xlu0 %v6506, 96
        %v6579 = vpop.permute.xlu0 %6578
        %6580 = vrot.lane.b32.xlu0 %v6507, 96
        %v6581 = vpop.permute.xlu0 %6580
        %6582 = vrot.lane.b32.xlu0 %v6508, 96
        %v6583 = vpop.permute.xlu0 %6582
        %6584 = vrot.lane.b32.xlu0 %v6509, 96
        %v6585 = vpop.permute.xlu0 %6584
        %6586 = vrot.lane.b32.xlu0 %v6510, 96
        %v6587 = vpop.permute.xlu0 %6586
        %6588 = vrot.lane.b32.xlu0 %v6511, 96
        %v6589 = vpop.permute.xlu0 %6588
        %6590 = vrot.lane.b32.xlu0 %v6512, 96
        %v6591 = vpop.permute.xlu0 %6590
        %6592 = vrot.lane.b32.xlu0 %v6513, 96
        %v6593 = vpop.permute.xlu0 %6592
        %6594 = vrot.lane.b32.xlu0 %v6514, 96
        %v6595 = vpop.permute.xlu0 %6594
        %6596 = vrot.lane.b32.xlu0 %v6515, 96
        %v6597 = vpop.permute.xlu0 %6596
        %6598 = vrot.lane.b32.xlu0 %v6516, 96
        %v6599 = vpop.permute.xlu0 %6598
        %6600 = vrot.lane.b32.xlu0 %v6517, 96
        %v6601 = vpop.permute.xlu0 %6600
        %6602 = vrot.lane.b32.xlu0 %v6518, 96
        %v6603 = vpop.permute.xlu0 %6602
        %6604 = vrot.lane.b32.xlu0 %v6519, 96
        %v6605 = vpop.permute.xlu0 %6604
        %6606 = vrot.lane.b32.xlu0 %v6520, 96
        %v6607 = vpop.permute.xlu0 %6606
        %6608 = vrot.lane.b32.xlu0 %v6521, 96
        %v6609 = vpop.permute.xlu0 %6608
        %6610 = vrot.lane.b32.xlu0 %v6522, 96
        %v6611 = vpop.permute.xlu0 %6610
        %6612 = vrot.lane.b32.xlu0 %v6523, 96
        %v6613 = vpop.permute.xlu0 %6612
        %6614 = vrot.lane.b32.xlu0 %v6524, 96
        %v6615 = vpop.permute.xlu0 %6614
        %6616 = vrot.lane.b32.xlu0 %v6525, 96
        %v6617 = vpop.permute.xlu0 %6616
        %6618 = vrot.lane.b32.xlu0 %v6526, 96
        %v6619 = vpop.permute.xlu0 %6618
        %6620 = vrot.lane.b32.xlu0 %v6527, 96
        %v6621 = vpop.permute.xlu0 %6620
        %6622 = vrot.lane.b32.xlu0 %v6528, 96
        %v6623 = vpop.permute.xlu0 %6622
        %6624 = vrot.lane.b32.xlu0 %v6529, 96
        %v6625 = vpop.permute.xlu0 %6624
        %6658 = vst.msk [vmem:[#allocation3 + $0x8] sm:$0xff] %vm1910, %v6563
        %6659 = vst.msk [vmem:[#allocation3 + $0x20] sm:$0xff] %vm1910, %v6565
        %6660 = vst.msk [vmem:[#allocation3 + $0x38] sm:$0xff] %vm1910, %v6567
        %6661 = vst.msk [vmem:[#allocation3 + $0x50] sm:$0xff] %vm1910, %v6569
        %6662 = vst.msk [vmem:[#allocation3 + $0x68] sm:$0xff] %vm1910, %v6571
        %6663 = vst.msk [vmem:[#allocation3 + $0x80] sm:$0xff] %vm1910, %v6573
        %6664 = vst.msk [vmem:[#allocation3 + $0x98] sm:$0xff] %vm1910, %v6575
        %6665 = vst.msk [vmem:[#allocation3 + $0xb0] sm:$0xff] %vm1910, %v6577
        %6666 = vst.msk [vmem:[#allocation3 + $0xc8] sm:$0xff] %vm1910, %v6579
        %6667 = vst.msk [vmem:[#allocation3 + $0xe0] sm:$0xff] %vm1910, %v6581
        %6668 = vst.msk [vmem:[#allocation3 + $0xf8] sm:$0xff] %vm1910, %v6583
        %6669 = vst.msk [vmem:[#allocation3 + $0x110] sm:$0xff] %vm1910, %v6585
        %6670 = vst.msk [vmem:[#allocation3 + $0x128] sm:$0xff] %vm1910, %v6587
        %6671 = vst.msk [vmem:[#allocation3 + $0x140] sm:$0xff] %vm1910, %v6589
        %6672 = vst.msk [vmem:[#allocation3 + $0x158] sm:$0xff] %vm1910, %v6591
        %6673 = vst.msk [vmem:[#allocation3 + $0x170] sm:$0xff] %vm1910, %v6593
        %6674 = vst.msk [vmem:[#allocation3 + $0x188] sm:$0xff] %vm1910, %v6595
        %6675 = vst.msk [vmem:[#allocation3 + $0x1a0] sm:$0xff] %vm1910, %v6597
        %6676 = vst.msk [vmem:[#allocation3 + $0x1b8] sm:$0xff] %vm1910, %v6599
        %6677 = vst.msk [vmem:[#allocation3 + $0x1d0] sm:$0xff] %vm1910, %v6601
        %6678 = vst.msk [vmem:[#allocation3 + $0x1e8] sm:$0xff] %vm1910, %v6603
        %6679 = vst.msk [vmem:[#allocation3 + $0x200] sm:$0xff] %vm1910, %v6605
        %6680 = vst.msk [vmem:[#allocation3 + $0x218] sm:$0xff] %vm1910, %v6607
        %6681 = vst.msk [vmem:[#allocation3 + $0x230] sm:$0xff] %vm1910, %v6609
        %6682 = vst.msk [vmem:[#allocation3 + $0x248] sm:$0xff] %vm1910, %v6611
        %6683 = vst.msk [vmem:[#allocation3 + $0x260] sm:$0xff] %vm1910, %v6613
        %6684 = vst.msk [vmem:[#allocation3 + $0x278] sm:$0xff] %vm1910, %v6615
        %6685 = vst.msk [vmem:[#allocation3 + $0x290] sm:$0xff] %vm1910, %v6617
        %6686 = vst.msk [vmem:[#allocation3 + $0x2a8] sm:$0xff] %vm1910, %v6619
        %6687 = vst.msk [vmem:[#allocation3 + $0x2c0] sm:$0xff] %vm1910, %v6621
        %6688 = vst.msk [vmem:[#allocation3 + $0x2d8] sm:$0xff] %vm1910, %v6623
        %6689 = vst.msk [vmem:[#allocation3 + $0x2f0] sm:$0xff] %vm1910, %v6625
        %v6690 = vld [vmem:[%s6305 + $0x24] sm:$0xff]
        %v6691 = vld [vmem:[%s6305 + $0x2c] sm:$0xff]
        %v6692 = vld [vmem:[%s6305 + $0x5c] sm:$0xff]
        %v6693 = vld [vmem:[%s6305 + $0x64] sm:$0xff]
        %v6694 = vld [vmem:[%s6305 + $0x94] sm:$0xff]
        %v6695 = vld [vmem:[%s6305 + $0x9c] sm:$0xff]
        %v6696 = vld [vmem:[%s6305 + $0xcc] sm:$0xff]
        %v6697 = vld [vmem:[%s6305 + $0xd4] sm:$0xff]
        %v6698 = vld [vmem:[%s6305 + $0x104] sm:$0xff]
        %v6699 = vld [vmem:[%s6305 + $0x10c] sm:$0xff]
        %v6700 = vld [vmem:[%s6305 + $0x13c] sm:$0xff]
        %v6701 = vld [vmem:[%s6305 + $0x144] sm:$0xff]
        %v6702 = vld [vmem:[%s6305 + $0x174] sm:$0xff]
        %v6703 = vld [vmem:[%s6305 + $0x17c] sm:$0xff]
        %v6704 = vld [vmem:[%s6305 + $0x1ac] sm:$0xff]
        %v6705 = vld [vmem:[%s6305 + $0x1b4] sm:$0xff]
        %v6706 = vld [vmem:[%s6305 + $0x1e4] sm:$0xff]
        %v6707 = vld [vmem:[%s6305 + $0x1ec] sm:$0xff]
        %v6708 = vld [vmem:[%s6305 + $0x21c] sm:$0xff]
        %v6709 = vld [vmem:[%s6305 + $0x224] sm:$0xff]
        %v6710 = vld [vmem:[%s6305 + $0x254] sm:$0xff]
        %v6711 = vld [vmem:[%s6305 + $0x25c] sm:$0xff]
        %v6712 = vld [vmem:[%s6305 + $0x28c] sm:$0xff]
        %v6713 = vld [vmem:[%s6305 + $0x294] sm:$0xff]
        %v6714 = vld [vmem:[%s6305 + $0x2c4] sm:$0xff]
        %v6715 = vld [vmem:[%s6305 + $0x2cc] sm:$0xff]
        %v6716 = vld [vmem:[%s6305 + $0x2fc] sm:$0xff]
        %v6717 = vld [vmem:[%s6305 + $0x304] sm:$0xff]
        %v6718 = vld [vmem:[%s6305 + $0x334] sm:$0xff]
        %v6719 = vld [vmem:[%s6305 + $0x33c] sm:$0xff]
        %v6720 = vld [vmem:[%s6305 + $0x36c] sm:$0xff]
        %v6721 = vld [vmem:[%s6305 + $0x374] sm:$0xff]
        %6722 = vst.msk [vmem:[#allocation3 + $0x10] sm:$0xff] %vm555, %v6690
        %6723 = vst.msk [vmem:[#allocation3 + $0x28] sm:$0xff] %vm555, %v6691
        %6724 = vst.msk [vmem:[#allocation3 + $0x40] sm:$0xff] %vm555, %v6692
        %6725 = vst.msk [vmem:[#allocation3 + $0x58] sm:$0xff] %vm555, %v6693
        %6726 = vst.msk [vmem:[#allocation3 + $0x70] sm:$0xff] %vm555, %v6694
        %6727 = vst.msk [vmem:[#allocation3 + $0x88] sm:$0xff] %vm555, %v6695
        %6728 = vst.msk [vmem:[#allocation3 + $0xa0] sm:$0xff] %vm555, %v6696
        %6729 = vst.msk [vmem:[#allocation3 + $0xb8] sm:$0xff] %vm555, %v6697
        %6730 = vst.msk [vmem:[#allocation3 + $0xd0] sm:$0xff] %vm555, %v6698
        %6731 = vst.msk [vmem:[#allocation3 + $0xe8] sm:$0xff] %vm555, %v6699
        %6732 = vst.msk [vmem:[#allocation3 + $0x100] sm:$0xff] %vm555, %v6700
        %6733 = vst.msk [vmem:[#allocation3 + $0x118] sm:$0xff] %vm555, %v6701
        %6734 = vst.msk [vmem:[#allocation3 + $0x130] sm:$0xff] %vm555, %v6702
        %6735 = vst.msk [vmem:[#allocation3 + $0x148] sm:$0xff] %vm555, %v6703
        %6736 = vst.msk [vmem:[#allocation3 + $0x160] sm:$0xff] %vm555, %v6704
        %6737 = vst.msk [vmem:[#allocation3 + $0x178] sm:$0xff] %vm555, %v6705
        %6738 = vst.msk [vmem:[#allocation3 + $0x190] sm:$0xff] %vm555, %v6706
        %6739 = vst.msk [vmem:[#allocation3 + $0x1a8] sm:$0xff] %vm555, %v6707
        %6740 = vst.msk [vmem:[#allocation3 + $0x1c0] sm:$0xff] %vm555, %v6708
        %6741 = vst.msk [vmem:[#allocation3 + $0x1d8] sm:$0xff] %vm555, %v6709
        %6742 = vst.msk [vmem:[#allocation3 + $0x1f0] sm:$0xff] %vm555, %v6710
        %6743 = vst.msk [vmem:[#allocation3 + $0x208] sm:$0xff] %vm555, %v6711
        %6744 = vst.msk [vmem:[#allocation3 + $0x220] sm:$0xff] %vm555, %v6712
        %6745 = vst.msk [vmem:[#allocation3 + $0x238] sm:$0xff] %vm555, %v6713
        %6746 = vst.msk [vmem:[#allocation3 + $0x250] sm:$0xff] %vm555, %v6714
        %6747 = vst.msk [vmem:[#allocation3 + $0x268] sm:$0xff] %vm555, %v6715
        %6748 = vst.msk [vmem:[#allocation3 + $0x280] sm:$0xff] %vm555, %v6716
        %6749 = vst.msk [vmem:[#allocation3 + $0x298] sm:$0xff] %vm555, %v6717
        %6750 = vst.msk [vmem:[#allocation3 + $0x2b0] sm:$0xff] %vm555, %v6718
        %6751 = vst.msk [vmem:[#allocation3 + $0x2c8] sm:$0xff] %vm555, %v6719
        %6752 = vst.msk [vmem:[#allocation3 + $0x2e0] sm:$0xff] %vm555, %v6720
        %6753 = vst.msk [vmem:[#allocation3 + $0x2f8] sm:$0xff] %vm555, %v6721
        %v6754 = vld [vmem:[#allocation3] sm:$0xff]
        %v6755 = vld [vmem:[#allocation3 + $0x8] sm:$0xff]
        %v6756 = vld [vmem:[#allocation3 + $0x10] sm:$0xff]
        %v6757 = vld [vmem:[#allocation3 + $0x18] sm:$0xff]
        %v6758 = vld [vmem:[#allocation3 + $0x20] sm:$0xff]
        %v6759 = vld [vmem:[#allocation3 + $0x28] sm:$0xff]
        %v6760 = vld [vmem:[#allocation3 + $0x30] sm:$0xff]
        %v6761 = vld [vmem:[#allocation3 + $0x38] sm:$0xff]
        %v6762 = vld [vmem:[#allocation3 + $0x40] sm:$0xff]
        %v6763 = vld [vmem:[#allocation3 + $0x48] sm:$0xff]
        %v6764 = vld [vmem:[#allocation3 + $0x50] sm:$0xff]
        %v6765 = vld [vmem:[#allocation3 + $0x58] sm:$0xff]
        %v6766 = vld [vmem:[#allocation3 + $0x60] sm:$0xff]
        %v6767 = vld [vmem:[#allocation3 + $0x68] sm:$0xff]
        %v6768 = vld [vmem:[#allocation3 + $0x70] sm:$0xff]
        %v6769 = vld [vmem:[#allocation3 + $0x78] sm:$0xff]
        %v6770 = vld [vmem:[#allocation3 + $0x80] sm:$0xff]
        %v6771 = vld [vmem:[#allocation3 + $0x88] sm:$0xff]
        %v6772 = vld [vmem:[#allocation3 + $0x90] sm:$0xff]
        %v6773 = vld [vmem:[#allocation3 + $0x98] sm:$0xff]
        %v6774 = vld [vmem:[#allocation3 + $0xa0] sm:$0xff]
        %v6775 = vld [vmem:[#allocation3 + $0xa8] sm:$0xff]
        %v6776 = vld [vmem:[#allocation3 + $0xb0] sm:$0xff]
        %v6777 = vld [vmem:[#allocation3 + $0xb8] sm:$0xff]
        %v6778 = vld [vmem:[#allocation3 + $0xc0] sm:$0xff]
        %v6779 = vld [vmem:[#allocation3 + $0xc8] sm:$0xff]
        %v6780 = vld [vmem:[#allocation3 + $0xd0] sm:$0xff]
        %v6781 = vld [vmem:[#allocation3 + $0xd8] sm:$0xff]
        %v6782 = vld [vmem:[#allocation3 + $0xe0] sm:$0xff]
        %v6783 = vld [vmem:[#allocation3 + $0xe8] sm:$0xff]
        %v6784 = vld [vmem:[#allocation3 + $0xf0] sm:$0xff]
        %v6785 = vld [vmem:[#allocation3 + $0xf8] sm:$0xff]
        %v6786 = vld [vmem:[#allocation3 + $0x100] sm:$0xff]
        %v6787 = vld [vmem:[#allocation3 + $0x108] sm:$0xff]
        %v6788 = vld [vmem:[#allocation3 + $0x110] sm:$0xff]
        %v6789 = vld [vmem:[#allocation3 + $0x118] sm:$0xff]
        %v6790 = vld [vmem:[#allocation3 + $0x120] sm:$0xff]
        %v6791 = vld [vmem:[#allocation3 + $0x128] sm:$0xff]
        %v6792 = vld [vmem:[#allocation3 + $0x130] sm:$0xff]
        %v6793 = vld [vmem:[#allocation3 + $0x138] sm:$0xff]
        %v6794 = vld [vmem:[#allocation3 + $0x140] sm:$0xff]
        %v6795 = vld [vmem:[#allocation3 + $0x148] sm:$0xff]
        %v6796 = vld [vmem:[#allocation3 + $0x150] sm:$0xff]
        %v6797 = vld [vmem:[#allocation3 + $0x158] sm:$0xff]
        %v6798 = vld [vmem:[#allocation3 + $0x160] sm:$0xff]
        %v6799 = vld [vmem:[#allocation3 + $0x168] sm:$0xff]
        %v6800 = vld [vmem:[#allocation3 + $0x170] sm:$0xff]
        %v6801 = vld [vmem:[#allocation3 + $0x178] sm:$0xff]
        %v6802 = vld [vmem:[#allocation3 + $0x180] sm:$0xff]
        %v6803 = vld [vmem:[#allocation3 + $0x188] sm:$0xff]
        %v6804 = vld [vmem:[#allocation3 + $0x190] sm:$0xff]
        %v6805 = vld [vmem:[#allocation3 + $0x198] sm:$0xff]
        %v6806 = vld [vmem:[#allocation3 + $0x1a0] sm:$0xff]
        %v6807 = vld [vmem:[#allocation3 + $0x1a8] sm:$0xff]
        %v6808 = vld [vmem:[#allocation3 + $0x1b0] sm:$0xff]
        %v6809 = vld [vmem:[#allocation3 + $0x1b8] sm:$0xff]
        %v6810 = vld [vmem:[#allocation3 + $0x1c0] sm:$0xff]
        %v6811 = vld [vmem:[#allocation3 + $0x1c8] sm:$0xff]
        %v6812 = vld [vmem:[#allocation3 + $0x1d0] sm:$0xff]
        %v6813 = vld [vmem:[#allocation3 + $0x1d8] sm:$0xff]
        %v6814 = vld [vmem:[#allocation3 + $0x1e0] sm:$0xff]
        %v6815 = vld [vmem:[#allocation3 + $0x1e8] sm:$0xff]
        %v6816 = vld [vmem:[#allocation3 + $0x1f0] sm:$0xff]
        %v6817 = vld [vmem:[#allocation3 + $0x1f8] sm:$0xff]
        %v6818 = vld [vmem:[#allocation3 + $0x200] sm:$0xff]
        %v6819 = vld [vmem:[#allocation3 + $0x208] sm:$0xff]
        %v6820 = vld [vmem:[#allocation3 + $0x210] sm:$0xff]
        %v6821 = vld [vmem:[#allocation3 + $0x218] sm:$0xff]
        %v6822 = vld [vmem:[#allocation3 + $0x220] sm:$0xff]
        %v6823 = vld [vmem:[#allocation3 + $0x228] sm:$0xff]
        %v6824 = vld [vmem:[#allocation3 + $0x230] sm:$0xff]
        %v6825 = vld [vmem:[#allocation3 + $0x238] sm:$0xff]
        %v6826 = vld [vmem:[#allocation3 + $0x240] sm:$0xff]
        %v6827 = vld [vmem:[#allocation3 + $0x248] sm:$0xff]
        %v6828 = vld [vmem:[#allocation3 + $0x250] sm:$0xff]
        %v6829 = vld [vmem:[#allocation3 + $0x258] sm:$0xff]
        %v6830 = vld [vmem:[#allocation3 + $0x260] sm:$0xff]
        %v6831 = vld [vmem:[#allocation3 + $0x268] sm:$0xff]
        %v6832 = vld [vmem:[#allocation3 + $0x270] sm:$0xff]
        %v6833 = vld [vmem:[#allocation3 + $0x278] sm:$0xff]
        %v6834 = vld [vmem:[#allocation3 + $0x280] sm:$0xff]
        %v6835 = vld [vmem:[#allocation3 + $0x288] sm:$0xff]
        %v6836 = vld [vmem:[#allocation3 + $0x290] sm:$0xff]
        %v6837 = vld [vmem:[#allocation3 + $0x298] sm:$0xff]
        %v6838 = vld [vmem:[#allocation3 + $0x2a0] sm:$0xff]
        %v6839 = vld [vmem:[#allocation3 + $0x2a8] sm:$0xff]
        %v6840 = vld [vmem:[#allocation3 + $0x2b0] sm:$0xff]
        %v6841 = vld [vmem:[#allocation3 + $0x2b8] sm:$0xff]
        %v6842 = vld [vmem:[#allocation3 + $0x2c0] sm:$0xff]
        %v6843 = vld [vmem:[#allocation3 + $0x2c8] sm:$0xff]
        %v6844 = vld [vmem:[#allocation3 + $0x2d0] sm:$0xff]
        %v6845 = vld [vmem:[#allocation3 + $0x2d8] sm:$0xff]
        %v6846 = vld [vmem:[#allocation3 + $0x2e0] sm:$0xff]
        %v6847 = vld [vmem:[#allocation3 + $0x2e8] sm:$0xff]
        %v6848 = vld [vmem:[#allocation3 + $0x2f0] sm:$0xff]
        %v6849 = vld [vmem:[#allocation3 + $0x2f8] sm:$0xff]
        %s6850 = scalar_lea.vmem [#allocation11], 576
        %v6851 = vld [vmem:[%s6850] sm:$0xff]
        %v6852 = vld [vmem:[%s6850 + $0x8] sm:$0xff]
        %v6853 = vld [vmem:[%s6850 + $0x10] sm:$0xff]
        %v6854 = vld [vmem:[%s6850 + $0x18] sm:$0xff]
        %v6855 = vld [vmem:[%s6850 + $0x20] sm:$0xff]
        %v6856 = vld [vmem:[%s6850 + $0x28] sm:$0xff]
        %v6857 = vld [vmem:[%s6850 + $0x30] sm:$0xff]
        %v6858 = vld [vmem:[%s6850 + $0x38] sm:$0xff]
        %v6859 = vld [vmem:[%s6850 + $0x40] sm:$0xff]
        %v6860 = vld [vmem:[%s6850 + $0x48] sm:$0xff]
        %v6861 = vld [vmem:[%s6850 + $0x50] sm:$0xff]
        %v6862 = vld [vmem:[%s6850 + $0x58] sm:$0xff]
        %v6863 = vld [vmem:[%s6850 + $0x60] sm:$0xff]
        %v6864 = vld [vmem:[%s6850 + $0x68] sm:$0xff]
        %v6865 = vld [vmem:[%s6850 + $0x70] sm:$0xff]
        %v6866 = vld [vmem:[%s6850 + $0x78] sm:$0xff]
        %v6867 = vld [vmem:[%s6850 + $0x80] sm:$0xff]
        %v6868 = vld [vmem:[%s6850 + $0x88] sm:$0xff]
        %v6869 = vld [vmem:[%s6850 + $0x90] sm:$0xff]
        %v6870 = vld [vmem:[%s6850 + $0x98] sm:$0xff]
        %v6871 = vld [vmem:[%s6850 + $0xa0] sm:$0xff]
        %v6872 = vld [vmem:[%s6850 + $0xa8] sm:$0xff]
        %v6873 = vld [vmem:[%s6850 + $0xb0] sm:$0xff]
        %v6874 = vld [vmem:[%s6850 + $0xb8] sm:$0xff]
        %v6875 = vld [vmem:[%s6850 + $0xc0] sm:$0xff]
        %v6876 = vld [vmem:[%s6850 + $0xc8] sm:$0xff]
        %v6877 = vld [vmem:[%s6850 + $0xd0] sm:$0xff]
        %v6878 = vld [vmem:[%s6850 + $0xd8] sm:$0xff]
        %v6879 = vld [vmem:[%s6850 + $0xe0] sm:$0xff]
        %v6880 = vld [vmem:[%s6850 + $0xe8] sm:$0xff]
        %v6881 = vld [vmem:[%s6850 + $0xf0] sm:$0xff]
        %v6882 = vld [vmem:[%s6850 + $0xf8] sm:$0xff]
        %v6883 = vld [vmem:[%s6850 + $0x100] sm:$0xff]
        %v6884 = vld [vmem:[%s6850 + $0x108] sm:$0xff]
        %v6885 = vld [vmem:[%s6850 + $0x110] sm:$0xff]
        %v6886 = vld [vmem:[%s6850 + $0x118] sm:$0xff]
        %s6887 = scalar_lea.vmem [#allocation14], 3
        %v6888 = vld [vmem:[%s6887] sm:$0x1]
        %v6890 = vperm.slane %v6888, 0
        %v6893 = vsel %vm555, %v6756, 0
        %v6896 = vsel %vm555, %v6759, 0
        %v6899 = vsel %vm555, %v6762, 0
        %v6902 = vsel %vm555, %v6765, 0
        %v6905 = vsel %vm555, %v6768, 0
        %v6908 = vsel %vm555, %v6771, 0
        %v6911 = vsel %vm555, %v6774, 0
        %v6914 = vsel %vm555, %v6777, 0
        %v6917 = vsel %vm555, %v6780, 0
        %v6920 = vsel %vm555, %v6783, 0
        %v6923 = vsel %vm555, %v6786, 0
        %v6926 = vsel %vm555, %v6789, 0
        %v6929 = vsel %vm555, %v6792, 0
        %v6932 = vsel %vm555, %v6795, 0
        %v6935 = vsel %vm555, %v6798, 0
        %v6938 = vsel %vm555, %v6801, 0
        %v6941 = vsel %vm555, %v6804, 0
        %v6944 = vsel %vm555, %v6807, 0
        %v6947 = vsel %vm555, %v6810, 0
        %v6950 = vsel %vm555, %v6813, 0
        %v6953 = vsel %vm555, %v6816, 0
        %v6956 = vsel %vm555, %v6819, 0
        %v6959 = vsel %vm555, %v6822, 0
        %v6962 = vsel %vm555, %v6825, 0
        %v6965 = vsel %vm555, %v6828, 0
        %v6968 = vsel %vm555, %v6831, 0
        %v6971 = vsel %vm555, %v6834, 0
        %v6974 = vsel %vm555, %v6837, 0
        %v6977 = vsel %vm555, %v6840, 0
        %v6980 = vsel %vm555, %v6843, 0
        %v6983 = vsel %vm555, %v6846, 0
        %v6986 = vsel %vm555, %v6849, 0
        %6988 = vmatpush.msra.mxu0 %v6866
        %6989 = vmatpush.msra.mxu0 %v6865
        %6990 = vmatpush.msra.mxu0 %v6864
        %6991 = vmatpush.msra.mxu0 %v6863
        %6992 = vmatpush.msra.mxu0 %v6862
        %6993 = vmatpush.msra.mxu0 %v6861
        %6994 = vmatpush.msra.mxu0 %v6860
        %6995 = vmatpush.msra.mxu0 %v6859
        %6996 = vmatpush.msra.mxu0 %v6858
        %6997 = vmatpush.msra.mxu0 %v6857
        %6998 = vmatpush.msra.mxu0 %v6856
        %6999 = vmatpush.msra.mxu0 %v6855
        %7000 = vmatpush.msra.mxu0 %v6854
        %7001 = vmatpush.msra.mxu0 %v6853
        %7002 = vmatpush.msra.mxu0 %v6852
        %7003 = vmatpush.msra.mxu0 %v6851
        %7004 = vmatmul.f32.gmra.mxu0 %v6754
        %v7005 = vpop.f32.mrf.mxu0
        %v7006 = vadd.f32 %v6890, %v7005
        %7007 = vmatmul.f32.gmra.mxu0 %v6757
        %v7008 = vpop.f32.mrf.mxu0
        %v7009 = vadd.f32 %v6890, %v7008
        %7010 = vmatmul.f32.gmra.mxu0 %v6760
        %v7011 = vpop.f32.mrf.mxu0
        %v7012 = vadd.f32 %v6890, %v7011
        %7013 = vmatmul.f32.gmra.mxu0 %v6763
        %v7014 = vpop.f32.mrf.mxu0
        %v7015 = vadd.f32 %v6890, %v7014
        %7016 = vmatmul.f32.gmra.mxu0 %v6766
        %v7017 = vpop.f32.mrf.mxu0
        %v7018 = vadd.f32 %v6890, %v7017
        %7019 = vmatmul.f32.gmra.mxu0 %v6769
        %v7020 = vpop.f32.mrf.mxu0
        %v7021 = vadd.f32 %v6890, %v7020
        %7022 = vmatmul.f32.gmra.mxu0 %v6772
        %v7023 = vpop.f32.mrf.mxu0
        %v7024 = vadd.f32 %v6890, %v7023
        %7025 = vmatmul.f32.gmra.mxu0 %v6775
        %v7026 = vpop.f32.mrf.mxu0
        %v7027 = vadd.f32 %v6890, %v7026
        %7028 = vmatmul.f32.gmra.mxu0 %v6778
        %v7029 = vpop.f32.mrf.mxu0
        %v7030 = vadd.f32 %v6890, %v7029
        %7031 = vmatmul.f32.gmra.mxu0 %v6781
        %v7032 = vpop.f32.mrf.mxu0
        %v7033 = vadd.f32 %v6890, %v7032
        %7034 = vmatmul.f32.gmra.mxu0 %v6784
        %v7035 = vpop.f32.mrf.mxu0
        %v7036 = vadd.f32 %v6890, %v7035
        %7037 = vmatmul.f32.gmra.mxu0 %v6787
        %v7038 = vpop.f32.mrf.mxu0
        %v7039 = vadd.f32 %v6890, %v7038
        %7040 = vmatmul.f32.gmra.mxu0 %v6790
        %v7041 = vpop.f32.mrf.mxu0
        %v7042 = vadd.f32 %v6890, %v7041
        %7043 = vmatmul.f32.gmra.mxu0 %v6793
        %v7044 = vpop.f32.mrf.mxu0
        %v7045 = vadd.f32 %v6890, %v7044
        %7046 = vmatmul.f32.gmra.mxu0 %v6796
        %v7047 = vpop.f32.mrf.mxu0
        %v7048 = vadd.f32 %v6890, %v7047
        %7049 = vmatmul.f32.gmra.mxu0 %v6799
        %v7050 = vpop.f32.mrf.mxu0
        %v7051 = vadd.f32 %v6890, %v7050
        %7052 = vmatmul.f32.gmra.mxu0 %v6802
        %v7053 = vpop.f32.mrf.mxu0
        %v7054 = vadd.f32 %v6890, %v7053
        %7055 = vmatmul.f32.gmra.mxu0 %v6805
        %v7056 = vpop.f32.mrf.mxu0
        %v7057 = vadd.f32 %v6890, %v7056
        %7058 = vmatmul.f32.gmra.mxu0 %v6808
        %v7059 = vpop.f32.mrf.mxu0
        %v7060 = vadd.f32 %v6890, %v7059
        %7061 = vmatmul.f32.gmra.mxu0 %v6811
        %v7062 = vpop.f32.mrf.mxu0
        %v7063 = vadd.f32 %v6890, %v7062
        %7064 = vmatmul.f32.gmra.mxu0 %v6814
        %v7065 = vpop.f32.mrf.mxu0
        %v7066 = vadd.f32 %v6890, %v7065
        %7067 = vmatmul.f32.gmra.mxu0 %v6817
        %v7068 = vpop.f32.mrf.mxu0
        %v7069 = vadd.f32 %v6890, %v7068
        %7070 = vmatmul.f32.gmra.mxu0 %v6820
        %v7071 = vpop.f32.mrf.mxu0
        %v7072 = vadd.f32 %v6890, %v7071
        %7073 = vmatmul.f32.gmra.mxu0 %v6823
        %v7074 = vpop.f32.mrf.mxu0
        %v7075 = vadd.f32 %v6890, %v7074
        %7076 = vmatmul.f32.gmra.mxu0 %v6826
        %v7077 = vpop.f32.mrf.mxu0
        %v7078 = vadd.f32 %v6890, %v7077
        %7079 = vmatmul.f32.gmra.mxu0 %v6829
        %v7080 = vpop.f32.mrf.mxu0
        %v7081 = vadd.f32 %v6890, %v7080
        %7082 = vmatmul.f32.gmra.mxu0 %v6832
        %v7083 = vpop.f32.mrf.mxu0
        %v7084 = vadd.f32 %v6890, %v7083
        %7085 = vmatmul.f32.gmra.mxu0 %v6835
        %v7086 = vpop.f32.mrf.mxu0
        %v7087 = vadd.f32 %v6890, %v7086
        %7088 = vmatmul.f32.gmra.mxu0 %v6838
        %v7089 = vpop.f32.mrf.mxu0
        %v7090 = vadd.f32 %v6890, %v7089
        %7091 = vmatmul.f32.gmra.mxu0 %v6841
        %v7092 = vpop.f32.mrf.mxu0
        %v7093 = vadd.f32 %v6890, %v7092
        %7094 = vmatmul.f32.gmra.mxu0 %v6844
        %v7095 = vpop.f32.mrf.mxu0
        %v7096 = vadd.f32 %v6890, %v7095
        %7097 = vmatmul.f32.gmra.mxu0 %v6847
        %v7098 = vpop.f32.mrf.mxu0
        %v7099 = vadd.f32 %v6890, %v7098
        %7100 = vdwg.mxu0
        %7101 = vmatpush.msra.mxu0 %v6882
        %7102 = vmatpush.msra.mxu0 %v6881
        %7103 = vmatpush.msra.mxu0 %v6880
        %7104 = vmatpush.msra.mxu0 %v6879
        %7105 = vmatpush.msra.mxu0 %v6878
        %7106 = vmatpush.msra.mxu0 %v6877
        %7107 = vmatpush.msra.mxu0 %v6876
        %7108 = vmatpush.msra.mxu0 %v6875
        %7109 = vmatpush.msra.mxu0 %v6874
        %7110 = vmatpush.msra.mxu0 %v6873
        %7111 = vmatpush.msra.mxu0 %v6872
        %7112 = vmatpush.msra.mxu0 %v6871
        %7113 = vmatpush.msra.mxu0 %v6870
        %7114 = vmatpush.msra.mxu0 %v6869
        %7115 = vmatpush.msra.mxu0 %v6868
        %7116 = vmatpush.msra.mxu0 %v6867
        %7117 = vmatmul.f32.gmra.mxu0 %v6755
        %v7118 = vpop.f32.mrf.mxu0
        %v7119 = vadd.f32 %v7006, %v7118
        %7120 = vmatmul.f32.gmra.mxu0 %v6758
        %v7121 = vpop.f32.mrf.mxu0
        %v7122 = vadd.f32 %v7009, %v7121
        %7123 = vmatmul.f32.gmra.mxu0 %v6761
        %v7124 = vpop.f32.mrf.mxu0
        %v7125 = vadd.f32 %v7012, %v7124
        %7126 = vmatmul.f32.gmra.mxu0 %v6764
        %v7127 = vpop.f32.mrf.mxu0
        %v7128 = vadd.f32 %v7015, %v7127
        %7129 = vmatmul.f32.gmra.mxu0 %v6767
        %v7130 = vpop.f32.mrf.mxu0
        %v7131 = vadd.f32 %v7018, %v7130
        %7132 = vmatmul.f32.gmra.mxu0 %v6770
        %v7133 = vpop.f32.mrf.mxu0
        %v7134 = vadd.f32 %v7021, %v7133
        %7135 = vmatmul.f32.gmra.mxu0 %v6773
        %v7136 = vpop.f32.mrf.mxu0
        %v7137 = vadd.f32 %v7024, %v7136
        %7138 = vmatmul.f32.gmra.mxu0 %v6776
        %v7139 = vpop.f32.mrf.mxu0
        %v7140 = vadd.f32 %v7027, %v7139
        %7141 = vmatmul.f32.gmra.mxu0 %v6779
        %v7142 = vpop.f32.mrf.mxu0
        %v7143 = vadd.f32 %v7030, %v7142
        %7144 = vmatmul.f32.gmra.mxu0 %v6782
        %v7145 = vpop.f32.mrf.mxu0
        %v7146 = vadd.f32 %v7033, %v7145
        %7147 = vmatmul.f32.gmra.mxu0 %v6785
        %v7148 = vpop.f32.mrf.mxu0
        %v7149 = vadd.f32 %v7036, %v7148
        %7150 = vmatmul.f32.gmra.mxu0 %v6788
        %v7151 = vpop.f32.mrf.mxu0
        %v7152 = vadd.f32 %v7039, %v7151
        %7153 = vmatmul.f32.gmra.mxu0 %v6791
        %v7154 = vpop.f32.mrf.mxu0
        %v7155 = vadd.f32 %v7042, %v7154
        %7156 = vmatmul.f32.gmra.mxu0 %v6794
        %v7157 = vpop.f32.mrf.mxu0
        %v7158 = vadd.f32 %v7045, %v7157
        %7159 = vmatmul.f32.gmra.mxu0 %v6797
        %v7160 = vpop.f32.mrf.mxu0
        %v7161 = vadd.f32 %v7048, %v7160
        %7162 = vmatmul.f32.gmra.mxu0 %v6800
        %v7163 = vpop.f32.mrf.mxu0
        %v7164 = vadd.f32 %v7051, %v7163
        %7165 = vmatmul.f32.gmra.mxu0 %v6803
        %v7166 = vpop.f32.mrf.mxu0
        %v7167 = vadd.f32 %v7054, %v7166
        %7168 = vmatmul.f32.gmra.mxu0 %v6806
        %v7169 = vpop.f32.mrf.mxu0
        %v7170 = vadd.f32 %v7057, %v7169
        %7171 = vmatmul.f32.gmra.mxu0 %v6809
        %v7172 = vpop.f32.mrf.mxu0
        %v7173 = vadd.f32 %v7060, %v7172
        %7174 = vmatmul.f32.gmra.mxu0 %v6812
        %v7175 = vpop.f32.mrf.mxu0
        %v7176 = vadd.f32 %v7063, %v7175
        %7177 = vmatmul.f32.gmra.mxu0 %v6815
        %v7178 = vpop.f32.mrf.mxu0
        %v7179 = vadd.f32 %v7066, %v7178
        %7180 = vmatmul.f32.gmra.mxu0 %v6818
        %v7181 = vpop.f32.mrf.mxu0
        %v7182 = vadd.f32 %v7069, %v7181
        %7183 = vmatmul.f32.gmra.mxu0 %v6821
        %v7184 = vpop.f32.mrf.mxu0
        %v7185 = vadd.f32 %v7072, %v7184
        %7186 = vmatmul.f32.gmra.mxu0 %v6824
        %v7187 = vpop.f32.mrf.mxu0
        %v7188 = vadd.f32 %v7075, %v7187
        %7189 = vmatmul.f32.gmra.mxu0 %v6827
        %v7190 = vpop.f32.mrf.mxu0
        %v7191 = vadd.f32 %v7078, %v7190
        %7192 = vmatmul.f32.gmra.mxu0 %v6830
        %v7193 = vpop.f32.mrf.mxu0
        %v7194 = vadd.f32 %v7081, %v7193
        %7195 = vmatmul.f32.gmra.mxu0 %v6833
        %v7196 = vpop.f32.mrf.mxu0
        %v7197 = vadd.f32 %v7084, %v7196
        %7198 = vmatmul.f32.gmra.mxu0 %v6836
        %v7199 = vpop.f32.mrf.mxu0
        %v7200 = vadd.f32 %v7087, %v7199
        %7201 = vmatmul.f32.gmra.mxu0 %v6839
        %v7202 = vpop.f32.mrf.mxu0
        %v7203 = vadd.f32 %v7090, %v7202
        %7204 = vmatmul.f32.gmra.mxu0 %v6842
        %v7205 = vpop.f32.mrf.mxu0
        %v7206 = vadd.f32 %v7093, %v7205
        %7207 = vmatmul.f32.gmra.mxu0 %v6845
        %v7208 = vpop.f32.mrf.mxu0
        %v7209 = vadd.f32 %v7096, %v7208
        %7210 = vmatmul.f32.gmra.mxu0 %v6848
        %v7211 = vpop.f32.mrf.mxu0
        %v7212 = vadd.f32 %v7099, %v7211
        %7213 = vdwg.mxu0
        %7214 = vmatpush.msra.mxu0 0.0
        %7215 = vmatpush.msra.mxu0 0.0
        %7216 = vmatpush.msra.mxu0 0.0
        %7217 = vmatpush.msra.mxu0 0.0
        %7218 = vmatpush.msra.mxu0 0.0
        %7219 = vmatpush.msra.mxu0 0.0
        %7220 = vmatpush.msra.mxu0 0.0
        %7221 = vmatpush.msra.mxu0 0.0
        %7222 = vmatpush.msra.mxu0 0.0
        %7223 = vmatpush.msra.mxu0 0.0
        %7224 = vmatpush.msra.mxu0 0.0
        %7225 = vmatpush.msra.mxu0 0.0
        %7226 = vmatpush.msra.mxu0 %v6886
        %7227 = vmatpush.msra.mxu0 %v6885
        %7228 = vmatpush.msra.mxu0 %v6884
        %7229 = vmatpush.msra.mxu0 %v6883
        %7230 = vmatmul.f32.gmra.mxu0 %v6893
        %v7231 = vpop.f32.mrf.mxu0
        %v7232 = vadd.f32 %v7119, %v7231
        %7233 = vmatmul.f32.gmra.mxu0 %v6896
        %v7234 = vpop.f32.mrf.mxu0
        %v7235 = vadd.f32 %v7122, %v7234
        %7236 = vmatmul.f32.gmra.mxu0 %v6899
        %v7237 = vpop.f32.mrf.mxu0
        %v7238 = vadd.f32 %v7125, %v7237
        %7239 = vmatmul.f32.gmra.mxu0 %v6902
        %v7240 = vpop.f32.mrf.mxu0
        %v7241 = vadd.f32 %v7128, %v7240
        %7242 = vmatmul.f32.gmra.mxu0 %v6905
        %v7243 = vpop.f32.mrf.mxu0
        %v7244 = vadd.f32 %v7131, %v7243
        %7245 = vmatmul.f32.gmra.mxu0 %v6908
        %v7246 = vpop.f32.mrf.mxu0
        %v7247 = vadd.f32 %v7134, %v7246
        %7248 = vmatmul.f32.gmra.mxu0 %v6911
        %v7249 = vpop.f32.mrf.mxu0
        %v7250 = vadd.f32 %v7137, %v7249
        %7251 = vmatmul.f32.gmra.mxu0 %v6914
        %v7252 = vpop.f32.mrf.mxu0
        %v7253 = vadd.f32 %v7140, %v7252
        %7254 = vmatmul.f32.gmra.mxu0 %v6917
        %v7255 = vpop.f32.mrf.mxu0
        %v7256 = vadd.f32 %v7143, %v7255
        %7257 = vmatmul.f32.gmra.mxu0 %v6920
        %v7258 = vpop.f32.mrf.mxu0
        %v7259 = vadd.f32 %v7146, %v7258
        %7260 = vmatmul.f32.gmra.mxu0 %v6923
        %v7261 = vpop.f32.mrf.mxu0
        %v7262 = vadd.f32 %v7149, %v7261
        %7263 = vmatmul.f32.gmra.mxu0 %v6926
        %v7264 = vpop.f32.mrf.mxu0
        %v7265 = vadd.f32 %v7152, %v7264
        %7266 = vmatmul.f32.gmra.mxu0 %v6929
        %v7267 = vpop.f32.mrf.mxu0
        %v7268 = vadd.f32 %v7155, %v7267
        %7269 = vmatmul.f32.gmra.mxu0 %v6932
        %v7270 = vpop.f32.mrf.mxu0
        %v7271 = vadd.f32 %v7158, %v7270
        %7272 = vmatmul.f32.gmra.mxu0 %v6935
        %v7273 = vpop.f32.mrf.mxu0
        %v7274 = vadd.f32 %v7161, %v7273
        %7275 = vmatmul.f32.gmra.mxu0 %v6938
        %v7276 = vpop.f32.mrf.mxu0
        %v7277 = vadd.f32 %v7164, %v7276
        %7278 = vmatmul.f32.gmra.mxu0 %v6941
        %v7279 = vpop.f32.mrf.mxu0
        %v7280 = vadd.f32 %v7167, %v7279
        %7281 = vmatmul.f32.gmra.mxu0 %v6944
        %v7282 = vpop.f32.mrf.mxu0
        %v7283 = vadd.f32 %v7170, %v7282
        %7284 = vmatmul.f32.gmra.mxu0 %v6947
        %v7285 = vpop.f32.mrf.mxu0
        %v7286 = vadd.f32 %v7173, %v7285
        %7287 = vmatmul.f32.gmra.mxu0 %v6950
        %v7288 = vpop.f32.mrf.mxu0
        %v7289 = vadd.f32 %v7176, %v7288
        %7290 = vmatmul.f32.gmra.mxu0 %v6953
        %v7291 = vpop.f32.mrf.mxu0
        %v7292 = vadd.f32 %v7179, %v7291
        %7293 = vmatmul.f32.gmra.mxu0 %v6956
        %v7294 = vpop.f32.mrf.mxu0
        %v7295 = vadd.f32 %v7182, %v7294
        %7296 = vmatmul.f32.gmra.mxu0 %v6959
        %v7297 = vpop.f32.mrf.mxu0
        %v7298 = vadd.f32 %v7185, %v7297
        %7299 = vmatmul.f32.gmra.mxu0 %v6962
        %v7300 = vpop.f32.mrf.mxu0
        %v7301 = vadd.f32 %v7188, %v7300
        %7302 = vmatmul.f32.gmra.mxu0 %v6965
        %v7303 = vpop.f32.mrf.mxu0
        %v7304 = vadd.f32 %v7191, %v7303
        %7305 = vmatmul.f32.gmra.mxu0 %v6968
        %v7306 = vpop.f32.mrf.mxu0
        %v7307 = vadd.f32 %v7194, %v7306
        %7308 = vmatmul.f32.gmra.mxu0 %v6971
        %v7309 = vpop.f32.mrf.mxu0
        %v7310 = vadd.f32 %v7197, %v7309
        %7311 = vmatmul.f32.gmra.mxu0 %v6974
        %v7312 = vpop.f32.mrf.mxu0
        %v7313 = vadd.f32 %v7200, %v7312
        %7314 = vmatmul.f32.gmra.mxu0 %v6977
        %v7315 = vpop.f32.mrf.mxu0
        %v7316 = vadd.f32 %v7203, %v7315
        %7317 = vmatmul.f32.gmra.mxu0 %v6980
        %v7318 = vpop.f32.mrf.mxu0
        %v7319 = vadd.f32 %v7206, %v7318
        %7320 = vmatmul.f32.gmra.mxu0 %v6983
        %v7321 = vpop.f32.mrf.mxu0
        %v7322 = vadd.f32 %v7209, %v7321
        %7323 = vmatmul.f32.gmra.mxu0 %v6986
        %v7324 = vpop.f32.mrf.mxu0
        %v7325 = vadd.f32 %v7212, %v7324
        %7326 = vdwg.mxu0
        %v7327 = vmax.f32 %v7232, 0.0
        %v7328 = vmax.f32 %v7235, 0.0
        %v7329 = vmax.f32 %v7238, 0.0
        %v7330 = vmax.f32 %v7241, 0.0
        %v7331 = vmax.f32 %v7244, 0.0
        %v7332 = vmax.f32 %v7247, 0.0
        %v7333 = vmax.f32 %v7250, 0.0
        %v7334 = vmax.f32 %v7253, 0.0
        %v7335 = vmax.f32 %v7256, 0.0
        %v7336 = vmax.f32 %v7259, 0.0
        %v7337 = vmax.f32 %v7262, 0.0
        %v7338 = vmax.f32 %v7265, 0.0
        %v7339 = vmax.f32 %v7268, 0.0
        %v7340 = vmax.f32 %v7271, 0.0
        %v7341 = vmax.f32 %v7274, 0.0
        %v7342 = vmax.f32 %v7277, 0.0
        %v7343 = vmax.f32 %v7280, 0.0
        %v7344 = vmax.f32 %v7283, 0.0
        %v7345 = vmax.f32 %v7286, 0.0
        %v7346 = vmax.f32 %v7289, 0.0
        %v7347 = vmax.f32 %v7292, 0.0
        %v7348 = vmax.f32 %v7295, 0.0
        %v7349 = vmax.f32 %v7298, 0.0
        %v7350 = vmax.f32 %v7301, 0.0
        %v7351 = vmax.f32 %v7304, 0.0
        %v7352 = vmax.f32 %v7307, 0.0
        %v7353 = vmax.f32 %v7310, 0.0
        %v7354 = vmax.f32 %v7313, 0.0
        %v7355 = vmax.f32 %v7316, 0.0
        %v7356 = vmax.f32 %v7319, 0.0
        %v7357 = vmax.f32 %v7322, 0.0
        %v7358 = vmax.f32 %v7325, 0.0
        %s7359 = scalar_lea.vmem [#allocation4], 768
        %7360 = vst.msk [vmem:[%s7359] sm:$0xff] %vm1189, %v7327
        %7361 = vst.msk [vmem:[%s7359 + $0x8] sm:$0xff] %vm1189, %v7328
        %7362 = vst.msk [vmem:[%s7359 + $0x10] sm:$0xff] %vm1189, %v7329
        %7363 = vst.msk [vmem:[%s7359 + $0x18] sm:$0xff] %vm1189, %v7330
        %7364 = vst.msk [vmem:[%s7359 + $0x20] sm:$0xff] %vm1189, %v7331
        %7365 = vst.msk [vmem:[%s7359 + $0x28] sm:$0xff] %vm1189, %v7332
        %7366 = vst.msk [vmem:[%s7359 + $0x30] sm:$0xff] %vm1189, %v7333
        %7367 = vst.msk [vmem:[%s7359 + $0x38] sm:$0xff] %vm1189, %v7334
        %7368 = vst.msk [vmem:[%s7359 + $0x40] sm:$0xff] %vm1189, %v7335
        %7369 = vst.msk [vmem:[%s7359 + $0x48] sm:$0xff] %vm1189, %v7336
        %7370 = vst.msk [vmem:[%s7359 + $0x50] sm:$0xff] %vm1189, %v7337
        %7371 = vst.msk [vmem:[%s7359 + $0x58] sm:$0xff] %vm1189, %v7338
        %7372 = vst.msk [vmem:[%s7359 + $0x60] sm:$0xff] %vm1189, %v7339
        %7373 = vst.msk [vmem:[%s7359 + $0x68] sm:$0xff] %vm1189, %v7340
        %7374 = vst.msk [vmem:[%s7359 + $0x70] sm:$0xff] %vm1189, %v7341
        %7375 = vst.msk [vmem:[%s7359 + $0x78] sm:$0xff] %vm1189, %v7342
        %7376 = vst.msk [vmem:[%s7359 + $0x80] sm:$0xff] %vm1189, %v7343
        %7377 = vst.msk [vmem:[%s7359 + $0x88] sm:$0xff] %vm1189, %v7344
        %7378 = vst.msk [vmem:[%s7359 + $0x90] sm:$0xff] %vm1189, %v7345
        %7379 = vst.msk [vmem:[%s7359 + $0x98] sm:$0xff] %vm1189, %v7346
        %7380 = vst.msk [vmem:[%s7359 + $0xa0] sm:$0xff] %vm1189, %v7347
        %7381 = vst.msk [vmem:[%s7359 + $0xa8] sm:$0xff] %vm1189, %v7348
        %7382 = vst.msk [vmem:[%s7359 + $0xb0] sm:$0xff] %vm1189, %v7349
        %7383 = vst.msk [vmem:[%s7359 + $0xb8] sm:$0xff] %vm1189, %v7350
        %7384 = vst.msk [vmem:[%s7359 + $0xc0] sm:$0xff] %vm1189, %v7351
        %7385 = vst.msk [vmem:[%s7359 + $0xc8] sm:$0xff] %vm1189, %v7352
        %7386 = vst.msk [vmem:[%s7359 + $0xd0] sm:$0xff] %vm1189, %v7353
        %7387 = vst.msk [vmem:[%s7359 + $0xd8] sm:$0xff] %vm1189, %v7354
        %7388 = vst.msk [vmem:[%s7359 + $0xe0] sm:$0xff] %vm1189, %v7355
        %7389 = vst.msk [vmem:[%s7359 + $0xe8] sm:$0xff] %vm1189, %v7356
        %7390 = vst.msk [vmem:[%s7359 + $0xf0] sm:$0xff] %vm1189, %v7357
        %7391 = vst.msk [vmem:[%s7359 + $0xf8] sm:$0xff] %vm1189, %v7358
        %v7392 = vsel %vm1189, %v7327, 0.0
        %v7393 = vsel %vm1189, %v7328, 0.0
        %v7394 = vadd.f32 %v7392, %v7393
        %v7395 = vsel %vm1189, %v7329, 0.0
        %v7396 = vadd.f32 %v7394, %v7395
        %v7397 = vsel %vm1189, %v7330, 0.0
        %v7398 = vadd.f32 %v7396, %v7397
        %v7399 = vsel %vm1189, %v7331, 0.0
        %v7400 = vadd.f32 %v7398, %v7399
        %v7401 = vsel %vm1189, %v7332, 0.0
        %v7402 = vadd.f32 %v7400, %v7401
        %v7403 = vsel %vm1189, %v7333, 0.0
        %v7404 = vadd.f32 %v7402, %v7403
        %v7405 = vsel %vm1189, %v7334, 0.0
        %v7406 = vadd.f32 %v7404, %v7405
        %v7407 = vsel %vm1189, %v7335, 0.0
        %v7408 = vadd.f32 %v7406, %v7407
        %v7409 = vsel %vm1189, %v7336, 0.0
        %v7410 = vadd.f32 %v7408, %v7409
        %v7411 = vsel %vm1189, %v7337, 0.0
        %v7412 = vadd.f32 %v7410, %v7411
        %v7413 = vsel %vm1189, %v7338, 0.0
        %v7414 = vadd.f32 %v7412, %v7413
        %v7415 = vsel %vm1189, %v7339, 0.0
        %v7416 = vadd.f32 %v7414, %v7415
        %v7417 = vsel %vm1189, %v7340, 0.0
        %v7418 = vadd.f32 %v7416, %v7417
        %v7419 = vsel %vm1189, %v7341, 0.0
        %v7420 = vadd.f32 %v7418, %v7419
        %v7421 = vsel %vm1189, %v7342, 0.0
        %v7422 = vadd.f32 %v7420, %v7421
        %v7423 = vsel %vm1189, %v7343, 0.0
        %v7424 = vadd.f32 %v7422, %v7423
        %v7425 = vsel %vm1189, %v7344, 0.0
        %v7426 = vadd.f32 %v7424, %v7425
        %v7427 = vsel %vm1189, %v7345, 0.0
        %v7428 = vadd.f32 %v7426, %v7427
        %v7429 = vsel %vm1189, %v7346, 0.0
        %v7430 = vadd.f32 %v7428, %v7429
        %v7431 = vsel %vm1189, %v7347, 0.0
        %v7432 = vadd.f32 %v7430, %v7431
        %v7433 = vsel %vm1189, %v7348, 0.0
        %v7434 = vadd.f32 %v7432, %v7433
        %v7435 = vsel %vm1189, %v7349, 0.0
        %v7436 = vadd.f32 %v7434, %v7435
        %v7437 = vsel %vm1189, %v7350, 0.0
        %v7438 = vadd.f32 %v7436, %v7437
        %v7439 = vsel %vm1189, %v7351, 0.0
        %v7440 = vadd.f32 %v7438, %v7439
        %v7441 = vsel %vm1189, %v7352, 0.0
        %v7442 = vadd.f32 %v7440, %v7441
        %v7443 = vsel %vm1189, %v7353, 0.0
        %v7444 = vadd.f32 %v7442, %v7443
        %v7445 = vsel %vm1189, %v7354, 0.0
        %v7446 = vadd.f32 %v7444, %v7445
        %v7447 = vsel %vm1189, %v7355, 0.0
        %v7448 = vadd.f32 %v7446, %v7447
        %v7449 = vsel %vm1189, %v7356, 0.0
        %v7450 = vadd.f32 %v7448, %v7449
        %v7451 = vsel %vm1189, %v7357, 0.0
        %v7452 = vadd.f32 %v7450, %v7451
        %v7453 = vsel %vm1189, %v7358, 0.0
        %v7454 = vadd.f32 %v7452, %v7453
        %v7455 = vrot.slane %v7454, 4
        %v7456 = vadd.f32 %v7454, %v7455
        %v7457 = vrot.slane %v7456, 2
        %v7458 = vadd.f32 %v7456, %v7457
        %v7459 = vrot.slane %v7458, 1
        %v7460 = vadd.f32 %v7458, %v7459
        %v7461 = vmul.f32 %v7460, %v1297
        %v7462 = vsel %vm555, %v523, 0.0
        %v7463 = vsel %vm555, %v524, 0.0
        %v7464 = vadd.f32 %v7462, %v7463
        %v7465 = vsel %vm555, %v525, 0.0
        %v7466 = vadd.f32 %v7464, %v7465
        %v7467 = vsel %vm555, %v526, 0.0
        %v7468 = vadd.f32 %v7466, %v7467
        %v7469 = vsel %vm555, %v527, 0.0
        %v7470 = vadd.f32 %v7468, %v7469
        %v7471 = vsel %vm555, %v528, 0.0
        %v7472 = vadd.f32 %v7470, %v7471
        %v7473 = vsel %vm555, %v529, 0.0
        %v7474 = vadd.f32 %v7472, %v7473
        %v7475 = vsel %vm555, %v530, 0.0
        %v7476 = vadd.f32 %v7474, %v7475
        %v7477 = vsel %vm555, %v531, 0.0
        %v7478 = vadd.f32 %v7476, %v7477
        %v7479 = vsel %vm555, %v532, 0.0
        %v7480 = vadd.f32 %v7478, %v7479
        %v7481 = vsel %vm555, %v533, 0.0
        %v7482 = vadd.f32 %v7480, %v7481
        %v7483 = vsel %vm555, %v534, 0.0
        %v7484 = vadd.f32 %v7482, %v7483
        %v7485 = vsel %vm555, %v535, 0.0
        %v7486 = vadd.f32 %v7484, %v7485
        %v7487 = vsel %vm555, %v536, 0.0
        %v7488 = vadd.f32 %v7486, %v7487
        %v7489 = vsel %vm555, %v537, 0.0
        %v7490 = vadd.f32 %v7488, %v7489
        %v7491 = vsel %vm555, %v538, 0.0
        %v7492 = vadd.f32 %v7490, %v7491
        %v7493 = vsel %vm555, %v539, 0.0
        %v7494 = vadd.f32 %v7492, %v7493
        %v7495 = vsel %vm555, %v540, 0.0
        %v7496 = vadd.f32 %v7494, %v7495
        %v7497 = vsel %vm555, %v541, 0.0
        %v7498 = vadd.f32 %v7496, %v7497
        %v7499 = vsel %vm555, %v542, 0.0
        %v7500 = vadd.f32 %v7498, %v7499
        %v7501 = vsel %vm555, %v543, 0.0
        %v7502 = vadd.f32 %v7500, %v7501
        %v7503 = vsel %vm555, %v544, 0.0
        %v7504 = vadd.f32 %v7502, %v7503
        %v7505 = vsel %vm555, %v545, 0.0
        %v7506 = vadd.f32 %v7504, %v7505
        %v7507 = vsel %vm555, %v546, 0.0
        %v7508 = vadd.f32 %v7506, %v7507
        %v7509 = vsel %vm555, %v547, 0.0
        %v7510 = vadd.f32 %v7508, %v7509
        %v7511 = vsel %vm555, %v548, 0.0
        %v7512 = vadd.f32 %v7510, %v7511
        %v7513 = vsel %vm555, %v549, 0.0
        %v7514 = vadd.f32 %v7512, %v7513
        %v7515 = vsel %vm555, %v550, 0.0
        %v7516 = vadd.f32 %v7514, %v7515
        %v7517 = vsel %vm555, %v551, 0.0
        %v7518 = vadd.f32 %v7516, %v7517
        %v7519 = vsel %vm555, %v552, 0.0
        %v7520 = vadd.f32 %v7518, %v7519
        %v7521 = vsel %vm555, %v553, 0.0
        %v7522 = vadd.f32 %v7520, %v7521
        %v7523 = vsel %vm555, %v554, 0.0
        %v7524 = vadd.f32 %v7522, %v7523
        %v7525 = vrot.slane %v7524, 4
        %v7526 = vadd.f32 %v7524, %v7525
        %v7527 = vrot.slane %v7526, 2
        %v7528 = vadd.f32 %v7526, %v7527
        %v7529 = vrot.slane %v7528, 1
        %v7530 = vadd.f32 %v7528, %v7529
        %v7531 = vmul.f32 %v7530, %v1297
        %v7532 = vld [vmem:[#allocation12] sm:$0xff]
        %v7533 = vld [vmem:[#allocation12 + $0x8] sm:$0xff]
        %v7534 = vld [vmem:[#allocation12 + $0x10] sm:$0xff]
        %v7535 = vld [vmem:[#allocation12 + $0x18] sm:$0xff]
        %s7536 = scalar_lea.vmem [#allocation14], 4
        %v7537 = vld [vmem:[%s7536] sm:$0x1]
        %v7539 = vsel %vm555, %v7531, 0
        %7541 = vmatpush.msra.mxu0 0.0
        %7542 = vmatpush.msra.mxu0 0.0
        %7543 = vmatpush.msra.mxu0 0.0
        %7544 = vmatpush.msra.mxu0 0.0
        %7545 = vmatpush.msra.mxu0 0.0
        %7546 = vmatpush.msra.mxu0 0.0
        %7547 = vmatpush.msra.mxu0 0.0
        %7548 = vmatpush.msra.mxu0 0.0
        %7549 = vmatpush.msra.mxu0 0.0
        %7550 = vmatpush.msra.mxu0 0.0
        %7551 = vmatpush.msra.mxu0 0.0
        %7552 = vmatpush.msra.mxu0 0.0
        %7553 = vmatpush.msra.mxu0 %v7535
        %7554 = vmatpush.msra.mxu0 %v7534
        %7555 = vmatpush.msra.mxu0 %v7533
        %7556 = vmatpush.msra.mxu0 %v7532
        %7557 = vmatmul.f32.gmra.mxu0 %v7539
        %v7558 = vpop.f32.mrf.mxu0
        %v7559 = vadd.f32 %v7537, %v7558
        %7560 = vdwg.mxu0
        %v7561 = vmax.f32 %v7559, 0.0
        %v7562 = vld [vmem:[%s6] sm:$0x1]
        %v7563 = vld [vmem:[#allocation15] sm:$0xff]
        %v7564 = vld [vmem:[#allocation15 + $0x8] sm:$0xff]
        %v7566 = vsel %vm1189, %v1298, 0
        %7568 = vmatpush.msra.mxu0 0.0
        %7569 = vmatpush.msra.mxu0 0.0
        %7570 = vmatpush.msra.mxu0 0.0
        %7571 = vmatpush.msra.mxu0 0.0
        %7572 = vmatpush.msra.mxu0 0.0
        %7573 = vmatpush.msra.mxu0 0.0
        %7574 = vmatpush.msra.mxu0 0.0
        %7575 = vmatpush.msra.mxu0 0.0
        %7576 = vmatpush.msra.mxu0 0.0
        %7577 = vmatpush.msra.mxu0 0.0
        %7578 = vmatpush.msra.mxu0 0.0
        %7579 = vmatpush.msra.mxu0 0.0
        %7580 = vmatpush.msra.mxu0 0.0
        %7581 = vmatpush.msra.mxu0 0.0
        %7582 = vmatpush.msra.mxu0 %v7564
        %7583 = vmatpush.msra.mxu0 %v7563
        %7584 = vmatmul.f32.gmra.mxu0 %v7566
        %v7585 = vpop.f32.mrf.mxu0
        %v7586 = vadd.f32 0.0, %v7585
        %7587 = vdwg.mxu0
        %v7588 = vadd.f32 %v7562, %v7586
        %s7589 = scalar_lea.vmem [#allocation15], 16
        %v7590 = vld [vmem:[%s7589] sm:$0xff]
        %v7591 = vld [vmem:[%s7589 + $0x8] sm:$0xff]
        %v7593 = vsel %vm1189, %v3354, 0
        %7595 = vmatpush.msra.mxu0 0.0
        %7596 = vmatpush.msra.mxu0 0.0
        %7597 = vmatpush.msra.mxu0 0.0
        %7598 = vmatpush.msra.mxu0 0.0
        %7599 = vmatpush.msra.mxu0 0.0
        %7600 = vmatpush.msra.mxu0 0.0
        %7601 = vmatpush.msra.mxu0 0.0
        %7602 = vmatpush.msra.mxu0 0.0
        %7603 = vmatpush.msra.mxu0 0.0
        %7604 = vmatpush.msra.mxu0 0.0
        %7605 = vmatpush.msra.mxu0 0.0
        %7606 = vmatpush.msra.mxu0 0.0
        %7607 = vmatpush.msra.mxu0 0.0
        %7608 = vmatpush.msra.mxu0 0.0
        %7609 = vmatpush.msra.mxu0 %v7591
        %7610 = vmatpush.msra.mxu0 %v7590
        %7611 = vmatmul.f32.gmra.mxu0 %v7593
        %v7612 = vpop.f32.mrf.mxu0
        %v7613 = vadd.f32 0.0, %v7612
        %7614 = vdwg.mxu0
        %v7615 = vadd.f32 %v7588, %v7613
        %s7616 = scalar_lea.vmem [#allocation15], 32
        %v7617 = vld [vmem:[%s7616] sm:$0xff]
        %v7618 = vld [vmem:[%s7616 + $0x8] sm:$0xff]
        %v7620 = vsel %vm1189, %v5408, 0
        %7622 = vmatpush.msra.mxu0 0.0
        %7623 = vmatpush.msra.mxu0 0.0
        %7624 = vmatpush.msra.mxu0 0.0
        %7625 = vmatpush.msra.mxu0 0.0
        %7626 = vmatpush.msra.mxu0 0.0
        %7627 = vmatpush.msra.mxu0 0.0
        %7628 = vmatpush.msra.mxu0 0.0
        %7629 = vmatpush.msra.mxu0 0.0
        %7630 = vmatpush.msra.mxu0 0.0
        %7631 = vmatpush.msra.mxu0 0.0
        %7632 = vmatpush.msra.mxu0 0.0
        %7633 = vmatpush.msra.mxu0 0.0
        %7634 = vmatpush.msra.mxu0 0.0
        %7635 = vmatpush.msra.mxu0 0.0
        %7636 = vmatpush.msra.mxu0 %v7618
        %7637 = vmatpush.msra.mxu0 %v7617
        %7638 = vmatmul.f32.gmra.mxu0 %v7620
        %v7639 = vpop.f32.mrf.mxu0
        %v7640 = vadd.f32 0.0, %v7639
        %7641 = vdwg.mxu0
        %v7642 = vadd.f32 %v7615, %v7640
        %s7643 = scalar_lea.vmem [#allocation15], 48
        %v7644 = vld [vmem:[%s7643] sm:$0xff]
        %v7645 = vld [vmem:[%s7643 + $0x8] sm:$0xff]
        %v7647 = vsel %vm1189, %v7461, 0
        %7649 = vmatpush.msra.mxu0 0.0
        %7650 = vmatpush.msra.mxu0 0.0
        %7651 = vmatpush.msra.mxu0 0.0
        %7652 = vmatpush.msra.mxu0 0.0
        %7653 = vmatpush.msra.mxu0 0.0
        %7654 = vmatpush.msra.mxu0 0.0
        %7655 = vmatpush.msra.mxu0 0.0
        %7656 = vmatpush.msra.mxu0 0.0
        %7657 = vmatpush.msra.mxu0 0.0
        %7658 = vmatpush.msra.mxu0 0.0
        %7659 = vmatpush.msra.mxu0 0.0
        %7660 = vmatpush.msra.mxu0 0.0
        %7661 = vmatpush.msra.mxu0 0.0
        %7662 = vmatpush.msra.mxu0 0.0
        %7663 = vmatpush.msra.mxu0 %v7645
        %7664 = vmatpush.msra.mxu0 %v7644
        %7665 = vmatmul.f32.gmra.mxu0 %v7647
        %v7666 = vpop.f32.mrf.mxu0
        %v7667 = vadd.f32 0.0, %v7666
        %7668 = vdwg.mxu0
        %v7669 = vadd.f32 %v7642, %v7667
        %s7670 = scalar_lea.vmem [#allocation15], 64
        %v7671 = vld [vmem:[%s7670] sm:$0xff]
        %v7672 = vld [vmem:[%s7670 + $0x8] sm:$0xff]
        %v7674 = vsel %vm1189, %v7561, 0
        %7676 = vmatpush.msra.mxu0 0.0
        %7677 = vmatpush.msra.mxu0 0.0
        %7678 = vmatpush.msra.mxu0 0.0
        %7679 = vmatpush.msra.mxu0 0.0
        %7680 = vmatpush.msra.mxu0 0.0
        %7681 = vmatpush.msra.mxu0 0.0
        %7682 = vmatpush.msra.mxu0 0.0
        %7683 = vmatpush.msra.mxu0 0.0
        %7684 = vmatpush.msra.mxu0 0.0
        %7685 = vmatpush.msra.mxu0 0.0
        %7686 = vmatpush.msra.mxu0 0.0
        %7687 = vmatpush.msra.mxu0 0.0
        %7688 = vmatpush.msra.mxu0 0.0
        %7689 = vmatpush.msra.mxu0 0.0
        %7690 = vmatpush.msra.mxu0 %v7672
        %7691 = vmatpush.msra.mxu0 %v7671
        %7692 = vmatmul.f32.gmra.mxu0 %v7674
        %v7693 = vpop.f32.mrf.mxu0
        %v7694 = vadd.f32 0.0, %v7693
        %7695 = vdwg.mxu0
        %v7696 = vadd.f32 %v7669, %v7694
        %v7697 = vmax.f32 %v7696, 0.0
        %v7698 = vld [vmem:[#allocation4] sm:$0xff]
        %v7699 = vld [vmem:[#allocation4 + $0x8] sm:$0xff]
        %v7700 = vld [vmem:[#allocation4 + $0x10] sm:$0xff]
        %v7701 = vld [vmem:[#allocation4 + $0x18] sm:$0xff]
        %v7702 = vld [vmem:[#allocation4 + $0x20] sm:$0xff]
        %v7703 = vld [vmem:[#allocation4 + $0x28] sm:$0xff]
        %v7704 = vld [vmem:[#allocation4 + $0x30] sm:$0xff]
        %v7705 = vld [vmem:[#allocation4 + $0x38] sm:$0xff]
        %v7706 = vld [vmem:[#allocation4 + $0x40] sm:$0xff]
        %v7707 = vld [vmem:[#allocation4 + $0x48] sm:$0xff]
        %v7708 = vld [vmem:[#allocation4 + $0x50] sm:$0xff]
        %v7709 = vld [vmem:[#allocation4 + $0x58] sm:$0xff]
        %v7710 = vld [vmem:[#allocation4 + $0x60] sm:$0xff]
        %v7711 = vld [vmem:[#allocation4 + $0x68] sm:$0xff]
        %v7712 = vld [vmem:[#allocation4 + $0x70] sm:$0xff]
        %v7713 = vld [vmem:[#allocation4 + $0x78] sm:$0xff]
        %v7714 = vld [vmem:[#allocation4 + $0x80] sm:$0xff]
        %v7715 = vld [vmem:[#allocation4 + $0x88] sm:$0xff]
        %v7716 = vld [vmem:[#allocation4 + $0x90] sm:$0xff]
        %v7717 = vld [vmem:[#allocation4 + $0x98] sm:$0xff]
        %v7718 = vld [vmem:[#allocation4 + $0xa0] sm:$0xff]
        %v7719 = vld [vmem:[#allocation4 + $0xa8] sm:$0xff]
        %v7720 = vld [vmem:[#allocation4 + $0xb0] sm:$0xff]
        %v7721 = vld [vmem:[#allocation4 + $0xb8] sm:$0xff]
        %v7722 = vld [vmem:[#allocation4 + $0xc0] sm:$0xff]
        %v7723 = vld [vmem:[#allocation4 + $0xc8] sm:$0xff]
        %v7724 = vld [vmem:[#allocation4 + $0xd0] sm:$0xff]
        %v7725 = vld [vmem:[#allocation4 + $0xd8] sm:$0xff]
        %v7726 = vld [vmem:[#allocation4 + $0xe0] sm:$0xff]
        %v7727 = vld [vmem:[#allocation4 + $0xe8] sm:$0xff]
        %v7728 = vld [vmem:[#allocation4 + $0xf0] sm:$0xff]
        %v7729 = vld [vmem:[#allocation4 + $0xf8] sm:$0xff]
        %v7730 = vld [vmem:[#allocation17] sm:$0x1f]
        %v7731 = vld [vmem:[%s8] sm:$0x1]
        %vm7732 = vcmask 39936
        %v7734 = vsel %vm7732, %v7697, 0
        %vm7736 = vcmask 1044480
        %v7738 = vsel %vm7736, %v7730, 0
        %7740 = vmatpush.msra.mxu0 0.0
        %7741 = vmatpush.msra.mxu0 0.0
        %7742 = vmatpush.msra.mxu0 0.0
        %7743 = vmatpush.msra.mxu0 0.0
        %7744 = vmatpush.msra.mxu0 0.0
        %7745 = vmatpush.msra.mxu0 0.0
        %7746 = vmatpush.msra.mxu0 0.0
        %7747 = vmatpush.msra.mxu0 0.0
        %7748 = vmatpush.msra.mxu0 0.0
        %7749 = vmatpush.msra.mxu0 0.0
        %7750 = vmatpush.msra.mxu0 0.0
        %7751 = vmatpush.msra.mxu0 0.0
        %7752 = vmatpush.msra.mxu0 0.0
        %7753 = vmatpush.msra.mxu0 0.0
        %7754 = vmatpush.msra.mxu0 0.0
        %7755 = vmatpush.msra.mxu0 %v7738
        %7756 = vmatmul.f32.gmra.mxu0 %v7734
        %v7757 = vpop.f32.mrf.mxu0
        %v7758 = vadd.f32 %v7731, %v7757
        %7759 = vdwg.mxu0
        %v7760 = vxor.u32 %v7758, 2147483648
        %v7761 = vmul.f32 %v7760, 1.442695
        %v7762 = vpow.pop %v7761
        %v7763 = vadd.f32 %v7762, 1.0
        %v7764 = vrcp.pop %v7763
        %v7765 = vmul.f32 %v7763, %v7764
        %v7766 = vsub.f32 1.0, %v7765
        %v7767 = vmul.f32 %v7764, %v7766
        %v7768 = vadd.f32 %v7764, %v7767
        %vm7769 = vweird.f32 %v7763
        %vm7770 = vweird.f32 %v7764
        %vm7771 = vmor %vm7769, %vm7770
        %v7772 = vsel %vm7771, %v7764, %v7768
        %v7773 = vand.u32 2147483647, %v7763
        %vm7774 = vcmp.eq.f32.partialorder %v7773, 8.507059e+37
        %v7775 = vand.u32 %v7763, 2147483648
        %v7776 = vor.u32 1.1754944e-38, %v7775
        %v7777 = vsel %vm7774, %v7776, %v7772
        %v7778 = vmul.f32 1.0, %v7777
        %v7779 = vperm.slane %v7778, 0
        %v7780 = vmul.f32 %v7698, %v7779
        %v7781 = vmul.f32 %v7699, %v7779
        %v7782 = vmul.f32 %v7700, %v7779
        %v7783 = vmul.f32 %v7701, %v7779
        %v7784 = vmul.f32 %v7702, %v7779
        %v7785 = vmul.f32 %v7703, %v7779
        %v7786 = vmul.f32 %v7704, %v7779
        %v7787 = vmul.f32 %v7705, %v7779
        %v7788 = vmul.f32 %v7706, %v7779
        %v7789 = vmul.f32 %v7707, %v7779
        %v7790 = vmul.f32 %v7708, %v7779
        %v7791 = vmul.f32 %v7709, %v7779
        %v7792 = vmul.f32 %v7710, %v7779
        %v7793 = vmul.f32 %v7711, %v7779
        %v7794 = vmul.f32 %v7712, %v7779
        %v7795 = vmul.f32 %v7713, %v7779
        %v7796 = vmul.f32 %v7714, %v7779
        %v7797 = vmul.f32 %v7715, %v7779
        %v7798 = vmul.f32 %v7716, %v7779
        %v7799 = vmul.f32 %v7717, %v7779
        %v7800 = vmul.f32 %v7718, %v7779
        %v7801 = vmul.f32 %v7719, %v7779
        %v7802 = vmul.f32 %v7720, %v7779
        %v7803 = vmul.f32 %v7721, %v7779
        %v7804 = vmul.f32 %v7722, %v7779
        %v7805 = vmul.f32 %v7723, %v7779
        %v7806 = vmul.f32 %v7724, %v7779
        %v7807 = vmul.f32 %v7725, %v7779
        %v7808 = vmul.f32 %v7726, %v7779
        %v7809 = vmul.f32 %v7727, %v7779
        %v7810 = vmul.f32 %v7728, %v7779
        %v7811 = vmul.f32 %v7729, %v7779
        %v7812 = vld [vmem:[#allocation18] sm:$0xff]
        %v7813 = vld [vmem:[#allocation18 + $0x8] sm:$0xff]
        %v7814 = vld [vmem:[%s3252] sm:$0xff]
        %v7815 = vld [vmem:[%s3252 + $0x8] sm:$0xff]
        %v7816 = vld [vmem:[%s3252 + $0x10] sm:$0xff]
        %v7817 = vld [vmem:[%s3252 + $0x18] sm:$0xff]
        %v7818 = vld [vmem:[%s3252 + $0x20] sm:$0xff]
        %v7819 = vld [vmem:[%s3252 + $0x28] sm:$0xff]
        %v7820 = vld [vmem:[%s3252 + $0x30] sm:$0xff]
        %v7821 = vld [vmem:[%s3252 + $0x38] sm:$0xff]
        %v7822 = vld [vmem:[%s3252 + $0x40] sm:$0xff]
        %v7823 = vld [vmem:[%s3252 + $0x48] sm:$0xff]
        %v7824 = vld [vmem:[%s3252 + $0x50] sm:$0xff]
        %v7825 = vld [vmem:[%s3252 + $0x58] sm:$0xff]
        %v7826 = vld [vmem:[%s3252 + $0x60] sm:$0xff]
        %v7827 = vld [vmem:[%s3252 + $0x68] sm:$0xff]
        %v7828 = vld [vmem:[%s3252 + $0x70] sm:$0xff]
        %v7829 = vld [vmem:[%s3252 + $0x78] sm:$0xff]
        %v7830 = vld [vmem:[%s3252 + $0x80] sm:$0xff]
        %v7831 = vld [vmem:[%s3252 + $0x88] sm:$0xff]
        %v7832 = vld [vmem:[%s3252 + $0x90] sm:$0xff]
        %v7833 = vld [vmem:[%s3252 + $0x98] sm:$0xff]
        %v7834 = vld [vmem:[%s3252 + $0xa0] sm:$0xff]
        %v7835 = vld [vmem:[%s3252 + $0xa8] sm:$0xff]
        %v7836 = vld [vmem:[%s3252 + $0xb0] sm:$0xff]
        %v7837 = vld [vmem:[%s3252 + $0xb8] sm:$0xff]
        %v7838 = vld [vmem:[%s3252 + $0xc0] sm:$0xff]
        %v7839 = vld [vmem:[%s3252 + $0xc8] sm:$0xff]
        %v7840 = vld [vmem:[%s3252 + $0xd0] sm:$0xff]
        %v7841 = vld [vmem:[%s3252 + $0xd8] sm:$0xff]
        %v7842 = vld [vmem:[%s3252 + $0xe0] sm:$0xff]
        %v7843 = vld [vmem:[%s3252 + $0xe8] sm:$0xff]
        %v7844 = vld [vmem:[%s3252 + $0xf0] sm:$0xff]
        %v7845 = vld [vmem:[%s3252 + $0xf8] sm:$0xff]
        %s7846 = scalar_lea.vmem [#allocation17], 8
        %v7847 = vld [vmem:[%s7846] sm:$0x1f]
        %s7848 = scalar_lea.vmem %s8, 1
        %v7849 = vld [vmem:[%s7848] sm:$0x1]
        %v7851 = vsel %vm7736, %v7847, 0
        %7853 = vmatpush.msra.mxu0 0.0
        %7854 = vmatpush.msra.mxu0 0.0
        %7855 = vmatpush.msra.mxu0 0.0
        %7856 = vmatpush.msra.mxu0 0.0
        %7857 = vmatpush.msra.mxu0 0.0
        %7858 = vmatpush.msra.mxu0 0.0
        %7859 = vmatpush.msra.mxu0 0.0
        %7860 = vmatpush.msra.mxu0 0.0
        %7861 = vmatpush.msra.mxu0 0.0
        %7862 = vmatpush.msra.mxu0 0.0
        %7863 = vmatpush.msra.mxu0 0.0
        %7864 = vmatpush.msra.mxu0 0.0
        %7865 = vmatpush.msra.mxu0 0.0
        %7866 = vmatpush.msra.mxu0 0.0
        %7867 = vmatpush.msra.mxu0 0.0
        %7868 = vmatpush.msra.mxu0 %v7851
        %7869 = vmatmul.f32.gmra.mxu0 %v7734
        %v7870 = vpop.f32.mrf.mxu0
        %v7871 = vadd.f32 %v7849, %v7870
        %7872 = vdwg.mxu0
        %v7873 = vxor.u32 %v7871, 2147483648
        %v7874 = vmul.f32 %v7873, 1.442695
        %v7875 = vpow.pop %v7874
        %v7876 = vadd.f32 %v7875, 1.0
        %v7877 = vrcp.pop %v7876
        %v7878 = vmul.f32 %v7876, %v7877
        %v7879 = vsub.f32 1.0, %v7878
        %v7880 = vmul.f32 %v7877, %v7879
        %v7881 = vadd.f32 %v7877, %v7880
        %vm7882 = vweird.f32 %v7876
        %vm7883 = vweird.f32 %v7877
        %vm7884 = vmor %vm7882, %vm7883
        %v7885 = vsel %vm7884, %v7877, %v7881
        %v7886 = vand.u32 2147483647, %v7876
        %vm7887 = vcmp.eq.f32.partialorder %v7886, 8.507059e+37
        %v7888 = vand.u32 %v7876, 2147483648
        %v7889 = vor.u32 1.1754944e-38, %v7888
        %v7890 = vsel %vm7887, %v7889, %v7885
        %v7891 = vmul.f32 1.0, %v7890
        %v7892 = vperm.slane %v7891, 0
        %v7893 = vmul.f32 %v7814, %v7892
        %v7894 = vmul.f32 %v7815, %v7892
        %v7895 = vmul.f32 %v7816, %v7892
        %v7896 = vmul.f32 %v7817, %v7892
        %v7897 = vmul.f32 %v7818, %v7892
        %v7898 = vmul.f32 %v7819, %v7892
        %v7899 = vmul.f32 %v7820, %v7892
        %v7900 = vmul.f32 %v7821, %v7892
        %v7901 = vmul.f32 %v7822, %v7892
        %v7902 = vmul.f32 %v7823, %v7892
        %v7903 = vmul.f32 %v7824, %v7892
        %v7904 = vmul.f32 %v7825, %v7892
        %v7905 = vmul.f32 %v7826, %v7892
        %v7906 = vmul.f32 %v7827, %v7892
        %v7907 = vmul.f32 %v7828, %v7892
        %v7908 = vmul.f32 %v7829, %v7892
        %v7909 = vmul.f32 %v7830, %v7892
        %v7910 = vmul.f32 %v7831, %v7892
        %v7911 = vmul.f32 %v7832, %v7892
        %v7912 = vmul.f32 %v7833, %v7892
        %v7913 = vmul.f32 %v7834, %v7892
        %v7914 = vmul.f32 %v7835, %v7892
        %v7915 = vmul.f32 %v7836, %v7892
        %v7916 = vmul.f32 %v7837, %v7892
        %v7917 = vmul.f32 %v7838, %v7892
        %v7918 = vmul.f32 %v7839, %v7892
        %v7919 = vmul.f32 %v7840, %v7892
        %v7920 = vmul.f32 %v7841, %v7892
        %v7921 = vmul.f32 %v7842, %v7892
        %v7922 = vmul.f32 %v7843, %v7892
        %v7923 = vmul.f32 %v7844, %v7892
        %v7924 = vmul.f32 %v7845, %v7892
        %s7925 = scalar_lea.vmem [#allocation18], 16
        %v7926 = vld [vmem:[%s7925] sm:$0xff]
        %v7927 = vld [vmem:[%s7925 + $0x8] sm:$0xff]
        %v7929 = vsel %vm1189, %v7893, 0
        %v7932 = vsel %vm1189, %v7894, 0
        %v7935 = vsel %vm1189, %v7895, 0
        %v7938 = vsel %vm1189, %v7896, 0
        %v7941 = vsel %vm1189, %v7897, 0
        %v7944 = vsel %vm1189, %v7898, 0
        %v7947 = vsel %vm1189, %v7899, 0
        %v7950 = vsel %vm1189, %v7900, 0
        %v7953 = vsel %vm1189, %v7901, 0
        %v7956 = vsel %vm1189, %v7902, 0
        %v7959 = vsel %vm1189, %v7903, 0
        %v7962 = vsel %vm1189, %v7904, 0
        %v7965 = vsel %vm1189, %v7905, 0
        %v7968 = vsel %vm1189, %v7906, 0
        %v7971 = vsel %vm1189, %v7907, 0
        %v7974 = vsel %vm1189, %v7908, 0
        %v7977 = vsel %vm1189, %v7909, 0
        %v7980 = vsel %vm1189, %v7910, 0
        %v7983 = vsel %vm1189, %v7911, 0
        %v7986 = vsel %vm1189, %v7912, 0
        %v7989 = vsel %vm1189, %v7913, 0
        %v7992 = vsel %vm1189, %v7914, 0
        %v7995 = vsel %vm1189, %v7915, 0
        %v7998 = vsel %vm1189, %v7916, 0
        %v8001 = vsel %vm1189, %v7917, 0
        %v8004 = vsel %vm1189, %v7918, 0
        %v8007 = vsel %vm1189, %v7919, 0
        %v8010 = vsel %vm1189, %v7920, 0
        %v8013 = vsel %vm1189, %v7921, 0
        %v8016 = vsel %vm1189, %v7922, 0
        %v8019 = vsel %vm1189, %v7923, 0
        %v8022 = vsel %vm1189, %v7924, 0
        %8024 = vmatpush.msra.mxu0 0.0
        %8025 = vmatpush.msra.mxu0 0.0
        %8026 = vmatpush.msra.mxu0 0.0
        %8027 = vmatpush.msra.mxu0 0.0
        %8028 = vmatpush.msra.mxu0 0.0
        %8029 = vmatpush.msra.mxu0 0.0
        %8030 = vmatpush.msra.mxu0 0.0
        %8031 = vmatpush.msra.mxu0 0.0
        %8032 = vmatpush.msra.mxu0 0.0
        %8033 = vmatpush.msra.mxu0 0.0
        %8034 = vmatpush.msra.mxu0 0.0
        %8035 = vmatpush.msra.mxu0 0.0
        %8036 = vmatpush.msra.mxu0 0.0
        %8037 = vmatpush.msra.mxu0 0.0
        %8038 = vmatpush.msra.mxu0 %v7927
        %8039 = vmatpush.msra.mxu0 %v7926
        %8040 = vmatmul.f32.gmra.mxu0 %v7929
        %v8041 = vpop.f32.mrf.mxu0
        %v8042 = vadd.f32 0.0, %v8041
        %8043 = vmatmul.f32.gmra.mxu0 %v7932
        %v8044 = vpop.f32.mrf.mxu0
        %v8045 = vadd.f32 0.0, %v8044
        %8046 = vmatmul.f32.gmra.mxu0 %v7935
        %v8047 = vpop.f32.mrf.mxu0
        %v8048 = vadd.f32 0.0, %v8047
        %8049 = vmatmul.f32.gmra.mxu0 %v7938
        %v8050 = vpop.f32.mrf.mxu0
        %v8051 = vadd.f32 0.0, %v8050
        %8052 = vmatmul.f32.gmra.mxu0 %v7941
        %v8053 = vpop.f32.mrf.mxu0
        %v8054 = vadd.f32 0.0, %v8053
        %8055 = vmatmul.f32.gmra.mxu0 %v7944
        %v8056 = vpop.f32.mrf.mxu0
        %v8057 = vadd.f32 0.0, %v8056
        %8058 = vmatmul.f32.gmra.mxu0 %v7947
        %v8059 = vpop.f32.mrf.mxu0
        %v8060 = vadd.f32 0.0, %v8059
        %8061 = vmatmul.f32.gmra.mxu0 %v7950
        %v8062 = vpop.f32.mrf.mxu0
        %v8063 = vadd.f32 0.0, %v8062
        %8064 = vmatmul.f32.gmra.mxu0 %v7953
        %v8065 = vpop.f32.mrf.mxu0
        %v8066 = vadd.f32 0.0, %v8065
        %8067 = vmatmul.f32.gmra.mxu0 %v7956
        %v8068 = vpop.f32.mrf.mxu0
        %v8069 = vadd.f32 0.0, %v8068
        %8070 = vmatmul.f32.gmra.mxu0 %v7959
        %v8071 = vpop.f32.mrf.mxu0
        %v8072 = vadd.f32 0.0, %v8071
        %8073 = vmatmul.f32.gmra.mxu0 %v7962
        %v8074 = vpop.f32.mrf.mxu0
        %v8075 = vadd.f32 0.0, %v8074
        %8076 = vmatmul.f32.gmra.mxu0 %v7965
        %v8077 = vpop.f32.mrf.mxu0
        %v8078 = vadd.f32 0.0, %v8077
        %8079 = vmatmul.f32.gmra.mxu0 %v7968
        %v8080 = vpop.f32.mrf.mxu0
        %v8081 = vadd.f32 0.0, %v8080
        %8082 = vmatmul.f32.gmra.mxu0 %v7971
        %v8083 = vpop.f32.mrf.mxu0
        %v8084 = vadd.f32 0.0, %v8083
        %8085 = vmatmul.f32.gmra.mxu0 %v7974
        %v8086 = vpop.f32.mrf.mxu0
        %v8087 = vadd.f32 0.0, %v8086
        %8088 = vmatmul.f32.gmra.mxu0 %v7977
        %v8089 = vpop.f32.mrf.mxu0
        %v8090 = vadd.f32 0.0, %v8089
        %8091 = vmatmul.f32.gmra.mxu0 %v7980
        %v8092 = vpop.f32.mrf.mxu0
        %v8093 = vadd.f32 0.0, %v8092
        %8094 = vmatmul.f32.gmra.mxu0 %v7983
        %v8095 = vpop.f32.mrf.mxu0
        %v8096 = vadd.f32 0.0, %v8095
        %8097 = vmatmul.f32.gmra.mxu0 %v7986
        %v8098 = vpop.f32.mrf.mxu0
        %v8099 = vadd.f32 0.0, %v8098
        %8100 = vmatmul.f32.gmra.mxu0 %v7989
        %v8101 = vpop.f32.mrf.mxu0
        %v8102 = vadd.f32 0.0, %v8101
        %8103 = vmatmul.f32.gmra.mxu0 %v7992
        %v8104 = vpop.f32.mrf.mxu0
        %v8105 = vadd.f32 0.0, %v8104
        %8106 = vmatmul.f32.gmra.mxu0 %v7995
        %v8107 = vpop.f32.mrf.mxu0
        %v8108 = vadd.f32 0.0, %v8107
        %8109 = vmatmul.f32.gmra.mxu0 %v7998
        %v8110 = vpop.f32.mrf.mxu0
        %v8111 = vadd.f32 0.0, %v8110
        %8112 = vmatmul.f32.gmra.mxu0 %v8001
        %v8113 = vpop.f32.mrf.mxu0
        %v8114 = vadd.f32 0.0, %v8113
        %8115 = vmatmul.f32.gmra.mxu0 %v8004
        %v8116 = vpop.f32.mrf.mxu0
        %v8117 = vadd.f32 0.0, %v8116
        %8118 = vmatmul.f32.gmra.mxu0 %v8007
        %v8119 = vpop.f32.mrf.mxu0
        %v8120 = vadd.f32 0.0, %v8119
        %8121 = vmatmul.f32.gmra.mxu0 %v8010
        %v8122 = vpop.f32.mrf.mxu0
        %v8123 = vadd.f32 0.0, %v8122
        %8124 = vmatmul.f32.gmra.mxu0 %v8013
        %v8125 = vpop.f32.mrf.mxu0
        %v8126 = vadd.f32 0.0, %v8125
        %8127 = vmatmul.f32.gmra.mxu0 %v8016
        %v8128 = vpop.f32.mrf.mxu0
        %v8129 = vadd.f32 0.0, %v8128
        %8130 = vmatmul.f32.gmra.mxu0 %v8019
        %v8131 = vpop.f32.mrf.mxu0
        %v8132 = vadd.f32 0.0, %v8131
        %8133 = vmatmul.f32.gmra.mxu0 %v8022
        %v8134 = vpop.f32.mrf.mxu0
        %v8135 = vadd.f32 0.0, %v8134
        %8136 = vdwg.mxu0
        %v8138 = vsel %vm1189, %v7780, 0
        %v8141 = vsel %vm1189, %v7781, 0
        %v8144 = vsel %vm1189, %v7782, 0
        %v8147 = vsel %vm1189, %v7783, 0
        %v8150 = vsel %vm1189, %v7784, 0
        %v8153 = vsel %vm1189, %v7785, 0
        %v8156 = vsel %vm1189, %v7786, 0
        %v8159 = vsel %vm1189, %v7787, 0
        %v8162 = vsel %vm1189, %v7788, 0
        %v8165 = vsel %vm1189, %v7789, 0
        %v8168 = vsel %vm1189, %v7790, 0
        %v8171 = vsel %vm1189, %v7791, 0
        %v8174 = vsel %vm1189, %v7792, 0
        %v8177 = vsel %vm1189, %v7793, 0
        %v8180 = vsel %vm1189, %v7794, 0
        %v8183 = vsel %vm1189, %v7795, 0
        %v8186 = vsel %vm1189, %v7796, 0
        %v8189 = vsel %vm1189, %v7797, 0
        %v8192 = vsel %vm1189, %v7798, 0
        %v8195 = vsel %vm1189, %v7799, 0
        %v8198 = vsel %vm1189, %v7800, 0
        %v8201 = vsel %vm1189, %v7801, 0
        %v8204 = vsel %vm1189, %v7802, 0
        %v8207 = vsel %vm1189, %v7803, 0
        %v8210 = vsel %vm1189, %v7804, 0
        %v8213 = vsel %vm1189, %v7805, 0
        %v8216 = vsel %vm1189, %v7806, 0
        %v8219 = vsel %vm1189, %v7807, 0
        %v8222 = vsel %vm1189, %v7808, 0
        %v8225 = vsel %vm1189, %v7809, 0
        %v8228 = vsel %vm1189, %v7810, 0
        %v8231 = vsel %vm1189, %v7811, 0
        %8233 = vmatpush.msra.mxu0 0.0
        %8234 = vmatpush.msra.mxu0 0.0
        %8235 = vmatpush.msra.mxu0 0.0
        %8236 = vmatpush.msra.mxu0 0.0
        %8237 = vmatpush.msra.mxu0 0.0
        %8238 = vmatpush.msra.mxu0 0.0
        %8239 = vmatpush.msra.mxu0 0.0
        %8240 = vmatpush.msra.mxu0 0.0
        %8241 = vmatpush.msra.mxu0 0.0
        %8242 = vmatpush.msra.mxu0 0.0
        %8243 = vmatpush.msra.mxu0 0.0
        %8244 = vmatpush.msra.mxu0 0.0
        %8245 = vmatpush.msra.mxu0 0.0
        %8246 = vmatpush.msra.mxu0 0.0
        %8247 = vmatpush.msra.mxu0 %v7813
        %8248 = vmatpush.msra.mxu0 %v7812
        %8249 = vmatmul.f32.gmra.mxu0 %v8138
        %v8250 = vpop.f32.mrf.mxu0
        %v8251 = vadd.f32 %v8042, %v8250
        %8252 = vmatmul.f32.gmra.mxu0 %v8141
        %v8253 = vpop.f32.mrf.mxu0
        %v8254 = vadd.f32 %v8045, %v8253
        %8255 = vmatmul.f32.gmra.mxu0 %v8144
        %v8256 = vpop.f32.mrf.mxu0
        %v8257 = vadd.f32 %v8048, %v8256
        %8258 = vmatmul.f32.gmra.mxu0 %v8147
        %v8259 = vpop.f32.mrf.mxu0
        %v8260 = vadd.f32 %v8051, %v8259
        %8261 = vmatmul.f32.gmra.mxu0 %v8150
        %v8262 = vpop.f32.mrf.mxu0
        %v8263 = vadd.f32 %v8054, %v8262
        %8264 = vmatmul.f32.gmra.mxu0 %v8153
        %v8265 = vpop.f32.mrf.mxu0
        %v8266 = vadd.f32 %v8057, %v8265
        %8267 = vmatmul.f32.gmra.mxu0 %v8156
        %v8268 = vpop.f32.mrf.mxu0
        %v8269 = vadd.f32 %v8060, %v8268
        %8270 = vmatmul.f32.gmra.mxu0 %v8159
        %v8271 = vpop.f32.mrf.mxu0
        %v8272 = vadd.f32 %v8063, %v8271
        %8273 = vmatmul.f32.gmra.mxu0 %v8162
        %v8274 = vpop.f32.mrf.mxu0
        %v8275 = vadd.f32 %v8066, %v8274
        %8276 = vmatmul.f32.gmra.mxu0 %v8165
        %v8277 = vpop.f32.mrf.mxu0
        %v8278 = vadd.f32 %v8069, %v8277
        %8279 = vmatmul.f32.gmra.mxu0 %v8168
        %v8280 = vpop.f32.mrf.mxu0
        %v8281 = vadd.f32 %v8072, %v8280
        %8282 = vmatmul.f32.gmra.mxu0 %v8171
        %v8283 = vpop.f32.mrf.mxu0
        %v8284 = vadd.f32 %v8075, %v8283
        %8285 = vmatmul.f32.gmra.mxu0 %v8174
        %v8286 = vpop.f32.mrf.mxu0
        %v8287 = vadd.f32 %v8078, %v8286
        %8288 = vmatmul.f32.gmra.mxu0 %v8177
        %v8289 = vpop.f32.mrf.mxu0
        %v8290 = vadd.f32 %v8081, %v8289
        %8291 = vmatmul.f32.gmra.mxu0 %v8180
        %v8292 = vpop.f32.mrf.mxu0
        %v8293 = vadd.f32 %v8084, %v8292
        %8294 = vmatmul.f32.gmra.mxu0 %v8183
        %v8295 = vpop.f32.mrf.mxu0
        %v8296 = vadd.f32 %v8087, %v8295
        %8297 = vmatmul.f32.gmra.mxu0 %v8186
        %v8298 = vpop.f32.mrf.mxu0
        %v8299 = vadd.f32 %v8090, %v8298
        %8300 = vmatmul.f32.gmra.mxu0 %v8189
        %v8301 = vpop.f32.mrf.mxu0
        %v8302 = vadd.f32 %v8093, %v8301
        %8303 = vmatmul.f32.gmra.mxu0 %v8192
        %v8304 = vpop.f32.mrf.mxu0
        %v8305 = vadd.f32 %v8096, %v8304
        %8306 = vmatmul.f32.gmra.mxu0 %v8195
        %v8307 = vpop.f32.mrf.mxu0
        %v8308 = vadd.f32 %v8099, %v8307
        %8309 = vmatmul.f32.gmra.mxu0 %v8198
        %v8310 = vpop.f32.mrf.mxu0
        %v8311 = vadd.f32 %v8102, %v8310
        %8312 = vmatmul.f32.gmra.mxu0 %v8201
        %v8313 = vpop.f32.mrf.mxu0
        %v8314 = vadd.f32 %v8105, %v8313
        %8315 = vmatmul.f32.gmra.mxu0 %v8204
        %v8316 = vpop.f32.mrf.mxu0
        %v8317 = vadd.f32 %v8108, %v8316
        %8318 = vmatmul.f32.gmra.mxu0 %v8207
        %v8319 = vpop.f32.mrf.mxu0
        %v8320 = vadd.f32 %v8111, %v8319
        %8321 = vmatmul.f32.gmra.mxu0 %v8210
        %v8322 = vpop.f32.mrf.mxu0
        %v8323 = vadd.f32 %v8114, %v8322
        %8324 = vmatmul.f32.gmra.mxu0 %v8213
        %v8325 = vpop.f32.mrf.mxu0
        %v8326 = vadd.f32 %v8117, %v8325
        %8327 = vmatmul.f32.gmra.mxu0 %v8216
        %v8328 = vpop.f32.mrf.mxu0
        %v8329 = vadd.f32 %v8120, %v8328
        %8330 = vmatmul.f32.gmra.mxu0 %v8219
        %v8331 = vpop.f32.mrf.mxu0
        %v8332 = vadd.f32 %v8123, %v8331
        %8333 = vmatmul.f32.gmra.mxu0 %v8222
        %v8334 = vpop.f32.mrf.mxu0
        %v8335 = vadd.f32 %v8126, %v8334
        %8336 = vmatmul.f32.gmra.mxu0 %v8225
        %v8337 = vpop.f32.mrf.mxu0
        %v8338 = vadd.f32 %v8129, %v8337
        %8339 = vmatmul.f32.gmra.mxu0 %v8228
        %v8340 = vpop.f32.mrf.mxu0
        %v8341 = vadd.f32 %v8132, %v8340
        %8342 = vmatmul.f32.gmra.mxu0 %v8231
        %v8343 = vpop.f32.mrf.mxu0
        %v8344 = vadd.f32 %v8135, %v8343
        %8345 = vdwg.mxu0
        %v8346 = vld [vmem:[%s5306] sm:$0xff]
        %v8347 = vld [vmem:[%s5306 + $0x8] sm:$0xff]
        %v8348 = vld [vmem:[%s5306 + $0x10] sm:$0xff]
        %v8349 = vld [vmem:[%s5306 + $0x18] sm:$0xff]
        %v8350 = vld [vmem:[%s5306 + $0x20] sm:$0xff]
        %v8351 = vld [vmem:[%s5306 + $0x28] sm:$0xff]
        %v8352 = vld [vmem:[%s5306 + $0x30] sm:$0xff]
        %v8353 = vld [vmem:[%s5306 + $0x38] sm:$0xff]
        %v8354 = vld [vmem:[%s5306 + $0x40] sm:$0xff]
        %v8355 = vld [vmem:[%s5306 + $0x48] sm:$0xff]
        %v8356 = vld [vmem:[%s5306 + $0x50] sm:$0xff]
        %v8357 = vld [vmem:[%s5306 + $0x58] sm:$0xff]
        %v8358 = vld [vmem:[%s5306 + $0x60] sm:$0xff]
        %v8359 = vld [vmem:[%s5306 + $0x68] sm:$0xff]
        %v8360 = vld [vmem:[%s5306 + $0x70] sm:$0xff]
        %v8361 = vld [vmem:[%s5306 + $0x78] sm:$0xff]
        %v8362 = vld [vmem:[%s5306 + $0x80] sm:$0xff]
        %v8363 = vld [vmem:[%s5306 + $0x88] sm:$0xff]
        %v8364 = vld [vmem:[%s5306 + $0x90] sm:$0xff]
        %v8365 = vld [vmem:[%s5306 + $0x98] sm:$0xff]
        %v8366 = vld [vmem:[%s5306 + $0xa0] sm:$0xff]
        %v8367 = vld [vmem:[%s5306 + $0xa8] sm:$0xff]
        %v8368 = vld [vmem:[%s5306 + $0xb0] sm:$0xff]
        %v8369 = vld [vmem:[%s5306 + $0xb8] sm:$0xff]
        %v8370 = vld [vmem:[%s5306 + $0xc0] sm:$0xff]
        %v8371 = vld [vmem:[%s5306 + $0xc8] sm:$0xff]
        %v8372 = vld [vmem:[%s5306 + $0xd0] sm:$0xff]
        %v8373 = vld [vmem:[%s5306 + $0xd8] sm:$0xff]
        %v8374 = vld [vmem:[%s5306 + $0xe0] sm:$0xff]
        %v8375 = vld [vmem:[%s5306 + $0xe8] sm:$0xff]
        %v8376 = vld [vmem:[%s5306 + $0xf0] sm:$0xff]
        %v8377 = vld [vmem:[%s5306 + $0xf8] sm:$0xff]
        %s8378 = scalar_lea.vmem [#allocation17], 16
        %v8379 = vld [vmem:[%s8378] sm:$0x1f]
        %s8380 = scalar_lea.vmem %s8, 2
        %v8381 = vld [vmem:[%s8380] sm:$0x1]
        %v8383 = vsel %vm7736, %v8379, 0
        %8385 = vmatpush.msra.mxu0 0.0
        %8386 = vmatpush.msra.mxu0 0.0
        %8387 = vmatpush.msra.mxu0 0.0
        %8388 = vmatpush.msra.mxu0 0.0
        %8389 = vmatpush.msra.mxu0 0.0
        %8390 = vmatpush.msra.mxu0 0.0
        %8391 = vmatpush.msra.mxu0 0.0
        %8392 = vmatpush.msra.mxu0 0.0
        %8393 = vmatpush.msra.mxu0 0.0
        %8394 = vmatpush.msra.mxu0 0.0
        %8395 = vmatpush.msra.mxu0 0.0
        %8396 = vmatpush.msra.mxu0 0.0
        %8397 = vmatpush.msra.mxu0 0.0
        %8398 = vmatpush.msra.mxu0 0.0
        %8399 = vmatpush.msra.mxu0 0.0
        %8400 = vmatpush.msra.mxu0 %v8383
        %8401 = vmatmul.f32.gmra.mxu0 %v7734
        %v8402 = vpop.f32.mrf.mxu0
        %v8403 = vadd.f32 %v8381, %v8402
        %8404 = vdwg.mxu0
        %v8405 = vxor.u32 %v8403, 2147483648
        %v8406 = vmul.f32 %v8405, 1.442695
        %v8407 = vpow.pop %v8406
        %v8408 = vadd.f32 %v8407, 1.0
        %v8409 = vrcp.pop %v8408
        %v8410 = vmul.f32 %v8408, %v8409
        %v8411 = vsub.f32 1.0, %v8410
        %v8412 = vmul.f32 %v8409, %v8411
        %v8413 = vadd.f32 %v8409, %v8412
        %vm8414 = vweird.f32 %v8408
        %vm8415 = vweird.f32 %v8409
        %vm8416 = vmor %vm8414, %vm8415
        %v8417 = vsel %vm8416, %v8409, %v8413
        %v8418 = vand.u32 2147483647, %v8408
        %vm8419 = vcmp.eq.f32.partialorder %v8418, 8.507059e+37
        %v8420 = vand.u32 %v8408, 2147483648
        %v8421 = vor.u32 1.1754944e-38, %v8420
        %v8422 = vsel %vm8419, %v8421, %v8417
        %v8423 = vmul.f32 1.0, %v8422
        %v8424 = vperm.slane %v8423, 0
        %v8425 = vmul.f32 %v8346, %v8424
        %v8426 = vmul.f32 %v8347, %v8424
        %v8427 = vmul.f32 %v8348, %v8424
        %v8428 = vmul.f32 %v8349, %v8424
        %v8429 = vmul.f32 %v8350, %v8424
        %v8430 = vmul.f32 %v8351, %v8424
        %v8431 = vmul.f32 %v8352, %v8424
        %v8432 = vmul.f32 %v8353, %v8424
        %v8433 = vmul.f32 %v8354, %v8424
        %v8434 = vmul.f32 %v8355, %v8424
        %v8435 = vmul.f32 %v8356, %v8424
        %v8436 = vmul.f32 %v8357, %v8424
        %v8437 = vmul.f32 %v8358, %v8424
        %v8438 = vmul.f32 %v8359, %v8424
        %v8439 = vmul.f32 %v8360, %v8424
        %v8440 = vmul.f32 %v8361, %v8424
        %v8441 = vmul.f32 %v8362, %v8424
        %v8442 = vmul.f32 %v8363, %v8424
        %v8443 = vmul.f32 %v8364, %v8424
        %v8444 = vmul.f32 %v8365, %v8424
        %v8445 = vmul.f32 %v8366, %v8424
        %v8446 = vmul.f32 %v8367, %v8424
        %v8447 = vmul.f32 %v8368, %v8424
        %v8448 = vmul.f32 %v8369, %v8424
        %v8449 = vmul.f32 %v8370, %v8424
        %v8450 = vmul.f32 %v8371, %v8424
        %v8451 = vmul.f32 %v8372, %v8424
        %v8452 = vmul.f32 %v8373, %v8424
        %v8453 = vmul.f32 %v8374, %v8424
        %v8454 = vmul.f32 %v8375, %v8424
        %v8455 = vmul.f32 %v8376, %v8424
        %v8456 = vmul.f32 %v8377, %v8424
        %s8457 = scalar_lea.vmem [#allocation18], 32
        %v8458 = vld [vmem:[%s8457] sm:$0xff]
        %v8459 = vld [vmem:[%s8457 + $0x8] sm:$0xff]
        %v8461 = vsel %vm1189, %v8425, 0
        %v8464 = vsel %vm1189, %v8426, 0
        %v8467 = vsel %vm1189, %v8427, 0
        %v8470 = vsel %vm1189, %v8428, 0
        %v8473 = vsel %vm1189, %v8429, 0
        %v8476 = vsel %vm1189, %v8430, 0
        %v8479 = vsel %vm1189, %v8431, 0
        %v8482 = vsel %vm1189, %v8432, 0
        %v8485 = vsel %vm1189, %v8433, 0
        %v8488 = vsel %vm1189, %v8434, 0
        %v8491 = vsel %vm1189, %v8435, 0
        %v8494 = vsel %vm1189, %v8436, 0
        %v8497 = vsel %vm1189, %v8437, 0
        %v8500 = vsel %vm1189, %v8438, 0
        %v8503 = vsel %vm1189, %v8439, 0
        %v8506 = vsel %vm1189, %v8440, 0
        %v8509 = vsel %vm1189, %v8441, 0
        %v8512 = vsel %vm1189, %v8442, 0
        %v8515 = vsel %vm1189, %v8443, 0
        %v8518 = vsel %vm1189, %v8444, 0
        %v8521 = vsel %vm1189, %v8445, 0
        %v8524 = vsel %vm1189, %v8446, 0
        %v8527 = vsel %vm1189, %v8447, 0
        %v8530 = vsel %vm1189, %v8448, 0
        %v8533 = vsel %vm1189, %v8449, 0
        %v8536 = vsel %vm1189, %v8450, 0
        %v8539 = vsel %vm1189, %v8451, 0
        %v8542 = vsel %vm1189, %v8452, 0
        %v8545 = vsel %vm1189, %v8453, 0
        %v8548 = vsel %vm1189, %v8454, 0
        %v8551 = vsel %vm1189, %v8455, 0
        %v8554 = vsel %vm1189, %v8456, 0
        %8556 = vmatpush.msra.mxu0 0.0
        %8557 = vmatpush.msra.mxu0 0.0
        %8558 = vmatpush.msra.mxu0 0.0
        %8559 = vmatpush.msra.mxu0 0.0
        %8560 = vmatpush.msra.mxu0 0.0
        %8561 = vmatpush.msra.mxu0 0.0
        %8562 = vmatpush.msra.mxu0 0.0
        %8563 = vmatpush.msra.mxu0 0.0
        %8564 = vmatpush.msra.mxu0 0.0
        %8565 = vmatpush.msra.mxu0 0.0
        %8566 = vmatpush.msra.mxu0 0.0
        %8567 = vmatpush.msra.mxu0 0.0
        %8568 = vmatpush.msra.mxu0 0.0
        %8569 = vmatpush.msra.mxu0 0.0
        %8570 = vmatpush.msra.mxu0 %v8459
        %8571 = vmatpush.msra.mxu0 %v8458
        %8572 = vmatmul.f32.gmra.mxu0 %v8461
        %v8573 = vpop.f32.mrf.mxu0
        %v8574 = vadd.f32 0.0, %v8573
        %8575 = vmatmul.f32.gmra.mxu0 %v8464
        %v8576 = vpop.f32.mrf.mxu0
        %v8577 = vadd.f32 0.0, %v8576
        %8578 = vmatmul.f32.gmra.mxu0 %v8467
        %v8579 = vpop.f32.mrf.mxu0
        %v8580 = vadd.f32 0.0, %v8579
        %8581 = vmatmul.f32.gmra.mxu0 %v8470
        %v8582 = vpop.f32.mrf.mxu0
        %v8583 = vadd.f32 0.0, %v8582
        %8584 = vmatmul.f32.gmra.mxu0 %v8473
        %v8585 = vpop.f32.mrf.mxu0
        %v8586 = vadd.f32 0.0, %v8585
        %8587 = vmatmul.f32.gmra.mxu0 %v8476
        %v8588 = vpop.f32.mrf.mxu0
        %v8589 = vadd.f32 0.0, %v8588
        %8590 = vmatmul.f32.gmra.mxu0 %v8479
        %v8591 = vpop.f32.mrf.mxu0
        %v8592 = vadd.f32 0.0, %v8591
        %8593 = vmatmul.f32.gmra.mxu0 %v8482
        %v8594 = vpop.f32.mrf.mxu0
        %v8595 = vadd.f32 0.0, %v8594
        %8596 = vmatmul.f32.gmra.mxu0 %v8485
        %v8597 = vpop.f32.mrf.mxu0
        %v8598 = vadd.f32 0.0, %v8597
        %8599 = vmatmul.f32.gmra.mxu0 %v8488
        %v8600 = vpop.f32.mrf.mxu0
        %v8601 = vadd.f32 0.0, %v8600
        %8602 = vmatmul.f32.gmra.mxu0 %v8491
        %v8603 = vpop.f32.mrf.mxu0
        %v8604 = vadd.f32 0.0, %v8603
        %8605 = vmatmul.f32.gmra.mxu0 %v8494
        %v8606 = vpop.f32.mrf.mxu0
        %v8607 = vadd.f32 0.0, %v8606
        %8608 = vmatmul.f32.gmra.mxu0 %v8497
        %v8609 = vpop.f32.mrf.mxu0
        %v8610 = vadd.f32 0.0, %v8609
        %8611 = vmatmul.f32.gmra.mxu0 %v8500
        %v8612 = vpop.f32.mrf.mxu0
        %v8613 = vadd.f32 0.0, %v8612
        %8614 = vmatmul.f32.gmra.mxu0 %v8503
        %v8615 = vpop.f32.mrf.mxu0
        %v8616 = vadd.f32 0.0, %v8615
        %8617 = vmatmul.f32.gmra.mxu0 %v8506
        %v8618 = vpop.f32.mrf.mxu0
        %v8619 = vadd.f32 0.0, %v8618
        %8620 = vmatmul.f32.gmra.mxu0 %v8509
        %v8621 = vpop.f32.mrf.mxu0
        %v8622 = vadd.f32 0.0, %v8621
        %8623 = vmatmul.f32.gmra.mxu0 %v8512
        %v8624 = vpop.f32.mrf.mxu0
        %v8625 = vadd.f32 0.0, %v8624
        %8626 = vmatmul.f32.gmra.mxu0 %v8515
        %v8627 = vpop.f32.mrf.mxu0
        %v8628 = vadd.f32 0.0, %v8627
        %8629 = vmatmul.f32.gmra.mxu0 %v8518
        %v8630 = vpop.f32.mrf.mxu0
        %v8631 = vadd.f32 0.0, %v8630
        %8632 = vmatmul.f32.gmra.mxu0 %v8521
        %v8633 = vpop.f32.mrf.mxu0
        %v8634 = vadd.f32 0.0, %v8633
        %8635 = vmatmul.f32.gmra.mxu0 %v8524
        %v8636 = vpop.f32.mrf.mxu0
        %v8637 = vadd.f32 0.0, %v8636
        %8638 = vmatmul.f32.gmra.mxu0 %v8527
        %v8639 = vpop.f32.mrf.mxu0
        %v8640 = vadd.f32 0.0, %v8639
        %8641 = vmatmul.f32.gmra.mxu0 %v8530
        %v8642 = vpop.f32.mrf.mxu0
        %v8643 = vadd.f32 0.0, %v8642
        %8644 = vmatmul.f32.gmra.mxu0 %v8533
        %v8645 = vpop.f32.mrf.mxu0
        %v8646 = vadd.f32 0.0, %v8645
        %8647 = vmatmul.f32.gmra.mxu0 %v8536
        %v8648 = vpop.f32.mrf.mxu0
        %v8649 = vadd.f32 0.0, %v8648
        %8650 = vmatmul.f32.gmra.mxu0 %v8539
        %v8651 = vpop.f32.mrf.mxu0
        %v8652 = vadd.f32 0.0, %v8651
        %8653 = vmatmul.f32.gmra.mxu0 %v8542
        %v8654 = vpop.f32.mrf.mxu0
        %v8655 = vadd.f32 0.0, %v8654
        %8656 = vmatmul.f32.gmra.mxu0 %v8545
        %v8657 = vpop.f32.mrf.mxu0
        %v8658 = vadd.f32 0.0, %v8657
        %8659 = vmatmul.f32.gmra.mxu0 %v8548
        %v8660 = vpop.f32.mrf.mxu0
        %v8661 = vadd.f32 0.0, %v8660
        %8662 = vmatmul.f32.gmra.mxu0 %v8551
        %v8663 = vpop.f32.mrf.mxu0
        %v8664 = vadd.f32 0.0, %v8663
        %8665 = vmatmul.f32.gmra.mxu0 %v8554
        %v8666 = vpop.f32.mrf.mxu0
        %v8667 = vadd.f32 0.0, %v8666
        %8668 = vdwg.mxu0
        %v8669 = vadd.f32 %v8251, %v8574
        %v8670 = vadd.f32 %v8254, %v8577
        %v8671 = vadd.f32 %v8257, %v8580
        %v8672 = vadd.f32 %v8260, %v8583
        %v8673 = vadd.f32 %v8263, %v8586
        %v8674 = vadd.f32 %v8266, %v8589
        %v8675 = vadd.f32 %v8269, %v8592
        %v8676 = vadd.f32 %v8272, %v8595
        %v8677 = vadd.f32 %v8275, %v8598
        %v8678 = vadd.f32 %v8278, %v8601
        %v8679 = vadd.f32 %v8281, %v8604
        %v8680 = vadd.f32 %v8284, %v8607
        %v8681 = vadd.f32 %v8287, %v8610
        %v8682 = vadd.f32 %v8290, %v8613
        %v8683 = vadd.f32 %v8293, %v8616
        %v8684 = vadd.f32 %v8296, %v8619
        %v8685 = vadd.f32 %v8299, %v8622
        %v8686 = vadd.f32 %v8302, %v8625
        %v8687 = vadd.f32 %v8305, %v8628
        %v8688 = vadd.f32 %v8308, %v8631
        %v8689 = vadd.f32 %v8311, %v8634
        %v8690 = vadd.f32 %v8314, %v8637
        %v8691 = vadd.f32 %v8317, %v8640
        %v8692 = vadd.f32 %v8320, %v8643
        %v8693 = vadd.f32 %v8323, %v8646
        %v8694 = vadd.f32 %v8326, %v8649
        %v8695 = vadd.f32 %v8329, %v8652
        %v8696 = vadd.f32 %v8332, %v8655
        %v8697 = vadd.f32 %v8335, %v8658
        %v8698 = vadd.f32 %v8338, %v8661
        %v8699 = vadd.f32 %v8341, %v8664
        %v8700 = vadd.f32 %v8344, %v8667
        %v8701 = vld [vmem:[%s7359] sm:$0xff]
        %v8702 = vld [vmem:[%s7359 + $0x8] sm:$0xff]
        %v8703 = vld [vmem:[%s7359 + $0x10] sm:$0xff]
        %v8704 = vld [vmem:[%s7359 + $0x18] sm:$0xff]
        %v8705 = vld [vmem:[%s7359 + $0x20] sm:$0xff]
        %v8706 = vld [vmem:[%s7359 + $0x28] sm:$0xff]
        %v8707 = vld [vmem:[%s7359 + $0x30] sm:$0xff]
        %v8708 = vld [vmem:[%s7359 + $0x38] sm:$0xff]
        %v8709 = vld [vmem:[%s7359 + $0x40] sm:$0xff]
        %v8710 = vld [vmem:[%s7359 + $0x48] sm:$0xff]
        %v8711 = vld [vmem:[%s7359 + $0x50] sm:$0xff]
        %v8712 = vld [vmem:[%s7359 + $0x58] sm:$0xff]
        %v8713 = vld [vmem:[%s7359 + $0x60] sm:$0xff]
        %v8714 = vld [vmem:[%s7359 + $0x68] sm:$0xff]
        %v8715 = vld [vmem:[%s7359 + $0x70] sm:$0xff]
        %v8716 = vld [vmem:[%s7359 + $0x78] sm:$0xff]
        %v8717 = vld [vmem:[%s7359 + $0x80] sm:$0xff]
        %v8718 = vld [vmem:[%s7359 + $0x88] sm:$0xff]
        %v8719 = vld [vmem:[%s7359 + $0x90] sm:$0xff]
        %v8720 = vld [vmem:[%s7359 + $0x98] sm:$0xff]
        %v8721 = vld [vmem:[%s7359 + $0xa0] sm:$0xff]
        %v8722 = vld [vmem:[%s7359 + $0xa8] sm:$0xff]
        %v8723 = vld [vmem:[%s7359 + $0xb0] sm:$0xff]
        %v8724 = vld [vmem:[%s7359 + $0xb8] sm:$0xff]
        %v8725 = vld [vmem:[%s7359 + $0xc0] sm:$0xff]
        %v8726 = vld [vmem:[%s7359 + $0xc8] sm:$0xff]
        %v8727 = vld [vmem:[%s7359 + $0xd0] sm:$0xff]
        %v8728 = vld [vmem:[%s7359 + $0xd8] sm:$0xff]
        %v8729 = vld [vmem:[%s7359 + $0xe0] sm:$0xff]
        %v8730 = vld [vmem:[%s7359 + $0xe8] sm:$0xff]
        %v8731 = vld [vmem:[%s7359 + $0xf0] sm:$0xff]
        %v8732 = vld [vmem:[%s7359 + $0xf8] sm:$0xff]
        %s8733 = scalar_lea.vmem [#allocation17], 24
        %v8734 = vld [vmem:[%s8733] sm:$0x1f]
        %s8735 = scalar_lea.vmem %s8, 3
        %v8736 = vld [vmem:[%s8735] sm:$0x1]
        %v8738 = vsel %vm7736, %v8734, 0
        %8740 = vmatpush.msra.mxu0 0.0
        %8741 = vmatpush.msra.mxu0 0.0
        %8742 = vmatpush.msra.mxu0 0.0
        %8743 = vmatpush.msra.mxu0 0.0
        %8744 = vmatpush.msra.mxu0 0.0
        %8745 = vmatpush.msra.mxu0 0.0
        %8746 = vmatpush.msra.mxu0 0.0
        %8747 = vmatpush.msra.mxu0 0.0
        %8748 = vmatpush.msra.mxu0 0.0
        %8749 = vmatpush.msra.mxu0 0.0
        %8750 = vmatpush.msra.mxu0 0.0
        %8751 = vmatpush.msra.mxu0 0.0
        %8752 = vmatpush.msra.mxu0 0.0
        %8753 = vmatpush.msra.mxu0 0.0
        %8754 = vmatpush.msra.mxu0 0.0
        %8755 = vmatpush.msra.mxu0 %v8738
        %8756 = vmatmul.f32.gmra.mxu0 %v7734
        %v8757 = vpop.f32.mrf.mxu0
        %v8758 = vadd.f32 %v8736, %v8757
        %8759 = vdwg.mxu0
        %v8760 = vxor.u32 %v8758, 2147483648
        %v8761 = vmul.f32 %v8760, 1.442695
        %v8762 = vpow.pop %v8761
        %v8763 = vadd.f32 %v8762, 1.0
        %v8764 = vrcp.pop %v8763
        %v8765 = vmul.f32 %v8763, %v8764
        %v8766 = vsub.f32 1.0, %v8765
        %v8767 = vmul.f32 %v8764, %v8766
        %v8768 = vadd.f32 %v8764, %v8767
        %vm8769 = vweird.f32 %v8763
        %vm8770 = vweird.f32 %v8764
        %vm8771 = vmor %vm8769, %vm8770
        %v8772 = vsel %vm8771, %v8764, %v8768
        %v8773 = vand.u32 2147483647, %v8763
        %vm8774 = vcmp.eq.f32.partialorder %v8773, 8.507059e+37
        %v8775 = vand.u32 %v8763, 2147483648
        %v8776 = vor.u32 1.1754944e-38, %v8775
        %v8777 = vsel %vm8774, %v8776, %v8772
        %v8778 = vmul.f32 1.0, %v8777
        %v8779 = vperm.slane %v8778, 0
        %v8780 = vmul.f32 %v8701, %v8779
        %v8781 = vmul.f32 %v8702, %v8779
        %v8782 = vmul.f32 %v8703, %v8779
        %v8783 = vmul.f32 %v8704, %v8779
        %v8784 = vmul.f32 %v8705, %v8779
        %v8785 = vmul.f32 %v8706, %v8779
        %v8786 = vmul.f32 %v8707, %v8779
        %v8787 = vmul.f32 %v8708, %v8779
        %v8788 = vmul.f32 %v8709, %v8779
        %v8789 = vmul.f32 %v8710, %v8779
        %v8790 = vmul.f32 %v8711, %v8779
        %v8791 = vmul.f32 %v8712, %v8779
        %v8792 = vmul.f32 %v8713, %v8779
        %v8793 = vmul.f32 %v8714, %v8779
        %v8794 = vmul.f32 %v8715, %v8779
        %v8795 = vmul.f32 %v8716, %v8779
        %v8796 = vmul.f32 %v8717, %v8779
        %v8797 = vmul.f32 %v8718, %v8779
        %v8798 = vmul.f32 %v8719, %v8779
        %v8799 = vmul.f32 %v8720, %v8779
        %v8800 = vmul.f32 %v8721, %v8779
        %v8801 = vmul.f32 %v8722, %v8779
        %v8802 = vmul.f32 %v8723, %v8779
        %v8803 = vmul.f32 %v8724, %v8779
        %v8804 = vmul.f32 %v8725, %v8779
        %v8805 = vmul.f32 %v8726, %v8779
        %v8806 = vmul.f32 %v8727, %v8779
        %v8807 = vmul.f32 %v8728, %v8779
        %v8808 = vmul.f32 %v8729, %v8779
        %v8809 = vmul.f32 %v8730, %v8779
        %v8810 = vmul.f32 %v8731, %v8779
        %v8811 = vmul.f32 %v8732, %v8779
        %s8812 = scalar_lea.vmem [#allocation18], 48
        %v8813 = vld [vmem:[%s8812] sm:$0xff]
        %v8814 = vld [vmem:[%s8812 + $0x8] sm:$0xff]
        %v8816 = vsel %vm1189, %v8780, 0
        %v8819 = vsel %vm1189, %v8781, 0
        %v8822 = vsel %vm1189, %v8782, 0
        %v8825 = vsel %vm1189, %v8783, 0
        %v8828 = vsel %vm1189, %v8784, 0
        %v8831 = vsel %vm1189, %v8785, 0
        %v8834 = vsel %vm1189, %v8786, 0
        %v8837 = vsel %vm1189, %v8787, 0
        %v8840 = vsel %vm1189, %v8788, 0
        %v8843 = vsel %vm1189, %v8789, 0
        %v8846 = vsel %vm1189, %v8790, 0
        %v8849 = vsel %vm1189, %v8791, 0
        %v8852 = vsel %vm1189, %v8792, 0
        %v8855 = vsel %vm1189, %v8793, 0
        %v8858 = vsel %vm1189, %v8794, 0
        %v8861 = vsel %vm1189, %v8795, 0
        %v8864 = vsel %vm1189, %v8796, 0
        %v8867 = vsel %vm1189, %v8797, 0
        %v8870 = vsel %vm1189, %v8798, 0
        %v8873 = vsel %vm1189, %v8799, 0
        %v8876 = vsel %vm1189, %v8800, 0
        %v8879 = vsel %vm1189, %v8801, 0
        %v8882 = vsel %vm1189, %v8802, 0
        %v8885 = vsel %vm1189, %v8803, 0
        %v8888 = vsel %vm1189, %v8804, 0
        %v8891 = vsel %vm1189, %v8805, 0
        %v8894 = vsel %vm1189, %v8806, 0
        %v8897 = vsel %vm1189, %v8807, 0
        %v8900 = vsel %vm1189, %v8808, 0
        %v8903 = vsel %vm1189, %v8809, 0
        %v8906 = vsel %vm1189, %v8810, 0
        %v8909 = vsel %vm1189, %v8811, 0
        %8911 = vmatpush.msra.mxu0 0.0
        %8912 = vmatpush.msra.mxu0 0.0
        %8913 = vmatpush.msra.mxu0 0.0
        %8914 = vmatpush.msra.mxu0 0.0
        %8915 = vmatpush.msra.mxu0 0.0
        %8916 = vmatpush.msra.mxu0 0.0
        %8917 = vmatpush.msra.mxu0 0.0
        %8918 = vmatpush.msra.mxu0 0.0
        %8919 = vmatpush.msra.mxu0 0.0
        %8920 = vmatpush.msra.mxu0 0.0
        %8921 = vmatpush.msra.mxu0 0.0
        %8922 = vmatpush.msra.mxu0 0.0
        %8923 = vmatpush.msra.mxu0 0.0
        %8924 = vmatpush.msra.mxu0 0.0
        %8925 = vmatpush.msra.mxu0 %v8814
        %8926 = vmatpush.msra.mxu0 %v8813
        %8927 = vmatmul.f32.gmra.mxu0 %v8816
        %v8928 = vpop.f32.mrf.mxu0
        %v8929 = vadd.f32 0.0, %v8928
        %8930 = vmatmul.f32.gmra.mxu0 %v8819
        %v8931 = vpop.f32.mrf.mxu0
        %v8932 = vadd.f32 0.0, %v8931
        %8933 = vmatmul.f32.gmra.mxu0 %v8822
        %v8934 = vpop.f32.mrf.mxu0
        %v8935 = vadd.f32 0.0, %v8934
        %8936 = vmatmul.f32.gmra.mxu0 %v8825
        %v8937 = vpop.f32.mrf.mxu0
        %v8938 = vadd.f32 0.0, %v8937
        %8939 = vmatmul.f32.gmra.mxu0 %v8828
        %v8940 = vpop.f32.mrf.mxu0
        %v8941 = vadd.f32 0.0, %v8940
        %8942 = vmatmul.f32.gmra.mxu0 %v8831
        %v8943 = vpop.f32.mrf.mxu0
        %v8944 = vadd.f32 0.0, %v8943
        %8945 = vmatmul.f32.gmra.mxu0 %v8834
        %v8946 = vpop.f32.mrf.mxu0
        %v8947 = vadd.f32 0.0, %v8946
        %8948 = vmatmul.f32.gmra.mxu0 %v8837
        %v8949 = vpop.f32.mrf.mxu0
        %v8950 = vadd.f32 0.0, %v8949
        %8951 = vmatmul.f32.gmra.mxu0 %v8840
        %v8952 = vpop.f32.mrf.mxu0
        %v8953 = vadd.f32 0.0, %v8952
        %8954 = vmatmul.f32.gmra.mxu0 %v8843
        %v8955 = vpop.f32.mrf.mxu0
        %v8956 = vadd.f32 0.0, %v8955
        %8957 = vmatmul.f32.gmra.mxu0 %v8846
        %v8958 = vpop.f32.mrf.mxu0
        %v8959 = vadd.f32 0.0, %v8958
        %8960 = vmatmul.f32.gmra.mxu0 %v8849
        %v8961 = vpop.f32.mrf.mxu0
        %v8962 = vadd.f32 0.0, %v8961
        %8963 = vmatmul.f32.gmra.mxu0 %v8852
        %v8964 = vpop.f32.mrf.mxu0
        %v8965 = vadd.f32 0.0, %v8964
        %8966 = vmatmul.f32.gmra.mxu0 %v8855
        %v8967 = vpop.f32.mrf.mxu0
        %v8968 = vadd.f32 0.0, %v8967
        %8969 = vmatmul.f32.gmra.mxu0 %v8858
        %v8970 = vpop.f32.mrf.mxu0
        %v8971 = vadd.f32 0.0, %v8970
        %8972 = vmatmul.f32.gmra.mxu0 %v8861
        %v8973 = vpop.f32.mrf.mxu0
        %v8974 = vadd.f32 0.0, %v8973
        %8975 = vmatmul.f32.gmra.mxu0 %v8864
        %v8976 = vpop.f32.mrf.mxu0
        %v8977 = vadd.f32 0.0, %v8976
        %8978 = vmatmul.f32.gmra.mxu0 %v8867
        %v8979 = vpop.f32.mrf.mxu0
        %v8980 = vadd.f32 0.0, %v8979
        %8981 = vmatmul.f32.gmra.mxu0 %v8870
        %v8982 = vpop.f32.mrf.mxu0
        %v8983 = vadd.f32 0.0, %v8982
        %8984 = vmatmul.f32.gmra.mxu0 %v8873
        %v8985 = vpop.f32.mrf.mxu0
        %v8986 = vadd.f32 0.0, %v8985
        %8987 = vmatmul.f32.gmra.mxu0 %v8876
        %v8988 = vpop.f32.mrf.mxu0
        %v8989 = vadd.f32 0.0, %v8988
        %8990 = vmatmul.f32.gmra.mxu0 %v8879
        %v8991 = vpop.f32.mrf.mxu0
        %v8992 = vadd.f32 0.0, %v8991
        %8993 = vmatmul.f32.gmra.mxu0 %v8882
        %v8994 = vpop.f32.mrf.mxu0
        %v8995 = vadd.f32 0.0, %v8994
        %8996 = vmatmul.f32.gmra.mxu0 %v8885
        %v8997 = vpop.f32.mrf.mxu0
        %v8998 = vadd.f32 0.0, %v8997
        %8999 = vmatmul.f32.gmra.mxu0 %v8888
        %v9000 = vpop.f32.mrf.mxu0
        %v9001 = vadd.f32 0.0, %v9000
        %9002 = vmatmul.f32.gmra.mxu0 %v8891
        %v9003 = vpop.f32.mrf.mxu0
        %v9004 = vadd.f32 0.0, %v9003
        %9005 = vmatmul.f32.gmra.mxu0 %v8894
        %v9006 = vpop.f32.mrf.mxu0
        %v9007 = vadd.f32 0.0, %v9006
        %9008 = vmatmul.f32.gmra.mxu0 %v8897
        %v9009 = vpop.f32.mrf.mxu0
        %v9010 = vadd.f32 0.0, %v9009
        %9011 = vmatmul.f32.gmra.mxu0 %v8900
        %v9012 = vpop.f32.mrf.mxu0
        %v9013 = vadd.f32 0.0, %v9012
        %9014 = vmatmul.f32.gmra.mxu0 %v8903
        %v9015 = vpop.f32.mrf.mxu0
        %v9016 = vadd.f32 0.0, %v9015
        %9017 = vmatmul.f32.gmra.mxu0 %v8906
        %v9018 = vpop.f32.mrf.mxu0
        %v9019 = vadd.f32 0.0, %v9018
        %9020 = vmatmul.f32.gmra.mxu0 %v8909
        %v9021 = vpop.f32.mrf.mxu0
        %v9022 = vadd.f32 0.0, %v9021
        %9023 = vdwg.mxu0
        %v9024 = vadd.f32 %v8669, %v8929
        %v9025 = vadd.f32 %v8670, %v8932
        %v9026 = vadd.f32 %v8671, %v8935
        %v9027 = vadd.f32 %v8672, %v8938
        %v9028 = vadd.f32 %v8673, %v8941
        %v9029 = vadd.f32 %v8674, %v8944
        %v9030 = vadd.f32 %v8675, %v8947
        %v9031 = vadd.f32 %v8676, %v8950
        %v9032 = vadd.f32 %v8677, %v8953
        %v9033 = vadd.f32 %v8678, %v8956
        %v9034 = vadd.f32 %v8679, %v8959
        %v9035 = vadd.f32 %v8680, %v8962
        %v9036 = vadd.f32 %v8681, %v8965
        %v9037 = vadd.f32 %v8682, %v8968
        %v9038 = vadd.f32 %v8683, %v8971
        %v9039 = vadd.f32 %v8684, %v8974
        %v9040 = vadd.f32 %v8685, %v8977
        %v9041 = vadd.f32 %v8686, %v8980
        %v9042 = vadd.f32 %v8687, %v8983
        %v9043 = vadd.f32 %v8688, %v8986
        %v9044 = vadd.f32 %v8689, %v8989
        %v9045 = vadd.f32 %v8690, %v8992
        %v9046 = vadd.f32 %v8691, %v8995
        %v9047 = vadd.f32 %v8692, %v8998
        %v9048 = vadd.f32 %v8693, %v9001
        %v9049 = vadd.f32 %v8694, %v9004
        %v9050 = vadd.f32 %v8695, %v9007
        %v9051 = vadd.f32 %v8696, %v9010
        %v9052 = vadd.f32 %v8697, %v9013
        %v9053 = vadd.f32 %v8698, %v9016
        %v9054 = vadd.f32 %v8699, %v9019
        %v9055 = vadd.f32 %v8700, %v9022
        %s9056 = scalar_lea.vmem [#allocation17], 32
        %v9057 = vld [vmem:[%s9056] sm:$0x1f]
        %s9058 = scalar_lea.vmem %s8, 4
        %v9059 = vld [vmem:[%s9058] sm:$0x1]
        %v9061 = vsel %vm7736, %v9057, 0
        %9063 = vmatpush.msra.mxu0 0.0
        %9064 = vmatpush.msra.mxu0 0.0
        %9065 = vmatpush.msra.mxu0 0.0
        %9066 = vmatpush.msra.mxu0 0.0
        %9067 = vmatpush.msra.mxu0 0.0
        %9068 = vmatpush.msra.mxu0 0.0
        %9069 = vmatpush.msra.mxu0 0.0
        %9070 = vmatpush.msra.mxu0 0.0
        %9071 = vmatpush.msra.mxu0 0.0
        %9072 = vmatpush.msra.mxu0 0.0
        %9073 = vmatpush.msra.mxu0 0.0
        %9074 = vmatpush.msra.mxu0 0.0
        %9075 = vmatpush.msra.mxu0 0.0
        %9076 = vmatpush.msra.mxu0 0.0
        %9077 = vmatpush.msra.mxu0 0.0
        %9078 = vmatpush.msra.mxu0 %v9061
        %9079 = vmatmul.f32.gmra.mxu0 %v7734
        %v9080 = vpop.f32.mrf.mxu0
        %v9081 = vadd.f32 %v9059, %v9080
        %9082 = vdwg.mxu0
        %v9083 = vxor.u32 %v9081, 2147483648
        %v9084 = vmul.f32 %v9083, 1.442695
        %v9085 = vpow.pop %v9084
        %v9086 = vadd.f32 %v9085, 1.0
        %v9087 = vrcp.pop %v9086
        %v9088 = vmul.f32 %v9086, %v9087
        %v9089 = vsub.f32 1.0, %v9088
        %v9090 = vmul.f32 %v9087, %v9089
        %v9091 = vadd.f32 %v9087, %v9090
        %vm9092 = vweird.f32 %v9086
        %vm9093 = vweird.f32 %v9087
        %vm9094 = vmor %vm9092, %vm9093
        %v9095 = vsel %vm9094, %v9087, %v9091
        %v9096 = vand.u32 2147483647, %v9086
        %vm9097 = vcmp.eq.f32.partialorder %v9096, 8.507059e+37
        %v9098 = vand.u32 %v9086, 2147483648
        %v9099 = vor.u32 1.1754944e-38, %v9098
        %v9100 = vsel %vm9097, %v9099, %v9095
        %v9101 = vmul.f32 1.0, %v9100
        %v9102 = vmul.f32 %v7561, %v9101
        %s9103 = scalar_lea.vmem [#allocation18], 64
        %v9104 = vld [vmem:[%s9103] sm:$0xff]
        %v9105 = vld [vmem:[%s9103 + $0x8] sm:$0xff]
        %v9107 = vsel %vm1189, %v9102, 0
        %9109 = vmatpush.msra.mxu0 0.0
        %9110 = vmatpush.msra.mxu0 0.0
        %9111 = vmatpush.msra.mxu0 0.0
        %9112 = vmatpush.msra.mxu0 0.0
        %9113 = vmatpush.msra.mxu0 0.0
        %9114 = vmatpush.msra.mxu0 0.0
        %9115 = vmatpush.msra.mxu0 0.0
        %9116 = vmatpush.msra.mxu0 0.0
        %9117 = vmatpush.msra.mxu0 0.0
        %9118 = vmatpush.msra.mxu0 0.0
        %9119 = vmatpush.msra.mxu0 0.0
        %9120 = vmatpush.msra.mxu0 0.0
        %9121 = vmatpush.msra.mxu0 0.0
        %9122 = vmatpush.msra.mxu0 0.0
        %9123 = vmatpush.msra.mxu0 %v9105
        %9124 = vmatpush.msra.mxu0 %v9104
        %9125 = vmatmul.f32.gmra.mxu0 %v9107
        %v9126 = vpop.f32.mrf.mxu0
        %v9127 = vadd.f32 0.0, %v9126
        %9128 = vdwg.mxu0
        %v9129 = vperm.slane %v9127, 0
        %v9130 = vadd.f32 %v9024, %v9129
        %v9131 = vadd.f32 %v9025, %v9129
        %v9132 = vadd.f32 %v9026, %v9129
        %v9133 = vadd.f32 %v9027, %v9129
        %v9134 = vadd.f32 %v9028, %v9129
        %v9135 = vadd.f32 %v9029, %v9129
        %v9136 = vadd.f32 %v9030, %v9129
        %v9137 = vadd.f32 %v9031, %v9129
        %v9138 = vadd.f32 %v9032, %v9129
        %v9139 = vadd.f32 %v9033, %v9129
        %v9140 = vadd.f32 %v9034, %v9129
        %v9141 = vadd.f32 %v9035, %v9129
        %v9142 = vadd.f32 %v9036, %v9129
        %v9143 = vadd.f32 %v9037, %v9129
        %v9144 = vadd.f32 %v9038, %v9129
        %v9145 = vadd.f32 %v9039, %v9129
        %v9146 = vadd.f32 %v9040, %v9129
        %v9147 = vadd.f32 %v9041, %v9129
        %v9148 = vadd.f32 %v9042, %v9129
        %v9149 = vadd.f32 %v9043, %v9129
        %v9150 = vadd.f32 %v9044, %v9129
        %v9151 = vadd.f32 %v9045, %v9129
        %v9152 = vadd.f32 %v9046, %v9129
        %v9153 = vadd.f32 %v9047, %v9129
        %v9154 = vadd.f32 %v9048, %v9129
        %v9155 = vadd.f32 %v9049, %v9129
        %v9156 = vadd.f32 %v9050, %v9129
        %v9157 = vadd.f32 %v9051, %v9129
        %v9158 = vadd.f32 %v9052, %v9129
        %v9159 = vadd.f32 %v9053, %v9129
        %v9160 = vadd.f32 %v9054, %v9129
        %v9161 = vadd.f32 %v9055, %v9129
        %v9162 = vld [vmem:[%s10] sm:$0x1]
        %v9164 = vperm.slane %v9162, 0
        %v9166 = vadd.f32 %v9130, %v9164
        %v9167 = vadd.f32 %v9131, %v9164
        %v9168 = vadd.f32 %v9132, %v9164
        %v9169 = vadd.f32 %v9133, %v9164
        %v9170 = vadd.f32 %v9134, %v9164
        %v9171 = vadd.f32 %v9135, %v9164
        %v9172 = vadd.f32 %v9136, %v9164
        %v9173 = vadd.f32 %v9137, %v9164
        %v9174 = vadd.f32 %v9138, %v9164
        %v9175 = vadd.f32 %v9139, %v9164
        %v9176 = vadd.f32 %v9140, %v9164
        %v9177 = vadd.f32 %v9141, %v9164
        %v9178 = vadd.f32 %v9142, %v9164
        %v9179 = vadd.f32 %v9143, %v9164
        %v9180 = vadd.f32 %v9144, %v9164
        %v9181 = vadd.f32 %v9145, %v9164
        %v9182 = vadd.f32 %v9146, %v9164
        %v9183 = vadd.f32 %v9147, %v9164
        %v9184 = vadd.f32 %v9148, %v9164
        %v9185 = vadd.f32 %v9149, %v9164
        %v9186 = vadd.f32 %v9150, %v9164
        %v9187 = vadd.f32 %v9151, %v9164
        %v9188 = vadd.f32 %v9152, %v9164
        %v9189 = vadd.f32 %v9153, %v9164
        %v9190 = vadd.f32 %v9154, %v9164
        %v9191 = vadd.f32 %v9155, %v9164
        %v9192 = vadd.f32 %v9156, %v9164
        %v9193 = vadd.f32 %v9157, %v9164
        %v9194 = vadd.f32 %v9158, %v9164
        %v9195 = vadd.f32 %v9159, %v9164
        %v9196 = vadd.f32 %v9160, %v9164
        %v9197 = vadd.f32 %v9161, %v9164
        %v9198 = vmax.f32 %v9166, 0.0
        %v9199 = vmax.f32 %v9167, 0.0
        %v9200 = vmax.f32 %v9168, 0.0
        %v9201 = vmax.f32 %v9169, 0.0
        %v9202 = vmax.f32 %v9170, 0.0
        %v9203 = vmax.f32 %v9171, 0.0
        %v9204 = vmax.f32 %v9172, 0.0
        %v9205 = vmax.f32 %v9173, 0.0
        %v9206 = vmax.f32 %v9174, 0.0
        %v9207 = vmax.f32 %v9175, 0.0
        %v9208 = vmax.f32 %v9176, 0.0
        %v9209 = vmax.f32 %v9177, 0.0
        %v9210 = vmax.f32 %v9178, 0.0
        %v9211 = vmax.f32 %v9179, 0.0
        %v9212 = vmax.f32 %v9180, 0.0
        %v9213 = vmax.f32 %v9181, 0.0
        %v9214 = vmax.f32 %v9182, 0.0
        %v9215 = vmax.f32 %v9183, 0.0
        %v9216 = vmax.f32 %v9184, 0.0
        %v9217 = vmax.f32 %v9185, 0.0
        %v9218 = vmax.f32 %v9186, 0.0
        %v9219 = vmax.f32 %v9187, 0.0
        %v9220 = vmax.f32 %v9188, 0.0
        %v9221 = vmax.f32 %v9189, 0.0
        %v9222 = vmax.f32 %v9190, 0.0
        %v9223 = vmax.f32 %v9191, 0.0
        %v9224 = vmax.f32 %v9192, 0.0
        %v9225 = vmax.f32 %v9193, 0.0
        %v9226 = vmax.f32 %v9194, 0.0
        %v9227 = vmax.f32 %v9195, 0.0
        %v9228 = vmax.f32 %v9196, 0.0
        %v9229 = vmax.f32 %v9197, 0.0
        %v9230 = vmax.f32 %v9198, %v9200
        %v9231 = vmax.f32 %v9199, %v9201
        %v9232 = vmax.f32 %v9202, %v9204
        %v9233 = vmax.f32 %v9203, %v9205
        %v9234 = vmax.f32 %v9206, %v9208
        %v9235 = vmax.f32 %v9207, %v9209
        %v9236 = vmax.f32 %v9210, %v9212
        %v9237 = vmax.f32 %v9211, %v9213
        %v9238 = vmax.f32 %v9214, %v9216
        %v9239 = vmax.f32 %v9215, %v9217
        %v9240 = vmax.f32 %v9218, %v9220
        %v9241 = vmax.f32 %v9219, %v9221
        %v9242 = vmax.f32 %v9222, %v9224
        %v9243 = vmax.f32 %v9223, %v9225
        %v9244 = vmax.f32 %v9226, %v9228
        %v9245 = vmax.f32 %v9227, %v9229
        %9246 = vst.msk [vmem:[#allocation5] sm:$0xff] %vm1189, %v9230
        %9247 = vst.msk [vmem:[#allocation5 + $0x8] sm:$0xff] %vm1189, %v9231
        %9248 = vst.msk [vmem:[#allocation5 + $0x10] sm:$0xff] %vm1189, %v9232
        %9249 = vst.msk [vmem:[#allocation5 + $0x18] sm:$0xff] %vm1189, %v9233
        %9250 = vst.msk [vmem:[#allocation5 + $0x20] sm:$0xff] %vm1189, %v9234
        %9251 = vst.msk [vmem:[#allocation5 + $0x28] sm:$0xff] %vm1189, %v9235
        %9252 = vst.msk [vmem:[#allocation5 + $0x30] sm:$0xff] %vm1189, %v9236
        %9253 = vst.msk [vmem:[#allocation5 + $0x38] sm:$0xff] %vm1189, %v9237
        %9254 = vst.msk [vmem:[#allocation5 + $0x40] sm:$0xff] %vm1189, %v9238
        %9255 = vst.msk [vmem:[#allocation5 + $0x48] sm:$0xff] %vm1189, %v9239
        %9256 = vst.msk [vmem:[#allocation5 + $0x50] sm:$0xff] %vm1189, %v9240
        %9257 = vst.msk [vmem:[#allocation5 + $0x58] sm:$0xff] %vm1189, %v9241
        %9258 = vst.msk [vmem:[#allocation5 + $0x60] sm:$0xff] %vm1189, %v9242
        %9259 = vst.msk [vmem:[#allocation5 + $0x68] sm:$0xff] %vm1189, %v9243
        %9260 = vst.msk [vmem:[#allocation5 + $0x70] sm:$0xff] %vm1189, %v9244
        %9261 = vst.msk [vmem:[#allocation5 + $0x78] sm:$0xff] %vm1189, %v9245
        %v9262 = vld [vmem:[#allocation5] ss:$2 sm:$0xff]
        %s9263 = scalar_lea.vmem [#allocation5], 16
        %v9264 = vld [vmem:[%s9263] ss:$2 sm:$0xff]
        %s9265 = scalar_lea.vmem [#allocation5], 32
        %v9266 = vld [vmem:[%s9265] ss:$2 sm:$0xff]
        %s9267 = scalar_lea.vmem [#allocation5], 48
        %v9268 = vld [vmem:[%s9267] ss:$2 sm:$0xff]
        %s9269 = scalar_lea.vmem [#allocation5], 64
        %v9270 = vld [vmem:[%s9269] ss:$2 sm:$0xff]
        %s9271 = scalar_lea.vmem [#allocation5], 80
        %v9272 = vld [vmem:[%s9271] ss:$2 sm:$0xff]
        %s9273 = scalar_lea.vmem [#allocation5], 96
        %v9274 = vld [vmem:[%s9273] ss:$2 sm:$0xff]
        %s9275 = scalar_lea.vmem [#allocation5], 112
        %v9276 = vld [vmem:[%s9275] ss:$2 sm:$0xff]
        %s9277 = scalar_lea.vmem [#allocation5], 1
        %v9278 = vld [vmem:[%s9277] ss:$2 sm:$0xff]
        %s9279 = scalar_lea.vmem [#allocation5], 17
        %v9280 = vld [vmem:[%s9279] ss:$2 sm:$0xff]
        %s9281 = scalar_lea.vmem [#allocation5], 33
        %v9282 = vld [vmem:[%s9281] ss:$2 sm:$0xff]
        %s9283 = scalar_lea.vmem [#allocation5], 49
        %v9284 = vld [vmem:[%s9283] ss:$2 sm:$0xff]
        %s9285 = scalar_lea.vmem [#allocation5], 65
        %v9286 = vld [vmem:[%s9285] ss:$2 sm:$0xff]
        %s9287 = scalar_lea.vmem [#allocation5], 81
        %v9288 = vld [vmem:[%s9287] ss:$2 sm:$0xff]
        %s9289 = scalar_lea.vmem [#allocation5], 97
        %v9290 = vld [vmem:[%s9289] ss:$2 sm:$0xff]
        %s9291 = scalar_lea.vmem [#allocation5], 113
        %v9292 = vld [vmem:[%s9291] ss:$2 sm:$0xff]
        %v9293 = vmax.f32 %v9262, %v9278
        %v9294 = vmax.f32 %v9264, %v9280
        %v9295 = vmax.f32 %v9266, %v9282
        %v9296 = vmax.f32 %v9268, %v9284
        %v9297 = vmax.f32 %v9270, %v9286
        %v9298 = vmax.f32 %v9272, %v9288
        %v9299 = vmax.f32 %v9274, %v9290
        %v9300 = vmax.f32 %v9276, %v9292
        %9301 = vst.msk [vmem:[%s522] sm:$0xff] %vm1189, %v9293
        %9302 = vst.msk [vmem:[%s522 + $0x8] sm:$0xff] %vm1189, %v9294
        %9303 = vst.msk [vmem:[%s522 + $0x10] sm:$0xff] %vm1189, %v9295
        %9304 = vst.msk [vmem:[%s522 + $0x18] sm:$0xff] %vm1189, %v9296
        %9305 = vst.msk [vmem:[%s522 + $0x20] sm:$0xff] %vm1189, %v9297
        %9306 = vst.msk [vmem:[%s522 + $0x28] sm:$0xff] %vm1189, %v9298
        %9307 = vst.msk [vmem:[%s522 + $0x30] sm:$0xff] %vm1189, %v9299
        %9308 = vst.msk [vmem:[%s522 + $0x38] sm:$0xff] %vm1189, %v9300
        %s9309 = sand.u32 %s276, 1
        %s9310 = scalar_lea.sflag [#allocation8], %s9309
        %s9311 = sand.u32 %s276, 1
        %s9312 = smul.addr %s9311, 64
        %s9313 = scalar_lea.vmem [#allocation20], %s9312
        // Predicated region
        $region97: #{a_call__.1} parent=63 // pred_check
          %p9314 = pneg %p286
        $region98: #{a_call__.1} parent=63 // pred_check_branch
          %9316 = sbr.rel (%p9314) target = $region100
        $region99: #{a_call__.1} parent=63 // pred_region
          %9318 = vsyncadd %s9310, 0
          %s9319 = smul.addr %s32, 8
          %s9320 = smul.addr %s9319, 8
          %s9321 = scalar_lea.hbm %s11, %s9320
          %s9322 = sshll.u32 %s9313, 4
          %s9323 = int_to_ptr.vmem [resolvable:$true] %s9322
          %s9324 = sshll.u32 %s9321, 4
          %s9325 = int_to_ptr.hbm [resolvable:$true] %s9324
          %9330 = dma.vmem_to_hbm [thread:$0]  %s9323, 1024, %s9325, %s9310, 128, 128, 8
        $region100: #{a_call__.1} parent=63 // pred_fallthru
          _
      $region64: #{a_call__.1} parent=5 // pred_fallthru
        _
      %p9331 = scmp.le.s32.totalorder 2, %s27
      // Predicated region
      $region101: #{a_call__.1} parent=5 // pred_check
        %p9332 = pneg %p9331
      $region102: #{a_call__.1} parent=5 // pred_check_branch
        %9334 = sbr.rel (%p9332) target = $region104
      $region103: #{a_call__.1} parent=5 // pred_region
        %s9335 = ssub.s32 %s27, 2
        // Predicated region
        $region105: #{a_call__.1} parent=103 // pred_check
          %p9336 = pneg %p292
        $region106: #{a_call__.1} parent=103 // pred_check_branch
          %9338 = sbr.rel (%p9336) target = $region108
        $region107: #{a_call__.1} parent=103 // pred_region
          %s9339 = sand.u32 %s277, 1
          %s9340 = scalar_lea.sflag [#allocation8], %s9339
          %s9341 = sand.u32 %s277, 1
          %s9342 = smul.addr %s9341, 64
          %s9343 = scalar_lea.vmem [#allocation20], %s9342
          %9345 = dma.done %s9340, 1024
        $region108: #{a_call__.1} parent=103 // pred_fallthru
          _
      $region104: #{a_call__.1} parent=5 // pred_fallthru
        _
    $region6: #{a_call__.1} parent=1 // loop_footer
      %s31 = sadd.s32 1, %s27
    $region7: #{a_call__.1} parent=1 // loop_footer_branch
      %26 = sbr.rel target = $region3
    $region8: #{a_call__.1} parent=1 // loop_exit
      _
    %9346 = vsyncpa [#allocation7], 1
    %s9347 = scalar_lea.sflag [#allocation7], 1
    %9348 = vsyncpa %s9347, 1
    %9349 = vsyncpa [#allocation10], 1
    %9350 = vsyncpa [#allocation13], 1
    %9351 = vsyncpa [#allocation16], 1
    %9352 = vsyncpa [#allocation19], 1
    %9353 = vsyncpa [#allocation8], 1
    %s9354 = scalar_lea.sflag [#allocation8], 1
    %9355 = vsyncpa %s9354, 1

</llo_original>
